<compile_context>
chip_gen: v7x
topology: tpu7x:2x2x1
jax: 0.10.0
libtpu: 0.0.40
codegen_flags: <defaults>
</compile_context>

<pallas_src>
import jax
import jax.numpy as jnp
from jax.experimental import pallas as pl
from jax.experimental.pallas import tpu as pltpu


_VMEM = pl.BlockSpec(memory_space=pltpu.MemorySpace.VMEM)
_ANY = pl.BlockSpec(memory_space=pl.ANY)


# ---------------------------------------------------------------------------
# Kernel 1: conv1 (3x3, pad 1, Cin=1) + bias + ReLU + 2x2 maxpool
# ---------------------------------------------------------------------------

def _conv1_pool_kernel(cols_ref, w1_ref, b1_ref, o_ref):
    """cols: (4, 16, M)  quadrant-major / tap-major / pooled position on lanes
    w1:   (32, 16)     [cout, tap]  (taps zero-padded 9 -> 16)
    b1:   (32, 1)
    o:    (32, M)      channel-major pooled conv1 output, M = N*14*14
    """
    w1 = w1_ref[...]

    def quad(q):
        # (32,16) @ (16,M) on the MXU (idle otherwise in this stage).
        return jnp.dot(w1, cols_ref[q], preferred_element_type=jnp.float32)

    m01 = jnp.maximum(quad(0), quad(1))
    m23 = jnp.maximum(quad(2), quad(3))
    # bias once after the max; relu(max) == max(relu) for per-channel bias.
    pooled = jnp.maximum(m01, m23) + b1_ref[...]
    o_ref[...] = jnp.maximum(pooled, 0.0).astype(o_ref.dtype)


def conv1_pool(cols1, w1t, b1):
    m = cols1.shape[-1]
    return pl.pallas_call(
        _conv1_pool_kernel,
        out_shape=jax.ShapeDtypeStruct((32, m), jnp.float32),
        in_specs=[_VMEM, _VMEM, _VMEM],
        out_specs=_VMEM,
    )(cols1, w1t, b1)


# ---------------------------------------------------------------------------
# Kernel 2 (fused): conv2 + bias + ReLU + 2x2 maxpool + flatten + fc1 + ReLU + fc2
# ---------------------------------------------------------------------------

def _conv2_mlp_kernel(wb_ref, w2_ref, b2_ref, fc1w_hbm_ref, fc1b_ref,
                      fc2w_ref, fc2b_ref, o_ref, fc1w_vmem, dma_sem):
    """wb:   (M2, 512) f32  window bank of the padded conv1 activation
                            (16 windows x 32 channels), rows position-major:
                            row = (i*7 + j)*N + n
    w2:   (9, 32, 64) f32   conv2 weights [tap, cin, cout]
    b2:   (1, 64)  f32
    fc1w: (3136, 128) bf16  in HBM (manual DMA), rows ordered (i*7+j)*64 + c
    fc1b: (1, 128) f32
    fc2w: (128, 128) bf16   (output cols 10.. zero-padded -> lane-dense store)
    fc2b: (1, 128) f32
    o:    (N, 128) f32      padded logits
    """
    # Kick off the dominant fc1 weight DMA immediately so it overlaps the
    # conv2 compute; wait only right before the fc1 dots.
    fc1w_copy = pltpu.make_async_copy(fc1w_hbm_ref, fc1w_vmem, dma_sem)
    fc1w_copy.start()

    wb = wb_ref[...]
    w2 = w2_ref[...]

    def quadrant(p, q):
        acc = None
        for dy in range(3):
            for dx in range(3):
                s, t = p + dy, q + dx
                # window index: (row parity, col parity, row offset, col offset)
                w = (s % 2) * 8 + (t % 2) * 4 + (s // 2) * 2 + (t // 2)
                lhs = wb[:, 32 * w:32 * (w + 1)]                       # (M2, 32)
                part = jnp.dot(lhs, w2[dy * 3 + dx],
                               preferred_element_type=jnp.float32)     # (M2, 64)
                acc = part if acc is None else acc + part
        return acc

    m01 = jnp.maximum(quadrant(0, 0), quadrant(0, 1))
    m23 = jnp.maximum(quadrant(1, 0), quadrant(1, 1))
    pooled = jnp.maximum(jnp.maximum(m01, m23) + b2_ref[...], 0.0)     # (M2,64) f32

    fc1w_copy.wait()                           # fc1 weights now resident in VMEM

    n = o_ref.shape[0]                         # batch
    npos = pooled.shape[0] // n                # 49 pooled positions
    # fc1 as 49 contiguous K-blocks (one per pooled position): avoids any
    # in-kernel flatten/reshape; total MXU weight streaming is identical to a
    # single (N, 3136) x (3136, 128) dot at this tiny M.
    h = jnp.zeros((n, 128), jnp.float32)
    for pos in range(npos):
        lhs = pooled[pos * n:(pos + 1) * n, :].astype(jnp.bfloat16)    # (N, 64)
        wblk = fc1w_vmem[pos * 64:(pos + 1) * 64, :]                   # (64, 128)
        h = h + jnp.dot(lhs, wblk, preferred_element_type=jnp.float32)
    h = jnp.maximum(h + fc1b_ref[...], 0.0)
    y = jnp.dot(h.astype(jnp.bfloat16), fc2w_ref[...],
                preferred_element_type=jnp.float32) + fc2b_ref[...]
    o_ref[...] = y.astype(o_ref.dtype)


def conv2_mlp(wb, w2, b2, fc1_w, fc1_b, fc2_w, fc2_b, *, batch):
    return pl.pallas_call(
        _conv2_mlp_kernel,
        out_shape=jax.ShapeDtypeStruct((batch, 128), jnp.float32),
        in_specs=[_VMEM, _VMEM, _VMEM, _ANY, _VMEM, _VMEM, _VMEM],
        out_specs=_VMEM,
        scratch_shapes=[pltpu.VMEM(fc1_w.shape, fc1_w.dtype),
                        pltpu.SemaphoreType.DMA],
    )(wb, w2, b2, fc1_w, fc1_b, fc2_w, fc2_b)


# ---------------------------------------------------------------------------
# XLA glue (inside jit): lane-dense im2col for conv1, window bank for conv2
# ---------------------------------------------------------------------------

def _conv1_im2col_quadrants(x_nhw):
    """(N, 28, 28) -> (4, 16, N*196): pool-quadrant major, tap major, pooled
    output position (n, i, j) on the lane axis.  Tap dim zero-padded 9 -> 16
    so the MXU contraction dim is sublane-aligned."""
    n = x_nhw.shape[0]
    xp = jnp.pad(x_nhw, ((0, 0), (1, 1), (1, 1)))                  # (N, 30, 30)
    rows = []
    for p in range(2):
        for q in range(2):
            for dy in range(3):
                for dx in range(3):
                    tap = xp[:, p + dy:p + dy + 28:2, q + dx:q + dx + 28:2]
                    rows.append(tap.reshape(1, n * 196))
    cols = jnp.concatenate(rows, axis=0).reshape(4, 9, n * 196)
    return jnp.pad(cols, ((0, 0), (0, 7), (0, 0)))


def _conv2_window_bank(y1_cm, batch):
    """(32, N*196) channel-major pooled conv1 output -> (N*49, 512) bank.

    The padded conv2 input only ever gets sampled at 16 distinct
    (row-parity, col-parity, row-offset, col-offset) windows across all
    4 pool quadrants x 9 taps; materialize exactly those (2.25x smaller than
    a full im2col), position-major rows, channel-minor columns."""
    n = batch
    y1 = jnp.transpose(y1_cm.reshape(32, n, 14, 14), (1, 2, 3, 0))  # NHWC
    y1p = jnp.pad(y1, ((0, 0), (1, 1), (1, 1), (0, 0)))             # (N,16,16,32)
    windows = []
    for a in range(2):
        for b in range(2):
            plane = y1p[:, a::2, b::2, :]                           # (N,8,8,32)
            for r0 in range(2):
                for c0 in range(2):
                    win = plane[:, r0:r0 + 7, c0:c0 + 7, :]         # (N,7,7,32)
                    win = jnp.transpose(win, (1, 2, 0, 3))          # (7,7,N,32)
                    windows.append(win.reshape(n * 49, 32))
    return jnp.concatenate(windows, axis=-1)                        # (N*49, 512)


# ---------------------------------------------------------------------------
# One-time parameter preparation (hoisted out of the hot path)
# ---------------------------------------------------------------------------

def prepare_params(params):
    # conv1: OIHW (32,1,3,3) -> (cout, tap) = (32, 9), taps zero-padded to 16.
    w1t = jnp.pad(params["w1"].reshape(32, 9).astype(jnp.float32), ((0, 0), (0, 7)))
    b1 = params["b1"].reshape(32, 1).astype(jnp.float32)
    # conv2: OIHW (64,32,3,3) -> (tap, cin, cout) = (9, 32, 64).
    w2 = jnp.transpose(params["w2"], (2, 3, 1, 0)).reshape(9, 32, 64).astype(jnp.float32)
    b2 = params["b2"].reshape(1, 64).astype(jnp.float32)
    # fc1: permute rows from torch's NCHW flatten (c,h,w) to our
    # position-major / channel-minor order (h,w,c), transpose to (K, N), and
    # cast to bf16 (halves the dominant weight DMA; accumulation stays f32).
    fc1_w = params["fc1_w"].reshape(128, 64, 7, 7)
    fc1_w = jnp.transpose(fc1_w, (2, 3, 1, 0)).reshape(49 * 64, 128).astype(jnp.bfloat16)
    fc1_b = params["fc1_b"].reshape(1, 128).astype(jnp.float32)
    # fc2: (K, N) with output cols zero-padded 10 -> 128 (lane-dense store).
    fc2_w = jnp.zeros((128, 128), jnp.bfloat16).at[:, :10].set(
        params["fc2_w"].T.astype(jnp.bfloat16))
    fc2_b = jnp.zeros((1, 128), jnp.float32).at[:, :10].set(params["fc2_b"])
    return {"w1t": w1t, "b1": b1, "w2": w2, "b2": b2,
            "fc1_w": fc1_w, "fc1_b": fc1_b, "fc2_w": fc2_w, "fc2_b": fc2_b}


# ---------------------------------------------------------------------------
# Full forward pass (matches NumberRecognitionCNN.forward), jitted
# ---------------------------------------------------------------------------

@jax.jit
def forward(x_nchw, p):
    n = x_nchw.shape[0]
    cols1 = _conv1_im2col_quadrants(x_nchw[:, 0, :, :])             # (4,16,N*196)
    y1_cm = conv1_pool(cols1, p["w1t"], p["b1"])                    # (32, N*196)
    wb = _conv2_window_bank(y1_cm, n)                               # (N*49, 512)
    logits = conv2_mlp(wb, p["w2"], p["b2"], p["fc1_w"], p["fc1_b"],
                       p["fc2_w"], p["fc2_b"], batch=n)             # (N, 128)
    return logits[:, :10]


# ---------------------------------------------------------------------------
# Pure-JAX reference (for correctness check)
# ---------------------------------------------------------------------------

def reference_forward(x, params):
    dn = ("NCHW", "OIHW", "NCHW")
    y = jax.lax.conv_general_dilated(x, params["w1"], (1, 1), ((1, 1), (1, 1)),
                                     dimension_numbers=dn)
    y = jax.nn.relu(y + params["b1"][None, :, None, None])
    y = jax.lax.reduce_window(y, -jnp.inf, jax.lax.max, (1, 1, 2, 2), (1, 1, 2, 2), "VALID")
    y = jax.lax.conv_general_dilated(y, params["w2"], (1, 1), ((1, 1), (1, 1)),
                                     dimension_numbers=dn)
    y = jax.nn.relu(y + params["b2"][None, :, None, None])
    y = jax.lax.reduce_window(y, -jnp.inf, jax.lax.max, (1, 1, 2, 2), (1, 1, 2, 2), "VALID")
    y = y.reshape(y.shape[0], -1)
    y = jax.nn.relu(y @ params["fc1_w"].T + params["fc1_b"])
    y = y @ params["fc2_w"].T + params["fc2_b"]
    return y


# ---------------------------------------------------------------------------
# Main
# ---------------------------------------------------------------------------

if __name__ == "__main__":
    key = jax.random.PRNGKey(0)
    kx, k1, k2, k3, k4, k5, k6, k7, k8 = jax.random.split(key, 9)

    # MNIST-sized input implied by fc1 = Linear(64*7*7, 128): (N, 1, 28, 28)
    x = jax.random.normal(kx, (2, 1, 28, 28), dtype=jnp.float32)

    params = {
        "w1": jax.random.normal(k1, (32, 1, 3, 3), dtype=jnp.float32) * 0.1,
        "b1": jax.random.normal(k2, (32,), dtype=jnp.float32) * 0.1,
        "w2": jax.random.normal(k3, (64, 32, 3, 3), dtype=jnp.float32) * 0.05,
        "b2": jax.random.normal(k4, (64,), dtype=jnp.float32) * 0.05,
        "fc1_w": jax.random.normal(k5, (128, 64 * 7 * 7), dtype=jnp.float32) * 0.01,
        "fc1_b": jax.random.normal(k6, (128,), dtype=jnp.float32) * 0.01,
        "fc2_w": jax.random.normal(k7, (10, 128), dtype=jnp.float32) * 0.05,
        "fc2_b": jax.random.normal(k8, (10,), dtype=jnp.float32) * 0.05,
    }

    prepped = prepare_params(params)   # one-time weight prep, outside the hot path

    out = jax.block_until_ready(forward(x, prepped))
    assert out.shape == (2, 10) and out.dtype == jnp.float32

    ref = jax.block_until_ready(reference_forward(x, params))
    assert jnp.allclose(out, ref, rtol=1e-2, atol=1e-2), (out, ref)

    print("KERNEL_OK")
</pallas_src>

<mosaic_0001>
module attributes {stable_mosaic.version = 11 : i64} {
  func.func @_conv1_pool_kernel(%arg0: memref<4x16x392xf32, #tpu.memory_space<vmem>>, %arg1: memref<32x16xf32, #tpu.memory_space<vmem>>, %arg2: memref<32x1xf32, #tpu.memory_space<vmem>>, %arg3: memref<32x392xf32, #tpu.memory_space<vmem>>) attributes {dimension_semantics = [], scalar_prefetch = 0 : i64, scratch_operands = 0 : i64, tpu.core_type = #tpu.core_type<tc>} {
    %c0 = arith.constant 0 : index
    %c0_0 = arith.constant 0 : index
    %0 = vector.load %arg1[%c0, %c0_0] : memref<32x16xf32, #tpu.memory_space<vmem>>, vector<32x16xf32>
    %c0_1 = arith.constant 0 : index
    %c0_2 = arith.constant 0 : index
    %c0_3 = arith.constant 0 : index
    %1 = vector.load %arg0[%c0_1, %c0_2, %c0_3] : memref<4x16x392xf32, #tpu.memory_space<vmem>>, vector<1x16x392xf32>
    %2 = vector.shape_cast %1 : vector<1x16x392xf32> to vector<16x392xf32>
    %cst = arith.constant dense<0.000000e+00> : vector<32x392xf32>
    %3 = tpu.matmul %0, %2, %cst {dimension_numbers = #tpu.dot_dimension_numbers<[1], [0], [0], [1], [0, 0, 1, 1], [], []>} : vector<32x16xf32>, vector<16x392xf32>, vector<32x392xf32> -> vector<32x392xf32>
    %c1 = arith.constant 1 : index
    %c0_4 = arith.constant 0 : index
    %c0_5 = arith.constant 0 : index
    %4 = vector.load %arg0[%c1, %c0_4, %c0_5] : memref<4x16x392xf32, #tpu.memory_space<vmem>>, vector<1x16x392xf32>
    %5 = vector.shape_cast %4 : vector<1x16x392xf32> to vector<16x392xf32>
    %cst_6 = arith.constant dense<0.000000e+00> : vector<32x392xf32>
    %6 = tpu.matmul %0, %5, %cst_6 {dimension_numbers = #tpu.dot_dimension_numbers<[1], [0], [0], [1], [0, 0, 1, 1], [], []>} : vector<32x16xf32>, vector<16x392xf32>, vector<32x392xf32> -> vector<32x392xf32>
    %7 = arith.maximumf %3, %6 : vector<32x392xf32>
    %c2 = arith.constant 2 : index
    %c0_7 = arith.constant 0 : index
    %c0_8 = arith.constant 0 : index
    %8 = vector.load %arg0[%c2, %c0_7, %c0_8] : memref<4x16x392xf32, #tpu.memory_space<vmem>>, vector<1x16x392xf32>
    %9 = vector.shape_cast %8 : vector<1x16x392xf32> to vector<16x392xf32>
    %cst_9 = arith.constant dense<0.000000e+00> : vector<32x392xf32>
    %10 = tpu.matmul %0, %9, %cst_9 {dimension_numbers = #tpu.dot_dimension_numbers<[1], [0], [0], [1], [0, 0, 1, 1], [], []>} : vector<32x16xf32>, vector<16x392xf32>, vector<32x392xf32> -> vector<32x392xf32>
    %c3 = arith.constant 3 : index
    %c0_10 = arith.constant 0 : index
    %c0_11 = arith.constant 0 : index
    %11 = vector.load %arg0[%c3, %c0_10, %c0_11] : memref<4x16x392xf32, #tpu.memory_space<vmem>>, vector<1x16x392xf32>
    %12 = vector.shape_cast %11 : vector<1x16x392xf32> to vector<16x392xf32>
    %cst_12 = arith.constant dense<0.000000e+00> : vector<32x392xf32>
    %13 = tpu.matmul %0, %12, %cst_12 {dimension_numbers = #tpu.dot_dimension_numbers<[1], [0], [0], [1], [0, 0, 1, 1], [], []>} : vector<32x16xf32>, vector<16x392xf32>, vector<32x392xf32> -> vector<32x392xf32>
    %14 = arith.maximumf %10, %13 : vector<32x392xf32>
    %15 = arith.maximumf %7, %14 : vector<32x392xf32>
    %c0_13 = arith.constant 0 : index
    %c0_14 = arith.constant 0 : index
    %16 = vector.load %arg2[%c0_13, %c0_14] : memref<32x1xf32, #tpu.memory_space<vmem>>, vector<32x1xf32>
    %17 = vector.broadcast %16 : vector<32x1xf32> to vector<32x392xf32>
    %18 = arith.addf %15, %17 : vector<32x392xf32>
    %cst_15 = arith.constant 0.000000e+00 : f32
    %19 = vector.broadcast %cst_15 : f32 to vector<32x392xf32>
    %20 = arith.maximumf %18, %19 : vector<32x392xf32>
    %c0_16 = arith.constant 0 : index
    %c0_17 = arith.constant 0 : index
    %21 = vector.load %arg3[%c0_16, %c0_17] : memref<32x392xf32, #tpu.memory_space<vmem>>, vector<32x392xf32>
    tpu.vector_store %arg3[%c0_16, %c0_17], %20 {strides = array<i32>} : memref<32x392xf32, #tpu.memory_space<vmem>>, vector<32x392xf32>,
    return
  }
}

module attributes {stable_mosaic.version = 11 : i64} {
  func.func @_conv2_mlp_kernel(%arg0: memref<98x512xf32, #tpu.memory_space<vmem>>, %arg1: memref<9x32x64xf32, #tpu.memory_space<vmem>>, %arg2: memref<1x64xf32, #tpu.memory_space<vmem>>, %arg3: memref<3136x128xbf16, #tpu.memory_space<any>>, %arg4: memref<1x128xf32, #tpu.memory_space<vmem>>, %arg5: memref<128x128xbf16, #tpu.memory_space<vmem>>, %arg6: memref<1x128xf32, #tpu.memory_space<vmem>>, %arg7: memref<2x128xf32, #tpu.memory_space<vmem>>, %arg8: memref<3136x128xbf16, #tpu.memory_space<vmem>>, %arg9: memref<!tpu.dma_semaphore, #tpu.memory_space<semaphore_mem>>) attributes {dimension_semantics = [], scalar_prefetch = 0 : i64, scratch_operands = 2 : i64, tpu.core_type = #tpu.core_type<tc>} {
    tpu.enqueue_dma source(%arg3 : memref<3136x128xbf16, #tpu.memory_space<any>>) target(%arg8 : memref<3136x128xbf16, #tpu.memory_space<vmem>>) target_semaphore(%arg9 : memref<!tpu.dma_semaphore, #tpu.memory_space<semaphore_mem>>)
    %c0 = arith.constant 0 : index
    %c0_0 = arith.constant 0 : index
    %0 = vector.load %arg0[%c0, %c0_0] : memref<98x512xf32, #tpu.memory_space<vmem>>, vector<98x512xf32>
    %c0_1 = arith.constant 0 : index
    %c0_2 = arith.constant 0 : index
    %c0_3 = arith.constant 0 : index
    %1 = vector.load %arg1[%c0_1, %c0_2, %c0_3] : memref<9x32x64xf32, #tpu.memory_space<vmem>>, vector<9x32x64xf32>
    %2 = vector.extract_strided_slice %0 {offsets = [0, 0], sizes = [98, 32], strides = [1, 1]} : vector<98x512xf32> to vector<98x32xf32>
    %3 = vector.extract_strided_slice %1 {offsets = [0, 0, 0], sizes = [1, 32, 64], strides = [1, 1, 1]} : vector<9x32x64xf32> to vector<1x32x64xf32>
    %4 = vector.shape_cast %3 : vector<1x32x64xf32> to vector<32x64xf32>
    %cst = arith.constant dense<0.000000e+00> : vector<98x64xf32>
    %5 = tpu.matmul %2, %4, %cst {dimension_numbers = #tpu.dot_dimension_numbers<[1], [0], [0], [1], [0, 0, 1, 1], [], []>} : vector<98x32xf32>, vector<32x64xf32>, vector<98x64xf32> -> vector<98x64xf32>
    %6 = vector.extract_strided_slice %0 {offsets = [0, 128], sizes = [98, 32], strides = [1, 1]} : vector<98x512xf32> to vector<98x32xf32>
    %7 = vector.extract_strided_slice %1 {offsets = [1, 0, 0], sizes = [1, 32, 64], strides = [1, 1, 1]} : vector<9x32x64xf32> to vector<1x32x64xf32>
    %8 = vector.shape_cast %7 : vector<1x32x64xf32> to vector<32x64xf32>
    %cst_4 = arith.constant dense<0.000000e+00> : vector<98x64xf32>
    %9 = tpu.matmul %6, %8, %cst_4 {dimension_numbers = #tpu.dot_dimension_numbers<[1], [0], [0], [1], [0, 0, 1, 1], [], []>} : vector<98x32xf32>, vector<32x64xf32>, vector<98x64xf32> -> vector<98x64xf32>
    %10 = arith.addf %5, %9 : vector<98x64xf32>
    %11 = vector.extract_strided_slice %0 {offsets = [0, 32], sizes = [98, 32], strides = [1, 1]} : vector<98x512xf32> to vector<98x32xf32>
    %12 = vector.extract_strided_slice %1 {offsets = [2, 0, 0], sizes = [1, 32, 64], strides = [1, 1, 1]} : vector<9x32x64xf32> to vector<1x32x64xf32>
    %13 = vector.shape_cast %12 : vector<1x32x64xf32> to vector<32x64xf32>
    %cst_5 = arith.constant dense<0.000000e+00> : vector<98x64xf32>
    %14 = tpu.matmul %11, %13, %cst_5 {dimension_numbers = #tpu.dot_dimension_numbers<[1], [0], [0], [1], [0, 0, 1, 1], [], []>} : vector<98x32xf32>, vector<32x64xf32>, vector<98x64xf32> -> vector<98x64xf32>
    %15 = arith.addf %10, %14 : vector<98x64xf32>
    %16 = vector.extract_strided_slice %0 {offsets = [0, 256], sizes = [98, 32], strides = [1, 1]} : vector<98x512xf32> to vector<98x32xf32>
    %17 = vector.extract_strided_slice %1 {offsets = [3, 0, 0], sizes = [1, 32, 64], strides = [1, 1, 1]} : vector<9x32x64xf32> to vector<1x32x64xf32>
    %18 = vector.shape_cast %17 : vector<1x32x64xf32> to vector<32x64xf32>
    %cst_6 = arith.constant dense<0.000000e+00> : vector<98x64xf32>
    %19 = tpu.matmul %16, %18, %cst_6 {dimension_numbers = #tpu.dot_dimension_numbers<[1], [0], [0], [1], [0, 0, 1, 1], [], []>} : vector<98x32xf32>, vector<32x64xf32>, vector<98x64xf32> -> vector<98x64xf32>
    %20 = arith.addf %15, %19 : vector<98x64xf32>
    %21 = vector.extract_strided_slice %0 {offsets = [0, 384], sizes = [98, 32], strides = [1, 1]} : vector<98x512xf32> to vector<98x32xf32>
    %22 = vector.extract_strided_slice %1 {offsets = [4, 0, 0], sizes = [1, 32, 64], strides = [1, 1, 1]} : vector<9x32x64xf32> to vector<1x32x64xf32>
    %23 = vector.shape_cast %22 : vector<1x32x64xf32> to vector<32x64xf32>
    %cst_7 = arith.constant dense<0.000000e+00> : vector<98x64xf32>
    %24 = tpu.matmul %21, %23, %cst_7 {dimension_numbers = #tpu.dot_dimension_numbers<[1], [0], [0], [1], [0, 0, 1, 1], [], []>} : vector<98x32xf32>, vector<32x64xf32>, vector<98x64xf32> -> vector<98x64xf32>
    %25 = arith.addf %20, %24 : vector<98x64xf32>
    %26 = vector.extract_strided_slice %0 {offsets = [0, 288], sizes = [98, 32], strides = [1, 1]} : vector<98x512xf32> to vector<98x32xf32>
    %27 = vector.extract_strided_slice %1 {offsets = [5, 0, 0], sizes = [1, 32, 64], strides = [1, 1, 1]} : vector<9x32x64xf32> to vector<1x32x64xf32>
    %28 = vector.shape_cast %27 : vector<1x32x64xf32> to vector<32x64xf32>
    %cst_8 = arith.constant dense<0.000000e+00> : vector<98x64xf32>
    %29 = tpu.matmul %26, %28, %cst_8 {dimension_numbers = #tpu.dot_dimension_numbers<[1], [0], [0], [1], [0, 0, 1, 1], [], []>} : vector<98x32xf32>, vector<32x64xf32>, vector<98x64xf32> -> vector<98x64xf32>
    %30 = arith.addf %25, %29 : vector<98x64xf32>
    %31 = vector.extract_strided_slice %0 {offsets = [0, 64], sizes = [98, 32], strides = [1, 1]} : vector<98x512xf32> to vector<98x32xf32>
    %32 = vector.extract_strided_slice %1 {offsets = [6, 0, 0], sizes = [1, 32, 64], strides = [1, 1, 1]} : vector<9x32x64xf32> to vector<1x32x64xf32>
    %33 = vector.shape_cast %32 : vector<1x32x64xf32> to vector<32x64xf32>
    %cst_9 = arith.constant dense<0.000000e+00> : vector<98x64xf32>
    %34 = tpu.matmul %31, %33, %cst_9 {dimension_numbers = #tpu.dot_dimension_numbers<[1], [0], [0], [1], [0, 0, 1, 1], [], []>} : vector<98x32xf32>, vector<32x64xf32>, vector<98x64xf32> -> vector<98x64xf32>
    %35 = arith.addf %30, %34 : vector<98x64xf32>
    %36 = vector.extract_strided_slice %0 {offsets = [0, 192], sizes = [98, 32], strides = [1, 1]} : vector<98x512xf32> to vector<98x32xf32>
    %37 = vector.extract_strided_slice %1 {offsets = [7, 0, 0], sizes = [1, 32, 64], strides = [1, 1, 1]} : vector<9x32x64xf32> to vector<1x32x64xf32>
    %38 = vector.shape_cast %37 : vector<1x32x64xf32> to vector<32x64xf32>
    %cst_10 = arith.constant dense<0.000000e+00> : vector<98x64xf32>
    %39 = tpu.matmul %36, %38, %cst_10 {dimension_numbers = #tpu.dot_dimension_numbers<[1], [0], [0], [1], [0, 0, 1, 1], [], []>} : vector<98x32xf32>, vector<32x64xf32>, vector<98x64xf32> -> vector<98x64xf32>
    %40 = arith.addf %35, %39 : vector<98x64xf32>
    %41 = vector.extract_strided_slice %0 {offsets = [0, 96], sizes = [98, 32], strides = [1, 1]} : vector<98x512xf32> to vector<98x32xf32>
    %42 = vector.extract_strided_slice %1 {offsets = [8, 0, 0], sizes = [1, 32, 64], strides = [1, 1, 1]} : vector<9x32x64xf32> to vector<1x32x64xf32>
    %43 = vector.shape_cast %42 : vector<1x32x64xf32> to vector<32x64xf32>
    %cst_11 = arith.constant dense<0.000000e+00> : vector<98x64xf32>
    %44 = tpu.matmul %41, %43, %cst_11 {dimension_numbers = #tpu.dot_dimension_numbers<[1], [0], [0], [1], [0, 0, 1, 1], [], []>} : vector<98x32xf32>, vector<32x64xf32>, vector<98x64xf32> -> vector<98x64xf32>
    %45 = arith.addf %40, %44 : vector<98x64xf32>
    %46 = vector.extract_strided_slice %0 {offsets = [0, 128], sizes = [98, 32], strides = [1, 1]} : vector<98x512xf32> to vector<98x32xf32>
    %47 = vector.extract_strided_slice %1 {offsets = [0, 0, 0], sizes = [1, 32, 64], strides = [1, 1, 1]} : vector<9x32x64xf32> to vector<1x32x64xf32>
    %48 = vector.shape_cast %47 : vector<1x32x64xf32> to vector<32x64xf32>
    %cst_12 = arith.constant dense<0.000000e+00> : vector<98x64xf32>
    %49 = tpu.matmul %46, %48, %cst_12 {dimension_numbers = #tpu.dot_dimension_numbers<[1], [0], [0], [1], [0, 0, 1, 1], [], []>} : vector<98x32xf32>, vector<32x64xf32>, vector<98x64xf32> -> vector<98x64xf32>
    %50 = vector.extract_strided_slice %0 {offsets = [0, 32], sizes = [98, 32], strides = [1, 1]} : vector<98x512xf32> to vector<98x32xf32>
    %51 = vector.extract_strided_slice %1 {offsets = [1, 0, 0], sizes = [1, 32, 64], strides = [1, 1, 1]} : vector<9x32x64xf32> to vector<1x32x64xf32>
    %52 = vector.shape_cast %51 : vector<1x32x64xf32> to vector<32x64xf32>
    %cst_13 = arith.constant dense<0.000000e+00> : vector<98x64xf32>
    %53 = tpu.matmul %50, %52, %cst_13 {dimension_numbers = #tpu.dot_dimension_numbers<[1], [0], [0], [1], [0, 0, 1, 1], [], []>} : vector<98x32xf32>, vector<32x64xf32>, vector<98x64xf32> -> vector<98x64xf32>
    %54 = arith.addf %49, %53 : vector<98x64xf32>
    %55 = vector.extract_strided_slice %0 {offsets = [0, 160], sizes = [98, 32], strides = [1, 1]} : vector<98x512xf32> to vector<98x32xf32>
    %56 = vector.extract_strided_slice %1 {offsets = [2, 0, 0], sizes = [1, 32, 64], strides = [1, 1, 1]} : vector<9x32x64xf32> to vector<1x32x64xf32>
    %57 = vector.shape_cast %56 : vector<1x32x64xf32> to vector<32x64xf32>
    %cst_14 = arith.constant dense<0.000000e+00> : vector<98x64xf32>
    %58 = tpu.matmul %55, %57, %cst_14 {dimension_numbers = #tpu.dot_dimension_numbers<[1], [0], [0], [1], [0, 0, 1, 1], [], []>} : vector<98x32xf32>, vector<32x64xf32>, vector<98x64xf32> -> vector<98x64xf32>
    %59 = arith.addf %54, %58 : vector<98x64xf32>
    %60 = vector.extract_strided_slice %0 {offsets = [0, 384], sizes = [98, 32], strides = [1, 1]} : vector<98x512xf32> to vector<98x32xf32>
    %61 = vector.extract_strided_slice %1 {offsets = [3, 0, 0], sizes = [1, 32, 64], strides = [1, 1, 1]} : vector<9x32x64xf32> to vector<1x32x64xf32>
    %62 = vector.shape_cast %61 : vector<1x32x64xf32> to vector<32x64xf32>
    %cst_15 = arith.constant dense<0.000000e+00> : vector<98x64xf32>
    %63 = tpu.matmul %60, %62, %cst_15 {dimension_numbers = #tpu.dot_dimension_numbers<[1], [0], [0], [1], [0, 0, 1, 1], [], []>} : vector<98x32xf32>, vector<32x64xf32>, vector<98x64xf32> -> vector<98x64xf32>
    %64 = arith.addf %59, %63 : vector<98x64xf32>
    %65 = vector.extract_strided_slice %0 {offsets = [0, 288], sizes = [98, 32], strides = [1, 1]} : vector<98x512xf32> to vector<98x32xf32>
    %66 = vector.extract_strided_slice %1 {offsets = [4, 0, 0], sizes = [1, 32, 64], strides = [1, 1, 1]} : vector<9x32x64xf32> to vector<1x32x64xf32>
    %67 = vector.shape_cast %66 : vector<1x32x64xf32> to vector<32x64xf32>
    %cst_16 = arith.constant dense<0.000000e+00> : vector<98x64xf32>
    %68 = tpu.matmul %65, %67, %cst_16 {dimension_numbers = #tpu.dot_dimension_numbers<[1], [0], [0], [1], [0, 0, 1, 1], [], []>} : vector<98x32xf32>, vector<32x64xf32>, vector<98x64xf32> -> vector<98x64xf32>
    %69 = arith.addf %64, %68 : vector<98x64xf32>
    %70 = vector.extract_strided_slice %0 {offsets = [0, 416], sizes = [98, 32], strides = [1, 1]} : vector<98x512xf32> to vector<98x32xf32>
    %71 = vector.extract_strided_slice %1 {offsets = [5, 0, 0], sizes = [1, 32, 64], strides = [1, 1, 1]} : vector<9x32x64xf32> to vector<1x32x64xf32>
    %72 = vector.shape_cast %71 : vector<1x32x64xf32> to vector<32x64xf32>
    %cst_17 = arith.constant dense<0.000000e+00> : vector<98x64xf32>
    %73 = tpu.matmul %70, %72, %cst_17 {dimension_numbers = #tpu.dot_dimension_numbers<[1], [0], [0], [1], [0, 0, 1, 1], [], []>} : vector<98x32xf32>, vector<32x64xf32>, vector<98x64xf32> -> vector<98x64xf32>
    %74 = arith.addf %69, %73 : vector<98x64xf32>
    %75 = vector.extract_strided_slice %0 {offsets = [0, 192], sizes = [98, 32], strides = [1, 1]} : vector<98x512xf32> to vector<98x32xf32>
    %76 = vector.extract_strided_slice %1 {offsets = [6, 0, 0], sizes = [1, 32, 64], strides = [1, 1, 1]} : vector<9x32x64xf32> to vector<1x32x64xf32>
    %77 = vector.shape_cast %76 : vector<1x32x64xf32> to vector<32x64xf32>
    %cst_18 = arith.constant dense<0.000000e+00> : vector<98x64xf32>
    %78 = tpu.matmul %75, %77, %cst_18 {dimension_numbers = #tpu.dot_dimension_numbers<[1], [0], [0], [1], [0, 0, 1, 1], [], []>} : vector<98x32xf32>, vector<32x64xf32>, vector<98x64xf32> -> vector<98x64xf32>
    %79 = arith.addf %74, %78 : vector<98x64xf32>
    %80 = vector.extract_strided_slice %0 {offsets = [0, 96], sizes = [98, 32], strides = [1, 1]} : vector<98x512xf32> to vector<98x32xf32>
    %81 = vector.extract_strided_slice %1 {offsets = [7, 0, 0], sizes = [1, 32, 64], strides = [1, 1, 1]} : vector<9x32x64xf32> to vector<1x32x64xf32>
    %82 = vector.shape_cast %81 : vector<1x32x64xf32> to vector<32x64xf32>
    %cst_19 = arith.constant dense<0.000000e+00> : vector<98x64xf32>
    %83 = tpu.matmul %80, %82, %cst_19 {dimension_numbers = #tpu.dot_dimension_numbers<[1], [0], [0], [1], [0, 0, 1, 1], [], []>} : vector<98x32xf32>, vector<32x64xf32>, vector<98x64xf32> -> vector<98x64xf32>
    %84 = arith.addf %79, %83 : vector<98x64xf32>
    %85 = vector.extract_strided_slice %0 {offsets = [0, 224], sizes = [98, 32], strides = [1, 1]} : vector<98x512xf32> to vector<98x32xf32>
    %86 = vector.extract_strided_slice %1 {offsets = [8, 0, 0], sizes = [1, 32, 64], strides = [1, 1, 1]} : vector<9x32x64xf32> to vector<1x32x64xf32>
    %87 = vector.shape_cast %86 : vector<1x32x64xf32> to vector<32x64xf32>
    %cst_20 = arith.constant dense<0.000000e+00> : vector<98x64xf32>
    %88 = tpu.matmul %85, %87, %cst_20 {dimension_numbers = #tpu.dot_dimension_numbers<[1], [0], [0], [1], [0, 0, 1, 1], [], []>} : vector<98x32xf32>, vector<32x64xf32>, vector<98x64xf32> -> vector<98x64xf32>
    %89 = arith.addf %84, %88 : vector<98x64xf32>
    %90 = arith.maximumf %45, %89 : vector<98x64xf32>
    %91 = vector.extract_strided_slice %0 {offsets = [0, 256], sizes = [98, 32], strides = [1, 1]} : vector<98x512xf32> to vector<98x32xf32>
    %92 = vector.extract_strided_slice %1 {offsets = [0, 0, 0], sizes = [1, 32, 64], strides = [1, 1, 1]} : vector<9x32x64xf32> to vector<1x32x64xf32>
    %93 = vector.shape_cast %92 : vector<1x32x64xf32> to vector<32x64xf32>
    %cst_21 = arith.constant dense<0.000000e+00> : vector<98x64xf32>
    %94 = tpu.matmul %91, %93, %cst_21 {dimension_numbers = #tpu.dot_dimension_numbers<[1], [0], [0], [1], [0, 0, 1, 1], [], []>} : vector<98x32xf32>, vector<32x64xf32>, vector<98x64xf32> -> vector<98x64xf32>
    %95 = vector.extract_strided_slice %0 {offsets = [0, 384], sizes = [98, 32], strides = [1, 1]} : vector<98x512xf32> to vector<98x32xf32>
    %96 = vector.extract_strided_slice %1 {offsets = [1, 0, 0], sizes = [1, 32, 64], strides = [1, 1, 1]} : vector<9x32x64xf32> to vector<1x32x64xf32>
    %97 = vector.shape_cast %96 : vector<1x32x64xf32> to vector<32x64xf32>
    %cst_22 = arith.constant dense<0.000000e+00> : vector<98x64xf32>
    %98 = tpu.matmul %95, %97, %cst_22 {dimension_numbers = #tpu.dot_dimension_numbers<[1], [0], [0], [1], [0, 0, 1, 1], [], []>} : vector<98x32xf32>, vector<32x64xf32>, vector<98x64xf32> -> vector<98x64xf32>
    %99 = arith.addf %94, %98 : vector<98x64xf32>
    %100 = vector.extract_strided_slice %0 {offsets = [0, 288], sizes = [98, 32], strides = [1, 1]} : vector<98x512xf32> to vector<98x32xf32>
    %101 = vector.extract_strided_slice %1 {offsets = [2, 0, 0], sizes = [1, 32, 64], strides = [1, 1, 1]} : vector<9x32x64xf32> to vector<1x32x64xf32>
    %102 = vector.shape_cast %101 : vector<1x32x64xf32> to vector<32x64xf32>
    %cst_23 = arith.constant dense<0.000000e+00> : vector<98x64xf32>
    %103 = tpu.matmul %100, %102, %cst_23 {dimension_numbers = #tpu.dot_dimension_numbers<[1], [0], [0], [1], [0, 0, 1, 1], [], []>} : vector<98x32xf32>, vector<32x64xf32>, vector<98x64xf32> -> vector<98x64xf32>
    %104 = arith.addf %99, %103 : vector<98x64xf32>
    %105 = vector.extract_strided_slice %0 {offsets = [0, 64], sizes = [98, 32], strides = [1, 1]} : vector<98x512xf32> to vector<98x32xf32>
    %106 = vector.extract_strided_slice %1 {offsets = [3, 0, 0], sizes = [1, 32, 64], strides = [1, 1, 1]} : vector<9x32x64xf32> to vector<1x32x64xf32>
    %107 = vector.shape_cast %106 : vector<1x32x64xf32> to vector<32x64xf32>
    %cst_24 = arith.constant dense<0.000000e+00> : vector<98x64xf32>
    %108 = tpu.matmul %105, %107, %cst_24 {dimension_numbers = #tpu.dot_dimension_numbers<[1], [0], [0], [1], [0, 0, 1, 1], [], []>} : vector<98x32xf32>, vector<32x64xf32>, vector<98x64xf32> -> vector<98x64xf32>
    %109 = arith.addf %104, %108 : vector<98x64xf32>
    %110 = vector.extract_strided_slice %0 {offsets = [0, 192], sizes = [98, 32], strides = [1, 1]} : vector<98x512xf32> to vector<98x32xf32>
    %111 = vector.extract_strided_slice %1 {offsets = [4, 0, 0], sizes = [1, 32, 64], strides = [1, 1, 1]} : vector<9x32x64xf32> to vector<1x32x64xf32>
    %112 = vector.shape_cast %111 : vector<1x32x64xf32> to vector<32x64xf32>
    %cst_25 = arith.constant dense<0.000000e+00> : vector<98x64xf32>
    %113 = tpu.matmul %110, %112, %cst_25 {dimension_numbers = #tpu.dot_dimension_numbers<[1], [0], [0], [1], [0, 0, 1, 1], [], []>} : vector<98x32xf32>, vector<32x64xf32>, vector<98x64xf32> -> vector<98x64xf32>
    %114 = arith.addf %109, %113 : vector<98x64xf32>
    %115 = vector.extract_strided_slice %0 {offsets = [0, 96], sizes = [98, 32], strides = [1, 1]} : vector<98x512xf32> to vector<98x32xf32>
    %116 = vector.extract_strided_slice %1 {offsets = [5, 0, 0], sizes = [1, 32, 64], strides = [1, 1, 1]} : vector<9x32x64xf32> to vector<1x32x64xf32>
    %117 = vector.shape_cast %116 : vector<1x32x64xf32> to vector<32x64xf32>
    %cst_26 = arith.constant dense<0.000000e+00> : vector<98x64xf32>
    %118 = tpu.matmul %115, %117, %cst_26 {dimension_numbers = #tpu.dot_dimension_numbers<[1], [0], [0], [1], [0, 0, 1, 1], [], []>} : vector<98x32xf32>, vector<32x64xf32>, vector<98x64xf32> -> vector<98x64xf32>
    %119 = arith.addf %114, %118 : vector<98x64xf32>
    %120 = vector.extract_strided_slice %0 {offsets = [0, 320], sizes = [98, 32], strides = [1, 1]} : vector<98x512xf32> to vector<98x32xf32>
    %121 = vector.extract_strided_slice %1 {offsets = [6, 0, 0], sizes = [1, 32, 64], strides = [1, 1, 1]} : vector<9x32x64xf32> to vector<1x32x64xf32>
    %122 = vector.shape_cast %121 : vector<1x32x64xf32> to vector<32x64xf32>
    %cst_27 = arith.constant dense<0.000000e+00> : vector<98x64xf32>
    %123 = tpu.matmul %120, %122, %cst_27 {dimension_numbers = #tpu.dot_dimension_numbers<[1], [0], [0], [1], [0, 0, 1, 1], [], []>} : vector<98x32xf32>, vector<32x64xf32>, vector<98x64xf32> -> vector<98x64xf32>
    %124 = arith.addf %119, %123 : vector<98x64xf32>
    %125 = vector.extract_strided_slice %0 {offsets = [0, 448], sizes = [98, 32], strides = [1, 1]} : vector<98x512xf32> to vector<98x32xf32>
    %126 = vector.extract_strided_slice %1 {offsets = [7, 0, 0], sizes = [1, 32, 64], strides = [1, 1, 1]} : vector<9x32x64xf32> to vector<1x32x64xf32>
    %127 = vector.shape_cast %126 : vector<1x32x64xf32> to vector<32x64xf32>
    %cst_28 = arith.constant dense<0.000000e+00> : vector<98x64xf32>
    %128 = tpu.matmul %125, %127, %cst_28 {dimension_numbers = #tpu.dot_dimension_numbers<[1], [0], [0], [1], [0, 0, 1, 1], [], []>} : vector<98x32xf32>, vector<32x64xf32>, vector<98x64xf32> -> vector<98x64xf32>
    %129 = arith.addf %124, %128 : vector<98x64xf32>
    %130 = vector.extract_strided_slice %0 {offsets = [0, 352], sizes = [98, 32], strides = [1, 1]} : vector<98x512xf32> to vector<98x32xf32>
    %131 = vector.extract_strided_slice %1 {offsets = [8, 0, 0], sizes = [1, 32, 64], strides = [1, 1, 1]} : vector<9x32x64xf32> to vector<1x32x64xf32>
    %132 = vector.shape_cast %131 : vector<1x32x64xf32> to vector<32x64xf32>
    %cst_29 = arith.constant dense<0.000000e+00> : vector<98x64xf32>
    %133 = tpu.matmul %130, %132, %cst_29 {dimension_numbers = #tpu.dot_dimension_numbers<[1], [0], [0], [1], [0, 0, 1, 1], [], []>} : vector<98x32xf32>, vector<32x64xf32>, vector<98x64xf32> -> vector<98x64xf32>
    %134 = arith.addf %129, %133 : vector<98x64xf32>
    %135 = vector.extract_strided_slice %0 {offsets = [0, 384], sizes = [98, 32], strides = [1, 1]} : vector<98x512xf32> to vector<98x32xf32>
    %136 = vector.extract_strided_slice %1 {offsets = [0, 0, 0], sizes = [1, 32, 64], strides = [1, 1, 1]} : vector<9x32x64xf32> to vector<1x32x64xf32>
    %137 = vector.shape_cast %136 : vector<1x32x64xf32> to vector<32x64xf32>
    %cst_30 = arith.constant dense<0.000000e+00> : vector<98x64xf32>
    %138 = tpu.matmul %135, %137, %cst_30 {dimension_numbers = #tpu.dot_dimension_numbers<[1], [0], [0], [1], [0, 0, 1, 1], [], []>} : vector<98x32xf32>, vector<32x64xf32>, vector<98x64xf32> -> vector<98x64xf32>
    %139 = vector.extract_strided_slice %0 {offsets = [0, 288], sizes = [98, 32], strides = [1, 1]} : vector<98x512xf32> to vector<98x32xf32>
    %140 = vector.extract_strided_slice %1 {offsets = [1, 0, 0], sizes = [1, 32, 64], strides = [1, 1, 1]} : vector<9x32x64xf32> to vector<1x32x64xf32>
    %141 = vector.shape_cast %140 : vector<1x32x64xf32> to vector<32x64xf32>
    %cst_31 = arith.constant dense<0.000000e+00> : vector<98x64xf32>
    %142 = tpu.matmul %139, %141, %cst_31 {dimension_numbers = #tpu.dot_dimension_numbers<[1], [0], [0], [1], [0, 0, 1, 1], [], []>} : vector<98x32xf32>, vector<32x64xf32>, vector<98x64xf32> -> vector<98x64xf32>
    %143 = arith.addf %138, %142 : vector<98x64xf32>
    %144 = vector.extract_strided_slice %0 {offsets = [0, 416], sizes = [98, 32], strides = [1, 1]} : vector<98x512xf32> to vector<98x32xf32>
    %145 = vector.extract_strided_slice %1 {offsets = [2, 0, 0], sizes = [1, 32, 64], strides = [1, 1, 1]} : vector<9x32x64xf32> to vector<1x32x64xf32>
    %146 = vector.shape_cast %145 : vector<1x32x64xf32> to vector<32x64xf32>
    %cst_32 = arith.constant dense<0.000000e+00> : vector<98x64xf32>
    %147 = tpu.matmul %144, %146, %cst_32 {dimension_numbers = #tpu.dot_dimension_numbers<[1], [0], [0], [1], [0, 0, 1, 1], [], []>} : vector<98x32xf32>, vector<32x64xf32>, vector<98x64xf32> -> vector<98x64xf32>
    %148 = arith.addf %143, %147 : vector<98x64xf32>
    %149 = vector.extract_strided_slice %0 {offsets = [0, 192], sizes = [98, 32], strides = [1, 1]} : vector<98x512xf32> to vector<98x32xf32>
    %150 = vector.extract_strided_slice %1 {offsets = [3, 0, 0], sizes = [1, 32, 64], strides = [1, 1, 1]} : vector<9x32x64xf32> to vector<1x32x64xf32>
    %151 = vector.shape_cast %150 : vector<1x32x64xf32> to vector<32x64xf32>
    %cst_33 = arith.constant dense<0.000000e+00> : vector<98x64xf32>
    %152 = tpu.matmul %149, %151, %cst_33 {dimension_numbers = #tpu.dot_dimension_numbers<[1], [0], [0], [1], [0, 0, 1, 1], [], []>} : vector<98x32xf32>, vector<32x64xf32>, vector<98x64xf32> -> vector<98x64xf32>
    %153 = arith.addf %148, %152 : vector<98x64xf32>
    %154 = vector.extract_strided_slice %0 {offsets = [0, 96], sizes = [98, 32], strides = [1, 1]} : vector<98x512xf32> to vector<98x32xf32>
    %155 = vector.extract_strided_slice %1 {offsets = [4, 0, 0], sizes = [1, 32, 64], strides = [1, 1, 1]} : vector<9x32x64xf32> to vector<1x32x64xf32>
    %156 = vector.shape_cast %155 : vector<1x32x64xf32> to vector<32x64xf32>
    %cst_34 = arith.constant dense<0.000000e+00> : vector<98x64xf32>
    %157 = tpu.matmul %154, %156, %cst_34 {dimension_numbers = #tpu.dot_dimension_numbers<[1], [0], [0], [1], [0, 0, 1, 1], [], []>} : vector<98x32xf32>, vector<32x64xf32>, vector<98x64xf32> -> vector<98x64xf32>
    %158 = arith.addf %153, %157 : vector<98x64xf32>
    %159 = vector.extract_strided_slice %0 {offsets = [0, 224], sizes = [98, 32], strides = [1, 1]} : vector<98x512xf32> to vector<98x32xf32>
    %160 = vector.extract_strided_slice %1 {offsets = [5, 0, 0], sizes = [1, 32, 64], strides = [1, 1, 1]} : vector<9x32x64xf32> to vector<1x32x64xf32>
    %161 = vector.shape_cast %160 : vector<1x32x64xf32> to vector<32x64xf32>
    %cst_35 = arith.constant dense<0.000000e+00> : vector<98x64xf32>
    %162 = tpu.matmul %159, %161, %cst_35 {dimension_numbers = #tpu.dot_dimension_numbers<[1], [0], [0], [1], [0, 0, 1, 1], [], []>} : vector<98x32xf32>, vector<32x64xf32>, vector<98x64xf32> -> vector<98x64xf32>
    %163 = arith.addf %158, %162 : vector<98x64xf32>
    %164 = vector.extract_strided_slice %0 {offsets = [0, 448], sizes = [98, 32], strides = [1, 1]} : vector<98x512xf32> to vector<98x32xf32>
    %165 = vector.extract_strided_slice %1 {offsets = [6, 0, 0], sizes = [1, 32, 64], strides = [1, 1, 1]} : vector<9x32x64xf32> to vector<1x32x64xf32>
    %166 = vector.shape_cast %165 : vector<1x32x64xf32> to vector<32x64xf32>
    %cst_36 = arith.constant dense<0.000000e+00> : vector<98x64xf32>
    %167 = tpu.matmul %164, %166, %cst_36 {dimension_numbers = #tpu.dot_dimension_numbers<[1], [0], [0], [1], [0, 0, 1, 1], [], []>} : vector<98x32xf32>, vector<32x64xf32>, vector<98x64xf32> -> vector<98x64xf32>
    %168 = arith.addf %163, %167 : vector<98x64xf32>
    %169 = vector.extract_strided_slice %0 {offsets = [0, 352], sizes = [98, 32], strides = [1, 1]} : vector<98x512xf32> to vector<98x32xf32>
    %170 = vector.extract_strided_slice %1 {offsets = [7, 0, 0], sizes = [1, 32, 64], strides = [1, 1, 1]} : vector<9x32x64xf32> to vector<1x32x64xf32>
    %171 = vector.shape_cast %170 : vector<1x32x64xf32> to vector<32x64xf32>
    %cst_37 = arith.constant dense<0.000000e+00> : vector<98x64xf32>
    %172 = tpu.matmul %169, %171, %cst_37 {dimension_numbers = #tpu.dot_dimension_numbers<[1], [0], [0], [1], [0, 0, 1, 1], [], []>} : vector<98x32xf32>, vector<32x64xf32>, vector<98x64xf32> -> vector<98x64xf32>
    %173 = arith.addf %168, %172 : vector<98x64xf32>
    %174 = vector.extract_strided_slice %0 {offsets = [0, 480], sizes = [98, 32], strides = [1, 1]} : vector<98x512xf32> to vector<98x32xf32>
    %175 = vector.extract_strided_slice %1 {offsets = [8, 0, 0], sizes = [1, 32, 64], strides = [1, 1, 1]} : vector<9x32x64xf32> to vector<1x32x64xf32>
    %176 = vector.shape_cast %175 : vector<1x32x64xf32> to vector<32x64xf32>
    %cst_38 = arith.constant dense<0.000000e+00> : vector<98x64xf32>
    %177 = tpu.matmul %174, %176, %cst_38 {dimension_numbers = #tpu.dot_dimension_numbers<[1], [0], [0], [1], [0, 0, 1, 1], [], []>} : vector<98x32xf32>, vector<32x64xf32>, vector<98x64xf32> -> vector<98x64xf32>
    %178 = arith.addf %173, %177 : vector<98x64xf32>
    %179 = arith.maximumf %134, %178 : vector<98x64xf32>
    %180 = arith.maximumf %90, %179 : vector<98x64xf32>
    %c0_39 = arith.constant 0 : index
    %c0_40 = arith.constant 0 : index
    %181 = vector.load %arg2[%c0_39, %c0_40] : memref<1x64xf32, #tpu.memory_space<vmem>>, vector<1x64xf32>
    %182 = vector.broadcast %181 : vector<1x64xf32> to vector<98x64xf32>
    %183 = arith.addf %180, %182 : vector<98x64xf32>
    %cst_41 = arith.constant 0.000000e+00 : f32
    %184 = vector.broadcast %cst_41 : f32 to vector<98x64xf32>
    %185 = arith.maximumf %183, %184 : vector<98x64xf32>
    tpu.wait_dma2 semaphore(%arg9 : memref<!tpu.dma_semaphore, #tpu.memory_space<semaphore_mem>>) src(%arg3 : memref<3136x128xbf16, #tpu.memory_space<any>>) dst(%arg8 : memref<3136x128xbf16, #tpu.memory_space<vmem>>)
    %cst_42 = arith.constant 0.000000e+00 : f32
    %186 = vector.broadcast %cst_42 : f32 to vector<2x128xf32>
    %187 = vector.extract_strided_slice %185 {offsets = [0, 0], sizes = [2, 64], strides = [1, 1]} : vector<98x64xf32> to vector<2x64xf32>
    %188 = arith.truncf %187 : vector<2x64xf32> to vector<2x64xbf16>
    %c0_43 = arith.constant 0 : index
    %c0_44 = arith.constant 0 : index
    %189 = vector.load %arg8[%c0_43, %c0_44] : memref<3136x128xbf16, #tpu.memory_space<vmem>>, vector<64x128xbf16>
    %cst_45 = arith.constant dense<0.000000e+00> : vector<2x128xf32>
    %190 = tpu.matmul %188, %189, %cst_45 {dimension_numbers = #tpu.dot_dimension_numbers<[1], [0], [0], [1], [0, 0, 1, 1], [], []>} : vector<2x64xbf16>, vector<64x128xbf16>, vector<2x128xf32> -> vector<2x128xf32>
    %191 = arith.addf %186, %190 : vector<2x128xf32>
    %192 = vector.extract_strided_slice %185 {offsets = [2, 0], sizes = [2, 64], strides = [1, 1]} : vector<98x64xf32> to vector<2x64xf32>
    %193 = arith.truncf %192 : vector<2x64xf32> to vector<2x64xbf16>
    %c64 = arith.constant 64 : index
    %c0_46 = arith.constant 0 : index
    %194 = vector.load %arg8[%c64, %c0_46] : memref<3136x128xbf16, #tpu.memory_space<vmem>>, vector<64x128xbf16>
    %cst_47 = arith.constant dense<0.000000e+00> : vector<2x128xf32>
    %195 = tpu.matmul %193, %194, %cst_47 {dimension_numbers = #tpu.dot_dimension_numbers<[1], [0], [0], [1], [0, 0, 1, 1], [], []>} : vector<2x64xbf16>, vector<64x128xbf16>, vector<2x128xf32> -> vector<2x128xf32>
    %196 = arith.addf %191, %195 : vector<2x128xf32>
    %197 = vector.extract_strided_slice %185 {offsets = [4, 0], sizes = [2, 64], strides = [1, 1]} : vector<98x64xf32> to vector<2x64xf32>
    %198 = arith.truncf %197 : vector<2x64xf32> to vector<2x64xbf16>
    %c128 = arith.constant 128 : index
    %c0_48 = arith.constant 0 : index
    %199 = vector.load %arg8[%c128, %c0_48] : memref<3136x128xbf16, #tpu.memory_space<vmem>>, vector<64x128xbf16>
    %cst_49 = arith.constant dense<0.000000e+00> : vector<2x128xf32>
    %200 = tpu.matmul %198, %199, %cst_49 {dimension_numbers = #tpu.dot_dimension_numbers<[1], [0], [0], [1], [0, 0, 1, 1], [], []>} : vector<2x64xbf16>, vector<64x128xbf16>, vector<2x128xf32> -> vector<2x128xf32>
    %201 = arith.addf %196, %200 : vector<2x128xf32>
    %202 = vector.extract_strided_slice %185 {offsets = [6, 0], sizes = [2, 64], strides = [1, 1]} : vector<98x64xf32> to vector<2x64xf32>
    %203 = arith.truncf %202 : vector<2x64xf32> to vector<2x64xbf16>
    %c192 = arith.constant 192 : index
    %c0_50 = arith.constant 0 : index
    %204 = vector.load %arg8[%c192, %c0_50] : memref<3136x128xbf16, #tpu.memory_space<vmem>>, vector<64x128xbf16>
    %cst_51 = arith.constant dense<0.000000e+00> : vector<2x128xf32>
    %205 = tpu.matmul %203, %204, %cst_51 {dimension_numbers = #tpu.dot_dimension_numbers<[1], [0], [0], [1], [0, 0, 1, 1], [], []>} : vector<2x64xbf16>, vector<64x128xbf16>, vector<2x128xf32> -> vector<2x128xf32>
    %206 = arith.addf %201, %205 : vector<2x128xf32>
    %207 = vector.extract_strided_slice %185 {offsets = [8, 0], sizes = [2, 64], strides = [1, 1]} : vector<98x64xf32> to vector<2x64xf32>
    %208 = arith.truncf %207 : vector<2x64xf32> to vector<2x64xbf16>
    %c256 = arith.constant 256 : index
    %c0_52 = arith.constant 0 : index
    %209 = vector.load %arg8[%c256, %c0_52] : memref<3136x128xbf16, #tpu.memory_space<vmem>>, vector<64x128xbf16>
    %cst_53 = arith.constant dense<0.000000e+00> : vector<2x128xf32>
    %210 = tpu.matmul %208, %209, %cst_53 {dimension_numbers = #tpu.dot_dimension_numbers<[1], [0], [0], [1], [0, 0, 1, 1], [], []>} : vector<2x64xbf16>, vector<64x128xbf16>, vector<2x128xf32> -> vector<2x128xf32>
    %211 = arith.addf %206, %210 : vector<2x128xf32>
    %212 = vector.extract_strided_slice %185 {offsets = [10, 0], sizes = [2, 64], strides = [1, 1]} : vector<98x64xf32> to vector<2x64xf32>
    %213 = arith.truncf %212 : vector<2x64xf32> to vector<2x64xbf16>
    %c320 = arith.constant 320 : index
    %c0_54 = arith.constant 0 : index
    %214 = vector.load %arg8[%c320, %c0_54] : memref<3136x128xbf16, #tpu.memory_space<vmem>>, vector<64x128xbf16>
    %cst_55 = arith.constant dense<0.000000e+00> : vector<2x128xf32>
    %215 = tpu.matmul %213, %214, %cst_55 {dimension_numbers = #tpu.dot_dimension_numbers<[1], [0], [0], [1], [0, 0, 1, 1], [], []>} : vector<2x64xbf16>, vector<64x128xbf16>, vector<2x128xf32> -> vector<2x128xf32>
    %216 = arith.addf %211, %215 : vector<2x128xf32>
    %217 = vector.extract_strided_slice %185 {offsets = [12, 0], sizes = [2, 64], strides = [1, 1]} : vector<98x64xf32> to vector<2x64xf32>
    %218 = arith.truncf %217 : vector<2x64xf32> to vector<2x64xbf16>
    %c384 = arith.constant 384 : index
    %c0_56 = arith.constant 0 : index
    %219 = vector.load %arg8[%c384, %c0_56] : memref<3136x128xbf16, #tpu.memory_space<vmem>>, vector<64x128xbf16>
    %cst_57 = arith.constant dense<0.000000e+00> : vector<2x128xf32>
    %220 = tpu.matmul %218, %219, %cst_57 {dimension_numbers = #tpu.dot_dimension_numbers<[1], [0], [0], [1], [0, 0, 1, 1], [], []>} : vector<2x64xbf16>, vector<64x128xbf16>, vector<2x128xf32> -> vector<2x128xf32>
    %221 = arith.addf %216, %220 : vector<2x128xf32>
    %222 = vector.extract_strided_slice %185 {offsets = [14, 0], sizes = [2, 64], strides = [1, 1]} : vector<98x64xf32> to vector<2x64xf32>
    %223 = arith.truncf %222 : vector<2x64xf32> to vector<2x64xbf16>
    %c448 = arith.constant 448 : index
    %c0_58 = arith.constant 0 : index
    %224 = vector.load %arg8[%c448, %c0_58] : memref<3136x128xbf16, #tpu.memory_space<vmem>>, vector<64x128xbf16>
    %cst_59 = arith.constant dense<0.000000e+00> : vector<2x128xf32>
    %225 = tpu.matmul %223, %224, %cst_59 {dimension_numbers = #tpu.dot_dimension_numbers<[1], [0], [0], [1], [0, 0, 1, 1], [], []>} : vector<2x64xbf16>, vector<64x128xbf16>, vector<2x128xf32> -> vector<2x128xf32>
    %226 = arith.addf %221, %225 : vector<2x128xf32>
    %227 = vector.extract_strided_slice %185 {offsets = [16, 0], sizes = [2, 64], strides = [1, 1]} : vector<98x64xf32> to vector<2x64xf32>
    %228 = arith.truncf %227 : vector<2x64xf32> to vector<2x64xbf16>
    %c512 = arith.constant 512 : index
    %c0_60 = arith.constant 0 : index
    %229 = vector.load %arg8[%c512, %c0_60] : memref<3136x128xbf16, #tpu.memory_space<vmem>>, vector<64x128xbf16>
    %cst_61 = arith.constant dense<0.000000e+00> : vector<2x128xf32>
    %230 = tpu.matmul %228, %229, %cst_61 {dimension_numbers = #tpu.dot_dimension_numbers<[1], [0], [0], [1], [0, 0, 1, 1], [], []>} : vector<2x64xbf16>, vector<64x128xbf16>, vector<2x128xf32> -> vector<2x128xf32>
    %231 = arith.addf %226, %230 : vector<2x128xf32>
    %232 = vector.extract_strided_slice %185 {offsets = [18, 0], sizes = [2, 64], strides = [1, 1]} : vector<98x64xf32> to vector<2x64xf32>
    %233 = arith.truncf %232 : vector<2x64xf32> to vector<2x64xbf16>
    %c576 = arith.constant 576 : index
    %c0_62 = arith.constant 0 : index
    %234 = vector.load %arg8[%c576, %c0_62] : memref<3136x128xbf16, #tpu.memory_space<vmem>>, vector<64x128xbf16>
    %cst_63 = arith.constant dense<0.000000e+00> : vector<2x128xf32>
    %235 = tpu.matmul %233, %234, %cst_63 {dimension_numbers = #tpu.dot_dimension_numbers<[1], [0], [0], [1], [0, 0, 1, 1], [], []>} : vector<2x64xbf16>, vector<64x128xbf16>, vector<2x128xf32> -> vector<2x128xf32>
    %236 = arith.addf %231, %235 : vector<2x128xf32>
    %237 = vector.extract_strided_slice %185 {offsets = [20, 0], sizes = [2, 64], strides = [1, 1]} : vector<98x64xf32> to vector<2x64xf32>
    %238 = arith.truncf %237 : vector<2x64xf32> to vector<2x64xbf16>
    %c640 = arith.constant 640 : index
    %c0_64 = arith.constant 0 : index
    %239 = vector.load %arg8[%c640, %c0_64] : memref<3136x128xbf16, #tpu.memory_space<vmem>>, vector<64x128xbf16>
    %cst_65 = arith.constant dense<0.000000e+00> : vector<2x128xf32>
    %240 = tpu.matmul %238, %239, %cst_65 {dimension_numbers = #tpu.dot_dimension_numbers<[1], [0], [0], [1], [0, 0, 1, 1], [], []>} : vector<2x64xbf16>, vector<64x128xbf16>, vector<2x128xf32> -> vector<2x128xf32>
    %241 = arith.addf %236, %240 : vector<2x128xf32>
    %242 = vector.extract_strided_slice %185 {offsets = [22, 0], sizes = [2, 64], strides = [1, 1]} : vector<98x64xf32> to vector<2x64xf32>
    %243 = arith.truncf %242 : vector<2x64xf32> to vector<2x64xbf16>
    %c704 = arith.constant 704 : index
    %c0_66 = arith.constant 0 : index
    %244 = vector.load %arg8[%c704, %c0_66] : memref<3136x128xbf16, #tpu.memory_space<vmem>>, vector<64x128xbf16>
    %cst_67 = arith.constant dense<0.000000e+00> : vector<2x128xf32>
    %245 = tpu.matmul %243, %244, %cst_67 {dimension_numbers = #tpu.dot_dimension_numbers<[1], [0], [0], [1], [0, 0, 1, 1], [], []>} : vector<2x64xbf16>, vector<64x128xbf16>, vector<2x128xf32> -> vector<2x128xf32>
    %246 = arith.addf %241, %245 : vector<2x128xf32>
    %247 = vector.extract_strided_slice %185 {offsets = [24, 0], sizes = [2, 64], strides = [1, 1]} : vector<98x64xf32> to vector<2x64xf32>
    %248 = arith.truncf %247 : vector<2x64xf32> to vector<2x64xbf16>
    %c768 = arith.constant 768 : index
    %c0_68 = arith.constant 0 : index
    %249 = vector.load %arg8[%c768, %c0_68] : memref<3136x128xbf16, #tpu.memory_space<vmem>>, vector<64x128xbf16>
    %cst_69 = arith.constant dense<0.000000e+00> : vector<2x128xf32>
    %250 = tpu.matmul %248, %249, %cst_69 {dimension_numbers = #tpu.dot_dimension_numbers<[1], [0], [0], [1], [0, 0, 1, 1], [], []>} : vector<2x64xbf16>, vector<64x128xbf16>, vector<2x128xf32> -> vector<2x128xf32>
    %251 = arith.addf %246, %250 : vector<2x128xf32>
    %252 = vector.extract_strided_slice %185 {offsets = [26, 0], sizes = [2, 64], strides = [1, 1]} : vector<98x64xf32> to vector<2x64xf32>
    %253 = arith.truncf %252 : vector<2x64xf32> to vector<2x64xbf16>
    %c832 = arith.constant 832 : index
    %c0_70 = arith.constant 0 : index
    %254 = vector.load %arg8[%c832, %c0_70] : memref<3136x128xbf16, #tpu.memory_space<vmem>>, vector<64x128xbf16>
    %cst_71 = arith.constant dense<0.000000e+00> : vector<2x128xf32>
    %255 = tpu.matmul %253, %254, %cst_71 {dimension_numbers = #tpu.dot_dimension_numbers<[1], [0], [0], [1], [0, 0, 1, 1], [], []>} : vector<2x64xbf16>, vector<64x128xbf16>, vector<2x128xf32> -> vector<2x128xf32>
    %256 = arith.addf %251, %255 : vector<2x128xf32>
    %257 = vector.extract_strided_slice %185 {offsets = [28, 0], sizes = [2, 64], strides = [1, 1]} : vector<98x64xf32> to vector<2x64xf32>
    %258 = arith.truncf %257 : vector<2x64xf32> to vector<2x64xbf16>
    %c896 = arith.constant 896 : index
    %c0_72 = arith.constant 0 : index
    %259 = vector.load %arg8[%c896, %c0_72] : memref<3136x128xbf16, #tpu.memory_space<vmem>>, vector<64x128xbf16>
    %cst_73 = arith.constant dense<0.000000e+00> : vector<2x128xf32>
    %260 = tpu.matmul %258, %259, %cst_73 {dimension_numbers = #tpu.dot_dimension_numbers<[1], [0], [0], [1], [0, 0, 1, 1], [], []>} : vector<2x64xbf16>, vector<64x128xbf16>, vector<2x128xf32> -> vector<2x128xf32>
    %261 = arith.addf %256, %260 : vector<2x128xf32>
    %262 = vector.extract_strided_slice %185 {offsets = [30, 0], sizes = [2, 64], strides = [1, 1]} : vector<98x64xf32> to vector<2x64xf32>
    %263 = arith.truncf %262 : vector<2x64xf32> to vector<2x64xbf16>
    %c960 = arith.constant 960 : index
    %c0_74 = arith.constant 0 : index
    %264 = vector.load %arg8[%c960, %c0_74] : memref<3136x128xbf16, #tpu.memory_space<vmem>>, vector<64x128xbf16>
    %cst_75 = arith.constant dense<0.000000e+00> : vector<2x128xf32>
    %265 = tpu.matmul %263, %264, %cst_75 {dimension_numbers = #tpu.dot_dimension_numbers<[1], [0], [0], [1], [0, 0, 1, 1], [], []>} : vector<2x64xbf16>, vector<64x128xbf16>, vector<2x128xf32> -> vector<2x128xf32>
    %266 = arith.addf %261, %265 : vector<2x128xf32>
    %267 = vector.extract_strided_slice %185 {offsets = [32, 0], sizes = [2, 64], strides = [1, 1]} : vector<98x64xf32> to vector<2x64xf32>
    %268 = arith.truncf %267 : vector<2x64xf32> to vector<2x64xbf16>
    %c1024 = arith.constant 1024 : index
    %c0_76 = arith.constant 0 : index
    %269 = vector.load %arg8[%c1024, %c0_76] : memref<3136x128xbf16, #tpu.memory_space<vmem>>, vector<64x128xbf16>
    %cst_77 = arith.constant dense<0.000000e+00> : vector<2x128xf32>
    %270 = tpu.matmul %268, %269, %cst_77 {dimension_numbers = #tpu.dot_dimension_numbers<[1], [0], [0], [1], [0, 0, 1, 1], [], []>} : vector<2x64xbf16>, vector<64x128xbf16>, vector<2x128xf32> -> vector<2x128xf32>
    %271 = arith.addf %266, %270 : vector<2x128xf32>
    %272 = vector.extract_strided_slice %185 {offsets = [34, 0], sizes = [2, 64], strides = [1, 1]} : vector<98x64xf32> to vector<2x64xf32>
    %273 = arith.truncf %272 : vector<2x64xf32> to vector<2x64xbf16>
    %c1088 = arith.constant 1088 : index
    %c0_78 = arith.constant 0 : index
    %274 = vector.load %arg8[%c1088, %c0_78] : memref<3136x128xbf16, #tpu.memory_space<vmem>>, vector<64x128xbf16>
    %cst_79 = arith.constant dense<0.000000e+00> : vector<2x128xf32>
    %275 = tpu.matmul %273, %274, %cst_79 {dimension_numbers = #tpu.dot_dimension_numbers<[1], [0], [0], [1], [0, 0, 1, 1], [], []>} : vector<2x64xbf16>, vector<64x128xbf16>, vector<2x128xf32> -> vector<2x128xf32>
    %276 = arith.addf %271, %275 : vector<2x128xf32>
    %277 = vector.extract_strided_slice %185 {offsets = [36, 0], sizes = [2, 64], strides = [1, 1]} : vector<98x64xf32> to vector<2x64xf32>
    %278 = arith.truncf %277 : vector<2x64xf32> to vector<2x64xbf16>
    %c1152 = arith.constant 1152 : index
    %c0_80 = arith.constant 0 : index
    %279 = vector.load %arg8[%c1152, %c0_80] : memref<3136x128xbf16, #tpu.memory_space<vmem>>, vector<64x128xbf16>
    %cst_81 = arith.constant dense<0.000000e+00> : vector<2x128xf32>
    %280 = tpu.matmul %278, %279, %cst_81 {dimension_numbers = #tpu.dot_dimension_numbers<[1], [0], [0], [1], [0, 0, 1, 1], [], []>} : vector<2x64xbf16>, vector<64x128xbf16>, vector<2x128xf32> -> vector<2x128xf32>
    %281 = arith.addf %276, %280 : vector<2x128xf32>
    %282 = vector.extract_strided_slice %185 {offsets = [38, 0], sizes = [2, 64], strides = [1, 1]} : vector<98x64xf32> to vector<2x64xf32>
    %283 = arith.truncf %282 : vector<2x64xf32> to vector<2x64xbf16>
    %c1216 = arith.constant 1216 : index
    %c0_82 = arith.constant 0 : index
    %284 = vector.load %arg8[%c1216, %c0_82] : memref<3136x128xbf16, #tpu.memory_space<vmem>>, vector<64x128xbf16>
    %cst_83 = arith.constant dense<0.000000e+00> : vector<2x128xf32>
    %285 = tpu.matmul %283, %284, %cst_83 {dimension_numbers = #tpu.dot_dimension_numbers<[1], [0], [0], [1], [0, 0, 1, 1], [], []>} : vector<2x64xbf16>, vector<64x128xbf16>, vector<2x128xf32> -> vector<2x128xf32>
    %286 = arith.addf %281, %285 : vector<2x128xf32>
    %287 = vector.extract_strided_slice %185 {offsets = [40, 0], sizes = [2, 64], strides = [1, 1]} : vector<98x64xf32> to vector<2x64xf32>
    %288 = arith.truncf %287 : vector<2x64xf32> to vector<2x64xbf16>
    %c1280 = arith.constant 1280 : index
    %c0_84 = arith.constant 0 : index
    %289 = vector.load %arg8[%c1280, %c0_84] : memref<3136x128xbf16, #tpu.memory_space<vmem>>, vector<64x128xbf16>
    %cst_85 = arith.constant dense<0.000000e+00> : vector<2x128xf32>
    %290 = tpu.matmul %288, %289, %cst_85 {dimension_numbers = #tpu.dot_dimension_numbers<[1], [0], [0], [1], [0, 0, 1, 1], [], []>} : vector<2x64xbf16>, vector<64x128xbf16>, vector<2x128xf32> -> vector<2x128xf32>
    %291 = arith.addf %286, %290 : vector<2x128xf32>
    %292 = vector.extract_strided_slice %185 {offsets = [42, 0], sizes = [2, 64], strides = [1, 1]} : vector<98x64xf32> to vector<2x64xf32>
    %293 = arith.truncf %292 : vector<2x64xf32> to vector<2x64xbf16>
    %c1344 = arith.constant 1344 : index
    %c0_86 = arith.constant 0 : index
    %294 = vector.load %arg8[%c1344, %c0_86] : memref<3136x128xbf16, #tpu.memory_space<vmem>>, vector<64x128xbf16>
    %cst_87 = arith.constant dense<0.000000e+00> : vector<2x128xf32>
    %295 = tpu.matmul %293, %294, %cst_87 {dimension_numbers = #tpu.dot_dimension_numbers<[1], [0], [0], [1], [0, 0, 1, 1], [], []>} : vector<2x64xbf16>, vector<64x128xbf16>, vector<2x128xf32> -> vector<2x128xf32>
    %296 = arith.addf %291, %295 : vector<2x128xf32>
    %297 = vector.extract_strided_slice %185 {offsets = [44, 0], sizes = [2, 64], strides = [1, 1]} : vector<98x64xf32> to vector<2x64xf32>
    %298 = arith.truncf %297 : vector<2x64xf32> to vector<2x64xbf16>
    %c1408 = arith.constant 1408 : index
    %c0_88 = arith.constant 0 : index
    %299 = vector.load %arg8[%c1408, %c0_88] : memref<3136x128xbf16, #tpu.memory_space<vmem>>, vector<64x128xbf16>
    %cst_89 = arith.constant dense<0.000000e+00> : vector<2x128xf32>
    %300 = tpu.matmul %298, %299, %cst_89 {dimension_numbers = #tpu.dot_dimension_numbers<[1], [0], [0], [1], [0, 0, 1, 1], [], []>} : vector<2x64xbf16>, vector<64x128xbf16>, vector<2x128xf32> -> vector<2x128xf32>
    %301 = arith.addf %296, %300 : vector<2x128xf32>
    %302 = vector.extract_strided_slice %185 {offsets = [46, 0], sizes = [2, 64], strides = [1, 1]} : vector<98x64xf32> to vector<2x64xf32>
    %303 = arith.truncf %302 : vector<2x64xf32> to vector<2x64xbf16>
    %c1472 = arith.constant 1472 : index
    %c0_90 = arith.constant 0 : index
    %304 = vector.load %arg8[%c1472, %c0_90] : memref<3136x128xbf16, #tpu.memory_space<vmem>>, vector<64x128xbf16>
    %cst_91 = arith.constant dense<0.000000e+00> : vector<2x128xf32>
    %305 = tpu.matmul %303, %304, %cst_91 {dimension_numbers = #tpu.dot_dimension_numbers<[1], [0], [0], [1], [0, 0, 1, 1], [], []>} : vector<2x64xbf16>, vector<64x128xbf16>, vector<2x128xf32> -> vector<2x128xf32>
    %306 = arith.addf %301, %305 : vector<2x128xf32>
    %307 = vector.extract_strided_slice %185 {offsets = [48, 0], sizes = [2, 64], strides = [1, 1]} : vector<98x64xf32> to vector<2x64xf32>
    %308 = arith.truncf %307 : vector<2x64xf32> to vector<2x64xbf16>
    %c1536 = arith.constant 1536 : index
    %c0_92 = arith.constant 0 : index
    %309 = vector.load %arg8[%c1536, %c0_92] : memref<3136x128xbf16, #tpu.memory_space<vmem>>, vector<64x128xbf16>
    %cst_93 = arith.constant dense<0.000000e+00> : vector<2x128xf32>
    %310 = tpu.matmul %308, %309, %cst_93 {dimension_numbers = #tpu.dot_dimension_numbers<[1], [0], [0], [1], [0, 0, 1, 1], [], []>} : vector<2x64xbf16>, vector<64x128xbf16>, vector<2x128xf32> -> vector<2x128xf32>
    %311 = arith.addf %306, %310 : vector<2x128xf32>
    %312 = vector.extract_strided_slice %185 {offsets = [50, 0], sizes = [2, 64], strides = [1, 1]} : vector<98x64xf32> to vector<2x64xf32>
    %313 = arith.truncf %312 : vector<2x64xf32> to vector<2x64xbf16>
    %c1600 = arith.constant 1600 : index
    %c0_94 = arith.constant 0 : index
    %314 = vector.load %arg8[%c1600, %c0_94] : memref<3136x128xbf16, #tpu.memory_space<vmem>>, vector<64x128xbf16>
    %cst_95 = arith.constant dense<0.000000e+00> : vector<2x128xf32>
    %315 = tpu.matmul %313, %314, %cst_95 {dimension_numbers = #tpu.dot_dimension_numbers<[1], [0], [0], [1], [0, 0, 1, 1], [], []>} : vector<2x64xbf16>, vector<64x128xbf16>, vector<2x128xf32> -> vector<2x128xf32>
    %316 = arith.addf %311, %315 : vector<2x128xf32>
    %317 = vector.extract_strided_slice %185 {offsets = [52, 0], sizes = [2, 64], strides = [1, 1]} : vector<98x64xf32> to vector<2x64xf32>
    %318 = arith.truncf %317 : vector<2x64xf32> to vector<2x64xbf16>
    %c1664 = arith.constant 1664 : index
    %c0_96 = arith.constant 0 : index
    %319 = vector.load %arg8[%c1664, %c0_96] : memref<3136x128xbf16, #tpu.memory_space<vmem>>, vector<64x128xbf16>
    %cst_97 = arith.constant dense<0.000000e+00> : vector<2x128xf32>
    %320 = tpu.matmul %318, %319, %cst_97 {dimension_numbers = #tpu.dot_dimension_numbers<[1], [0], [0], [1], [0, 0, 1, 1], [], []>} : vector<2x64xbf16>, vector<64x128xbf16>, vector<2x128xf32> -> vector<2x128xf32>
    %321 = arith.addf %316, %320 : vector<2x128xf32>
    %322 = vector.extract_strided_slice %185 {offsets = [54, 0], sizes = [2, 64], strides = [1, 1]} : vector<98x64xf32> to vector<2x64xf32>
    %323 = arith.truncf %322 : vector<2x64xf32> to vector<2x64xbf16>
    %c1728 = arith.constant 1728 : index
    %c0_98 = arith.constant 0 : index
    %324 = vector.load %arg8[%c1728, %c0_98] : memref<3136x128xbf16, #tpu.memory_space<vmem>>, vector<64x128xbf16>
    %cst_99 = arith.constant dense<0.000000e+00> : vector<2x128xf32>
    %325 = tpu.matmul %323, %324, %cst_99 {dimension_numbers = #tpu.dot_dimension_numbers<[1], [0], [0], [1], [0, 0, 1, 1], [], []>} : vector<2x64xbf16>, vector<64x128xbf16>, vector<2x128xf32> -> vector<2x128xf32>
    %326 = arith.addf %321, %325 : vector<2x128xf32>
    %327 = vector.extract_strided_slice %185 {offsets = [56, 0], sizes = [2, 64], strides = [1, 1]} : vector<98x64xf32> to vector<2x64xf32>
    %328 = arith.truncf %327 : vector<2x64xf32> to vector<2x64xbf16>
    %c1792 = arith.constant 1792 : index
    %c0_100 = arith.constant 0 : index
    %329 = vector.load %arg8[%c1792, %c0_100] : memref<3136x128xbf16, #tpu.memory_space<vmem>>, vector<64x128xbf16>
    %cst_101 = arith.constant dense<0.000000e+00> : vector<2x128xf32>
    %330 = tpu.matmul %328, %329, %cst_101 {dimension_numbers = #tpu.dot_dimension_numbers<[1], [0], [0], [1], [0, 0, 1, 1], [], []>} : vector<2x64xbf16>, vector<64x128xbf16>, vector<2x128xf32> -> vector<2x128xf32>
    %331 = arith.addf %326, %330 : vector<2x128xf32>
    %332 = vector.extract_strided_slice %185 {offsets = [58, 0], sizes = [2, 64], strides = [1, 1]} : vector<98x64xf32> to vector<2x64xf32>
    %333 = arith.truncf %332 : vector<2x64xf32> to vector<2x64xbf16>
    %c1856 = arith.constant 1856 : index
    %c0_102 = arith.constant 0 : index
    %334 = vector.load %arg8[%c1856, %c0_102] : memref<3136x128xbf16, #tpu.memory_space<vmem>>, vector<64x128xbf16>
    %cst_103 = arith.constant dense<0.000000e+00> : vector<2x128xf32>
    %335 = tpu.matmul %333, %334, %cst_103 {dimension_numbers = #tpu.dot_dimension_numbers<[1], [0], [0], [1], [0, 0, 1, 1], [], []>} : vector<2x64xbf16>, vector<64x128xbf16>, vector<2x128xf32> -> vector<2x128xf32>
    %336 = arith.addf %331, %335 : vector<2x128xf32>
    %337 = vector.extract_strided_slice %185 {offsets = [60, 0], sizes = [2, 64], strides = [1, 1]} : vector<98x64xf32> to vector<2x64xf32>
    %338 = arith.truncf %337 : vector<2x64xf32> to vector<2x64xbf16>
    %c1920 = arith.constant 1920 : index
    %c0_104 = arith.constant 0 : index
    %339 = vector.load %arg8[%c1920, %c0_104] : memref<3136x128xbf16, #tpu.memory_space<vmem>>, vector<64x128xbf16>
    %cst_105 = arith.constant dense<0.000000e+00> : vector<2x128xf32>
    %340 = tpu.matmul %338, %339, %cst_105 {dimension_numbers = #tpu.dot_dimension_numbers<[1], [0], [0], [1], [0, 0, 1, 1], [], []>} : vector<2x64xbf16>, vector<64x128xbf16>, vector<2x128xf32> -> vector<2x128xf32>
    %341 = arith.addf %336, %340 : vector<2x128xf32>
    %342 = vector.extract_strided_slice %185 {offsets = [62, 0], sizes = [2, 64], strides = [1, 1]} : vector<98x64xf32> to vector<2x64xf32>
    %343 = arith.truncf %342 : vector<2x64xf32> to vector<2x64xbf16>
    %c1984 = arith.constant 1984 : index
    %c0_106 = arith.constant 0 : index
    %344 = vector.load %arg8[%c1984, %c0_106] : memref<3136x128xbf16, #tpu.memory_space<vmem>>, vector<64x128xbf16>
    %cst_107 = arith.constant dense<0.000000e+00> : vector<2x128xf32>
    %345 = tpu.matmul %343, %344, %cst_107 {dimension_numbers = #tpu.dot_dimension_numbers<[1], [0], [0], [1], [0, 0, 1, 1], [], []>} : vector<2x64xbf16>, vector<64x128xbf16>, vector<2x128xf32> -> vector<2x128xf32>
    %346 = arith.addf %341, %345 : vector<2x128xf32>
    %347 = vector.extract_strided_slice %185 {offsets = [64, 0], sizes = [2, 64], strides = [1, 1]} : vector<98x64xf32> to vector<2x64xf32>
    %348 = arith.truncf %347 : vector<2x64xf32> to vector<2x64xbf16>
    %c2048 = arith.constant 2048 : index
    %c0_108 = arith.constant 0 : index
    %349 = vector.load %arg8[%c2048, %c0_108] : memref<3136x128xbf16, #tpu.memory_space<vmem>>, vector<64x128xbf16>
    %cst_109 = arith.constant dense<0.000000e+00> : vector<2x128xf32>
    %350 = tpu.matmul %348, %349, %cst_109 {dimension_numbers = #tpu.dot_dimension_numbers<[1], [0], [0], [1], [0, 0, 1, 1], [], []>} : vector<2x64xbf16>, vector<64x128xbf16>, vector<2x128xf32> -> vector<2x128xf32>
    %351 = arith.addf %346, %350 : vector<2x128xf32>
    %352 = vector.extract_strided_slice %185 {offsets = [66, 0], sizes = [2, 64], strides = [1, 1]} : vector<98x64xf32> to vector<2x64xf32>
    %353 = arith.truncf %352 : vector<2x64xf32> to vector<2x64xbf16>
    %c2112 = arith.constant 2112 : index
    %c0_110 = arith.constant 0 : index
    %354 = vector.load %arg8[%c2112, %c0_110] : memref<3136x128xbf16, #tpu.memory_space<vmem>>, vector<64x128xbf16>
    %cst_111 = arith.constant dense<0.000000e+00> : vector<2x128xf32>
    %355 = tpu.matmul %353, %354, %cst_111 {dimension_numbers = #tpu.dot_dimension_numbers<[1], [0], [0], [1], [0, 0, 1, 1], [], []>} : vector<2x64xbf16>, vector<64x128xbf16>, vector<2x128xf32> -> vector<2x128xf32>
    %356 = arith.addf %351, %355 : vector<2x128xf32>
    %357 = vector.extract_strided_slice %185 {offsets = [68, 0], sizes = [2, 64], strides = [1, 1]} : vector<98x64xf32> to vector<2x64xf32>
    %358 = arith.truncf %357 : vector<2x64xf32> to vector<2x64xbf16>
    %c2176 = arith.constant 2176 : index
    %c0_112 = arith.constant 0 : index
    %359 = vector.load %arg8[%c2176, %c0_112] : memref<3136x128xbf16, #tpu.memory_space<vmem>>, vector<64x128xbf16>
    %cst_113 = arith.constant dense<0.000000e+00> : vector<2x128xf32>
    %360 = tpu.matmul %358, %359, %cst_113 {dimension_numbers = #tpu.dot_dimension_numbers<[1], [0], [0], [1], [0, 0, 1, 1], [], []>} : vector<2x64xbf16>, vector<64x128xbf16>, vector<2x128xf32> -> vector<2x128xf32>
    %361 = arith.addf %356, %360 : vector<2x128xf32>
    %362 = vector.extract_strided_slice %185 {offsets = [70, 0], sizes = [2, 64], strides = [1, 1]} : vector<98x64xf32> to vector<2x64xf32>
    %363 = arith.truncf %362 : vector<2x64xf32> to vector<2x64xbf16>
    %c2240 = arith.constant 2240 : index
    %c0_114 = arith.constant 0 : index
    %364 = vector.load %arg8[%c2240, %c0_114] : memref<3136x128xbf16, #tpu.memory_space<vmem>>, vector<64x128xbf16>
    %cst_115 = arith.constant dense<0.000000e+00> : vector<2x128xf32>
    %365 = tpu.matmul %363, %364, %cst_115 {dimension_numbers = #tpu.dot_dimension_numbers<[1], [0], [0], [1], [0, 0, 1, 1], [], []>} : vector<2x64xbf16>, vector<64x128xbf16>, vector<2x128xf32> -> vector<2x128xf32>
    %366 = arith.addf %361, %365 : vector<2x128xf32>
    %367 = vector.extract_strided_slice %185 {offsets = [72, 0], sizes = [2, 64], strides = [1, 1]} : vector<98x64xf32> to vector<2x64xf32>
    %368 = arith.truncf %367 : vector<2x64xf32> to vector<2x64xbf16>
    %c2304 = arith.constant 2304 : index
    %c0_116 = arith.constant 0 : index
    %369 = vector.load %arg8[%c2304, %c0_116] : memref<3136x128xbf16, #tpu.memory_space<vmem>>, vector<64x128xbf16>
    %cst_117 = arith.constant dense<0.000000e+00> : vector<2x128xf32>
    %370 = tpu.matmul %368, %369, %cst_117 {dimension_numbers = #tpu.dot_dimension_numbers<[1], [0], [0], [1], [0, 0, 1, 1], [], []>} : vector<2x64xbf16>, vector<64x128xbf16>, vector<2x128xf32> -> vector<2x128xf32>
    %371 = arith.addf %366, %370 : vector<2x128xf32>
    %372 = vector.extract_strided_slice %185 {offsets = [74, 0], sizes = [2, 64], strides = [1, 1]} : vector<98x64xf32> to vector<2x64xf32>
    %373 = arith.truncf %372 : vector<2x64xf32> to vector<2x64xbf16>
    %c2368 = arith.constant 2368 : index
    %c0_118 = arith.constant 0 : index
    %374 = vector.load %arg8[%c2368, %c0_118] : memref<3136x128xbf16, #tpu.memory_space<vmem>>, vector<64x128xbf16>
    %cst_119 = arith.constant dense<0.000000e+00> : vector<2x128xf32>
    %375 = tpu.matmul %373, %374, %cst_119 {dimension_numbers = #tpu.dot_dimension_numbers<[1], [0], [0], [1], [0, 0, 1, 1], [], []>} : vector<2x64xbf16>, vector<64x128xbf16>, vector<2x128xf32> -> vector<2x128xf32>
    %376 = arith.addf %371, %375 : vector<2x128xf32>
    %377 = vector.extract_strided_slice %185 {offsets = [76, 0], sizes = [2, 64], strides = [1, 1]} : vector<98x64xf32> to vector<2x64xf32>
    %378 = arith.truncf %377 : vector<2x64xf32> to vector<2x64xbf16>
    %c2432 = arith.constant 2432 : index
    %c0_120 = arith.constant 0 : index
    %379 = vector.load %arg8[%c2432, %c0_120] : memref<3136x128xbf16, #tpu.memory_space<vmem>>, vector<64x128xbf16>
    %cst_121 = arith.constant dense<0.000000e+00> : vector<2x128xf32>
    %380 = tpu.matmul %378, %379, %cst_121 {dimension_numbers = #tpu.dot_dimension_numbers<[1], [0], [0], [1], [0, 0, 1, 1], [], []>} : vector<2x64xbf16>, vector<64x128xbf16>, vector<2x128xf32> -> vector<2x128xf32>
    %381 = arith.addf %376, %380 : vector<2x128xf32>
    %382 = vector.extract_strided_slice %185 {offsets = [78, 0], sizes = [2, 64], strides = [1, 1]} : vector<98x64xf32> to vector<2x64xf32>
    %383 = arith.truncf %382 : vector<2x64xf32> to vector<2x64xbf16>
    %c2496 = arith.constant 2496 : index
    %c0_122 = arith.constant 0 : index
    %384 = vector.load %arg8[%c2496, %c0_122] : memref<3136x128xbf16, #tpu.memory_space<vmem>>, vector<64x128xbf16>
    %cst_123 = arith.constant dense<0.000000e+00> : vector<2x128xf32>
    %385 = tpu.matmul %383, %384, %cst_123 {dimension_numbers = #tpu.dot_dimension_numbers<[1], [0], [0], [1], [0, 0, 1, 1], [], []>} : vector<2x64xbf16>, vector<64x128xbf16>, vector<2x128xf32> -> vector<2x128xf32>
    %386 = arith.addf %381, %385 : vector<2x128xf32>
    %387 = vector.extract_strided_slice %185 {offsets = [80, 0], sizes = [2, 64], strides = [1, 1]} : vector<98x64xf32> to vector<2x64xf32>
    %388 = arith.truncf %387 : vector<2x64xf32> to vector<2x64xbf16>
    %c2560 = arith.constant 2560 : index
    %c0_124 = arith.constant 0 : index
    %389 = vector.load %arg8[%c2560, %c0_124] : memref<3136x128xbf16, #tpu.memory_space<vmem>>, vector<64x128xbf16>
    %cst_125 = arith.constant dense<0.000000e+00> : vector<2x128xf32>
    %390 = tpu.matmul %388, %389, %cst_125 {dimension_numbers = #tpu.dot_dimension_numbers<[1], [0], [0], [1], [0, 0, 1, 1], [], []>} : vector<2x64xbf16>, vector<64x128xbf16>, vector<2x128xf32> -> vector<2x128xf32>
    %391 = arith.addf %386, %390 : vector<2x128xf32>
    %392 = vector.extract_strided_slice %185 {offsets = [82, 0], sizes = [2, 64], strides = [1, 1]} : vector<98x64xf32> to vector<2x64xf32>
    %393 = arith.truncf %392 : vector<2x64xf32> to vector<2x64xbf16>
    %c2624 = arith.constant 2624 : index
    %c0_126 = arith.constant 0 : index
    %394 = vector.load %arg8[%c2624, %c0_126] : memref<3136x128xbf16, #tpu.memory_space<vmem>>, vector<64x128xbf16>
    %cst_127 = arith.constant dense<0.000000e+00> : vector<2x128xf32>
    %395 = tpu.matmul %393, %394, %cst_127 {dimension_numbers = #tpu.dot_dimension_numbers<[1], [0], [0], [1], [0, 0, 1, 1], [], []>} : vector<2x64xbf16>, vector<64x128xbf16>, vector<2x128xf32> -> vector<2x128xf32>
    %396 = arith.addf %391, %395 : vector<2x128xf32>
    %397 = vector.extract_strided_slice %185 {offsets = [84, 0], sizes = [2, 64], strides = [1, 1]} : vector<98x64xf32> to vector<2x64xf32>
    %398 = arith.truncf %397 : vector<2x64xf32> to vector<2x64xbf16>
    %c2688 = arith.constant 2688 : index
    %c0_128 = arith.constant 0 : index
    %399 = vector.load %arg8[%c2688, %c0_128] : memref<3136x128xbf16, #tpu.memory_space<vmem>>, vector<64x128xbf16>
    %cst_129 = arith.constant dense<0.000000e+00> : vector<2x128xf32>
    %400 = tpu.matmul %398, %399, %cst_129 {dimension_numbers = #tpu.dot_dimension_numbers<[1], [0], [0], [1], [0, 0, 1, 1], [], []>} : vector<2x64xbf16>, vector<64x128xbf16>, vector<2x128xf32> -> vector<2x128xf32>
    %401 = arith.addf %396, %400 : vector<2x128xf32>
    %402 = vector.extract_strided_slice %185 {offsets = [86, 0], sizes = [2, 64], strides = [1, 1]} : vector<98x64xf32> to vector<2x64xf32>
    %403 = arith.truncf %402 : vector<2x64xf32> to vector<2x64xbf16>
    %c2752 = arith.constant 2752 : index
    %c0_130 = arith.constant 0 : index
    %404 = vector.load %arg8[%c2752, %c0_130] : memref<3136x128xbf16, #tpu.memory_space<vmem>>, vector<64x128xbf16>
    %cst_131 = arith.constant dense<0.000000e+00> : vector<2x128xf32>
    %405 = tpu.matmul %403, %404, %cst_131 {dimension_numbers = #tpu.dot_dimension_numbers<[1], [0], [0], [1], [0, 0, 1, 1], [], []>} : vector<2x64xbf16>, vector<64x128xbf16>, vector<2x128xf32> -> vector<2x128xf32>
    %406 = arith.addf %401, %405 : vector<2x128xf32>
    %407 = vector.extract_strided_slice %185 {offsets = [88, 0], sizes = [2, 64], strides = [1, 1]} : vector<98x64xf32> to vector<2x64xf32>
    %408 = arith.truncf %407 : vector<2x64xf32> to vector<2x64xbf16>
    %c2816 = arith.constant 2816 : index
    %c0_132 = arith.constant 0 : index
    %409 = vector.load %arg8[%c2816, %c0_132] : memref<3136x128xbf16, #tpu.memory_space<vmem>>, vector<64x128xbf16>
    %cst_133 = arith.constant dense<0.000000e+00> : vector<2x128xf32>
    %410 = tpu.matmul %408, %409, %cst_133 {dimension_numbers = #tpu.dot_dimension_numbers<[1], [0], [0], [1], [0, 0, 1, 1], [], []>} : vector<2x64xbf16>, vector<64x128xbf16>, vector<2x128xf32> -> vector<2x128xf32>
    %411 = arith.addf %406, %410 : vector<2x128xf32>
    %412 = vector.extract_strided_slice %185 {offsets = [90, 0], sizes = [2, 64], strides = [1, 1]} : vector<98x64xf32> to vector<2x64xf32>
    %413 = arith.truncf %412 : vector<2x64xf32> to vector<2x64xbf16>
    %c2880 = arith.constant 2880 : index
    %c0_134 = arith.constant 0 : index
    %414 = vector.load %arg8[%c2880, %c0_134] : memref<3136x128xbf16, #tpu.memory_space<vmem>>, vector<64x128xbf16>
    %cst_135 = arith.constant dense<0.000000e+00> : vector<2x128xf32>
    %415 = tpu.matmul %413, %414, %cst_135 {dimension_numbers = #tpu.dot_dimension_numbers<[1], [0], [0], [1], [0, 0, 1, 1], [], []>} : vector<2x64xbf16>, vector<64x128xbf16>, vector<2x128xf32> -> vector<2x128xf32>
    %416 = arith.addf %411, %415 : vector<2x128xf32>
    %417 = vector.extract_strided_slice %185 {offsets = [92, 0], sizes = [2, 64], strides = [1, 1]} : vector<98x64xf32> to vector<2x64xf32>
    %418 = arith.truncf %417 : vector<2x64xf32> to vector<2x64xbf16>
    %c2944 = arith.constant 2944 : index
    %c0_136 = arith.constant 0 : index
    %419 = vector.load %arg8[%c2944, %c0_136] : memref<3136x128xbf16, #tpu.memory_space<vmem>>, vector<64x128xbf16>
    %cst_137 = arith.constant dense<0.000000e+00> : vector<2x128xf32>
    %420 = tpu.matmul %418, %419, %cst_137 {dimension_numbers = #tpu.dot_dimension_numbers<[1], [0], [0], [1], [0, 0, 1, 1], [], []>} : vector<2x64xbf16>, vector<64x128xbf16>, vector<2x128xf32> -> vector<2x128xf32>
    %421 = arith.addf %416, %420 : vector<2x128xf32>
    %422 = vector.extract_strided_slice %185 {offsets = [94, 0], sizes = [2, 64], strides = [1, 1]} : vector<98x64xf32> to vector<2x64xf32>
    %423 = arith.truncf %422 : vector<2x64xf32> to vector<2x64xbf16>
    %c3008 = arith.constant 3008 : index
    %c0_138 = arith.constant 0 : index
    %424 = vector.load %arg8[%c3008, %c0_138] : memref<3136x128xbf16, #tpu.memory_space<vmem>>, vector<64x128xbf16>
    %cst_139 = arith.constant dense<0.000000e+00> : vector<2x128xf32>
    %425 = tpu.matmul %423, %424, %cst_139 {dimension_numbers = #tpu.dot_dimension_numbers<[1], [0], [0], [1], [0, 0, 1, 1], [], []>} : vector<2x64xbf16>, vector<64x128xbf16>, vector<2x128xf32> -> vector<2x128xf32>
    %426 = arith.addf %421, %425 : vector<2x128xf32>
    %427 = vector.extract_strided_slice %185 {offsets = [96, 0], sizes = [2, 64], strides = [1, 1]} : vector<98x64xf32> to vector<2x64xf32>
    %428 = arith.truncf %427 : vector<2x64xf32> to vector<2x64xbf16>
    %c3072 = arith.constant 3072 : index
    %c0_140 = arith.constant 0 : index
    %429 = vector.load %arg8[%c3072, %c0_140] : memref<3136x128xbf16, #tpu.memory_space<vmem>>, vector<64x128xbf16>
    %cst_141 = arith.constant dense<0.000000e+00> : vector<2x128xf32>
    %430 = tpu.matmul %428, %429, %cst_141 {dimension_numbers = #tpu.dot_dimension_numbers<[1], [0], [0], [1], [0, 0, 1, 1], [], []>} : vector<2x64xbf16>, vector<64x128xbf16>, vector<2x128xf32> -> vector<2x128xf32>
    %431 = arith.addf %426, %430 : vector<2x128xf32>
    %c0_142 = arith.constant 0 : index
    %c0_143 = arith.constant 0 : index
    %432 = vector.load %arg4[%c0_142, %c0_143] : memref<1x128xf32, #tpu.memory_space<vmem>>, vector<1x128xf32>
    %433 = vector.broadcast %432 : vector<1x128xf32> to vector<2x128xf32>
    %434 = arith.addf %431, %433 : vector<2x128xf32>
    %cst_144 = arith.constant 0.000000e+00 : f32
    %435 = vector.broadcast %cst_144 : f32 to vector<2x128xf32>
    %436 = arith.maximumf %434, %435 : vector<2x128xf32>
    %437 = arith.truncf %436 : vector<2x128xf32> to vector<2x128xbf16>
    %c0_145 = arith.constant 0 : index
    %c0_146 = arith.constant 0 : index
    %438 = vector.load %arg5[%c0_145, %c0_146] : memref<128x128xbf16, #tpu.memory_space<vmem>>, vector<128x128xbf16>
    %cst_147 = arith.constant dense<0.000000e+00> : vector<2x128xf32>
    %439 = tpu.matmul %437, %438, %cst_147 {dimension_numbers = #tpu.dot_dimension_numbers<[1], [0], [0], [1], [0, 0, 1, 1], [], []>} : vector<2x128xbf16>, vector<128x128xbf16>, vector<2x128xf32> -> vector<2x128xf32>
    %c0_148 = arith.constant 0 : index
    %c0_149 = arith.constant 0 : index
    %440 = vector.load %arg6[%c0_148, %c0_149] : memref<1x128xf32, #tpu.memory_space<vmem>>, vector<1x128xf32>
    %441 = vector.broadcast %440 : vector<1x128xf32> to vector<2x128xf32>
    %442 = arith.addf %439, %441 : vector<2x128xf32>
    %c0_150 = arith.constant 0 : index
    %c0_151 = arith.constant 0 : index
    %443 = vector.load %arg7[%c0_150, %c0_151] : memref<2x128xf32, #tpu.memory_space<vmem>>, vector<2x128xf32>
    tpu.vector_store %arg7[%c0_150, %c0_151], %442 {strides = array<i32>} : memref<2x128xf32, #tpu.memory_space<vmem>>, vector<2x128xf32>,
    return
  }
}

</mosaic_0001>

<llo_original>
// kernel: forward.2
$region0: #{forward.2}
  #allocation0 [shape = 'u32[]', space=smem, size = 0x4, offset = 0x4, fixed_abs, tag = 'smem constant byte address 0x4 - core index']
  #allocation1 [shape = 'u32[144,128]{1,0:T(1,128)}', space=vmem, size = 0x12000, scoped, tag = 'internal scratch']
  %s0 = inlined_call_operand.vmem [shape: f32[4,16,392], index: 0, kind: input, shape index: {}]
  %s1 = inlined_call_operand.vmem [shape: f32[32,16], index: 1, kind: input, shape index: {}]
  %s2 = inlined_call_operand.vmem [shape: f32[32,1], index: 2, kind: input, shape index: {}]
  %s3 = inlined_call_operand.vmem [shape: f32[32,392], index: 3, kind: output, shape index: {}]
  %s4 = sld [smem:[#allocation0]]
  $region22: #{forward.2} parent=0
    _
  %s6 = ssub.s32 1, %s4
  %s7 = scalar_select 0, %s6, %s4
  // Predicated region
  $region2: #{forward.2} parent=0 // pred_check
    _
  $region3: #{forward.2} parent=0 // pred_check_branch
    %9 = sbr.rel (0) target = $region5
  $region4: #{forward.2} parent=0 // pred_region
    _
  $region5: #{forward.2} parent=0 // pred_fallthru
    _
  // Predicated region
  $region6: #{forward.2} parent=0 // pred_check
    _
  $region7: #{forward.2} parent=0 // pred_check_branch
    %11 = sbr.rel (0) target = $region9
  $region8: #{forward.2} parent=0 // pred_region
    _
  $region9: #{forward.2} parent=0 // pred_fallthru
    _
  // Predicated region
  $region10: #{forward.2} parent=0 // pred_check
    _
  $region11: #{forward.2} parent=0 // pred_check_branch
    %13 = sbr.rel (0) target = $region13
  $region12: #{forward.2} parent=0 // pred_region
    _
  $region13: #{forward.2} parent=0 // pred_fallthru
    _
  %v14 = vld [vmem:[%s1] sm:$0xff]
  %v15 = vld [vmem:[%s1 + $0x8] sm:$0xff]
  %v16 = vld [vmem:[%s1 + $0x10] sm:$0xff]
  %v17 = vld [vmem:[%s1 + $0x18] sm:$0xff]
  %v18 = vld [vmem:[%s0] sm:$0xff]
  %v19 = vld [vmem:[%s0 + $0x8] sm:$0xff]
  %v20 = vld [vmem:[%s0 + $0x10] sm:$0xff]
  %v21 = vld [vmem:[%s0 + $0x18] sm:$0xff]
  %v22 = vld [vmem:[%s0 + $0x20] sm:$0xff]
  %v23 = vld [vmem:[%s0 + $0x28] sm:$0xff]
  %v24 = vld [vmem:[%s0 + $0x30] sm:$0xff]
  %v25 = vld [vmem:[%s0 + $0x38] sm:$0xff]
  %vm26 = vcmask 130048
  %v28 = vsel %vm26, %v14, 0
  %v31 = vsel %vm26, %v15, 0
  %v34 = vsel %vm26, %v16, 0
  %v37 = vsel %vm26, %v17, 0
  %39 = vmatprep.subr.mxu0 %v19
  %40 = vmatpush1.msra.mxu0 %v18
  %41 = vmatprep.subr.mxu0 %v23
  %42 = vmatpush1.msra.mxu0 %v22
  %43 = vmatprep.subr.mxu0 0.0
  %44 = vmatpush1.msra.mxu0 0.0
  %45 = vmatprep.subr.mxu0 0.0
  %46 = vmatpush1.msra.mxu0 0.0
  %47 = vmatprep.subr.mxu0 0.0
  %48 = vmatpush1.msra.mxu0 0.0
  %49 = vmatprep.subr.mxu0 0.0
  %50 = vmatpush1.msra.mxu0 0.0
  %51 = vmatprep.subr.mxu0 0.0
  %52 = vmatpush1.msra.mxu0 0.0
  %53 = vmatprep.subr.mxu0 0.0
  %54 = vmatpush1.msra.mxu0 0.0
  %55 = vmatprep.subr.mxu0 0.0
  %56 = vmatpush1.msra.mxu0 0.0
  %57 = vmatprep.subr.mxu0 0.0
  %58 = vmatpush1.msra.mxu0 0.0
  %59 = vmatprep.subr.mxu0 0.0
  %60 = vmatpush1.msra.mxu0 0.0
  %61 = vmatprep.subr.mxu0 0.0
  %62 = vmatpush1.msra.mxu0 0.0
  %63 = vmatprep.subr.mxu0 0.0
  %64 = vmatpush1.msra.mxu0 0.0
  %65 = vmatprep.subr.mxu0 0.0
  %66 = vmatpush1.msra.mxu0 0.0
  %67 = vmatprep.subr.mxu0 0.0
  %68 = vmatpush1.msra.mxu0 0.0
  %69 = vmatprep.subr.mxu0 0.0
  %70 = vmatpush1.msra.mxu0 0.0
  %71 = vmatprep.subr.mxu0 0.0
  %72 = vmatpush1.msra.mxu0 0.0
  %73 = vmatprep.subr.mxu0 0.0
  %74 = vmatpush1.msra.mxu0 0.0
  %75 = vmatprep.subr.mxu0 0.0
  %76 = vmatpush1.msra.mxu0 0.0
  %77 = vmatprep.subr.mxu0 0.0
  %78 = vmatpush1.msra.mxu0 0.0
  %79 = vmatprep.subr.mxu0 0.0
  %80 = vmatpush1.msra.mxu0 0.0
  %81 = vmatprep.subr.mxu0 0.0
  %82 = vmatpush1.msra.mxu0 0.0
  %83 = vmatprep.subr.mxu0 0.0
  %84 = vmatpush1.msra.mxu0 0.0
  %85 = vmatprep.subr.mxu0 0.0
  %86 = vmatpush1.msra.mxu0 0.0
  %87 = vmatprep.subr.mxu0 0.0
  %88 = vmatpush1.msra.mxu0 0.0
  %89 = vmatprep.subr.mxu0 0.0
  %90 = vmatpush1.msra.mxu0 0.0
  %91 = vmatprep.subr.mxu0 0.0
  %92 = vmatpush1.msra.mxu0 0.0
  %93 = vmatprep.subr.mxu0 0.0
  %94 = vmatpush1.msra.mxu0 0.0
  %95 = vmatprep.subr.mxu0 0.0
  %96 = vmatpush1.msra.mxu0 0.0
  %97 = vmatprep.subr.mxu0 0.0
  %98 = vmatpush1.msra.mxu0 0.0
  %99 = vmatprep.subr.mxu0 0.0
  %100 = vmatpush1.msra.mxu0 0.0
  %101 = vmatprep.subr.mxu0 0.0
  %102 = vmatpush1.msra.mxu0 0.0
  %103 = vmatprep.mubr.f32.mxu0 0.0
  %104 = vmatmul.mubr.f32.gmra.mrb[0].mxu0 %v28
  %v105 = vpop.f32.mrb[0].mxu0
  %v106 = vadd.f32 0.0, %v105
  %v107 = vpop.f32.mrb[0].mxu0
  %v108 = vadd.f32 0.0, %v107
  %109 = vmatprep.mubr.f32.mxu0 0.0
  %110 = vmatmul.mubr.f32.gmra.mrb[0].mxu0 %v31
  %v111 = vpop.f32.mrb[0].mxu0
  %v112 = vadd.f32 0.0, %v111
  %v113 = vpop.f32.mrb[0].mxu0
  %v114 = vadd.f32 0.0, %v113
  %115 = vmatprep.mubr.f32.mxu0 0.0
  %116 = vmatmul.mubr.f32.gmra.mrb[0].mxu0 %v34
  %v117 = vpop.f32.mrb[0].mxu0
  %v118 = vadd.f32 0.0, %v117
  %v119 = vpop.f32.mrb[0].mxu0
  %v120 = vadd.f32 0.0, %v119
  %121 = vmatprep.mubr.f32.mxu0 0.0
  %122 = vmatmul.mubr.f32.gmra.mrb[0].mxu0 %v37
  %v123 = vpop.f32.mrb[0].mxu0
  %v124 = vadd.f32 0.0, %v123
  %v125 = vpop.f32.mrb[0].mxu0
  %v126 = vadd.f32 0.0, %v125
  %127 = vdwg.mxu0
  %128 = vmatprep.subr.mxu0 %v21
  %129 = vmatpush1.msra.mxu0 %v20
  %130 = vmatprep.subr.mxu0 %v25
  %131 = vmatpush1.msra.mxu0 %v24
  %132 = vmatprep.subr.mxu0 0.0
  %133 = vmatpush1.msra.mxu0 0.0
  %134 = vmatprep.subr.mxu0 0.0
  %135 = vmatpush1.msra.mxu0 0.0
  %136 = vmatprep.subr.mxu0 0.0
  %137 = vmatpush1.msra.mxu0 0.0
  %138 = vmatprep.subr.mxu0 0.0
  %139 = vmatpush1.msra.mxu0 0.0
  %140 = vmatprep.subr.mxu0 0.0
  %141 = vmatpush1.msra.mxu0 0.0
  %142 = vmatprep.subr.mxu0 0.0
  %143 = vmatpush1.msra.mxu0 0.0
  %144 = vmatprep.subr.mxu0 0.0
  %145 = vmatpush1.msra.mxu0 0.0
  %146 = vmatprep.subr.mxu0 0.0
  %147 = vmatpush1.msra.mxu0 0.0
  %148 = vmatprep.subr.mxu0 0.0
  %149 = vmatpush1.msra.mxu0 0.0
  %150 = vmatprep.subr.mxu0 0.0
  %151 = vmatpush1.msra.mxu0 0.0
  %152 = vmatprep.subr.mxu0 0.0
  %153 = vmatpush1.msra.mxu0 0.0
  %154 = vmatprep.subr.mxu0 0.0
  %155 = vmatpush1.msra.mxu0 0.0
  %156 = vmatprep.subr.mxu0 0.0
  %157 = vmatpush1.msra.mxu0 0.0
  %158 = vmatprep.subr.mxu0 0.0
  %159 = vmatpush1.msra.mxu0 0.0
  %160 = vmatprep.subr.mxu0 0.0
  %161 = vmatpush1.msra.mxu0 0.0
  %162 = vmatprep.subr.mxu0 0.0
  %163 = vmatpush1.msra.mxu0 0.0
  %164 = vmatprep.subr.mxu0 0.0
  %165 = vmatpush1.msra.mxu0 0.0
  %166 = vmatprep.subr.mxu0 0.0
  %167 = vmatpush1.msra.mxu0 0.0
  %168 = vmatprep.subr.mxu0 0.0
  %169 = vmatpush1.msra.mxu0 0.0
  %170 = vmatprep.subr.mxu0 0.0
  %171 = vmatpush1.msra.mxu0 0.0
  %172 = vmatprep.subr.mxu0 0.0
  %173 = vmatpush1.msra.mxu0 0.0
  %174 = vmatprep.subr.mxu0 0.0
  %175 = vmatpush1.msra.mxu0 0.0
  %176 = vmatprep.subr.mxu0 0.0
  %177 = vmatpush1.msra.mxu0 0.0
  %178 = vmatprep.subr.mxu0 0.0
  %179 = vmatpush1.msra.mxu0 0.0
  %180 = vmatprep.subr.mxu0 0.0
  %181 = vmatpush1.msra.mxu0 0.0
  %182 = vmatprep.subr.mxu0 0.0
  %183 = vmatpush1.msra.mxu0 0.0
  %184 = vmatprep.subr.mxu0 0.0
  %185 = vmatpush1.msra.mxu0 0.0
  %186 = vmatprep.subr.mxu0 0.0
  %187 = vmatpush1.msra.mxu0 0.0
  %188 = vmatprep.subr.mxu0 0.0
  %189 = vmatpush1.msra.mxu0 0.0
  %190 = vmatprep.subr.mxu0 0.0
  %191 = vmatpush1.msra.mxu0 0.0
  %192 = vmatprep.mubr.f32.mxu0 0.0
  %193 = vmatmul.mubr.f32.gmra.mrb[0].mxu0 %v28
  %v194 = vpop.f32.mrb[0].mxu0
  %v195 = vadd.f32 0.0, %v194
  %v196 = vpop.f32.mrb[0].mxu0
  %v197 = vadd.f32 0.0, %v196
  %198 = vmatprep.mubr.f32.mxu0 0.0
  %199 = vmatmul.mubr.f32.gmra.mrb[0].mxu0 %v31
  %v200 = vpop.f32.mrb[0].mxu0
  %v201 = vadd.f32 0.0, %v200
  %v202 = vpop.f32.mrb[0].mxu0
  %v203 = vadd.f32 0.0, %v202
  %204 = vmatprep.mubr.f32.mxu0 0.0
  %205 = vmatmul.mubr.f32.gmra.mrb[0].mxu0 %v34
  %v206 = vpop.f32.mrb[0].mxu0
  %v207 = vadd.f32 0.0, %v206
  %v208 = vpop.f32.mrb[0].mxu0
  %v209 = vadd.f32 0.0, %v208
  %210 = vmatprep.mubr.f32.mxu0 0.0
  %211 = vmatmul.mubr.f32.gmra.mrb[0].mxu0 %v37
  %v212 = vpop.f32.mrb[0].mxu0
  %v213 = vadd.f32 0.0, %v212
  %v214 = vpop.f32.mrb[0].mxu0
  %v215 = vadd.f32 0.0, %v214
  %216 = vdwg.mxu0
  %s217 = scalar_lea.vmem %s0, 64
  %v218 = vld [vmem:[%s217] sm:$0xff]
  %v219 = vld [vmem:[%s217 + $0x8] sm:$0xff]
  %v220 = vld [vmem:[%s217 + $0x10] sm:$0xff]
  %v221 = vld [vmem:[%s217 + $0x18] sm:$0xff]
  %v222 = vld [vmem:[%s217 + $0x20] sm:$0xff]
  %v223 = vld [vmem:[%s217 + $0x28] sm:$0xff]
  %v224 = vld [vmem:[%s217 + $0x30] sm:$0xff]
  %v225 = vld [vmem:[%s217 + $0x38] sm:$0xff]
  %226 = vmatprep.subr.mxu0 %v219
  %227 = vmatpush1.msra.mxu0 %v218
  %228 = vmatprep.subr.mxu0 %v223
  %229 = vmatpush1.msra.mxu0 %v222
  %230 = vmatprep.subr.mxu0 0.0
  %231 = vmatpush1.msra.mxu0 0.0
  %232 = vmatprep.subr.mxu0 0.0
  %233 = vmatpush1.msra.mxu0 0.0
  %234 = vmatprep.subr.mxu0 0.0
  %235 = vmatpush1.msra.mxu0 0.0
  %236 = vmatprep.subr.mxu0 0.0
  %237 = vmatpush1.msra.mxu0 0.0
  %238 = vmatprep.subr.mxu0 0.0
  %239 = vmatpush1.msra.mxu0 0.0
  %240 = vmatprep.subr.mxu0 0.0
  %241 = vmatpush1.msra.mxu0 0.0
  %242 = vmatprep.subr.mxu0 0.0
  %243 = vmatpush1.msra.mxu0 0.0
  %244 = vmatprep.subr.mxu0 0.0
  %245 = vmatpush1.msra.mxu0 0.0
  %246 = vmatprep.subr.mxu0 0.0
  %247 = vmatpush1.msra.mxu0 0.0
  %248 = vmatprep.subr.mxu0 0.0
  %249 = vmatpush1.msra.mxu0 0.0
  %250 = vmatprep.subr.mxu0 0.0
  %251 = vmatpush1.msra.mxu0 0.0
  %252 = vmatprep.subr.mxu0 0.0
  %253 = vmatpush1.msra.mxu0 0.0
  %254 = vmatprep.subr.mxu0 0.0
  %255 = vmatpush1.msra.mxu0 0.0
  %256 = vmatprep.subr.mxu0 0.0
  %257 = vmatpush1.msra.mxu0 0.0
  %258 = vmatprep.subr.mxu0 0.0
  %259 = vmatpush1.msra.mxu0 0.0
  %260 = vmatprep.subr.mxu0 0.0
  %261 = vmatpush1.msra.mxu0 0.0
  %262 = vmatprep.subr.mxu0 0.0
  %263 = vmatpush1.msra.mxu0 0.0
  %264 = vmatprep.subr.mxu0 0.0
  %265 = vmatpush1.msra.mxu0 0.0
  %266 = vmatprep.subr.mxu0 0.0
  %267 = vmatpush1.msra.mxu0 0.0
  %268 = vmatprep.subr.mxu0 0.0
  %269 = vmatpush1.msra.mxu0 0.0
  %270 = vmatprep.subr.mxu0 0.0
  %271 = vmatpush1.msra.mxu0 0.0
  %272 = vmatprep.subr.mxu0 0.0
  %273 = vmatpush1.msra.mxu0 0.0
  %274 = vmatprep.subr.mxu0 0.0
  %275 = vmatpush1.msra.mxu0 0.0
  %276 = vmatprep.subr.mxu0 0.0
  %277 = vmatpush1.msra.mxu0 0.0
  %278 = vmatprep.subr.mxu0 0.0
  %279 = vmatpush1.msra.mxu0 0.0
  %280 = vmatprep.subr.mxu0 0.0
  %281 = vmatpush1.msra.mxu0 0.0
  %282 = vmatprep.subr.mxu0 0.0
  %283 = vmatpush1.msra.mxu0 0.0
  %284 = vmatprep.subr.mxu0 0.0
  %285 = vmatpush1.msra.mxu0 0.0
  %286 = vmatprep.subr.mxu0 0.0
  %287 = vmatpush1.msra.mxu0 0.0
  %288 = vmatprep.subr.mxu0 0.0
  %289 = vmatpush1.msra.mxu0 0.0
  %290 = vmatprep.mubr.f32.mxu0 0.0
  %291 = vmatmul.mubr.f32.gmra.mrb[0].mxu0 %v28
  %v292 = vpop.f32.mrb[0].mxu0
  %v293 = vadd.f32 0.0, %v292
  %v294 = vpop.f32.mrb[0].mxu0
  %v295 = vadd.f32 0.0, %v294
  %296 = vmatprep.mubr.f32.mxu0 0.0
  %297 = vmatmul.mubr.f32.gmra.mrb[0].mxu0 %v31
  %v298 = vpop.f32.mrb[0].mxu0
  %v299 = vadd.f32 0.0, %v298
  %v300 = vpop.f32.mrb[0].mxu0
  %v301 = vadd.f32 0.0, %v300
  %302 = vmatprep.mubr.f32.mxu0 0.0
  %303 = vmatmul.mubr.f32.gmra.mrb[0].mxu0 %v34
  %v304 = vpop.f32.mrb[0].mxu0
  %v305 = vadd.f32 0.0, %v304
  %v306 = vpop.f32.mrb[0].mxu0
  %v307 = vadd.f32 0.0, %v306
  %308 = vmatprep.mubr.f32.mxu0 0.0
  %309 = vmatmul.mubr.f32.gmra.mrb[0].mxu0 %v37
  %v310 = vpop.f32.mrb[0].mxu0
  %v311 = vadd.f32 0.0, %v310
  %v312 = vpop.f32.mrb[0].mxu0
  %v313 = vadd.f32 0.0, %v312
  %314 = vdwg.mxu0
  %315 = vmatprep.subr.mxu0 %v221
  %316 = vmatpush1.msra.mxu0 %v220
  %317 = vmatprep.subr.mxu0 %v225
  %318 = vmatpush1.msra.mxu0 %v224
  %319 = vmatprep.subr.mxu0 0.0
  %320 = vmatpush1.msra.mxu0 0.0
  %321 = vmatprep.subr.mxu0 0.0
  %322 = vmatpush1.msra.mxu0 0.0
  %323 = vmatprep.subr.mxu0 0.0
  %324 = vmatpush1.msra.mxu0 0.0
  %325 = vmatprep.subr.mxu0 0.0
  %326 = vmatpush1.msra.mxu0 0.0
  %327 = vmatprep.subr.mxu0 0.0
  %328 = vmatpush1.msra.mxu0 0.0
  %329 = vmatprep.subr.mxu0 0.0
  %330 = vmatpush1.msra.mxu0 0.0
  %331 = vmatprep.subr.mxu0 0.0
  %332 = vmatpush1.msra.mxu0 0.0
  %333 = vmatprep.subr.mxu0 0.0
  %334 = vmatpush1.msra.mxu0 0.0
  %335 = vmatprep.subr.mxu0 0.0
  %336 = vmatpush1.msra.mxu0 0.0
  %337 = vmatprep.subr.mxu0 0.0
  %338 = vmatpush1.msra.mxu0 0.0
  %339 = vmatprep.subr.mxu0 0.0
  %340 = vmatpush1.msra.mxu0 0.0
  %341 = vmatprep.subr.mxu0 0.0
  %342 = vmatpush1.msra.mxu0 0.0
  %343 = vmatprep.subr.mxu0 0.0
  %344 = vmatpush1.msra.mxu0 0.0
  %345 = vmatprep.subr.mxu0 0.0
  %346 = vmatpush1.msra.mxu0 0.0
  %347 = vmatprep.subr.mxu0 0.0
  %348 = vmatpush1.msra.mxu0 0.0
  %349 = vmatprep.subr.mxu0 0.0
  %350 = vmatpush1.msra.mxu0 0.0
  %351 = vmatprep.subr.mxu0 0.0
  %352 = vmatpush1.msra.mxu0 0.0
  %353 = vmatprep.subr.mxu0 0.0
  %354 = vmatpush1.msra.mxu0 0.0
  %355 = vmatprep.subr.mxu0 0.0
  %356 = vmatpush1.msra.mxu0 0.0
  %357 = vmatprep.subr.mxu0 0.0
  %358 = vmatpush1.msra.mxu0 0.0
  %359 = vmatprep.subr.mxu0 0.0
  %360 = vmatpush1.msra.mxu0 0.0
  %361 = vmatprep.subr.mxu0 0.0
  %362 = vmatpush1.msra.mxu0 0.0
  %363 = vmatprep.subr.mxu0 0.0
  %364 = vmatpush1.msra.mxu0 0.0
  %365 = vmatprep.subr.mxu0 0.0
  %366 = vmatpush1.msra.mxu0 0.0
  %367 = vmatprep.subr.mxu0 0.0
  %368 = vmatpush1.msra.mxu0 0.0
  %369 = vmatprep.subr.mxu0 0.0
  %370 = vmatpush1.msra.mxu0 0.0
  %371 = vmatprep.subr.mxu0 0.0
  %372 = vmatpush1.msra.mxu0 0.0
  %373 = vmatprep.subr.mxu0 0.0
  %374 = vmatpush1.msra.mxu0 0.0
  %375 = vmatprep.subr.mxu0 0.0
  %376 = vmatpush1.msra.mxu0 0.0
  %377 = vmatprep.subr.mxu0 0.0
  %378 = vmatpush1.msra.mxu0 0.0
  %379 = vmatprep.mubr.f32.mxu0 0.0
  %380 = vmatmul.mubr.f32.gmra.mrb[0].mxu0 %v28
  %v381 = vpop.f32.mrb[0].mxu0
  %v382 = vadd.f32 0.0, %v381
  %v383 = vpop.f32.mrb[0].mxu0
  %v384 = vadd.f32 0.0, %v383
  %385 = vmatprep.mubr.f32.mxu0 0.0
  %386 = vmatmul.mubr.f32.gmra.mrb[0].mxu0 %v31
  %v387 = vpop.f32.mrb[0].mxu0
  %v388 = vadd.f32 0.0, %v387
  %v389 = vpop.f32.mrb[0].mxu0
  %v390 = vadd.f32 0.0, %v389
  %391 = vmatprep.mubr.f32.mxu0 0.0
  %392 = vmatmul.mubr.f32.gmra.mrb[0].mxu0 %v34
  %v393 = vpop.f32.mrb[0].mxu0
  %v394 = vadd.f32 0.0, %v393
  %v395 = vpop.f32.mrb[0].mxu0
  %v396 = vadd.f32 0.0, %v395
  %397 = vmatprep.mubr.f32.mxu0 0.0
  %398 = vmatmul.mubr.f32.gmra.mrb[0].mxu0 %v37
  %v399 = vpop.f32.mrb[0].mxu0
  %v400 = vadd.f32 0.0, %v399
  %v401 = vpop.f32.mrb[0].mxu0
  %v402 = vadd.f32 0.0, %v401
  %403 = vdwg.mxu0
  %v404 = vmax.f32 %v106, %v293
  %v405 = vmax.f32 %v108, %v295
  %v406 = vmax.f32 %v195, %v382
  %v407 = vmax.f32 %v197, %v384
  %v408 = vmax.f32 %v112, %v299
  %v409 = vmax.f32 %v114, %v301
  %v410 = vmax.f32 %v201, %v388
  %v411 = vmax.f32 %v203, %v390
  %v412 = vmax.f32 %v118, %v305
  %v413 = vmax.f32 %v120, %v307
  %v414 = vmax.f32 %v207, %v394
  %v415 = vmax.f32 %v209, %v396
  %v416 = vmax.f32 %v124, %v311
  %v417 = vmax.f32 %v126, %v313
  %v418 = vmax.f32 %v213, %v400
  %v419 = vmax.f32 %v215, %v402
  %s420 = scalar_lea.vmem %s0, 128
  %v421 = vld [vmem:[%s420] sm:$0xff]
  %v422 = vld [vmem:[%s420 + $0x8] sm:$0xff]
  %v423 = vld [vmem:[%s420 + $0x10] sm:$0xff]
  %v424 = vld [vmem:[%s420 + $0x18] sm:$0xff]
  %v425 = vld [vmem:[%s420 + $0x20] sm:$0xff]
  %v426 = vld [vmem:[%s420 + $0x28] sm:$0xff]
  %v427 = vld [vmem:[%s420 + $0x30] sm:$0xff]
  %v428 = vld [vmem:[%s420 + $0x38] sm:$0xff]
  %429 = vmatprep.subr.mxu0 %v422
  %430 = vmatpush1.msra.mxu0 %v421
  %431 = vmatprep.subr.mxu0 %v426
  %432 = vmatpush1.msra.mxu0 %v425
  %433 = vmatprep.subr.mxu0 0.0
  %434 = vmatpush1.msra.mxu0 0.0
  %435 = vmatprep.subr.mxu0 0.0
  %436 = vmatpush1.msra.mxu0 0.0
  %437 = vmatprep.subr.mxu0 0.0
  %438 = vmatpush1.msra.mxu0 0.0
  %439 = vmatprep.subr.mxu0 0.0
  %440 = vmatpush1.msra.mxu0 0.0
  %441 = vmatprep.subr.mxu0 0.0
  %442 = vmatpush1.msra.mxu0 0.0
  %443 = vmatprep.subr.mxu0 0.0
  %444 = vmatpush1.msra.mxu0 0.0
  %445 = vmatprep.subr.mxu0 0.0
  %446 = vmatpush1.msra.mxu0 0.0
  %447 = vmatprep.subr.mxu0 0.0
  %448 = vmatpush1.msra.mxu0 0.0
  %449 = vmatprep.subr.mxu0 0.0
  %450 = vmatpush1.msra.mxu0 0.0
  %451 = vmatprep.subr.mxu0 0.0
  %452 = vmatpush1.msra.mxu0 0.0
  %453 = vmatprep.subr.mxu0 0.0
  %454 = vmatpush1.msra.mxu0 0.0
  %455 = vmatprep.subr.mxu0 0.0
  %456 = vmatpush1.msra.mxu0 0.0
  %457 = vmatprep.subr.mxu0 0.0
  %458 = vmatpush1.msra.mxu0 0.0
  %459 = vmatprep.subr.mxu0 0.0
  %460 = vmatpush1.msra.mxu0 0.0
  %461 = vmatprep.subr.mxu0 0.0
  %462 = vmatpush1.msra.mxu0 0.0
  %463 = vmatprep.subr.mxu0 0.0
  %464 = vmatpush1.msra.mxu0 0.0
  %465 = vmatprep.subr.mxu0 0.0
  %466 = vmatpush1.msra.mxu0 0.0
  %467 = vmatprep.subr.mxu0 0.0
  %468 = vmatpush1.msra.mxu0 0.0
  %469 = vmatprep.subr.mxu0 0.0
  %470 = vmatpush1.msra.mxu0 0.0
  %471 = vmatprep.subr.mxu0 0.0
  %472 = vmatpush1.msra.mxu0 0.0
  %473 = vmatprep.subr.mxu0 0.0
  %474 = vmatpush1.msra.mxu0 0.0
  %475 = vmatprep.subr.mxu0 0.0
  %476 = vmatpush1.msra.mxu0 0.0
  %477 = vmatprep.subr.mxu0 0.0
  %478 = vmatpush1.msra.mxu0 0.0
  %479 = vmatprep.subr.mxu0 0.0
  %480 = vmatpush1.msra.mxu0 0.0
  %481 = vmatprep.subr.mxu0 0.0
  %482 = vmatpush1.msra.mxu0 0.0
  %483 = vmatprep.subr.mxu0 0.0
  %484 = vmatpush1.msra.mxu0 0.0
  %485 = vmatprep.subr.mxu0 0.0
  %486 = vmatpush1.msra.mxu0 0.0
  %487 = vmatprep.subr.mxu0 0.0
  %488 = vmatpush1.msra.mxu0 0.0
  %489 = vmatprep.subr.mxu0 0.0
  %490 = vmatpush1.msra.mxu0 0.0
  %491 = vmatprep.subr.mxu0 0.0
  %492 = vmatpush1.msra.mxu0 0.0
  %493 = vmatprep.mubr.f32.mxu0 0.0
  %494 = vmatmul.mubr.f32.gmra.mrb[0].mxu0 %v28
  %v495 = vpop.f32.mrb[0].mxu0
  %v496 = vadd.f32 0.0, %v495
  %v497 = vpop.f32.mrb[0].mxu0
  %v498 = vadd.f32 0.0, %v497
  %499 = vmatprep.mubr.f32.mxu0 0.0
  %500 = vmatmul.mubr.f32.gmra.mrb[0].mxu0 %v31
  %v501 = vpop.f32.mrb[0].mxu0
  %v502 = vadd.f32 0.0, %v501
  %v503 = vpop.f32.mrb[0].mxu0
  %v504 = vadd.f32 0.0, %v503
  %505 = vmatprep.mubr.f32.mxu0 0.0
  %506 = vmatmul.mubr.f32.gmra.mrb[0].mxu0 %v34
  %v507 = vpop.f32.mrb[0].mxu0
  %v508 = vadd.f32 0.0, %v507
  %v509 = vpop.f32.mrb[0].mxu0
  %v510 = vadd.f32 0.0, %v509
  %511 = vmatprep.mubr.f32.mxu0 0.0
  %512 = vmatmul.mubr.f32.gmra.mrb[0].mxu0 %v37
  %v513 = vpop.f32.mrb[0].mxu0
  %v514 = vadd.f32 0.0, %v513
  %v515 = vpop.f32.mrb[0].mxu0
  %v516 = vadd.f32 0.0, %v515
  %517 = vdwg.mxu0
  %518 = vmatprep.subr.mxu0 %v424
  %519 = vmatpush1.msra.mxu0 %v423
  %520 = vmatprep.subr.mxu0 %v428
  %521 = vmatpush1.msra.mxu0 %v427
  %522 = vmatprep.subr.mxu0 0.0
  %523 = vmatpush1.msra.mxu0 0.0
  %524 = vmatprep.subr.mxu0 0.0
  %525 = vmatpush1.msra.mxu0 0.0
  %526 = vmatprep.subr.mxu0 0.0
  %527 = vmatpush1.msra.mxu0 0.0
  %528 = vmatprep.subr.mxu0 0.0
  %529 = vmatpush1.msra.mxu0 0.0
  %530 = vmatprep.subr.mxu0 0.0
  %531 = vmatpush1.msra.mxu0 0.0
  %532 = vmatprep.subr.mxu0 0.0
  %533 = vmatpush1.msra.mxu0 0.0
  %534 = vmatprep.subr.mxu0 0.0
  %535 = vmatpush1.msra.mxu0 0.0
  %536 = vmatprep.subr.mxu0 0.0
  %537 = vmatpush1.msra.mxu0 0.0
  %538 = vmatprep.subr.mxu0 0.0
  %539 = vmatpush1.msra.mxu0 0.0
  %540 = vmatprep.subr.mxu0 0.0
  %541 = vmatpush1.msra.mxu0 0.0
  %542 = vmatprep.subr.mxu0 0.0
  %543 = vmatpush1.msra.mxu0 0.0
  %544 = vmatprep.subr.mxu0 0.0
  %545 = vmatpush1.msra.mxu0 0.0
  %546 = vmatprep.subr.mxu0 0.0
  %547 = vmatpush1.msra.mxu0 0.0
  %548 = vmatprep.subr.mxu0 0.0
  %549 = vmatpush1.msra.mxu0 0.0
  %550 = vmatprep.subr.mxu0 0.0
  %551 = vmatpush1.msra.mxu0 0.0
  %552 = vmatprep.subr.mxu0 0.0
  %553 = vmatpush1.msra.mxu0 0.0
  %554 = vmatprep.subr.mxu0 0.0
  %555 = vmatpush1.msra.mxu0 0.0
  %556 = vmatprep.subr.mxu0 0.0
  %557 = vmatpush1.msra.mxu0 0.0
  %558 = vmatprep.subr.mxu0 0.0
  %559 = vmatpush1.msra.mxu0 0.0
  %560 = vmatprep.subr.mxu0 0.0
  %561 = vmatpush1.msra.mxu0 0.0
  %562 = vmatprep.subr.mxu0 0.0
  %563 = vmatpush1.msra.mxu0 0.0
  %564 = vmatprep.subr.mxu0 0.0
  %565 = vmatpush1.msra.mxu0 0.0
  %566 = vmatprep.subr.mxu0 0.0
  %567 = vmatpush1.msra.mxu0 0.0
  %568 = vmatprep.subr.mxu0 0.0
  %569 = vmatpush1.msra.mxu0 0.0
  %570 = vmatprep.subr.mxu0 0.0
  %571 = vmatpush1.msra.mxu0 0.0
  %572 = vmatprep.subr.mxu0 0.0
  %573 = vmatpush1.msra.mxu0 0.0
  %574 = vmatprep.subr.mxu0 0.0
  %575 = vmatpush1.msra.mxu0 0.0
  %576 = vmatprep.subr.mxu0 0.0
  %577 = vmatpush1.msra.mxu0 0.0
  %578 = vmatprep.subr.mxu0 0.0
  %579 = vmatpush1.msra.mxu0 0.0
  %580 = vmatprep.subr.mxu0 0.0
  %581 = vmatpush1.msra.mxu0 0.0
  %582 = vmatprep.mubr.f32.mxu0 0.0
  %583 = vmatmul.mubr.f32.gmra.mrb[0].mxu0 %v28
  %v584 = vpop.f32.mrb[0].mxu0
  %v585 = vadd.f32 0.0, %v584
  %v586 = vpop.f32.mrb[0].mxu0
  %v587 = vadd.f32 0.0, %v586
  %588 = vmatprep.mubr.f32.mxu0 0.0
  %589 = vmatmul.mubr.f32.gmra.mrb[0].mxu0 %v31
  %v590 = vpop.f32.mrb[0].mxu0
  %v591 = vadd.f32 0.0, %v590
  %v592 = vpop.f32.mrb[0].mxu0
  %v593 = vadd.f32 0.0, %v592
  %594 = vmatprep.mubr.f32.mxu0 0.0
  %595 = vmatmul.mubr.f32.gmra.mrb[0].mxu0 %v34
  %v596 = vpop.f32.mrb[0].mxu0
  %v597 = vadd.f32 0.0, %v596
  %v598 = vpop.f32.mrb[0].mxu0
  %v599 = vadd.f32 0.0, %v598
  %600 = vmatprep.mubr.f32.mxu0 0.0
  %601 = vmatmul.mubr.f32.gmra.mrb[0].mxu0 %v37
  %v602 = vpop.f32.mrb[0].mxu0
  %v603 = vadd.f32 0.0, %v602
  %v604 = vpop.f32.mrb[0].mxu0
  %v605 = vadd.f32 0.0, %v604
  %606 = vdwg.mxu0
  %s607 = scalar_lea.vmem %s0, 192
  %v608 = vld [vmem:[%s607] sm:$0xff]
  %v609 = vld [vmem:[%s607 + $0x8] sm:$0xff]
  %v610 = vld [vmem:[%s607 + $0x10] sm:$0xff]
  %v611 = vld [vmem:[%s607 + $0x18] sm:$0xff]
  %v612 = vld [vmem:[%s607 + $0x20] sm:$0xff]
  %v613 = vld [vmem:[%s607 + $0x28] sm:$0xff]
  %v614 = vld [vmem:[%s607 + $0x30] sm:$0xff]
  %v615 = vld [vmem:[%s607 + $0x38] sm:$0xff]
  %616 = vmatprep.subr.mxu0 %v609
  %617 = vmatpush1.msra.mxu0 %v608
  %618 = vmatprep.subr.mxu0 %v613
  %619 = vmatpush1.msra.mxu0 %v612
  %620 = vmatprep.subr.mxu0 0.0
  %621 = vmatpush1.msra.mxu0 0.0
  %622 = vmatprep.subr.mxu0 0.0
  %623 = vmatpush1.msra.mxu0 0.0
  %624 = vmatprep.subr.mxu0 0.0
  %625 = vmatpush1.msra.mxu0 0.0
  %626 = vmatprep.subr.mxu0 0.0
  %627 = vmatpush1.msra.mxu0 0.0
  %628 = vmatprep.subr.mxu0 0.0
  %629 = vmatpush1.msra.mxu0 0.0
  %630 = vmatprep.subr.mxu0 0.0
  %631 = vmatpush1.msra.mxu0 0.0
  %632 = vmatprep.subr.mxu0 0.0
  %633 = vmatpush1.msra.mxu0 0.0
  %634 = vmatprep.subr.mxu0 0.0
  %635 = vmatpush1.msra.mxu0 0.0
  %636 = vmatprep.subr.mxu0 0.0
  %637 = vmatpush1.msra.mxu0 0.0
  %638 = vmatprep.subr.mxu0 0.0
  %639 = vmatpush1.msra.mxu0 0.0
  %640 = vmatprep.subr.mxu0 0.0
  %641 = vmatpush1.msra.mxu0 0.0
  %642 = vmatprep.subr.mxu0 0.0
  %643 = vmatpush1.msra.mxu0 0.0
  %644 = vmatprep.subr.mxu0 0.0
  %645 = vmatpush1.msra.mxu0 0.0
  %646 = vmatprep.subr.mxu0 0.0
  %647 = vmatpush1.msra.mxu0 0.0
  %648 = vmatprep.subr.mxu0 0.0
  %649 = vmatpush1.msra.mxu0 0.0
  %650 = vmatprep.subr.mxu0 0.0
  %651 = vmatpush1.msra.mxu0 0.0
  %652 = vmatprep.subr.mxu0 0.0
  %653 = vmatpush1.msra.mxu0 0.0
  %654 = vmatprep.subr.mxu0 0.0
  %655 = vmatpush1.msra.mxu0 0.0
  %656 = vmatprep.subr.mxu0 0.0
  %657 = vmatpush1.msra.mxu0 0.0
  %658 = vmatprep.subr.mxu0 0.0
  %659 = vmatpush1.msra.mxu0 0.0
  %660 = vmatprep.subr.mxu0 0.0
  %661 = vmatpush1.msra.mxu0 0.0
  %662 = vmatprep.subr.mxu0 0.0
  %663 = vmatpush1.msra.mxu0 0.0
  %664 = vmatprep.subr.mxu0 0.0
  %665 = vmatpush1.msra.mxu0 0.0
  %666 = vmatprep.subr.mxu0 0.0
  %667 = vmatpush1.msra.mxu0 0.0
  %668 = vmatprep.subr.mxu0 0.0
  %669 = vmatpush1.msra.mxu0 0.0
  %670 = vmatprep.subr.mxu0 0.0
  %671 = vmatpush1.msra.mxu0 0.0
  %672 = vmatprep.subr.mxu0 0.0
  %673 = vmatpush1.msra.mxu0 0.0
  %674 = vmatprep.subr.mxu0 0.0
  %675 = vmatpush1.msra.mxu0 0.0
  %676 = vmatprep.subr.mxu0 0.0
  %677 = vmatpush1.msra.mxu0 0.0
  %678 = vmatprep.subr.mxu0 0.0
  %679 = vmatpush1.msra.mxu0 0.0
  %680 = vmatprep.mubr.f32.mxu0 0.0
  %681 = vmatmul.mubr.f32.gmra.mrb[0].mxu0 %v28
  %v682 = vpop.f32.mrb[0].mxu0
  %v683 = vadd.f32 0.0, %v682
  %v684 = vpop.f32.mrb[0].mxu0
  %v685 = vadd.f32 0.0, %v684
  %686 = vmatprep.mubr.f32.mxu0 0.0
  %687 = vmatmul.mubr.f32.gmra.mrb[0].mxu0 %v31
  %v688 = vpop.f32.mrb[0].mxu0
  %v689 = vadd.f32 0.0, %v688
  %v690 = vpop.f32.mrb[0].mxu0
  %v691 = vadd.f32 0.0, %v690
  %692 = vmatprep.mubr.f32.mxu0 0.0
  %693 = vmatmul.mubr.f32.gmra.mrb[0].mxu0 %v34
  %v694 = vpop.f32.mrb[0].mxu0
  %v695 = vadd.f32 0.0, %v694
  %v696 = vpop.f32.mrb[0].mxu0
  %v697 = vadd.f32 0.0, %v696
  %698 = vmatprep.mubr.f32.mxu0 0.0
  %699 = vmatmul.mubr.f32.gmra.mrb[0].mxu0 %v37
  %v700 = vpop.f32.mrb[0].mxu0
  %v701 = vadd.f32 0.0, %v700
  %v702 = vpop.f32.mrb[0].mxu0
  %v703 = vadd.f32 0.0, %v702
  %704 = vdwg.mxu0
  %705 = vmatprep.subr.mxu0 %v611
  %706 = vmatpush1.msra.mxu0 %v610
  %707 = vmatprep.subr.mxu0 %v615
  %708 = vmatpush1.msra.mxu0 %v614
  %709 = vmatprep.subr.mxu0 0.0
  %710 = vmatpush1.msra.mxu0 0.0
  %711 = vmatprep.subr.mxu0 0.0
  %712 = vmatpush1.msra.mxu0 0.0
  %713 = vmatprep.subr.mxu0 0.0
  %714 = vmatpush1.msra.mxu0 0.0
  %715 = vmatprep.subr.mxu0 0.0
  %716 = vmatpush1.msra.mxu0 0.0
  %717 = vmatprep.subr.mxu0 0.0
  %718 = vmatpush1.msra.mxu0 0.0
  %719 = vmatprep.subr.mxu0 0.0
  %720 = vmatpush1.msra.mxu0 0.0
  %721 = vmatprep.subr.mxu0 0.0
  %722 = vmatpush1.msra.mxu0 0.0
  %723 = vmatprep.subr.mxu0 0.0
  %724 = vmatpush1.msra.mxu0 0.0
  %725 = vmatprep.subr.mxu0 0.0
  %726 = vmatpush1.msra.mxu0 0.0
  %727 = vmatprep.subr.mxu0 0.0
  %728 = vmatpush1.msra.mxu0 0.0
  %729 = vmatprep.subr.mxu0 0.0
  %730 = vmatpush1.msra.mxu0 0.0
  %731 = vmatprep.subr.mxu0 0.0
  %732 = vmatpush1.msra.mxu0 0.0
  %733 = vmatprep.subr.mxu0 0.0
  %734 = vmatpush1.msra.mxu0 0.0
  %735 = vmatprep.subr.mxu0 0.0
  %736 = vmatpush1.msra.mxu0 0.0
  %737 = vmatprep.subr.mxu0 0.0
  %738 = vmatpush1.msra.mxu0 0.0
  %739 = vmatprep.subr.mxu0 0.0
  %740 = vmatpush1.msra.mxu0 0.0
  %741 = vmatprep.subr.mxu0 0.0
  %742 = vmatpush1.msra.mxu0 0.0
  %743 = vmatprep.subr.mxu0 0.0
  %744 = vmatpush1.msra.mxu0 0.0
  %745 = vmatprep.subr.mxu0 0.0
  %746 = vmatpush1.msra.mxu0 0.0
  %747 = vmatprep.subr.mxu0 0.0
  %748 = vmatpush1.msra.mxu0 0.0
  %749 = vmatprep.subr.mxu0 0.0
  %750 = vmatpush1.msra.mxu0 0.0
  %751 = vmatprep.subr.mxu0 0.0
  %752 = vmatpush1.msra.mxu0 0.0
  %753 = vmatprep.subr.mxu0 0.0
  %754 = vmatpush1.msra.mxu0 0.0
  %755 = vmatprep.subr.mxu0 0.0
  %756 = vmatpush1.msra.mxu0 0.0
  %757 = vmatprep.subr.mxu0 0.0
  %758 = vmatpush1.msra.mxu0 0.0
  %759 = vmatprep.subr.mxu0 0.0
  %760 = vmatpush1.msra.mxu0 0.0
  %761 = vmatprep.subr.mxu0 0.0
  %762 = vmatpush1.msra.mxu0 0.0
  %763 = vmatprep.subr.mxu0 0.0
  %764 = vmatpush1.msra.mxu0 0.0
  %765 = vmatprep.subr.mxu0 0.0
  %766 = vmatpush1.msra.mxu0 0.0
  %767 = vmatprep.subr.mxu0 0.0
  %768 = vmatpush1.msra.mxu0 0.0
  %769 = vmatprep.mubr.f32.mxu0 0.0
  %770 = vmatmul.mubr.f32.gmra.mrb[0].mxu0 %v28
  %v771 = vpop.f32.mrb[0].mxu0
  %v772 = vadd.f32 0.0, %v771
  %v773 = vpop.f32.mrb[0].mxu0
  %v774 = vadd.f32 0.0, %v773
  %775 = vmatprep.mubr.f32.mxu0 0.0
  %776 = vmatmul.mubr.f32.gmra.mrb[0].mxu0 %v31
  %v777 = vpop.f32.mrb[0].mxu0
  %v778 = vadd.f32 0.0, %v777
  %v779 = vpop.f32.mrb[0].mxu0
  %v780 = vadd.f32 0.0, %v779
  %781 = vmatprep.mubr.f32.mxu0 0.0
  %782 = vmatmul.mubr.f32.gmra.mrb[0].mxu0 %v34
  %v783 = vpop.f32.mrb[0].mxu0
  %v784 = vadd.f32 0.0, %v783
  %v785 = vpop.f32.mrb[0].mxu0
  %v786 = vadd.f32 0.0, %v785
  %787 = vmatprep.mubr.f32.mxu0 0.0
  %788 = vmatmul.mubr.f32.gmra.mrb[0].mxu0 %v37
  %v789 = vpop.f32.mrb[0].mxu0
  %v790 = vadd.f32 0.0, %v789
  %v791 = vpop.f32.mrb[0].mxu0
  %v792 = vadd.f32 0.0, %v791
  %793 = vdwg.mxu0
  %v794 = vmax.f32 %v496, %v683
  %v795 = vmax.f32 %v498, %v685
  %v796 = vmax.f32 %v585, %v772
  %v797 = vmax.f32 %v587, %v774
  %v798 = vmax.f32 %v502, %v689
  %v799 = vmax.f32 %v504, %v691
  %v800 = vmax.f32 %v591, %v778
  %v801 = vmax.f32 %v593, %v780
  %v802 = vmax.f32 %v508, %v695
  %v803 = vmax.f32 %v510, %v697
  %v804 = vmax.f32 %v597, %v784
  %v805 = vmax.f32 %v599, %v786
  %v806 = vmax.f32 %v514, %v701
  %v807 = vmax.f32 %v516, %v703
  %v808 = vmax.f32 %v603, %v790
  %v809 = vmax.f32 %v605, %v792
  %v810 = vmax.f32 %v404, %v794
  %v811 = vmax.f32 %v405, %v795
  %v812 = vmax.f32 %v406, %v796
  %v813 = vmax.f32 %v407, %v797
  %v814 = vmax.f32 %v408, %v798
  %v815 = vmax.f32 %v409, %v799
  %v816 = vmax.f32 %v410, %v800
  %v817 = vmax.f32 %v411, %v801
  %v818 = vmax.f32 %v412, %v802
  %v819 = vmax.f32 %v413, %v803
  %v820 = vmax.f32 %v414, %v804
  %v821 = vmax.f32 %v415, %v805
  %v822 = vmax.f32 %v416, %v806
  %v823 = vmax.f32 %v417, %v807
  %v824 = vmax.f32 %v418, %v808
  %v825 = vmax.f32 %v419, %v809
  %v826 = vld [vmem:[%s2] sm:$0xff]
  %v827 = vld [vmem:[%s2 + $0x8] sm:$0xff]
  %v828 = vld [vmem:[%s2 + $0x10] sm:$0xff]
  %v829 = vld [vmem:[%s2 + $0x18] sm:$0xff]
  %831 = vset.pattern.permute.xlu0 0
  %832 = vperm.xlu0 %831, %v826
  %v833 = vpop.permute.xlu0 %832
  %836 = vset.pattern.permute.xlu0 0
  %837 = vperm.xlu0 %836, %v827
  %v838 = vpop.permute.xlu0 %837
  %841 = vset.pattern.permute.xlu0 0
  %842 = vperm.xlu0 %841, %v828
  %v843 = vpop.permute.xlu0 %842
  %846 = vset.pattern.permute.xlu0 0
  %847 = vperm.xlu0 %846, %v829
  %v848 = vpop.permute.xlu0 %847
  %v850 = vadd.f32 %v810, %v833
  %v851 = vadd.f32 %v811, %v833
  %v852 = vadd.f32 %v812, %v833
  %v853 = vadd.f32 %v813, %v833
  %v854 = vadd.f32 %v814, %v838
  %v855 = vadd.f32 %v815, %v838
  %v856 = vadd.f32 %v816, %v838
  %v857 = vadd.f32 %v817, %v838
  %v858 = vadd.f32 %v818, %v843
  %v859 = vadd.f32 %v819, %v843
  %v860 = vadd.f32 %v820, %v843
  %v861 = vadd.f32 %v821, %v843
  %v862 = vadd.f32 %v822, %v848
  %v863 = vadd.f32 %v823, %v848
  %v864 = vadd.f32 %v824, %v848
  %v865 = vadd.f32 %v825, %v848
  %v866 = vmax.f32 %v850, 0.0
  %v867 = vmax.f32 %v851, 0.0
  %v868 = vmax.f32 %v852, 0.0
  %v869 = vmax.f32 %v853, 0.0
  %v870 = vmax.f32 %v854, 0.0
  %v871 = vmax.f32 %v855, 0.0
  %v872 = vmax.f32 %v856, 0.0
  %v873 = vmax.f32 %v857, 0.0
  %v874 = vmax.f32 %v858, 0.0
  %v875 = vmax.f32 %v859, 0.0
  %v876 = vmax.f32 %v860, 0.0
  %v877 = vmax.f32 %v861, 0.0
  %v878 = vmax.f32 %v862, 0.0
  %v879 = vmax.f32 %v863, 0.0
  %v880 = vmax.f32 %v864, 0.0
  %v881 = vmax.f32 %v865, 0.0
  %882 = vst [vmem:[%s3] sm:$0xff] %v866
  %883 = vst [vmem:[%s3 + $0x8] sm:$0xff] %v867
  %884 = vst [vmem:[%s3 + $0x10] sm:$0xff] %v868
  %vm885 = vcmask 64512
  %886 = vst.msk [vmem:[%s3 + $0x18] sm:$0xff] %vm885, %v869
  %887 = vst [vmem:[%s3 + $0x20] sm:$0xff] %v870
  %888 = vst [vmem:[%s3 + $0x28] sm:$0xff] %v871
  %889 = vst [vmem:[%s3 + $0x30] sm:$0xff] %v872
  %890 = vst.msk [vmem:[%s3 + $0x38] sm:$0xff] %vm885, %v873
  %891 = vst [vmem:[%s3 + $0x40] sm:$0xff] %v874
  %892 = vst [vmem:[%s3 + $0x48] sm:$0xff] %v875
  %893 = vst [vmem:[%s3 + $0x50] sm:$0xff] %v876
  %894 = vst.msk [vmem:[%s3 + $0x58] sm:$0xff] %vm885, %v877
  %895 = vst [vmem:[%s3 + $0x60] sm:$0xff] %v878
  %896 = vst [vmem:[%s3 + $0x68] sm:$0xff] %v879
  %897 = vst [vmem:[%s3 + $0x70] sm:$0xff] %v880
  %898 = vst.msk [vmem:[%s3 + $0x78] sm:$0xff] %vm885, %v881
  // Predicated region
  $region14: #{forward.2} parent=0 // pred_check
    _
  $region15: #{forward.2} parent=0 // pred_check_branch
    %900 = sbr.rel (0) target = $region17
  $region16: #{forward.2} parent=0 // pred_region
    _
  $region17: #{forward.2} parent=0 // pred_fallthru
    _
  // Predicated region
  $region18: #{forward.2} parent=0 // pred_check
    _
  $region19: #{forward.2} parent=0 // pred_check_branch
    %902 = sbr.rel (0) target = $region21
  $region20: #{forward.2} parent=0 // pred_region
    _
  $region21: #{forward.2} parent=0 // pred_fallthru
    _

// kernel: forward.3
$region0: #{forward.3}
  #allocation0 [shape = 'u32[]', space=smem, size = 0x4, offset = 0x4, fixed_abs, tag = 'smem constant byte address 0x4 - core index']
  #allocation1 [shape = 'u32[144,128]{1,0:T(1,128)}', space=vmem, size = 0x12000, scoped, tag = 'internal scratch']
  #allocation2 [shape = 'bf16[3136,128]{1,0:T(16,128)(2,1)}', space=vmem, size = 0xc4000, scoped, tag = 'scratch operand']
  #allocation3 [shape = 's32[1]{0}', space=sflag, size = 0x4, scoped, tag = 'scratch operand']
  #allocation6 [shape = 's32[]', space=sflag, size = 0x4, offset = 0, fixed_abs, tag = 'sflag constant byte address 0x0 - dummy sync flag']
  %s0 = inlined_call_operand.vmem [shape: f32[98,512], index: 0, kind: input, shape index: {}]
  %s1 = inlined_call_operand.vmem [shape: f32[9,32,64], index: 1, kind: input, shape index: {}]
  %s2 = inlined_call_operand.vmem [shape: f32[1,64], index: 2, kind: input, shape index: {}]
  %s3 = inlined_call_operand.vmem [shape: bf16[3136,128], index: 3, kind: input, shape index: {}]
  %s4 = inlined_call_operand.vmem [shape: f32[1,128], index: 4, kind: input, shape index: {}]
  %s5 = inlined_call_operand.vmem [shape: bf16[128,128], index: 5, kind: input, shape index: {}]
  %s6 = inlined_call_operand.vmem [shape: f32[1,128], index: 6, kind: input, shape index: {}]
  %s7 = inlined_call_operand.hbm [shape: f32[2,128], index: 7, kind: output, shape index: {}]
  %s8 = sld [smem:[#allocation0]]
  $region68: #{forward.3} parent=0
    _
  %s10 = ssub.s32 1, %s8
  %s11 = scalar_select 0, %s10, %s8
  $region1: #{forward.3} parent=0
    #allocation4 [shape = 'u8[1024]{0}', space=vmem, size = 0x400, scoped, tag = 'output window, operand 0, single buffered']
    #allocation5 [shape = 's32[1]{0}', space=sflag, size = 0x4, scoped, tag = 'scoped memory for forward.3']
    %12 = vsyncpa [#allocation5], 0
    // Predicated region
    $region2: #{forward.3} parent=1 // pred_check
      _
    $region3: #{forward.3} parent=1 // pred_check_branch
      %14 = sbr.rel (0) target = $region5
    $region4: #{forward.3} parent=1 // pred_region
      _
    $region5: #{forward.3} parent=1 // pred_fallthru
      _
    // Predicated region
    $region6: #{forward.3} parent=1 // pred_check
      _
    $region7: #{forward.3} parent=1 // pred_check_branch
      %16 = sbr.rel (0) target = $region9
    $region8: #{forward.3} parent=1 // pred_region
      _
    $region9: #{forward.3} parent=1 // pred_fallthru
      _
    // Predicated region
    $region10: #{forward.3} parent=1 // pred_check
      _
    $region11: #{forward.3} parent=1 // pred_check_branch
      %18 = sbr.rel (0) target = $region13
    $region12: #{forward.3} parent=1 // pred_region
      _
    $region13: #{forward.3} parent=1 // pred_fallthru
      _
    // Predicated region
    $region14: #{forward.3} parent=1 // pred_check
      _
    $region15: #{forward.3} parent=1 // pred_check_branch
      %20 = sbr.rel (0) target = $region17
    $region16: #{forward.3} parent=1 // pred_region
      _
    $region17: #{forward.3} parent=1 // pred_fallthru
      _
    // Predicated region
    $region18: #{forward.3} parent=1 // pred_check
      _
    $region19: #{forward.3} parent=1 // pred_check_branch
      %22 = sbr.rel (0) target = $region21
    $region20: #{forward.3} parent=1 // pred_region
      _
    $region21: #{forward.3} parent=1 // pred_fallthru
      _
    // Predicated region
    $region22: #{forward.3} parent=1 // pred_check
      _
    $region23: #{forward.3} parent=1 // pred_check_branch
      %24 = sbr.rel (0) target = $region25
    $region24: #{forward.3} parent=1 // pred_region
      _
    $region25: #{forward.3} parent=1 // pred_fallthru
      _
    %p27 = scmp.lt.u32.totalorder 1568, 8
    %p28 = pneg %p27
    // Predicated region
    $region26: #{forward.3} parent=1 // pred_check
      _
    $region27: #{forward.3} parent=1 // pred_check_branch
      %30 = sbr.rel (%p27) target = $region29
    $region28: #{forward.3} parent=1 // pred_region
      %s45 = sand.u32 1568, 7
      %p46 = scmp.eq.s32.totalorder %s45, 0
      // Predicated region
      $region41: #{forward.3} parent=28 // pred_check
        %p47 = pneg %p46
      $region42: #{forward.3} parent=28 // pred_check_branch
        %49 = sbr.rel (%p47) target = $region44
      $region43: #{forward.3} parent=28 // pred_region
        loop: start=0, step=1, limit=1
        $region45: #{forward.3} parent=43 // loop_pre_header
          _
        $region46: #{forward.3} parent=43 // loop_header
          %s51 = sphi 0, %s55
          %p52 = scmp.ge.s32.totalorder %s51, 1
          %s56 = sphi %s3, %s3
          %s57 = sphi [#allocation2], [#allocation2]
        $region47: #{forward.3} parent=43 // loop_header_branch
          %54 = sbr.rel (%p52) target = $region51
        $region48: #{forward.3} parent=43 // loop_body
          %v58 = vld [vmem:[%s56] sm:$0xff]
          %59 = vst [vmem:[%s57] sm:$0xff] %v58
          %v60 = vld [vmem:[%s56 + $0x8] sm:$0xff]
          %61 = vst [vmem:[%s57 + $0x8] sm:$0xff] %v60
          %v62 = vld [vmem:[%s56 + $0x10] sm:$0xff]
          %63 = vst [vmem:[%s57 + $0x10] sm:$0xff] %v62
          %v64 = vld [vmem:[%s56 + $0x18] sm:$0xff]
          %65 = vst [vmem:[%s57 + $0x18] sm:$0xff] %v64
          %v66 = vld [vmem:[%s56 + $0x20] sm:$0xff]
          %67 = vst [vmem:[%s57 + $0x20] sm:$0xff] %v66
          %v68 = vld [vmem:[%s56 + $0x28] sm:$0xff]
          %69 = vst [vmem:[%s57 + $0x28] sm:$0xff] %v68
          %v70 = vld [vmem:[%s56 + $0x30] sm:$0xff]
          %71 = vst [vmem:[%s57 + $0x30] sm:$0xff] %v70
          %v72 = vld [vmem:[%s56 + $0x38] sm:$0xff]
          %73 = vst [vmem:[%s57 + $0x38] sm:$0xff] %v72
          %v74 = vld [vmem:[%s56 + $0x40] sm:$0xff]
          %75 = vst [vmem:[%s57 + $0x40] sm:$0xff] %v74
          %v76 = vld [vmem:[%s56 + $0x48] sm:$0xff]
          %77 = vst [vmem:[%s57 + $0x48] sm:$0xff] %v76
          %v78 = vld [vmem:[%s56 + $0x50] sm:$0xff]
          %79 = vst [vmem:[%s57 + $0x50] sm:$0xff] %v78
          %v80 = vld [vmem:[%s56 + $0x58] sm:$0xff]
          %81 = vst [vmem:[%s57 + $0x58] sm:$0xff] %v80
          %v82 = vld [vmem:[%s56 + $0x60] sm:$0xff]
          %83 = vst [vmem:[%s57 + $0x60] sm:$0xff] %v82
          %v84 = vld [vmem:[%s56 + $0x68] sm:$0xff]
          %85 = vst [vmem:[%s57 + $0x68] sm:$0xff] %v84
          %v86 = vld [vmem:[%s56 + $0x70] sm:$0xff]
          %87 = vst [vmem:[%s57 + $0x70] sm:$0xff] %v86
          %v88 = vld [vmem:[%s56 + $0x78] sm:$0xff]
          %89 = vst [vmem:[%s57 + $0x78] sm:$0xff] %v88
          %v90 = vld [vmem:[%s56 + $0x80] sm:$0xff]
          %91 = vst [vmem:[%s57 + $0x80] sm:$0xff] %v90
          %v92 = vld [vmem:[%s56 + $0x88] sm:$0xff]
          %93 = vst [vmem:[%s57 + $0x88] sm:$0xff] %v92
          %v94 = vld [vmem:[%s56 + $0x90] sm:$0xff]
          %95 = vst [vmem:[%s57 + $0x90] sm:$0xff] %v94
          %v96 = vld [vmem:[%s56 + $0x98] sm:$0xff]
          %97 = vst [vmem:[%s57 + $0x98] sm:$0xff] %v96
          %v98 = vld [vmem:[%s56 + $0xa0] sm:$0xff]
          %99 = vst [vmem:[%s57 + $0xa0] sm:$0xff] %v98
          %v100 = vld [vmem:[%s56 + $0xa8] sm:$0xff]
          %101 = vst [vmem:[%s57 + $0xa8] sm:$0xff] %v100
          %v102 = vld [vmem:[%s56 + $0xb0] sm:$0xff]
          %103 = vst [vmem:[%s57 + $0xb0] sm:$0xff] %v102
          %v104 = vld [vmem:[%s56 + $0xb8] sm:$0xff]
          %105 = vst [vmem:[%s57 + $0xb8] sm:$0xff] %v104
          %v106 = vld [vmem:[%s56 + $0xc0] sm:$0xff]
          %107 = vst [vmem:[%s57 + $0xc0] sm:$0xff] %v106
          %v108 = vld [vmem:[%s56 + $0xc8] sm:$0xff]
          %109 = vst [vmem:[%s57 + $0xc8] sm:$0xff] %v108
          %v110 = vld [vmem:[%s56 + $0xd0] sm:$0xff]
          %111 = vst [vmem:[%s57 + $0xd0] sm:$0xff] %v110
          %v112 = vld [vmem:[%s56 + $0xd8] sm:$0xff]
          %113 = vst [vmem:[%s57 + $0xd8] sm:$0xff] %v112
          %v114 = vld [vmem:[%s56 + $0xe0] sm:$0xff]
          %115 = vst [vmem:[%s57 + $0xe0] sm:$0xff] %v114
          %v116 = vld [vmem:[%s56 + $0xe8] sm:$0xff]
          %117 = vst [vmem:[%s57 + $0xe8] sm:$0xff] %v116
          %v118 = vld [vmem:[%s56 + $0xf0] sm:$0xff]
          %119 = vst [vmem:[%s57 + $0xf0] sm:$0xff] %v118
          %v120 = vld [vmem:[%s56 + $0xf8] sm:$0xff]
          %121 = vst [vmem:[%s57 + $0xf8] sm:$0xff] %v120
          %v122 = vld [vmem:[%s56 + $0x100] sm:$0xff]
          %123 = vst [vmem:[%s57 + $0x100] sm:$0xff] %v122
          %v124 = vld [vmem:[%s56 + $0x108] sm:$0xff]
          %125 = vst [vmem:[%s57 + $0x108] sm:$0xff] %v124
          %v126 = vld [vmem:[%s56 + $0x110] sm:$0xff]
          %127 = vst [vmem:[%s57 + $0x110] sm:$0xff] %v126
          %v128 = vld [vmem:[%s56 + $0x118] sm:$0xff]
          %129 = vst [vmem:[%s57 + $0x118] sm:$0xff] %v128
          %v130 = vld [vmem:[%s56 + $0x120] sm:$0xff]
          %131 = vst [vmem:[%s57 + $0x120] sm:$0xff] %v130
          %v132 = vld [vmem:[%s56 + $0x128] sm:$0xff]
          %133 = vst [vmem:[%s57 + $0x128] sm:$0xff] %v132
          %v134 = vld [vmem:[%s56 + $0x130] sm:$0xff]
          %135 = vst [vmem:[%s57 + $0x130] sm:$0xff] %v134
          %v136 = vld [vmem:[%s56 + $0x138] sm:$0xff]
          %137 = vst [vmem:[%s57 + $0x138] sm:$0xff] %v136
          %v138 = vld [vmem:[%s56 + $0x140] sm:$0xff]
          %139 = vst [vmem:[%s57 + $0x140] sm:$0xff] %v138
          %v140 = vld [vmem:[%s56 + $0x148] sm:$0xff]
          %141 = vst [vmem:[%s57 + $0x148] sm:$0xff] %v140
          %v142 = vld [vmem:[%s56 + $0x150] sm:$0xff]
          %143 = vst [vmem:[%s57 + $0x150] sm:$0xff] %v142
          %v144 = vld [vmem:[%s56 + $0x158] sm:$0xff]
          %145 = vst [vmem:[%s57 + $0x158] sm:$0xff] %v144
          %v146 = vld [vmem:[%s56 + $0x160] sm:$0xff]
          %147 = vst [vmem:[%s57 + $0x160] sm:$0xff] %v146
          %v148 = vld [vmem:[%s56 + $0x168] sm:$0xff]
          %149 = vst [vmem:[%s57 + $0x168] sm:$0xff] %v148
          %v150 = vld [vmem:[%s56 + $0x170] sm:$0xff]
          %151 = vst [vmem:[%s57 + $0x170] sm:$0xff] %v150
          %v152 = vld [vmem:[%s56 + $0x178] sm:$0xff]
          %153 = vst [vmem:[%s57 + $0x178] sm:$0xff] %v152
          %v154 = vld [vmem:[%s56 + $0x180] sm:$0xff]
          %155 = vst [vmem:[%s57 + $0x180] sm:$0xff] %v154
          %v156 = vld [vmem:[%s56 + $0x188] sm:$0xff]
          %157 = vst [vmem:[%s57 + $0x188] sm:$0xff] %v156
          %v158 = vld [vmem:[%s56 + $0x190] sm:$0xff]
          %159 = vst [vmem:[%s57 + $0x190] sm:$0xff] %v158
          %v160 = vld [vmem:[%s56 + $0x198] sm:$0xff]
          %161 = vst [vmem:[%s57 + $0x198] sm:$0xff] %v160
          %v162 = vld [vmem:[%s56 + $0x1a0] sm:$0xff]
          %163 = vst [vmem:[%s57 + $0x1a0] sm:$0xff] %v162
          %v164 = vld [vmem:[%s56 + $0x1a8] sm:$0xff]
          %165 = vst [vmem:[%s57 + $0x1a8] sm:$0xff] %v164
          %v166 = vld [vmem:[%s56 + $0x1b0] sm:$0xff]
          %167 = vst [vmem:[%s57 + $0x1b0] sm:$0xff] %v166
          %v168 = vld [vmem:[%s56 + $0x1b8] sm:$0xff]
          %169 = vst [vmem:[%s57 + $0x1b8] sm:$0xff] %v168
          %v170 = vld [vmem:[%s56 + $0x1c0] sm:$0xff]
          %171 = vst [vmem:[%s57 + $0x1c0] sm:$0xff] %v170
          %v172 = vld [vmem:[%s56 + $0x1c8] sm:$0xff]
          %173 = vst [vmem:[%s57 + $0x1c8] sm:$0xff] %v172
          %v174 = vld [vmem:[%s56 + $0x1d0] sm:$0xff]
          %175 = vst [vmem:[%s57 + $0x1d0] sm:$0xff] %v174
          %v176 = vld [vmem:[%s56 + $0x1d8] sm:$0xff]
          %177 = vst [vmem:[%s57 + $0x1d8] sm:$0xff] %v176
          %v178 = vld [vmem:[%s56 + $0x1e0] sm:$0xff]
          %179 = vst [vmem:[%s57 + $0x1e0] sm:$0xff] %v178
          %v180 = vld [vmem:[%s56 + $0x1e8] sm:$0xff]
          %181 = vst [vmem:[%s57 + $0x1e8] sm:$0xff] %v180
          %v182 = vld [vmem:[%s56 + $0x1f0] sm:$0xff]
          %183 = vst [vmem:[%s57 + $0x1f0] sm:$0xff] %v182
          %v184 = vld [vmem:[%s56 + $0x1f8] sm:$0xff]
          %185 = vst [vmem:[%s57 + $0x1f8] sm:$0xff] %v184
          %v186 = vld [vmem:[%s56 + $0x200] sm:$0xff]
          %187 = vst [vmem:[%s57 + $0x200] sm:$0xff] %v186
          %v188 = vld [vmem:[%s56 + $0x208] sm:$0xff]
          %189 = vst [vmem:[%s57 + $0x208] sm:$0xff] %v188
          %v190 = vld [vmem:[%s56 + $0x210] sm:$0xff]
          %191 = vst [vmem:[%s57 + $0x210] sm:$0xff] %v190
          %v192 = vld [vmem:[%s56 + $0x218] sm:$0xff]
          %193 = vst [vmem:[%s57 + $0x218] sm:$0xff] %v192
          %v194 = vld [vmem:[%s56 + $0x220] sm:$0xff]
          %195 = vst [vmem:[%s57 + $0x220] sm:$0xff] %v194
          %v196 = vld [vmem:[%s56 + $0x228] sm:$0xff]
          %197 = vst [vmem:[%s57 + $0x228] sm:$0xff] %v196
          %v198 = vld [vmem:[%s56 + $0x230] sm:$0xff]
          %199 = vst [vmem:[%s57 + $0x230] sm:$0xff] %v198
          %v200 = vld [vmem:[%s56 + $0x238] sm:$0xff]
          %201 = vst [vmem:[%s57 + $0x238] sm:$0xff] %v200
          %v202 = vld [vmem:[%s56 + $0x240] sm:$0xff]
          %203 = vst [vmem:[%s57 + $0x240] sm:$0xff] %v202
          %v204 = vld [vmem:[%s56 + $0x248] sm:$0xff]
          %205 = vst [vmem:[%s57 + $0x248] sm:$0xff] %v204
          %v206 = vld [vmem:[%s56 + $0x250] sm:$0xff]
          %207 = vst [vmem:[%s57 + $0x250] sm:$0xff] %v206
          %v208 = vld [vmem:[%s56 + $0x258] sm:$0xff]
          %209 = vst [vmem:[%s57 + $0x258] sm:$0xff] %v208
          %v210 = vld [vmem:[%s56 + $0x260] sm:$0xff]
          %211 = vst [vmem:[%s57 + $0x260] sm:$0xff] %v210
          %v212 = vld [vmem:[%s56 + $0x268] sm:$0xff]
          %213 = vst [vmem:[%s57 + $0x268] sm:$0xff] %v212
          %v214 = vld [vmem:[%s56 + $0x270] sm:$0xff]
          %215 = vst [vmem:[%s57 + $0x270] sm:$0xff] %v214
          %v216 = vld [vmem:[%s56 + $0x278] sm:$0xff]
          %217 = vst [vmem:[%s57 + $0x278] sm:$0xff] %v216
          %v218 = vld [vmem:[%s56 + $0x280] sm:$0xff]
          %219 = vst [vmem:[%s57 + $0x280] sm:$0xff] %v218
          %v220 = vld [vmem:[%s56 + $0x288] sm:$0xff]
          %221 = vst [vmem:[%s57 + $0x288] sm:$0xff] %v220
          %v222 = vld [vmem:[%s56 + $0x290] sm:$0xff]
          %223 = vst [vmem:[%s57 + $0x290] sm:$0xff] %v222
          %v224 = vld [vmem:[%s56 + $0x298] sm:$0xff]
          %225 = vst [vmem:[%s57 + $0x298] sm:$0xff] %v224
          %v226 = vld [vmem:[%s56 + $0x2a0] sm:$0xff]
          %227 = vst [vmem:[%s57 + $0x2a0] sm:$0xff] %v226
          %v228 = vld [vmem:[%s56 + $0x2a8] sm:$0xff]
          %229 = vst [vmem:[%s57 + $0x2a8] sm:$0xff] %v228
          %v230 = vld [vmem:[%s56 + $0x2b0] sm:$0xff]
          %231 = vst [vmem:[%s57 + $0x2b0] sm:$0xff] %v230
          %v232 = vld [vmem:[%s56 + $0x2b8] sm:$0xff]
          %233 = vst [vmem:[%s57 + $0x2b8] sm:$0xff] %v232
          %v234 = vld [vmem:[%s56 + $0x2c0] sm:$0xff]
          %235 = vst [vmem:[%s57 + $0x2c0] sm:$0xff] %v234
          %v236 = vld [vmem:[%s56 + $0x2c8] sm:$0xff]
          %237 = vst [vmem:[%s57 + $0x2c8] sm:$0xff] %v236
          %v238 = vld [vmem:[%s56 + $0x2d0] sm:$0xff]
          %239 = vst [vmem:[%s57 + $0x2d0] sm:$0xff] %v238
          %v240 = vld [vmem:[%s56 + $0x2d8] sm:$0xff]
          %241 = vst [vmem:[%s57 + $0x2d8] sm:$0xff] %v240
          %v242 = vld [vmem:[%s56 + $0x2e0] sm:$0xff]
          %243 = vst [vmem:[%s57 + $0x2e0] sm:$0xff] %v242
          %v244 = vld [vmem:[%s56 + $0x2e8] sm:$0xff]
          %245 = vst [vmem:[%s57 + $0x2e8] sm:$0xff] %v244
          %v246 = vld [vmem:[%s56 + $0x2f0] sm:$0xff]
          %247 = vst [vmem:[%s57 + $0x2f0] sm:$0xff] %v246
          %v248 = vld [vmem:[%s56 + $0x2f8] sm:$0xff]
          %249 = vst [vmem:[%s57 + $0x2f8] sm:$0xff] %v248
          %v250 = vld [vmem:[%s56 + $0x300] sm:$0xff]
          %251 = vst [vmem:[%s57 + $0x300] sm:$0xff] %v250
          %v252 = vld [vmem:[%s56 + $0x308] sm:$0xff]
          %253 = vst [vmem:[%s57 + $0x308] sm:$0xff] %v252
          %v254 = vld [vmem:[%s56 + $0x310] sm:$0xff]
          %255 = vst [vmem:[%s57 + $0x310] sm:$0xff] %v254
          %v256 = vld [vmem:[%s56 + $0x318] sm:$0xff]
          %257 = vst [vmem:[%s57 + $0x318] sm:$0xff] %v256
          %v258 = vld [vmem:[%s56 + $0x320] sm:$0xff]
          %259 = vst [vmem:[%s57 + $0x320] sm:$0xff] %v258
          %v260 = vld [vmem:[%s56 + $0x328] sm:$0xff]
          %261 = vst [vmem:[%s57 + $0x328] sm:$0xff] %v260
          %v262 = vld [vmem:[%s56 + $0x330] sm:$0xff]
          %263 = vst [vmem:[%s57 + $0x330] sm:$0xff] %v262
          %v264 = vld [vmem:[%s56 + $0x338] sm:$0xff]
          %265 = vst [vmem:[%s57 + $0x338] sm:$0xff] %v264
          %v266 = vld [vmem:[%s56 + $0x340] sm:$0xff]
          %267 = vst [vmem:[%s57 + $0x340] sm:$0xff] %v266
          %v268 = vld [vmem:[%s56 + $0x348] sm:$0xff]
          %269 = vst [vmem:[%s57 + $0x348] sm:$0xff] %v268
          %v270 = vld [vmem:[%s56 + $0x350] sm:$0xff]
          %271 = vst [vmem:[%s57 + $0x350] sm:$0xff] %v270
          %v272 = vld [vmem:[%s56 + $0x358] sm:$0xff]
          %273 = vst [vmem:[%s57 + $0x358] sm:$0xff] %v272
          %v274 = vld [vmem:[%s56 + $0x360] sm:$0xff]
          %275 = vst [vmem:[%s57 + $0x360] sm:$0xff] %v274
          %v276 = vld [vmem:[%s56 + $0x368] sm:$0xff]
          %277 = vst [vmem:[%s57 + $0x368] sm:$0xff] %v276
          %v278 = vld [vmem:[%s56 + $0x370] sm:$0xff]
          %279 = vst [vmem:[%s57 + $0x370] sm:$0xff] %v278
          %v280 = vld [vmem:[%s56 + $0x378] sm:$0xff]
          %281 = vst [vmem:[%s57 + $0x378] sm:$0xff] %v280
          %v282 = vld [vmem:[%s56 + $0x380] sm:$0xff]
          %283 = vst [vmem:[%s57 + $0x380] sm:$0xff] %v282
          %v284 = vld [vmem:[%s56 + $0x388] sm:$0xff]
          %285 = vst [vmem:[%s57 + $0x388] sm:$0xff] %v284
          %v286 = vld [vmem:[%s56 + $0x390] sm:$0xff]
          %287 = vst [vmem:[%s57 + $0x390] sm:$0xff] %v286
          %v288 = vld [vmem:[%s56 + $0x398] sm:$0xff]
          %289 = vst [vmem:[%s57 + $0x398] sm:$0xff] %v288
          %v290 = vld [vmem:[%s56 + $0x3a0] sm:$0xff]
          %291 = vst [vmem:[%s57 + $0x3a0] sm:$0xff] %v290
          %v292 = vld [vmem:[%s56 + $0x3a8] sm:$0xff]
          %293 = vst [vmem:[%s57 + $0x3a8] sm:$0xff] %v292
          %v294 = vld [vmem:[%s56 + $0x3b0] sm:$0xff]
          %295 = vst [vmem:[%s57 + $0x3b0] sm:$0xff] %v294
          %v296 = vld [vmem:[%s56 + $0x3b8] sm:$0xff]
          %297 = vst [vmem:[%s57 + $0x3b8] sm:$0xff] %v296
          %v298 = vld [vmem:[%s56 + $0x3c0] sm:$0xff]
          %299 = vst [vmem:[%s57 + $0x3c0] sm:$0xff] %v298
          %v300 = vld [vmem:[%s56 + $0x3c8] sm:$0xff]
          %301 = vst [vmem:[%s57 + $0x3c8] sm:$0xff] %v300
          %v302 = vld [vmem:[%s56 + $0x3d0] sm:$0xff]
          %303 = vst [vmem:[%s57 + $0x3d0] sm:$0xff] %v302
          %v304 = vld [vmem:[%s56 + $0x3d8] sm:$0xff]
          %305 = vst [vmem:[%s57 + $0x3d8] sm:$0xff] %v304
          %v306 = vld [vmem:[%s56 + $0x3e0] sm:$0xff]
          %307 = vst [vmem:[%s57 + $0x3e0] sm:$0xff] %v306
          %v308 = vld [vmem:[%s56 + $0x3e8] sm:$0xff]
          %309 = vst [vmem:[%s57 + $0x3e8] sm:$0xff] %v308
          %v310 = vld [vmem:[%s56 + $0x3f0] sm:$0xff]
          %311 = vst [vmem:[%s57 + $0x3f0] sm:$0xff] %v310
          %v312 = vld [vmem:[%s56 + $0x3f8] sm:$0xff]
          %313 = vst [vmem:[%s57 + $0x3f8] sm:$0xff] %v312
          %v314 = vld [vmem:[%s56 + $0x400] sm:$0xff]
          %315 = vst [vmem:[%s57 + $0x400] sm:$0xff] %v314
          %v316 = vld [vmem:[%s56 + $0x408] sm:$0xff]
          %317 = vst [vmem:[%s57 + $0x408] sm:$0xff] %v316
          %v318 = vld [vmem:[%s56 + $0x410] sm:$0xff]
          %319 = vst [vmem:[%s57 + $0x410] sm:$0xff] %v318
          %v320 = vld [vmem:[%s56 + $0x418] sm:$0xff]
          %321 = vst [vmem:[%s57 + $0x418] sm:$0xff] %v320
          %v322 = vld [vmem:[%s56 + $0x420] sm:$0xff]
          %323 = vst [vmem:[%s57 + $0x420] sm:$0xff] %v322
          %v324 = vld [vmem:[%s56 + $0x428] sm:$0xff]
          %325 = vst [vmem:[%s57 + $0x428] sm:$0xff] %v324
          %v326 = vld [vmem:[%s56 + $0x430] sm:$0xff]
          %327 = vst [vmem:[%s57 + $0x430] sm:$0xff] %v326
          %v328 = vld [vmem:[%s56 + $0x438] sm:$0xff]
          %329 = vst [vmem:[%s57 + $0x438] sm:$0xff] %v328
          %v330 = vld [vmem:[%s56 + $0x440] sm:$0xff]
          %331 = vst [vmem:[%s57 + $0x440] sm:$0xff] %v330
          %v332 = vld [vmem:[%s56 + $0x448] sm:$0xff]
          %333 = vst [vmem:[%s57 + $0x448] sm:$0xff] %v332
          %v334 = vld [vmem:[%s56 + $0x450] sm:$0xff]
          %335 = vst [vmem:[%s57 + $0x450] sm:$0xff] %v334
          %v336 = vld [vmem:[%s56 + $0x458] sm:$0xff]
          %337 = vst [vmem:[%s57 + $0x458] sm:$0xff] %v336
          %v338 = vld [vmem:[%s56 + $0x460] sm:$0xff]
          %339 = vst [vmem:[%s57 + $0x460] sm:$0xff] %v338
          %v340 = vld [vmem:[%s56 + $0x468] sm:$0xff]
          %341 = vst [vmem:[%s57 + $0x468] sm:$0xff] %v340
          %v342 = vld [vmem:[%s56 + $0x470] sm:$0xff]
          %343 = vst [vmem:[%s57 + $0x470] sm:$0xff] %v342
          %v344 = vld [vmem:[%s56 + $0x478] sm:$0xff]
          %345 = vst [vmem:[%s57 + $0x478] sm:$0xff] %v344
          %v346 = vld [vmem:[%s56 + $0x480] sm:$0xff]
          %347 = vst [vmem:[%s57 + $0x480] sm:$0xff] %v346
          %v348 = vld [vmem:[%s56 + $0x488] sm:$0xff]
          %349 = vst [vmem:[%s57 + $0x488] sm:$0xff] %v348
          %v350 = vld [vmem:[%s56 + $0x490] sm:$0xff]
          %351 = vst [vmem:[%s57 + $0x490] sm:$0xff] %v350
          %v352 = vld [vmem:[%s56 + $0x498] sm:$0xff]
          %353 = vst [vmem:[%s57 + $0x498] sm:$0xff] %v352
          %v354 = vld [vmem:[%s56 + $0x4a0] sm:$0xff]
          %355 = vst [vmem:[%s57 + $0x4a0] sm:$0xff] %v354
          %v356 = vld [vmem:[%s56 + $0x4a8] sm:$0xff]
          %357 = vst [vmem:[%s57 + $0x4a8] sm:$0xff] %v356
          %v358 = vld [vmem:[%s56 + $0x4b0] sm:$0xff]
          %359 = vst [vmem:[%s57 + $0x4b0] sm:$0xff] %v358
          %v360 = vld [vmem:[%s56 + $0x4b8] sm:$0xff]
          %361 = vst [vmem:[%s57 + $0x4b8] sm:$0xff] %v360
          %v362 = vld [vmem:[%s56 + $0x4c0] sm:$0xff]
          %363 = vst [vmem:[%s57 + $0x4c0] sm:$0xff] %v362
          %v364 = vld [vmem:[%s56 + $0x4c8] sm:$0xff]
          %365 = vst [vmem:[%s57 + $0x4c8] sm:$0xff] %v364
          %v366 = vld [vmem:[%s56 + $0x4d0] sm:$0xff]
          %367 = vst [vmem:[%s57 + $0x4d0] sm:$0xff] %v366
          %v368 = vld [vmem:[%s56 + $0x4d8] sm:$0xff]
          %369 = vst [vmem:[%s57 + $0x4d8] sm:$0xff] %v368
          %v370 = vld [vmem:[%s56 + $0x4e0] sm:$0xff]
          %371 = vst [vmem:[%s57 + $0x4e0] sm:$0xff] %v370
          %v372 = vld [vmem:[%s56 + $0x4e8] sm:$0xff]
          %373 = vst [vmem:[%s57 + $0x4e8] sm:$0xff] %v372
          %v374 = vld [vmem:[%s56 + $0x4f0] sm:$0xff]
          %375 = vst [vmem:[%s57 + $0x4f0] sm:$0xff] %v374
          %v376 = vld [vmem:[%s56 + $0x4f8] sm:$0xff]
          %377 = vst [vmem:[%s57 + $0x4f8] sm:$0xff] %v376
          %v378 = vld [vmem:[%s56 + $0x500] sm:$0xff]
          %379 = vst [vmem:[%s57 + $0x500] sm:$0xff] %v378
          %v380 = vld [vmem:[%s56 + $0x508] sm:$0xff]
          %381 = vst [vmem:[%s57 + $0x508] sm:$0xff] %v380
          %v382 = vld [vmem:[%s56 + $0x510] sm:$0xff]
          %383 = vst [vmem:[%s57 + $0x510] sm:$0xff] %v382
          %v384 = vld [vmem:[%s56 + $0x518] sm:$0xff]
          %385 = vst [vmem:[%s57 + $0x518] sm:$0xff] %v384
          %v386 = vld [vmem:[%s56 + $0x520] sm:$0xff]
          %387 = vst [vmem:[%s57 + $0x520] sm:$0xff] %v386
          %v388 = vld [vmem:[%s56 + $0x528] sm:$0xff]
          %389 = vst [vmem:[%s57 + $0x528] sm:$0xff] %v388
          %v390 = vld [vmem:[%s56 + $0x530] sm:$0xff]
          %391 = vst [vmem:[%s57 + $0x530] sm:$0xff] %v390
          %v392 = vld [vmem:[%s56 + $0x538] sm:$0xff]
          %393 = vst [vmem:[%s57 + $0x538] sm:$0xff] %v392
          %v394 = vld [vmem:[%s56 + $0x540] sm:$0xff]
          %395 = vst [vmem:[%s57 + $0x540] sm:$0xff] %v394
          %v396 = vld [vmem:[%s56 + $0x548] sm:$0xff]
          %397 = vst [vmem:[%s57 + $0x548] sm:$0xff] %v396
          %v398 = vld [vmem:[%s56 + $0x550] sm:$0xff]
          %399 = vst [vmem:[%s57 + $0x550] sm:$0xff] %v398
          %v400 = vld [vmem:[%s56 + $0x558] sm:$0xff]
          %401 = vst [vmem:[%s57 + $0x558] sm:$0xff] %v400
          %v402 = vld [vmem:[%s56 + $0x560] sm:$0xff]
          %403 = vst [vmem:[%s57 + $0x560] sm:$0xff] %v402
          %v404 = vld [vmem:[%s56 + $0x568] sm:$0xff]
          %405 = vst [vmem:[%s57 + $0x568] sm:$0xff] %v404
          %v406 = vld [vmem:[%s56 + $0x570] sm:$0xff]
          %407 = vst [vmem:[%s57 + $0x570] sm:$0xff] %v406
          %v408 = vld [vmem:[%s56 + $0x578] sm:$0xff]
          %409 = vst [vmem:[%s57 + $0x578] sm:$0xff] %v408
          %v410 = vld [vmem:[%s56 + $0x580] sm:$0xff]
          %411 = vst [vmem:[%s57 + $0x580] sm:$0xff] %v410
          %v412 = vld [vmem:[%s56 + $0x588] sm:$0xff]
          %413 = vst [vmem:[%s57 + $0x588] sm:$0xff] %v412
          %v414 = vld [vmem:[%s56 + $0x590] sm:$0xff]
          %415 = vst [vmem:[%s57 + $0x590] sm:$0xff] %v414
          %v416 = vld [vmem:[%s56 + $0x598] sm:$0xff]
          %417 = vst [vmem:[%s57 + $0x598] sm:$0xff] %v416
          %v418 = vld [vmem:[%s56 + $0x5a0] sm:$0xff]
          %419 = vst [vmem:[%s57 + $0x5a0] sm:$0xff] %v418
          %v420 = vld [vmem:[%s56 + $0x5a8] sm:$0xff]
          %421 = vst [vmem:[%s57 + $0x5a8] sm:$0xff] %v420
          %v422 = vld [vmem:[%s56 + $0x5b0] sm:$0xff]
          %423 = vst [vmem:[%s57 + $0x5b0] sm:$0xff] %v422
          %v424 = vld [vmem:[%s56 + $0x5b8] sm:$0xff]
          %425 = vst [vmem:[%s57 + $0x5b8] sm:$0xff] %v424
          %v426 = vld [vmem:[%s56 + $0x5c0] sm:$0xff]
          %427 = vst [vmem:[%s57 + $0x5c0] sm:$0xff] %v426
          %v428 = vld [vmem:[%s56 + $0x5c8] sm:$0xff]
          %429 = vst [vmem:[%s57 + $0x5c8] sm:$0xff] %v428
          %v430 = vld [vmem:[%s56 + $0x5d0] sm:$0xff]
          %431 = vst [vmem:[%s57 + $0x5d0] sm:$0xff] %v430
          %v432 = vld [vmem:[%s56 + $0x5d8] sm:$0xff]
          %433 = vst [vmem:[%s57 + $0x5d8] sm:$0xff] %v432
          %v434 = vld [vmem:[%s56 + $0x5e0] sm:$0xff]
          %435 = vst [vmem:[%s57 + $0x5e0] sm:$0xff] %v434
          %v436 = vld [vmem:[%s56 + $0x5e8] sm:$0xff]
          %437 = vst [vmem:[%s57 + $0x5e8] sm:$0xff] %v436
          %v438 = vld [vmem:[%s56 + $0x5f0] sm:$0xff]
          %439 = vst [vmem:[%s57 + $0x5f0] sm:$0xff] %v438
          %v440 = vld [vmem:[%s56 + $0x5f8] sm:$0xff]
          %441 = vst [vmem:[%s57 + $0x5f8] sm:$0xff] %v440
          %v442 = vld [vmem:[%s56 + $0x600] sm:$0xff]
          %443 = vst [vmem:[%s57 + $0x600] sm:$0xff] %v442
          %v444 = vld [vmem:[%s56 + $0x608] sm:$0xff]
          %445 = vst [vmem:[%s57 + $0x608] sm:$0xff] %v444
          %v446 = vld [vmem:[%s56 + $0x610] sm:$0xff]
          %447 = vst [vmem:[%s57 + $0x610] sm:$0xff] %v446
          %v448 = vld [vmem:[%s56 + $0x618] sm:$0xff]
          %449 = vst [vmem:[%s57 + $0x618] sm:$0xff] %v448
        $region49: #{forward.3} parent=43 // loop_footer
          %s55 = sadd.s32 1, %s51
        $region50: #{forward.3} parent=43 // loop_footer_branch
          %50 = sbr.rel target = $region46
        $region51: #{forward.3} parent=43 // loop_exit
          _
      $region44: #{forward.3} parent=28 // pred_fallthru
        _
      %p450 = pneg %p46
      // Predicated region
      $region52: #{forward.3} parent=28 // pred_check
        _
      $region53: #{forward.3} parent=28 // pred_check_branch
        %452 = sbr.rel (%p46) target = $region55
      $region54: #{forward.3} parent=28 // pred_region
        %s453 = sand.u32 1568, 7
      $region55: #{forward.3} parent=28 // pred_fallthru
        _
    $region29: #{forward.3} parent=1 // pred_fallthru
      _
    // Predicated region
    $region30: #{forward.3} parent=1 // pred_check
      %p31 = pneg %p27
    $region31: #{forward.3} parent=1 // pred_check_branch
      %33 = sbr.rel (%p31) target = $region33
    $region32: #{forward.3} parent=1 // pred_region
      %s34 = sshllo.u32 0, 1568
      loop: start=0, step=1, limit=1
      $region34: #{forward.3} parent=32 // loop_pre_header
        _
      $region35: #{forward.3} parent=32 // loop_header
        %s36 = sphi 0, %s40
        %p37 = scmp.ge.s32.totalorder %s36, 1
        %s41 = sphi %s3, %s3
        %s42 = sphi [#allocation2], [#allocation2]
      $region36: #{forward.3} parent=32 // loop_header_branch
        %39 = sbr.rel (%p37) target = $region40
      $region37: #{forward.3} parent=32 // loop_body
        %v43 = vld [vmem:[%s41] sm:%s34]
        %44 = vst [vmem:[%s42] sm:%s34] %v43
      $region38: #{forward.3} parent=32 // loop_footer
        %s40 = sadd.s32 1, %s36
      $region39: #{forward.3} parent=32 // loop_footer_branch
        %35 = sbr.rel target = $region35
      $region40: #{forward.3} parent=32 // loop_exit
        _
    $region33: #{forward.3} parent=1 // pred_fallthru
      _
    // Predicated region
    $region56: #{forward.3} parent=1 // pred_check
      _
    $region57: #{forward.3} parent=1 // pred_check_branch
      %456 = sbr.rel (0) target = $region59
    $region58: #{forward.3} parent=1 // pred_region
      %457 = vsyncadd [#allocation3], 25088
    $region59: #{forward.3} parent=1 // pred_fallthru
      _
    %v458 = vld [vmem:[%s0] sm:$0xff]
    %v459 = vld [vmem:[%s0 + $0x8] sm:$0xff]
    %v460 = vld [vmem:[%s0 + $0x10] sm:$0xff]
    %v461 = vld [vmem:[%s0 + $0x18] sm:$0xff]
    %v462 = vld [vmem:[%s0 + $0x20] sm:$0xff]
    %v463 = vld [vmem:[%s0 + $0x28] sm:$0xff]
    %v464 = vld [vmem:[%s0 + $0x30] sm:$0xff]
    %v465 = vld [vmem:[%s0 + $0x38] sm:$0xff]
    %v466 = vld [vmem:[%s0 + $0x40] sm:$0xff]
    %v467 = vld [vmem:[%s0 + $0x48] sm:$0xff]
    %v468 = vld [vmem:[%s0 + $0x50] sm:$0xff]
    %v469 = vld [vmem:[%s0 + $0x58] sm:$0xff]
    %v470 = vld [vmem:[%s0 + $0x60] sm:$0xff]
    %v471 = vld [vmem:[%s0 + $0x68] sm:$0xff]
    %v472 = vld [vmem:[%s0 + $0x70] sm:$0xff]
    %v473 = vld [vmem:[%s0 + $0x78] sm:$0xff]
    %v474 = vld [vmem:[%s0 + $0x80] sm:$0xff]
    %v475 = vld [vmem:[%s0 + $0x88] sm:$0xff]
    %v476 = vld [vmem:[%s0 + $0x90] sm:$0xff]
    %v477 = vld [vmem:[%s0 + $0x98] sm:$0xff]
    %v478 = vld [vmem:[%s0 + $0xa0] sm:$0xff]
    %v479 = vld [vmem:[%s0 + $0xa8] sm:$0xff]
    %v480 = vld [vmem:[%s0 + $0xb0] sm:$0xff]
    %v481 = vld [vmem:[%s0 + $0xb8] sm:$0xff]
    %v482 = vld [vmem:[%s0 + $0xc0] sm:$0xff]
    %v483 = vld [vmem:[%s0 + $0xc8] sm:$0xff]
    %v484 = vld [vmem:[%s0 + $0xd0] sm:$0xff]
    %v485 = vld [vmem:[%s0 + $0xd8] sm:$0xff]
    %v486 = vld [vmem:[%s0 + $0xe0] sm:$0xff]
    %v487 = vld [vmem:[%s0 + $0xe8] sm:$0xff]
    %v488 = vld [vmem:[%s0 + $0xf0] sm:$0xff]
    %v489 = vld [vmem:[%s0 + $0xf8] sm:$0xff]
    %v490 = vld [vmem:[%s0 + $0x100] sm:$0xff]
    %v491 = vld [vmem:[%s0 + $0x108] sm:$0xff]
    %v492 = vld [vmem:[%s0 + $0x110] sm:$0xff]
    %v493 = vld [vmem:[%s0 + $0x118] sm:$0xff]
    %v494 = vld [vmem:[%s0 + $0x120] sm:$0xff]
    %v495 = vld [vmem:[%s0 + $0x128] sm:$0xff]
    %v496 = vld [vmem:[%s0 + $0x130] sm:$0xff]
    %v497 = vld [vmem:[%s0 + $0x138] sm:$0xff]
    %v498 = vld [vmem:[%s0 + $0x140] sm:$0xff]
    %v499 = vld [vmem:[%s0 + $0x148] sm:$0xff]
    %v500 = vld [vmem:[%s0 + $0x150] sm:$0xff]
    %v501 = vld [vmem:[%s0 + $0x158] sm:$0xff]
    %v502 = vld [vmem:[%s0 + $0x160] sm:$0xff]
    %v503 = vld [vmem:[%s0 + $0x168] sm:$0xff]
    %v504 = vld [vmem:[%s0 + $0x170] sm:$0xff]
    %v505 = vld [vmem:[%s0 + $0x178] sm:$0xff]
    %v506 = vld [vmem:[%s0 + $0x180] sm:$0x3]
    %v507 = vld [vmem:[%s0 + $0x188] sm:$0x3]
    %v508 = vld [vmem:[%s0 + $0x190] sm:$0x3]
    %v509 = vld [vmem:[%s0 + $0x198] sm:$0x3]
    %v510 = vld [vmem:[%s1] sm:$0xff]
    %v511 = vld [vmem:[%s1 + $0x8] sm:$0xff]
    %v512 = vld [vmem:[%s1 + $0x10] sm:$0xff]
    %v513 = vld [vmem:[%s1 + $0x18] sm:$0xff]
    %v514 = vld [vmem:[%s1 + $0x20] sm:$0xff]
    %v515 = vld [vmem:[%s1 + $0x28] sm:$0xff]
    %v516 = vld [vmem:[%s1 + $0x30] sm:$0xff]
    %v517 = vld [vmem:[%s1 + $0x38] sm:$0xff]
    %v518 = vld [vmem:[%s1 + $0x40] sm:$0xff]
    %v519 = vld [vmem:[%s1 + $0x48] sm:$0xff]
    %v520 = vld [vmem:[%s1 + $0x50] sm:$0xff]
    %v521 = vld [vmem:[%s1 + $0x58] sm:$0xff]
    %v522 = vld [vmem:[%s1 + $0x60] sm:$0xff]
    %v523 = vld [vmem:[%s1 + $0x68] sm:$0xff]
    %v524 = vld [vmem:[%s1 + $0x70] sm:$0xff]
    %v525 = vld [vmem:[%s1 + $0x78] sm:$0xff]
    %v526 = vld [vmem:[%s1 + $0x80] sm:$0xff]
    %v527 = vld [vmem:[%s1 + $0x88] sm:$0xff]
    %v528 = vld [vmem:[%s1 + $0x90] sm:$0xff]
    %v529 = vld [vmem:[%s1 + $0x98] sm:$0xff]
    %v530 = vld [vmem:[%s1 + $0xa0] sm:$0xff]
    %v531 = vld [vmem:[%s1 + $0xa8] sm:$0xff]
    %v532 = vld [vmem:[%s1 + $0xb0] sm:$0xff]
    %v533 = vld [vmem:[%s1 + $0xb8] sm:$0xff]
    %v534 = vld [vmem:[%s1 + $0xc0] sm:$0xff]
    %v535 = vld [vmem:[%s1 + $0xc8] sm:$0xff]
    %v536 = vld [vmem:[%s1 + $0xd0] sm:$0xff]
    %v537 = vld [vmem:[%s1 + $0xd8] sm:$0xff]
    %v538 = vld [vmem:[%s1 + $0xe0] sm:$0xff]
    %v539 = vld [vmem:[%s1 + $0xe8] sm:$0xff]
    %v540 = vld [vmem:[%s1 + $0xf0] sm:$0xff]
    %v541 = vld [vmem:[%s1 + $0xf8] sm:$0xff]
    %v542 = vld [vmem:[%s1 + $0x100] sm:$0xff]
    %v543 = vld [vmem:[%s1 + $0x108] sm:$0xff]
    %v544 = vld [vmem:[%s1 + $0x110] sm:$0xff]
    %v545 = vld [vmem:[%s1 + $0x118] sm:$0xff]
    %vm546 = vcmask 261120
    %v548 = vsel %vm546, %v459, 0
    %v551 = vsel %vm546, %v463, 0
    %v554 = vsel %vm546, %v467, 0
    %v557 = vsel %vm546, %v471, 0
    %v560 = vsel %vm546, %v475, 0
    %v563 = vsel %vm546, %v479, 0
    %v566 = vsel %vm546, %v483, 0
    %v569 = vsel %vm546, %v487, 0
    %v572 = vsel %vm546, %v491, 0
    %v575 = vsel %vm546, %v495, 0
    %v578 = vsel %vm546, %v499, 0
    %v581 = vsel %vm546, %v503, 0
    %v584 = vsel %vm546, %v507, 0
    %586 = vmatprep.subr.mxu0 0.0
    %587 = vmatpush1.msra.mxu0 %v514
    %588 = vmatprep.subr.mxu0 0.0
    %589 = vmatpush1.msra.mxu0 %v515
    %590 = vmatprep.subr.mxu0 0.0
    %591 = vmatpush1.msra.mxu0 %v516
    %592 = vmatprep.subr.mxu0 0.0
    %593 = vmatpush1.msra.mxu0 %v517
    %594 = vmatprep.subr.mxu0 0.0
    %595 = vmatpush1.msra.mxu0 0.0
    %596 = vmatprep.subr.mxu0 0.0
    %597 = vmatpush1.msra.mxu0 0.0
    %598 = vmatprep.subr.mxu0 0.0
    %599 = vmatpush1.msra.mxu0 0.0
    %600 = vmatprep.subr.mxu0 0.0
    %601 = vmatpush1.msra.mxu0 0.0
    %602 = vmatprep.subr.mxu0 0.0
    %603 = vmatpush1.msra.mxu0 0.0
    %604 = vmatprep.subr.mxu0 0.0
    %605 = vmatpush1.msra.mxu0 0.0
    %606 = vmatprep.subr.mxu0 0.0
    %607 = vmatpush1.msra.mxu0 0.0
    %608 = vmatprep.subr.mxu0 0.0
    %609 = vmatpush1.msra.mxu0 0.0
    %610 = vmatprep.subr.mxu0 0.0
    %611 = vmatpush1.msra.mxu0 0.0
    %612 = vmatprep.subr.mxu0 0.0
    %613 = vmatpush1.msra.mxu0 0.0
    %614 = vmatprep.subr.mxu0 0.0
    %615 = vmatpush1.msra.mxu0 0.0
    %616 = vmatprep.subr.mxu0 0.0
    %617 = vmatpush1.msra.mxu0 0.0
    %618 = vmatprep.subr.mxu0 0.0
    %619 = vmatpush1.msra.mxu0 0.0
    %620 = vmatprep.subr.mxu0 0.0
    %621 = vmatpush1.msra.mxu0 0.0
    %622 = vmatprep.subr.mxu0 0.0
    %623 = vmatpush1.msra.mxu0 0.0
    %624 = vmatprep.subr.mxu0 0.0
    %625 = vmatpush1.msra.mxu0 0.0
    %626 = vmatprep.subr.mxu0 0.0
    %627 = vmatpush1.msra.mxu0 0.0
    %628 = vmatprep.subr.mxu0 0.0
    %629 = vmatpush1.msra.mxu0 0.0
    %630 = vmatprep.subr.mxu0 0.0
    %631 = vmatpush1.msra.mxu0 0.0
    %632 = vmatprep.subr.mxu0 0.0
    %633 = vmatpush1.msra.mxu0 0.0
    %634 = vmatprep.subr.mxu0 0.0
    %635 = vmatpush1.msra.mxu0 0.0
    %636 = vmatprep.subr.mxu0 0.0
    %637 = vmatpush1.msra.mxu0 0.0
    %638 = vmatprep.subr.mxu0 0.0
    %639 = vmatpush1.msra.mxu0 0.0
    %640 = vmatprep.subr.mxu0 0.0
    %641 = vmatpush1.msra.mxu0 0.0
    %642 = vmatprep.subr.mxu0 0.0
    %643 = vmatpush1.msra.mxu0 0.0
    %644 = vmatprep.subr.mxu0 0.0
    %645 = vmatpush1.msra.mxu0 0.0
    %646 = vmatprep.subr.mxu0 0.0
    %647 = vmatpush1.msra.mxu0 0.0
    %648 = vmatprep.subr.mxu0 0.0
    %649 = vmatpush1.msra.mxu0 0.0
    %650 = vmatprep.mubr.f32.mxu0 0.0
    %651 = vmatmul.mubr.f32.gmra.mrb[0].mxu0 %v548
    %v652 = vpop.f32.mrb[0].mxu0
    %v653 = vadd.f32 0.0, %v652
    %v654 = vpop.f32.mrb[0].mxu0
    %655 = vmatprep.mubr.f32.mxu0 0.0
    %656 = vmatmul.mubr.f32.gmra.mrb[0].mxu0 %v551
    %v657 = vpop.f32.mrb[0].mxu0
    %v658 = vadd.f32 0.0, %v657
    %v659 = vpop.f32.mrb[0].mxu0
    %660 = vmatprep.mubr.f32.mxu0 0.0
    %661 = vmatmul.mubr.f32.gmra.mrb[0].mxu0 %v554
    %v662 = vpop.f32.mrb[0].mxu0
    %v663 = vadd.f32 0.0, %v662
    %v664 = vpop.f32.mrb[0].mxu0
    %665 = vmatprep.mubr.f32.mxu0 0.0
    %666 = vmatmul.mubr.f32.gmra.mrb[0].mxu0 %v557
    %v667 = vpop.f32.mrb[0].mxu0
    %v668 = vadd.f32 0.0, %v667
    %v669 = vpop.f32.mrb[0].mxu0
    %670 = vmatprep.mubr.f32.mxu0 0.0
    %671 = vmatmul.mubr.f32.gmra.mrb[0].mxu0 %v560
    %v672 = vpop.f32.mrb[0].mxu0
    %v673 = vadd.f32 0.0, %v672
    %v674 = vpop.f32.mrb[0].mxu0
    %675 = vmatprep.mubr.f32.mxu0 0.0
    %676 = vmatmul.mubr.f32.gmra.mrb[0].mxu0 %v563
    %v677 = vpop.f32.mrb[0].mxu0
    %v678 = vadd.f32 0.0, %v677
    %v679 = vpop.f32.mrb[0].mxu0
    %680 = vmatprep.mubr.f32.mxu0 0.0
    %681 = vmatmul.mubr.f32.gmra.mrb[0].mxu0 %v566
    %v682 = vpop.f32.mrb[0].mxu0
    %v683 = vadd.f32 0.0, %v682
    %v684 = vpop.f32.mrb[0].mxu0
    %685 = vmatprep.mubr.f32.mxu0 0.0
    %686 = vmatmul.mubr.f32.gmra.mrb[0].mxu0 %v569
    %v687 = vpop.f32.mrb[0].mxu0
    %v688 = vadd.f32 0.0, %v687
    %v689 = vpop.f32.mrb[0].mxu0
    %690 = vmatprep.mubr.f32.mxu0 0.0
    %691 = vmatmul.mubr.f32.gmra.mrb[0].mxu0 %v572
    %v692 = vpop.f32.mrb[0].mxu0
    %v693 = vadd.f32 0.0, %v692
    %v694 = vpop.f32.mrb[0].mxu0
    %695 = vmatprep.mubr.f32.mxu0 0.0
    %696 = vmatmul.mubr.f32.gmra.mrb[0].mxu0 %v575
    %v697 = vpop.f32.mrb[0].mxu0
    %v698 = vadd.f32 0.0, %v697
    %v699 = vpop.f32.mrb[0].mxu0
    %700 = vmatprep.mubr.f32.mxu0 0.0
    %701 = vmatmul.mubr.f32.gmra.mrb[0].mxu0 %v578
    %v702 = vpop.f32.mrb[0].mxu0
    %v703 = vadd.f32 0.0, %v702
    %v704 = vpop.f32.mrb[0].mxu0
    %705 = vmatprep.mubr.f32.mxu0 0.0
    %706 = vmatmul.mubr.f32.gmra.mrb[0].mxu0 %v581
    %v707 = vpop.f32.mrb[0].mxu0
    %v708 = vadd.f32 0.0, %v707
    %v709 = vpop.f32.mrb[0].mxu0
    %710 = vmatprep.mubr.f32.mxu0 0.0
    %711 = vmatmul.mubr.f32.gmra.mrb[0].mxu0 %v584
    %v712 = vpop.f32.mrb[0].mxu0
    %v713 = vadd.f32 0.0, %v712
    %v714 = vpop.f32.mrb[0].mxu0
    %715 = vdwg.mxu0
    %v717 = vsel %vm546, %v458, 0
    %v720 = vsel %vm546, %v462, 0
    %v723 = vsel %vm546, %v466, 0
    %v726 = vsel %vm546, %v470, 0
    %v729 = vsel %vm546, %v474, 0
    %v732 = vsel %vm546, %v478, 0
    %v735 = vsel %vm546, %v482, 0
    %v738 = vsel %vm546, %v486, 0
    %v741 = vsel %vm546, %v490, 0
    %v744 = vsel %vm546, %v494, 0
    %v747 = vsel %vm546, %v498, 0
    %v750 = vsel %vm546, %v502, 0
    %v753 = vsel %vm546, %v506, 0
    %755 = vmatprep.subr.mxu0 0.0
    %756 = vmatpush1.msra.mxu0 %v510
    %757 = vmatprep.subr.mxu0 0.0
    %758 = vmatpush1.msra.mxu0 %v511
    %759 = vmatprep.subr.mxu0 0.0
    %760 = vmatpush1.msra.mxu0 %v512
    %761 = vmatprep.subr.mxu0 0.0
    %762 = vmatpush1.msra.mxu0 %v513
    %763 = vmatprep.subr.mxu0 0.0
    %764 = vmatpush1.msra.mxu0 0.0
    %765 = vmatprep.subr.mxu0 0.0
    %766 = vmatpush1.msra.mxu0 0.0
    %767 = vmatprep.subr.mxu0 0.0
    %768 = vmatpush1.msra.mxu0 0.0
    %769 = vmatprep.subr.mxu0 0.0
    %770 = vmatpush1.msra.mxu0 0.0
    %771 = vmatprep.subr.mxu0 0.0
    %772 = vmatpush1.msra.mxu0 0.0
    %773 = vmatprep.subr.mxu0 0.0
    %774 = vmatpush1.msra.mxu0 0.0
    %775 = vmatprep.subr.mxu0 0.0
    %776 = vmatpush1.msra.mxu0 0.0
    %777 = vmatprep.subr.mxu0 0.0
    %778 = vmatpush1.msra.mxu0 0.0
    %779 = vmatprep.subr.mxu0 0.0
    %780 = vmatpush1.msra.mxu0 0.0
    %781 = vmatprep.subr.mxu0 0.0
    %782 = vmatpush1.msra.mxu0 0.0
    %783 = vmatprep.subr.mxu0 0.0
    %784 = vmatpush1.msra.mxu0 0.0
    %785 = vmatprep.subr.mxu0 0.0
    %786 = vmatpush1.msra.mxu0 0.0
    %787 = vmatprep.subr.mxu0 0.0
    %788 = vmatpush1.msra.mxu0 0.0
    %789 = vmatprep.subr.mxu0 0.0
    %790 = vmatpush1.msra.mxu0 0.0
    %791 = vmatprep.subr.mxu0 0.0
    %792 = vmatpush1.msra.mxu0 0.0
    %793 = vmatprep.subr.mxu0 0.0
    %794 = vmatpush1.msra.mxu0 0.0
    %795 = vmatprep.subr.mxu0 0.0
    %796 = vmatpush1.msra.mxu0 0.0
    %797 = vmatprep.subr.mxu0 0.0
    %798 = vmatpush1.msra.mxu0 0.0
    %799 = vmatprep.subr.mxu0 0.0
    %800 = vmatpush1.msra.mxu0 0.0
    %801 = vmatprep.subr.mxu0 0.0
    %802 = vmatpush1.msra.mxu0 0.0
    %803 = vmatprep.subr.mxu0 0.0
    %804 = vmatpush1.msra.mxu0 0.0
    %805 = vmatprep.subr.mxu0 0.0
    %806 = vmatpush1.msra.mxu0 0.0
    %807 = vmatprep.subr.mxu0 0.0
    %808 = vmatpush1.msra.mxu0 0.0
    %809 = vmatprep.subr.mxu0 0.0
    %810 = vmatpush1.msra.mxu0 0.0
    %811 = vmatprep.subr.mxu0 0.0
    %812 = vmatpush1.msra.mxu0 0.0
    %813 = vmatprep.subr.mxu0 0.0
    %814 = vmatpush1.msra.mxu0 0.0
    %815 = vmatprep.subr.mxu0 0.0
    %816 = vmatpush1.msra.mxu0 0.0
    %817 = vmatprep.subr.mxu0 0.0
    %818 = vmatpush1.msra.mxu0 0.0
    %819 = vmatprep.mubr.f32.mxu0 0.0
    %820 = vmatmul.mubr.f32.gmra.mrb[0].mxu0 %v717
    %v821 = vpop.f32.mrb[0].mxu0
    %v822 = vadd.f32 %v653, %v821
    %v823 = vpop.f32.mrb[0].mxu0
    %824 = vmatprep.mubr.f32.mxu0 0.0
    %825 = vmatmul.mubr.f32.gmra.mrb[0].mxu0 %v720
    %v826 = vpop.f32.mrb[0].mxu0
    %v827 = vadd.f32 %v658, %v826
    %v828 = vpop.f32.mrb[0].mxu0
    %829 = vmatprep.mubr.f32.mxu0 0.0
    %830 = vmatmul.mubr.f32.gmra.mrb[0].mxu0 %v723
    %v831 = vpop.f32.mrb[0].mxu0
    %v832 = vadd.f32 %v663, %v831
    %v833 = vpop.f32.mrb[0].mxu0
    %834 = vmatprep.mubr.f32.mxu0 0.0
    %835 = vmatmul.mubr.f32.gmra.mrb[0].mxu0 %v726
    %v836 = vpop.f32.mrb[0].mxu0
    %v837 = vadd.f32 %v668, %v836
    %v838 = vpop.f32.mrb[0].mxu0
    %839 = vmatprep.mubr.f32.mxu0 0.0
    %840 = vmatmul.mubr.f32.gmra.mrb[0].mxu0 %v729
    %v841 = vpop.f32.mrb[0].mxu0
    %v842 = vadd.f32 %v673, %v841
    %v843 = vpop.f32.mrb[0].mxu0
    %844 = vmatprep.mubr.f32.mxu0 0.0
    %845 = vmatmul.mubr.f32.gmra.mrb[0].mxu0 %v732
    %v846 = vpop.f32.mrb[0].mxu0
    %v847 = vadd.f32 %v678, %v846
    %v848 = vpop.f32.mrb[0].mxu0
    %849 = vmatprep.mubr.f32.mxu0 0.0
    %850 = vmatmul.mubr.f32.gmra.mrb[0].mxu0 %v735
    %v851 = vpop.f32.mrb[0].mxu0
    %v852 = vadd.f32 %v683, %v851
    %v853 = vpop.f32.mrb[0].mxu0
    %854 = vmatprep.mubr.f32.mxu0 0.0
    %855 = vmatmul.mubr.f32.gmra.mrb[0].mxu0 %v738
    %v856 = vpop.f32.mrb[0].mxu0
    %v857 = vadd.f32 %v688, %v856
    %v858 = vpop.f32.mrb[0].mxu0
    %859 = vmatprep.mubr.f32.mxu0 0.0
    %860 = vmatmul.mubr.f32.gmra.mrb[0].mxu0 %v741
    %v861 = vpop.f32.mrb[0].mxu0
    %v862 = vadd.f32 %v693, %v861
    %v863 = vpop.f32.mrb[0].mxu0
    %864 = vmatprep.mubr.f32.mxu0 0.0
    %865 = vmatmul.mubr.f32.gmra.mrb[0].mxu0 %v744
    %v866 = vpop.f32.mrb[0].mxu0
    %v867 = vadd.f32 %v698, %v866
    %v868 = vpop.f32.mrb[0].mxu0
    %869 = vmatprep.mubr.f32.mxu0 0.0
    %870 = vmatmul.mubr.f32.gmra.mrb[0].mxu0 %v747
    %v871 = vpop.f32.mrb[0].mxu0
    %v872 = vadd.f32 %v703, %v871
    %v873 = vpop.f32.mrb[0].mxu0
    %874 = vmatprep.mubr.f32.mxu0 0.0
    %875 = vmatmul.mubr.f32.gmra.mrb[0].mxu0 %v750
    %v876 = vpop.f32.mrb[0].mxu0
    %v877 = vadd.f32 %v708, %v876
    %v878 = vpop.f32.mrb[0].mxu0
    %879 = vmatprep.mubr.f32.mxu0 0.0
    %880 = vmatmul.mubr.f32.gmra.mrb[0].mxu0 %v753
    %v881 = vpop.f32.mrb[0].mxu0
    %v882 = vadd.f32 %v713, %v881
    %v883 = vpop.f32.mrb[0].mxu0
    %884 = vdwg.mxu0
    %885 = vrot.lane.b32.xlu0 %v458, 96
    %v886 = vpop.permute.xlu0 %885
    %887 = vrot.lane.b32.xlu0 %v462, 96
    %v888 = vpop.permute.xlu0 %887
    %889 = vrot.lane.b32.xlu0 %v466, 96
    %v890 = vpop.permute.xlu0 %889
    %891 = vrot.lane.b32.xlu0 %v470, 96
    %v892 = vpop.permute.xlu0 %891
    %893 = vrot.lane.b32.xlu0 %v474, 96
    %v894 = vpop.permute.xlu0 %893
    %895 = vrot.lane.b32.xlu0 %v478, 96
    %v896 = vpop.permute.xlu0 %895
    %897 = vrot.lane.b32.xlu0 %v482, 96
    %v898 = vpop.permute.xlu0 %897
    %899 = vrot.lane.b32.xlu0 %v486, 96
    %v900 = vpop.permute.xlu0 %899
    %901 = vrot.lane.b32.xlu0 %v490, 96
    %v902 = vpop.permute.xlu0 %901
    %903 = vrot.lane.b32.xlu0 %v494, 96
    %v904 = vpop.permute.xlu0 %903
    %905 = vrot.lane.b32.xlu0 %v498, 96
    %v906 = vpop.permute.xlu0 %905
    %907 = vrot.lane.b32.xlu0 %v502, 96
    %v908 = vpop.permute.xlu0 %907
    %909 = vrot.lane.b32.xlu0 %v506, 96
    %v910 = vpop.permute.xlu0 %909
    %v911 = vsel %vm546, %v886, 0
    %v913 = vsel %vm546, %v888, 0
    %v915 = vsel %vm546, %v890, 0
    %v917 = vsel %vm546, %v892, 0
    %v919 = vsel %vm546, %v894, 0
    %v921 = vsel %vm546, %v896, 0
    %v923 = vsel %vm546, %v898, 0
    %v925 = vsel %vm546, %v900, 0
    %v927 = vsel %vm546, %v902, 0
    %v929 = vsel %vm546, %v904, 0
    %v931 = vsel %vm546, %v906, 0
    %v933 = vsel %vm546, %v908, 0
    %v935 = vsel %vm546, %v910, 0
    %937 = vmatprep.subr.mxu0 0.0
    %938 = vmatpush1.msra.mxu0 %v518
    %939 = vmatprep.subr.mxu0 0.0
    %940 = vmatpush1.msra.mxu0 %v519
    %941 = vmatprep.subr.mxu0 0.0
    %942 = vmatpush1.msra.mxu0 %v520
    %943 = vmatprep.subr.mxu0 0.0
    %944 = vmatpush1.msra.mxu0 %v521
    %945 = vmatprep.subr.mxu0 0.0
    %946 = vmatpush1.msra.mxu0 0.0
    %947 = vmatprep.subr.mxu0 0.0
    %948 = vmatpush1.msra.mxu0 0.0
    %949 = vmatprep.subr.mxu0 0.0
    %950 = vmatpush1.msra.mxu0 0.0
    %951 = vmatprep.subr.mxu0 0.0
    %952 = vmatpush1.msra.mxu0 0.0
    %953 = vmatprep.subr.mxu0 0.0
    %954 = vmatpush1.msra.mxu0 0.0
    %955 = vmatprep.subr.mxu0 0.0
    %956 = vmatpush1.msra.mxu0 0.0
    %957 = vmatprep.subr.mxu0 0.0
    %958 = vmatpush1.msra.mxu0 0.0
    %959 = vmatprep.subr.mxu0 0.0
    %960 = vmatpush1.msra.mxu0 0.0
    %961 = vmatprep.subr.mxu0 0.0
    %962 = vmatpush1.msra.mxu0 0.0
    %963 = vmatprep.subr.mxu0 0.0
    %964 = vmatpush1.msra.mxu0 0.0
    %965 = vmatprep.subr.mxu0 0.0
    %966 = vmatpush1.msra.mxu0 0.0
    %967 = vmatprep.subr.mxu0 0.0
    %968 = vmatpush1.msra.mxu0 0.0
    %969 = vmatprep.subr.mxu0 0.0
    %970 = vmatpush1.msra.mxu0 0.0
    %971 = vmatprep.subr.mxu0 0.0
    %972 = vmatpush1.msra.mxu0 0.0
    %973 = vmatprep.subr.mxu0 0.0
    %974 = vmatpush1.msra.mxu0 0.0
    %975 = vmatprep.subr.mxu0 0.0
    %976 = vmatpush1.msra.mxu0 0.0
    %977 = vmatprep.subr.mxu0 0.0
    %978 = vmatpush1.msra.mxu0 0.0
    %979 = vmatprep.subr.mxu0 0.0
    %980 = vmatpush1.msra.mxu0 0.0
    %981 = vmatprep.subr.mxu0 0.0
    %982 = vmatpush1.msra.mxu0 0.0
    %983 = vmatprep.subr.mxu0 0.0
    %984 = vmatpush1.msra.mxu0 0.0
    %985 = vmatprep.subr.mxu0 0.0
    %986 = vmatpush1.msra.mxu0 0.0
    %987 = vmatprep.subr.mxu0 0.0
    %988 = vmatpush1.msra.mxu0 0.0
    %989 = vmatprep.subr.mxu0 0.0
    %990 = vmatpush1.msra.mxu0 0.0
    %991 = vmatprep.subr.mxu0 0.0
    %992 = vmatpush1.msra.mxu0 0.0
    %993 = vmatprep.subr.mxu0 0.0
    %994 = vmatpush1.msra.mxu0 0.0
    %995 = vmatprep.subr.mxu0 0.0
    %996 = vmatpush1.msra.mxu0 0.0
    %997 = vmatprep.subr.mxu0 0.0
    %998 = vmatpush1.msra.mxu0 0.0
    %999 = vmatprep.subr.mxu0 0.0
    %1000 = vmatpush1.msra.mxu0 0.0
    %1001 = vmatprep.mubr.f32.mxu0 0.0
    %1002 = vmatmul.mubr.f32.gmra.mrb[0].mxu0 %v911
    %v1003 = vpop.f32.mrb[0].mxu0
    %v1004 = vadd.f32 0.0, %v1003
    %v1005 = vpop.f32.mrb[0].mxu0
    %1006 = vmatprep.mubr.f32.mxu0 0.0
    %1007 = vmatmul.mubr.f32.gmra.mrb[0].mxu0 %v913
    %v1008 = vpop.f32.mrb[0].mxu0
    %v1009 = vadd.f32 0.0, %v1008
    %v1010 = vpop.f32.mrb[0].mxu0
    %1011 = vmatprep.mubr.f32.mxu0 0.0
    %1012 = vmatmul.mubr.f32.gmra.mrb[0].mxu0 %v915
    %v1013 = vpop.f32.mrb[0].mxu0
    %v1014 = vadd.f32 0.0, %v1013
    %v1015 = vpop.f32.mrb[0].mxu0
    %1016 = vmatprep.mubr.f32.mxu0 0.0
    %1017 = vmatmul.mubr.f32.gmra.mrb[0].mxu0 %v917
    %v1018 = vpop.f32.mrb[0].mxu0
    %v1019 = vadd.f32 0.0, %v1018
    %v1020 = vpop.f32.mrb[0].mxu0
    %1021 = vmatprep.mubr.f32.mxu0 0.0
    %1022 = vmatmul.mubr.f32.gmra.mrb[0].mxu0 %v919
    %v1023 = vpop.f32.mrb[0].mxu0
    %v1024 = vadd.f32 0.0, %v1023
    %v1025 = vpop.f32.mrb[0].mxu0
    %1026 = vmatprep.mubr.f32.mxu0 0.0
    %1027 = vmatmul.mubr.f32.gmra.mrb[0].mxu0 %v921
    %v1028 = vpop.f32.mrb[0].mxu0
    %v1029 = vadd.f32 0.0, %v1028
    %v1030 = vpop.f32.mrb[0].mxu0
    %1031 = vmatprep.mubr.f32.mxu0 0.0
    %1032 = vmatmul.mubr.f32.gmra.mrb[0].mxu0 %v923
    %v1033 = vpop.f32.mrb[0].mxu0
    %v1034 = vadd.f32 0.0, %v1033
    %v1035 = vpop.f32.mrb[0].mxu0
    %1036 = vmatprep.mubr.f32.mxu0 0.0
    %1037 = vmatmul.mubr.f32.gmra.mrb[0].mxu0 %v925
    %v1038 = vpop.f32.mrb[0].mxu0
    %v1039 = vadd.f32 0.0, %v1038
    %v1040 = vpop.f32.mrb[0].mxu0
    %1041 = vmatprep.mubr.f32.mxu0 0.0
    %1042 = vmatmul.mubr.f32.gmra.mrb[0].mxu0 %v927
    %v1043 = vpop.f32.mrb[0].mxu0
    %v1044 = vadd.f32 0.0, %v1043
    %v1045 = vpop.f32.mrb[0].mxu0
    %1046 = vmatprep.mubr.f32.mxu0 0.0
    %1047 = vmatmul.mubr.f32.gmra.mrb[0].mxu0 %v929
    %v1048 = vpop.f32.mrb[0].mxu0
    %v1049 = vadd.f32 0.0, %v1048
    %v1050 = vpop.f32.mrb[0].mxu0
    %1051 = vmatprep.mubr.f32.mxu0 0.0
    %1052 = vmatmul.mubr.f32.gmra.mrb[0].mxu0 %v931
    %v1053 = vpop.f32.mrb[0].mxu0
    %v1054 = vadd.f32 0.0, %v1053
    %v1055 = vpop.f32.mrb[0].mxu0
    %1056 = vmatprep.mubr.f32.mxu0 0.0
    %1057 = vmatmul.mubr.f32.gmra.mrb[0].mxu0 %v933
    %v1058 = vpop.f32.mrb[0].mxu0
    %v1059 = vadd.f32 0.0, %v1058
    %v1060 = vpop.f32.mrb[0].mxu0
    %1061 = vmatprep.mubr.f32.mxu0 0.0
    %1062 = vmatmul.mubr.f32.gmra.mrb[0].mxu0 %v935
    %v1063 = vpop.f32.mrb[0].mxu0
    %v1064 = vadd.f32 0.0, %v1063
    %v1065 = vpop.f32.mrb[0].mxu0
    %1066 = vdwg.mxu0
    %v1067 = vadd.f32 %v822, %v1004
    %v1068 = vadd.f32 %v827, %v1009
    %v1069 = vadd.f32 %v832, %v1014
    %v1070 = vadd.f32 %v837, %v1019
    %v1071 = vadd.f32 %v842, %v1024
    %v1072 = vadd.f32 %v847, %v1029
    %v1073 = vadd.f32 %v852, %v1034
    %v1074 = vadd.f32 %v857, %v1039
    %v1075 = vadd.f32 %v862, %v1044
    %v1076 = vadd.f32 %v867, %v1049
    %v1077 = vadd.f32 %v872, %v1054
    %v1078 = vadd.f32 %v877, %v1059
    %v1079 = vadd.f32 %v882, %v1064
    %v1081 = vsel %vm546, %v460, 0
    %v1084 = vsel %vm546, %v464, 0
    %v1087 = vsel %vm546, %v468, 0
    %v1090 = vsel %vm546, %v472, 0
    %v1093 = vsel %vm546, %v476, 0
    %v1096 = vsel %vm546, %v480, 0
    %v1099 = vsel %vm546, %v484, 0
    %v1102 = vsel %vm546, %v488, 0
    %v1105 = vsel %vm546, %v492, 0
    %v1108 = vsel %vm546, %v496, 0
    %v1111 = vsel %vm546, %v500, 0
    %v1114 = vsel %vm546, %v504, 0
    %v1117 = vsel %vm546, %v508, 0
    %1119 = vmatprep.subr.mxu0 0.0
    %1120 = vmatpush1.msra.mxu0 %v522
    %1121 = vmatprep.subr.mxu0 0.0
    %1122 = vmatpush1.msra.mxu0 %v523
    %1123 = vmatprep.subr.mxu0 0.0
    %1124 = vmatpush1.msra.mxu0 %v524
    %1125 = vmatprep.subr.mxu0 0.0
    %1126 = vmatpush1.msra.mxu0 %v525
    %1127 = vmatprep.subr.mxu0 0.0
    %1128 = vmatpush1.msra.mxu0 0.0
    %1129 = vmatprep.subr.mxu0 0.0
    %1130 = vmatpush1.msra.mxu0 0.0
    %1131 = vmatprep.subr.mxu0 0.0
    %1132 = vmatpush1.msra.mxu0 0.0
    %1133 = vmatprep.subr.mxu0 0.0
    %1134 = vmatpush1.msra.mxu0 0.0
    %1135 = vmatprep.subr.mxu0 0.0
    %1136 = vmatpush1.msra.mxu0 0.0
    %1137 = vmatprep.subr.mxu0 0.0
    %1138 = vmatpush1.msra.mxu0 0.0
    %1139 = vmatprep.subr.mxu0 0.0
    %1140 = vmatpush1.msra.mxu0 0.0
    %1141 = vmatprep.subr.mxu0 0.0
    %1142 = vmatpush1.msra.mxu0 0.0
    %1143 = vmatprep.subr.mxu0 0.0
    %1144 = vmatpush1.msra.mxu0 0.0
    %1145 = vmatprep.subr.mxu0 0.0
    %1146 = vmatpush1.msra.mxu0 0.0
    %1147 = vmatprep.subr.mxu0 0.0
    %1148 = vmatpush1.msra.mxu0 0.0
    %1149 = vmatprep.subr.mxu0 0.0
    %1150 = vmatpush1.msra.mxu0 0.0
    %1151 = vmatprep.subr.mxu0 0.0
    %1152 = vmatpush1.msra.mxu0 0.0
    %1153 = vmatprep.subr.mxu0 0.0
    %1154 = vmatpush1.msra.mxu0 0.0
    %1155 = vmatprep.subr.mxu0 0.0
    %1156 = vmatpush1.msra.mxu0 0.0
    %1157 = vmatprep.subr.mxu0 0.0
    %1158 = vmatpush1.msra.mxu0 0.0
    %1159 = vmatprep.subr.mxu0 0.0
    %1160 = vmatpush1.msra.mxu0 0.0
    %1161 = vmatprep.subr.mxu0 0.0
    %1162 = vmatpush1.msra.mxu0 0.0
    %1163 = vmatprep.subr.mxu0 0.0
    %1164 = vmatpush1.msra.mxu0 0.0
    %1165 = vmatprep.subr.mxu0 0.0
    %1166 = vmatpush1.msra.mxu0 0.0
    %1167 = vmatprep.subr.mxu0 0.0
    %1168 = vmatpush1.msra.mxu0 0.0
    %1169 = vmatprep.subr.mxu0 0.0
    %1170 = vmatpush1.msra.mxu0 0.0
    %1171 = vmatprep.subr.mxu0 0.0
    %1172 = vmatpush1.msra.mxu0 0.0
    %1173 = vmatprep.subr.mxu0 0.0
    %1174 = vmatpush1.msra.mxu0 0.0
    %1175 = vmatprep.subr.mxu0 0.0
    %1176 = vmatpush1.msra.mxu0 0.0
    %1177 = vmatprep.subr.mxu0 0.0
    %1178 = vmatpush1.msra.mxu0 0.0
    %1179 = vmatprep.subr.mxu0 0.0
    %1180 = vmatpush1.msra.mxu0 0.0
    %1181 = vmatprep.subr.mxu0 0.0
    %1182 = vmatpush1.msra.mxu0 0.0
    %1183 = vmatprep.mubr.f32.mxu0 0.0
    %1184 = vmatmul.mubr.f32.gmra.mrb[0].mxu0 %v1081
    %v1185 = vpop.f32.mrb[0].mxu0
    %v1186 = vadd.f32 0.0, %v1185
    %v1187 = vpop.f32.mrb[0].mxu0
    %1188 = vmatprep.mubr.f32.mxu0 0.0
    %1189 = vmatmul.mubr.f32.gmra.mrb[0].mxu0 %v1084
    %v1190 = vpop.f32.mrb[0].mxu0
    %v1191 = vadd.f32 0.0, %v1190
    %v1192 = vpop.f32.mrb[0].mxu0
    %1193 = vmatprep.mubr.f32.mxu0 0.0
    %1194 = vmatmul.mubr.f32.gmra.mrb[0].mxu0 %v1087
    %v1195 = vpop.f32.mrb[0].mxu0
    %v1196 = vadd.f32 0.0, %v1195
    %v1197 = vpop.f32.mrb[0].mxu0
    %1198 = vmatprep.mubr.f32.mxu0 0.0
    %1199 = vmatmul.mubr.f32.gmra.mrb[0].mxu0 %v1090
    %v1200 = vpop.f32.mrb[0].mxu0
    %v1201 = vadd.f32 0.0, %v1200
    %v1202 = vpop.f32.mrb[0].mxu0
    %1203 = vmatprep.mubr.f32.mxu0 0.0
    %1204 = vmatmul.mubr.f32.gmra.mrb[0].mxu0 %v1093
    %v1205 = vpop.f32.mrb[0].mxu0
    %v1206 = vadd.f32 0.0, %v1205
    %v1207 = vpop.f32.mrb[0].mxu0
    %1208 = vmatprep.mubr.f32.mxu0 0.0
    %1209 = vmatmul.mubr.f32.gmra.mrb[0].mxu0 %v1096
    %v1210 = vpop.f32.mrb[0].mxu0
    %v1211 = vadd.f32 0.0, %v1210
    %v1212 = vpop.f32.mrb[0].mxu0
    %1213 = vmatprep.mubr.f32.mxu0 0.0
    %1214 = vmatmul.mubr.f32.gmra.mrb[0].mxu0 %v1099
    %v1215 = vpop.f32.mrb[0].mxu0
    %v1216 = vadd.f32 0.0, %v1215
    %v1217 = vpop.f32.mrb[0].mxu0
    %1218 = vmatprep.mubr.f32.mxu0 0.0
    %1219 = vmatmul.mubr.f32.gmra.mrb[0].mxu0 %v1102
    %v1220 = vpop.f32.mrb[0].mxu0
    %v1221 = vadd.f32 0.0, %v1220
    %v1222 = vpop.f32.mrb[0].mxu0
    %1223 = vmatprep.mubr.f32.mxu0 0.0
    %1224 = vmatmul.mubr.f32.gmra.mrb[0].mxu0 %v1105
    %v1225 = vpop.f32.mrb[0].mxu0
    %v1226 = vadd.f32 0.0, %v1225
    %v1227 = vpop.f32.mrb[0].mxu0
    %1228 = vmatprep.mubr.f32.mxu0 0.0
    %1229 = vmatmul.mubr.f32.gmra.mrb[0].mxu0 %v1108
    %v1230 = vpop.f32.mrb[0].mxu0
    %v1231 = vadd.f32 0.0, %v1230
    %v1232 = vpop.f32.mrb[0].mxu0
    %1233 = vmatprep.mubr.f32.mxu0 0.0
    %1234 = vmatmul.mubr.f32.gmra.mrb[0].mxu0 %v1111
    %v1235 = vpop.f32.mrb[0].mxu0
    %v1236 = vadd.f32 0.0, %v1235
    %v1237 = vpop.f32.mrb[0].mxu0
    %1238 = vmatprep.mubr.f32.mxu0 0.0
    %1239 = vmatmul.mubr.f32.gmra.mrb[0].mxu0 %v1114
    %v1240 = vpop.f32.mrb[0].mxu0
    %v1241 = vadd.f32 0.0, %v1240
    %v1242 = vpop.f32.mrb[0].mxu0
    %1243 = vmatprep.mubr.f32.mxu0 0.0
    %1244 = vmatmul.mubr.f32.gmra.mrb[0].mxu0 %v1117
    %v1245 = vpop.f32.mrb[0].mxu0
    %v1246 = vadd.f32 0.0, %v1245
    %v1247 = vpop.f32.mrb[0].mxu0
    %1248 = vdwg.mxu0
    %v1249 = vadd.f32 %v1067, %v1186
    %v1250 = vadd.f32 %v1068, %v1191
    %v1251 = vadd.f32 %v1069, %v1196
    %v1252 = vadd.f32 %v1070, %v1201
    %v1253 = vadd.f32 %v1071, %v1206
    %v1254 = vadd.f32 %v1072, %v1211
    %v1255 = vadd.f32 %v1073, %v1216
    %v1256 = vadd.f32 %v1074, %v1221
    %v1257 = vadd.f32 %v1075, %v1226
    %v1258 = vadd.f32 %v1076, %v1231
    %v1259 = vadd.f32 %v1077, %v1236
    %v1260 = vadd.f32 %v1078, %v1241
    %v1261 = vadd.f32 %v1079, %v1246
    %v1263 = vsel %vm546, %v461, 0
    %v1266 = vsel %vm546, %v465, 0
    %v1269 = vsel %vm546, %v469, 0
    %v1272 = vsel %vm546, %v473, 0
    %v1275 = vsel %vm546, %v477, 0
    %v1278 = vsel %vm546, %v481, 0
    %v1281 = vsel %vm546, %v485, 0
    %v1284 = vsel %vm546, %v489, 0
    %v1287 = vsel %vm546, %v493, 0
    %v1290 = vsel %vm546, %v497, 0
    %v1293 = vsel %vm546, %v501, 0
    %v1296 = vsel %vm546, %v505, 0
    %v1299 = vsel %vm546, %v509, 0
    %1301 = vmatprep.subr.mxu0 0.0
    %1302 = vmatpush1.msra.mxu0 %v526
    %1303 = vmatprep.subr.mxu0 0.0
    %1304 = vmatpush1.msra.mxu0 %v527
    %1305 = vmatprep.subr.mxu0 0.0
    %1306 = vmatpush1.msra.mxu0 %v528
    %1307 = vmatprep.subr.mxu0 0.0
    %1308 = vmatpush1.msra.mxu0 %v529
    %1309 = vmatprep.subr.mxu0 0.0
    %1310 = vmatpush1.msra.mxu0 0.0
    %1311 = vmatprep.subr.mxu0 0.0
    %1312 = vmatpush1.msra.mxu0 0.0
    %1313 = vmatprep.subr.mxu0 0.0
    %1314 = vmatpush1.msra.mxu0 0.0
    %1315 = vmatprep.subr.mxu0 0.0
    %1316 = vmatpush1.msra.mxu0 0.0
    %1317 = vmatprep.subr.mxu0 0.0
    %1318 = vmatpush1.msra.mxu0 0.0
    %1319 = vmatprep.subr.mxu0 0.0
    %1320 = vmatpush1.msra.mxu0 0.0
    %1321 = vmatprep.subr.mxu0 0.0
    %1322 = vmatpush1.msra.mxu0 0.0
    %1323 = vmatprep.subr.mxu0 0.0
    %1324 = vmatpush1.msra.mxu0 0.0
    %1325 = vmatprep.subr.mxu0 0.0
    %1326 = vmatpush1.msra.mxu0 0.0
    %1327 = vmatprep.subr.mxu0 0.0
    %1328 = vmatpush1.msra.mxu0 0.0
    %1329 = vmatprep.subr.mxu0 0.0
    %1330 = vmatpush1.msra.mxu0 0.0
    %1331 = vmatprep.subr.mxu0 0.0
    %1332 = vmatpush1.msra.mxu0 0.0
    %1333 = vmatprep.subr.mxu0 0.0
    %1334 = vmatpush1.msra.mxu0 0.0
    %1335 = vmatprep.subr.mxu0 0.0
    %1336 = vmatpush1.msra.mxu0 0.0
    %1337 = vmatprep.subr.mxu0 0.0
    %1338 = vmatpush1.msra.mxu0 0.0
    %1339 = vmatprep.subr.mxu0 0.0
    %1340 = vmatpush1.msra.mxu0 0.0
    %1341 = vmatprep.subr.mxu0 0.0
    %1342 = vmatpush1.msra.mxu0 0.0
    %1343 = vmatprep.subr.mxu0 0.0
    %1344 = vmatpush1.msra.mxu0 0.0
    %1345 = vmatprep.subr.mxu0 0.0
    %1346 = vmatpush1.msra.mxu0 0.0
    %1347 = vmatprep.subr.mxu0 0.0
    %1348 = vmatpush1.msra.mxu0 0.0
    %1349 = vmatprep.subr.mxu0 0.0
    %1350 = vmatpush1.msra.mxu0 0.0
    %1351 = vmatprep.subr.mxu0 0.0
    %1352 = vmatpush1.msra.mxu0 0.0
    %1353 = vmatprep.subr.mxu0 0.0
    %1354 = vmatpush1.msra.mxu0 0.0
    %1355 = vmatprep.subr.mxu0 0.0
    %1356 = vmatpush1.msra.mxu0 0.0
    %1357 = vmatprep.subr.mxu0 0.0
    %1358 = vmatpush1.msra.mxu0 0.0
    %1359 = vmatprep.subr.mxu0 0.0
    %1360 = vmatpush1.msra.mxu0 0.0
    %1361 = vmatprep.subr.mxu0 0.0
    %1362 = vmatpush1.msra.mxu0 0.0
    %1363 = vmatprep.subr.mxu0 0.0
    %1364 = vmatpush1.msra.mxu0 0.0
    %1365 = vmatprep.mubr.f32.mxu0 0.0
    %1366 = vmatmul.mubr.f32.gmra.mrb[0].mxu0 %v1263
    %v1367 = vpop.f32.mrb[0].mxu0
    %v1368 = vadd.f32 0.0, %v1367
    %v1369 = vpop.f32.mrb[0].mxu0
    %1370 = vmatprep.mubr.f32.mxu0 0.0
    %1371 = vmatmul.mubr.f32.gmra.mrb[0].mxu0 %v1266
    %v1372 = vpop.f32.mrb[0].mxu0
    %v1373 = vadd.f32 0.0, %v1372
    %v1374 = vpop.f32.mrb[0].mxu0
    %1375 = vmatprep.mubr.f32.mxu0 0.0
    %1376 = vmatmul.mubr.f32.gmra.mrb[0].mxu0 %v1269
    %v1377 = vpop.f32.mrb[0].mxu0
    %v1378 = vadd.f32 0.0, %v1377
    %v1379 = vpop.f32.mrb[0].mxu0
    %1380 = vmatprep.mubr.f32.mxu0 0.0
    %1381 = vmatmul.mubr.f32.gmra.mrb[0].mxu0 %v1272
    %v1382 = vpop.f32.mrb[0].mxu0
    %v1383 = vadd.f32 0.0, %v1382
    %v1384 = vpop.f32.mrb[0].mxu0
    %1385 = vmatprep.mubr.f32.mxu0 0.0
    %1386 = vmatmul.mubr.f32.gmra.mrb[0].mxu0 %v1275
    %v1387 = vpop.f32.mrb[0].mxu0
    %v1388 = vadd.f32 0.0, %v1387
    %v1389 = vpop.f32.mrb[0].mxu0
    %1390 = vmatprep.mubr.f32.mxu0 0.0
    %1391 = vmatmul.mubr.f32.gmra.mrb[0].mxu0 %v1278
    %v1392 = vpop.f32.mrb[0].mxu0
    %v1393 = vadd.f32 0.0, %v1392
    %v1394 = vpop.f32.mrb[0].mxu0
    %1395 = vmatprep.mubr.f32.mxu0 0.0
    %1396 = vmatmul.mubr.f32.gmra.mrb[0].mxu0 %v1281
    %v1397 = vpop.f32.mrb[0].mxu0
    %v1398 = vadd.f32 0.0, %v1397
    %v1399 = vpop.f32.mrb[0].mxu0
    %1400 = vmatprep.mubr.f32.mxu0 0.0
    %1401 = vmatmul.mubr.f32.gmra.mrb[0].mxu0 %v1284
    %v1402 = vpop.f32.mrb[0].mxu0
    %v1403 = vadd.f32 0.0, %v1402
    %v1404 = vpop.f32.mrb[0].mxu0
    %1405 = vmatprep.mubr.f32.mxu0 0.0
    %1406 = vmatmul.mubr.f32.gmra.mrb[0].mxu0 %v1287
    %v1407 = vpop.f32.mrb[0].mxu0
    %v1408 = vadd.f32 0.0, %v1407
    %v1409 = vpop.f32.mrb[0].mxu0
    %1410 = vmatprep.mubr.f32.mxu0 0.0
    %1411 = vmatmul.mubr.f32.gmra.mrb[0].mxu0 %v1290
    %v1412 = vpop.f32.mrb[0].mxu0
    %v1413 = vadd.f32 0.0, %v1412
    %v1414 = vpop.f32.mrb[0].mxu0
    %1415 = vmatprep.mubr.f32.mxu0 0.0
    %1416 = vmatmul.mubr.f32.gmra.mrb[0].mxu0 %v1293
    %v1417 = vpop.f32.mrb[0].mxu0
    %v1418 = vadd.f32 0.0, %v1417
    %v1419 = vpop.f32.mrb[0].mxu0
    %1420 = vmatprep.mubr.f32.mxu0 0.0
    %1421 = vmatmul.mubr.f32.gmra.mrb[0].mxu0 %v1296
    %v1422 = vpop.f32.mrb[0].mxu0
    %v1423 = vadd.f32 0.0, %v1422
    %v1424 = vpop.f32.mrb[0].mxu0
    %1425 = vmatprep.mubr.f32.mxu0 0.0
    %1426 = vmatmul.mubr.f32.gmra.mrb[0].mxu0 %v1299
    %v1427 = vpop.f32.mrb[0].mxu0
    %v1428 = vadd.f32 0.0, %v1427
    %v1429 = vpop.f32.mrb[0].mxu0
    %1430 = vdwg.mxu0
    %v1431 = vadd.f32 %v1249, %v1368
    %v1432 = vadd.f32 %v1250, %v1373
    %v1433 = vadd.f32 %v1251, %v1378
    %v1434 = vadd.f32 %v1252, %v1383
    %v1435 = vadd.f32 %v1253, %v1388
    %v1436 = vadd.f32 %v1254, %v1393
    %v1437 = vadd.f32 %v1255, %v1398
    %v1438 = vadd.f32 %v1256, %v1403
    %v1439 = vadd.f32 %v1257, %v1408
    %v1440 = vadd.f32 %v1258, %v1413
    %v1441 = vadd.f32 %v1259, %v1418
    %v1442 = vadd.f32 %v1260, %v1423
    %v1443 = vadd.f32 %v1261, %v1428
    %1444 = vrot.lane.b32.xlu0 %v460, 96
    %v1445 = vpop.permute.xlu0 %1444
    %1446 = vrot.lane.b32.xlu0 %v464, 96
    %v1447 = vpop.permute.xlu0 %1446
    %1448 = vrot.lane.b32.xlu0 %v468, 96
    %v1449 = vpop.permute.xlu0 %1448
    %1450 = vrot.lane.b32.xlu0 %v472, 96
    %v1451 = vpop.permute.xlu0 %1450
    %1452 = vrot.lane.b32.xlu0 %v476, 96
    %v1453 = vpop.permute.xlu0 %1452
    %1454 = vrot.lane.b32.xlu0 %v480, 96
    %v1455 = vpop.permute.xlu0 %1454
    %1456 = vrot.lane.b32.xlu0 %v484, 96
    %v1457 = vpop.permute.xlu0 %1456
    %1458 = vrot.lane.b32.xlu0 %v488, 96
    %v1459 = vpop.permute.xlu0 %1458
    %1460 = vrot.lane.b32.xlu0 %v492, 96
    %v1461 = vpop.permute.xlu0 %1460
    %1462 = vrot.lane.b32.xlu0 %v496, 96
    %v1463 = vpop.permute.xlu0 %1462
    %1464 = vrot.lane.b32.xlu0 %v500, 96
    %v1465 = vpop.permute.xlu0 %1464
    %1466 = vrot.lane.b32.xlu0 %v504, 96
    %v1467 = vpop.permute.xlu0 %1466
    %1468 = vrot.lane.b32.xlu0 %v508, 96
    %v1469 = vpop.permute.xlu0 %1468
    %v1470 = vsel %vm546, %v1445, 0
    %v1472 = vsel %vm546, %v1447, 0
    %v1474 = vsel %vm546, %v1449, 0
    %v1476 = vsel %vm546, %v1451, 0
    %v1478 = vsel %vm546, %v1453, 0
    %v1480 = vsel %vm546, %v1455, 0
    %v1482 = vsel %vm546, %v1457, 0
    %v1484 = vsel %vm546, %v1459, 0
    %v1486 = vsel %vm546, %v1461, 0
    %v1488 = vsel %vm546, %v1463, 0
    %v1490 = vsel %vm546, %v1465, 0
    %v1492 = vsel %vm546, %v1467, 0
    %v1494 = vsel %vm546, %v1469, 0
    %1496 = vmatprep.subr.mxu0 0.0
    %1497 = vmatpush1.msra.mxu0 %v530
    %1498 = vmatprep.subr.mxu0 0.0
    %1499 = vmatpush1.msra.mxu0 %v531
    %1500 = vmatprep.subr.mxu0 0.0
    %1501 = vmatpush1.msra.mxu0 %v532
    %1502 = vmatprep.subr.mxu0 0.0
    %1503 = vmatpush1.msra.mxu0 %v533
    %1504 = vmatprep.subr.mxu0 0.0
    %1505 = vmatpush1.msra.mxu0 0.0
    %1506 = vmatprep.subr.mxu0 0.0
    %1507 = vmatpush1.msra.mxu0 0.0
    %1508 = vmatprep.subr.mxu0 0.0
    %1509 = vmatpush1.msra.mxu0 0.0
    %1510 = vmatprep.subr.mxu0 0.0
    %1511 = vmatpush1.msra.mxu0 0.0
    %1512 = vmatprep.subr.mxu0 0.0
    %1513 = vmatpush1.msra.mxu0 0.0
    %1514 = vmatprep.subr.mxu0 0.0
    %1515 = vmatpush1.msra.mxu0 0.0
    %1516 = vmatprep.subr.mxu0 0.0
    %1517 = vmatpush1.msra.mxu0 0.0
    %1518 = vmatprep.subr.mxu0 0.0
    %1519 = vmatpush1.msra.mxu0 0.0
    %1520 = vmatprep.subr.mxu0 0.0
    %1521 = vmatpush1.msra.mxu0 0.0
    %1522 = vmatprep.subr.mxu0 0.0
    %1523 = vmatpush1.msra.mxu0 0.0
    %1524 = vmatprep.subr.mxu0 0.0
    %1525 = vmatpush1.msra.mxu0 0.0
    %1526 = vmatprep.subr.mxu0 0.0
    %1527 = vmatpush1.msra.mxu0 0.0
    %1528 = vmatprep.subr.mxu0 0.0
    %1529 = vmatpush1.msra.mxu0 0.0
    %1530 = vmatprep.subr.mxu0 0.0
    %1531 = vmatpush1.msra.mxu0 0.0
    %1532 = vmatprep.subr.mxu0 0.0
    %1533 = vmatpush1.msra.mxu0 0.0
    %1534 = vmatprep.subr.mxu0 0.0
    %1535 = vmatpush1.msra.mxu0 0.0
    %1536 = vmatprep.subr.mxu0 0.0
    %1537 = vmatpush1.msra.mxu0 0.0
    %1538 = vmatprep.subr.mxu0 0.0
    %1539 = vmatpush1.msra.mxu0 0.0
    %1540 = vmatprep.subr.mxu0 0.0
    %1541 = vmatpush1.msra.mxu0 0.0
    %1542 = vmatprep.subr.mxu0 0.0
    %1543 = vmatpush1.msra.mxu0 0.0
    %1544 = vmatprep.subr.mxu0 0.0
    %1545 = vmatpush1.msra.mxu0 0.0
    %1546 = vmatprep.subr.mxu0 0.0
    %1547 = vmatpush1.msra.mxu0 0.0
    %1548 = vmatprep.subr.mxu0 0.0
    %1549 = vmatpush1.msra.mxu0 0.0
    %1550 = vmatprep.subr.mxu0 0.0
    %1551 = vmatpush1.msra.mxu0 0.0
    %1552 = vmatprep.subr.mxu0 0.0
    %1553 = vmatpush1.msra.mxu0 0.0
    %1554 = vmatprep.subr.mxu0 0.0
    %1555 = vmatpush1.msra.mxu0 0.0
    %1556 = vmatprep.subr.mxu0 0.0
    %1557 = vmatpush1.msra.mxu0 0.0
    %1558 = vmatprep.subr.mxu0 0.0
    %1559 = vmatpush1.msra.mxu0 0.0
    %1560 = vmatprep.mubr.f32.mxu0 0.0
    %1561 = vmatmul.mubr.f32.gmra.mrb[0].mxu0 %v1470
    %v1562 = vpop.f32.mrb[0].mxu0
    %v1563 = vadd.f32 0.0, %v1562
    %v1564 = vpop.f32.mrb[0].mxu0
    %1565 = vmatprep.mubr.f32.mxu0 0.0
    %1566 = vmatmul.mubr.f32.gmra.mrb[0].mxu0 %v1472
    %v1567 = vpop.f32.mrb[0].mxu0
    %v1568 = vadd.f32 0.0, %v1567
    %v1569 = vpop.f32.mrb[0].mxu0
    %1570 = vmatprep.mubr.f32.mxu0 0.0
    %1571 = vmatmul.mubr.f32.gmra.mrb[0].mxu0 %v1474
    %v1572 = vpop.f32.mrb[0].mxu0
    %v1573 = vadd.f32 0.0, %v1572
    %v1574 = vpop.f32.mrb[0].mxu0
    %1575 = vmatprep.mubr.f32.mxu0 0.0
    %1576 = vmatmul.mubr.f32.gmra.mrb[0].mxu0 %v1476
    %v1577 = vpop.f32.mrb[0].mxu0
    %v1578 = vadd.f32 0.0, %v1577
    %v1579 = vpop.f32.mrb[0].mxu0
    %1580 = vmatprep.mubr.f32.mxu0 0.0
    %1581 = vmatmul.mubr.f32.gmra.mrb[0].mxu0 %v1478
    %v1582 = vpop.f32.mrb[0].mxu0
    %v1583 = vadd.f32 0.0, %v1582
    %v1584 = vpop.f32.mrb[0].mxu0
    %1585 = vmatprep.mubr.f32.mxu0 0.0
    %1586 = vmatmul.mubr.f32.gmra.mrb[0].mxu0 %v1480
    %v1587 = vpop.f32.mrb[0].mxu0
    %v1588 = vadd.f32 0.0, %v1587
    %v1589 = vpop.f32.mrb[0].mxu0
    %1590 = vmatprep.mubr.f32.mxu0 0.0
    %1591 = vmatmul.mubr.f32.gmra.mrb[0].mxu0 %v1482
    %v1592 = vpop.f32.mrb[0].mxu0
    %v1593 = vadd.f32 0.0, %v1592
    %v1594 = vpop.f32.mrb[0].mxu0
    %1595 = vmatprep.mubr.f32.mxu0 0.0
    %1596 = vmatmul.mubr.f32.gmra.mrb[0].mxu0 %v1484
    %v1597 = vpop.f32.mrb[0].mxu0
    %v1598 = vadd.f32 0.0, %v1597
    %v1599 = vpop.f32.mrb[0].mxu0
    %1600 = vmatprep.mubr.f32.mxu0 0.0
    %1601 = vmatmul.mubr.f32.gmra.mrb[0].mxu0 %v1486
    %v1602 = vpop.f32.mrb[0].mxu0
    %v1603 = vadd.f32 0.0, %v1602
    %v1604 = vpop.f32.mrb[0].mxu0
    %1605 = vmatprep.mubr.f32.mxu0 0.0
    %1606 = vmatmul.mubr.f32.gmra.mrb[0].mxu0 %v1488
    %v1607 = vpop.f32.mrb[0].mxu0
    %v1608 = vadd.f32 0.0, %v1607
    %v1609 = vpop.f32.mrb[0].mxu0
    %1610 = vmatprep.mubr.f32.mxu0 0.0
    %1611 = vmatmul.mubr.f32.gmra.mrb[0].mxu0 %v1490
    %v1612 = vpop.f32.mrb[0].mxu0
    %v1613 = vadd.f32 0.0, %v1612
    %v1614 = vpop.f32.mrb[0].mxu0
    %1615 = vmatprep.mubr.f32.mxu0 0.0
    %1616 = vmatmul.mubr.f32.gmra.mrb[0].mxu0 %v1492
    %v1617 = vpop.f32.mrb[0].mxu0
    %v1618 = vadd.f32 0.0, %v1617
    %v1619 = vpop.f32.mrb[0].mxu0
    %1620 = vmatprep.mubr.f32.mxu0 0.0
    %1621 = vmatmul.mubr.f32.gmra.mrb[0].mxu0 %v1494
    %v1622 = vpop.f32.mrb[0].mxu0
    %v1623 = vadd.f32 0.0, %v1622
    %v1624 = vpop.f32.mrb[0].mxu0
    %1625 = vdwg.mxu0
    %v1626 = vadd.f32 %v1431, %v1563
    %v1627 = vadd.f32 %v1432, %v1568
    %v1628 = vadd.f32 %v1433, %v1573
    %v1629 = vadd.f32 %v1434, %v1578
    %v1630 = vadd.f32 %v1435, %v1583
    %v1631 = vadd.f32 %v1436, %v1588
    %v1632 = vadd.f32 %v1437, %v1593
    %v1633 = vadd.f32 %v1438, %v1598
    %v1634 = vadd.f32 %v1439, %v1603
    %v1635 = vadd.f32 %v1440, %v1608
    %v1636 = vadd.f32 %v1441, %v1613
    %v1637 = vadd.f32 %v1442, %v1618
    %v1638 = vadd.f32 %v1443, %v1623
    %1639 = vrot.lane.b32.xlu0 %v458, 64
    %v1640 = vpop.permute.xlu0 %1639
    %1641 = vrot.lane.b32.xlu0 %v462, 64
    %v1642 = vpop.permute.xlu0 %1641
    %1643 = vrot.lane.b32.xlu0 %v466, 64
    %v1644 = vpop.permute.xlu0 %1643
    %1645 = vrot.lane.b32.xlu0 %v470, 64
    %v1646 = vpop.permute.xlu0 %1645
    %1647 = vrot.lane.b32.xlu0 %v474, 64
    %v1648 = vpop.permute.xlu0 %1647
    %1649 = vrot.lane.b32.xlu0 %v478, 64
    %v1650 = vpop.permute.xlu0 %1649
    %1651 = vrot.lane.b32.xlu0 %v482, 64
    %v1652 = vpop.permute.xlu0 %1651
    %1653 = vrot.lane.b32.xlu0 %v486, 64
    %v1654 = vpop.permute.xlu0 %1653
    %1655 = vrot.lane.b32.xlu0 %v490, 64
    %v1656 = vpop.permute.xlu0 %1655
    %1657 = vrot.lane.b32.xlu0 %v494, 64
    %v1658 = vpop.permute.xlu0 %1657
    %1659 = vrot.lane.b32.xlu0 %v498, 64
    %v1660 = vpop.permute.xlu0 %1659
    %1661 = vrot.lane.b32.xlu0 %v502, 64
    %v1662 = vpop.permute.xlu0 %1661
    %1663 = vrot.lane.b32.xlu0 %v506, 64
    %v1664 = vpop.permute.xlu0 %1663
    %v1665 = vsel %vm546, %v1640, 0
    %v1667 = vsel %vm546, %v1642, 0
    %v1669 = vsel %vm546, %v1644, 0
    %v1671 = vsel %vm546, %v1646, 0
    %v1673 = vsel %vm546, %v1648, 0
    %v1675 = vsel %vm546, %v1650, 0
    %v1677 = vsel %vm546, %v1652, 0
    %v1679 = vsel %vm546, %v1654, 0
    %v1681 = vsel %vm546, %v1656, 0
    %v1683 = vsel %vm546, %v1658, 0
    %v1685 = vsel %vm546, %v1660, 0
    %v1687 = vsel %vm546, %v1662, 0
    %v1689 = vsel %vm546, %v1664, 0
    %1691 = vmatprep.subr.mxu0 0.0
    %1692 = vmatpush1.msra.mxu0 %v534
    %1693 = vmatprep.subr.mxu0 0.0
    %1694 = vmatpush1.msra.mxu0 %v535
    %1695 = vmatprep.subr.mxu0 0.0
    %1696 = vmatpush1.msra.mxu0 %v536
    %1697 = vmatprep.subr.mxu0 0.0
    %1698 = vmatpush1.msra.mxu0 %v537
    %1699 = vmatprep.subr.mxu0 0.0
    %1700 = vmatpush1.msra.mxu0 0.0
    %1701 = vmatprep.subr.mxu0 0.0
    %1702 = vmatpush1.msra.mxu0 0.0
    %1703 = vmatprep.subr.mxu0 0.0
    %1704 = vmatpush1.msra.mxu0 0.0
    %1705 = vmatprep.subr.mxu0 0.0
    %1706 = vmatpush1.msra.mxu0 0.0
    %1707 = vmatprep.subr.mxu0 0.0
    %1708 = vmatpush1.msra.mxu0 0.0
    %1709 = vmatprep.subr.mxu0 0.0
    %1710 = vmatpush1.msra.mxu0 0.0
    %1711 = vmatprep.subr.mxu0 0.0
    %1712 = vmatpush1.msra.mxu0 0.0
    %1713 = vmatprep.subr.mxu0 0.0
    %1714 = vmatpush1.msra.mxu0 0.0
    %1715 = vmatprep.subr.mxu0 0.0
    %1716 = vmatpush1.msra.mxu0 0.0
    %1717 = vmatprep.subr.mxu0 0.0
    %1718 = vmatpush1.msra.mxu0 0.0
    %1719 = vmatprep.subr.mxu0 0.0
    %1720 = vmatpush1.msra.mxu0 0.0
    %1721 = vmatprep.subr.mxu0 0.0
    %1722 = vmatpush1.msra.mxu0 0.0
    %1723 = vmatprep.subr.mxu0 0.0
    %1724 = vmatpush1.msra.mxu0 0.0
    %1725 = vmatprep.subr.mxu0 0.0
    %1726 = vmatpush1.msra.mxu0 0.0
    %1727 = vmatprep.subr.mxu0 0.0
    %1728 = vmatpush1.msra.mxu0 0.0
    %1729 = vmatprep.subr.mxu0 0.0
    %1730 = vmatpush1.msra.mxu0 0.0
    %1731 = vmatprep.subr.mxu0 0.0
    %1732 = vmatpush1.msra.mxu0 0.0
    %1733 = vmatprep.subr.mxu0 0.0
    %1734 = vmatpush1.msra.mxu0 0.0
    %1735 = vmatprep.subr.mxu0 0.0
    %1736 = vmatpush1.msra.mxu0 0.0
    %1737 = vmatprep.subr.mxu0 0.0
    %1738 = vmatpush1.msra.mxu0 0.0
    %1739 = vmatprep.subr.mxu0 0.0
    %1740 = vmatpush1.msra.mxu0 0.0
    %1741 = vmatprep.subr.mxu0 0.0
    %1742 = vmatpush1.msra.mxu0 0.0
    %1743 = vmatprep.subr.mxu0 0.0
    %1744 = vmatpush1.msra.mxu0 0.0
    %1745 = vmatprep.subr.mxu0 0.0
    %1746 = vmatpush1.msra.mxu0 0.0
    %1747 = vmatprep.subr.mxu0 0.0
    %1748 = vmatpush1.msra.mxu0 0.0
    %1749 = vmatprep.subr.mxu0 0.0
    %1750 = vmatpush1.msra.mxu0 0.0
    %1751 = vmatprep.subr.mxu0 0.0
    %1752 = vmatpush1.msra.mxu0 0.0
    %1753 = vmatprep.subr.mxu0 0.0
    %1754 = vmatpush1.msra.mxu0 0.0
    %1755 = vmatprep.mubr.f32.mxu0 0.0
    %1756 = vmatmul.mubr.f32.gmra.mrb[0].mxu0 %v1665
    %v1757 = vpop.f32.mrb[0].mxu0
    %v1758 = vadd.f32 0.0, %v1757
    %v1759 = vpop.f32.mrb[0].mxu0
    %1760 = vmatprep.mubr.f32.mxu0 0.0
    %1761 = vmatmul.mubr.f32.gmra.mrb[0].mxu0 %v1667
    %v1762 = vpop.f32.mrb[0].mxu0
    %v1763 = vadd.f32 0.0, %v1762
    %v1764 = vpop.f32.mrb[0].mxu0
    %1765 = vmatprep.mubr.f32.mxu0 0.0
    %1766 = vmatmul.mubr.f32.gmra.mrb[0].mxu0 %v1669
    %v1767 = vpop.f32.mrb[0].mxu0
    %v1768 = vadd.f32 0.0, %v1767
    %v1769 = vpop.f32.mrb[0].mxu0
    %1770 = vmatprep.mubr.f32.mxu0 0.0
    %1771 = vmatmul.mubr.f32.gmra.mrb[0].mxu0 %v1671
    %v1772 = vpop.f32.mrb[0].mxu0
    %v1773 = vadd.f32 0.0, %v1772
    %v1774 = vpop.f32.mrb[0].mxu0
    %1775 = vmatprep.mubr.f32.mxu0 0.0
    %1776 = vmatmul.mubr.f32.gmra.mrb[0].mxu0 %v1673
    %v1777 = vpop.f32.mrb[0].mxu0
    %v1778 = vadd.f32 0.0, %v1777
    %v1779 = vpop.f32.mrb[0].mxu0
    %1780 = vmatprep.mubr.f32.mxu0 0.0
    %1781 = vmatmul.mubr.f32.gmra.mrb[0].mxu0 %v1675
    %v1782 = vpop.f32.mrb[0].mxu0
    %v1783 = vadd.f32 0.0, %v1782
    %v1784 = vpop.f32.mrb[0].mxu0
    %1785 = vmatprep.mubr.f32.mxu0 0.0
    %1786 = vmatmul.mubr.f32.gmra.mrb[0].mxu0 %v1677
    %v1787 = vpop.f32.mrb[0].mxu0
    %v1788 = vadd.f32 0.0, %v1787
    %v1789 = vpop.f32.mrb[0].mxu0
    %1790 = vmatprep.mubr.f32.mxu0 0.0
    %1791 = vmatmul.mubr.f32.gmra.mrb[0].mxu0 %v1679
    %v1792 = vpop.f32.mrb[0].mxu0
    %v1793 = vadd.f32 0.0, %v1792
    %v1794 = vpop.f32.mrb[0].mxu0
    %1795 = vmatprep.mubr.f32.mxu0 0.0
    %1796 = vmatmul.mubr.f32.gmra.mrb[0].mxu0 %v1681
    %v1797 = vpop.f32.mrb[0].mxu0
    %v1798 = vadd.f32 0.0, %v1797
    %v1799 = vpop.f32.mrb[0].mxu0
    %1800 = vmatprep.mubr.f32.mxu0 0.0
    %1801 = vmatmul.mubr.f32.gmra.mrb[0].mxu0 %v1683
    %v1802 = vpop.f32.mrb[0].mxu0
    %v1803 = vadd.f32 0.0, %v1802
    %v1804 = vpop.f32.mrb[0].mxu0
    %1805 = vmatprep.mubr.f32.mxu0 0.0
    %1806 = vmatmul.mubr.f32.gmra.mrb[0].mxu0 %v1685
    %v1807 = vpop.f32.mrb[0].mxu0
    %v1808 = vadd.f32 0.0, %v1807
    %v1809 = vpop.f32.mrb[0].mxu0
    %1810 = vmatprep.mubr.f32.mxu0 0.0
    %1811 = vmatmul.mubr.f32.gmra.mrb[0].mxu0 %v1687
    %v1812 = vpop.f32.mrb[0].mxu0
    %v1813 = vadd.f32 0.0, %v1812
    %v1814 = vpop.f32.mrb[0].mxu0
    %1815 = vmatprep.mubr.f32.mxu0 0.0
    %1816 = vmatmul.mubr.f32.gmra.mrb[0].mxu0 %v1689
    %v1817 = vpop.f32.mrb[0].mxu0
    %v1818 = vadd.f32 0.0, %v1817
    %v1819 = vpop.f32.mrb[0].mxu0
    %1820 = vdwg.mxu0
    %v1821 = vadd.f32 %v1626, %v1758
    %v1822 = vadd.f32 %v1627, %v1763
    %v1823 = vadd.f32 %v1628, %v1768
    %v1824 = vadd.f32 %v1629, %v1773
    %v1825 = vadd.f32 %v1630, %v1778
    %v1826 = vadd.f32 %v1631, %v1783
    %v1827 = vadd.f32 %v1632, %v1788
    %v1828 = vadd.f32 %v1633, %v1793
    %v1829 = vadd.f32 %v1634, %v1798
    %v1830 = vadd.f32 %v1635, %v1803
    %v1831 = vadd.f32 %v1636, %v1808
    %v1832 = vadd.f32 %v1637, %v1813
    %v1833 = vadd.f32 %v1638, %v1818
    %1834 = vrot.lane.b32.xlu0 %v459, 64
    %v1835 = vpop.permute.xlu0 %1834
    %1836 = vrot.lane.b32.xlu0 %v463, 64
    %v1837 = vpop.permute.xlu0 %1836
    %1838 = vrot.lane.b32.xlu0 %v467, 64
    %v1839 = vpop.permute.xlu0 %1838
    %1840 = vrot.lane.b32.xlu0 %v471, 64
    %v1841 = vpop.permute.xlu0 %1840
    %1842 = vrot.lane.b32.xlu0 %v475, 64
    %v1843 = vpop.permute.xlu0 %1842
    %1844 = vrot.lane.b32.xlu0 %v479, 64
    %v1845 = vpop.permute.xlu0 %1844
    %1846 = vrot.lane.b32.xlu0 %v483, 64
    %v1847 = vpop.permute.xlu0 %1846
    %1848 = vrot.lane.b32.xlu0 %v487, 64
    %v1849 = vpop.permute.xlu0 %1848
    %1850 = vrot.lane.b32.xlu0 %v491, 64
    %v1851 = vpop.permute.xlu0 %1850
    %1852 = vrot.lane.b32.xlu0 %v495, 64
    %v1853 = vpop.permute.xlu0 %1852
    %1854 = vrot.lane.b32.xlu0 %v499, 64
    %v1855 = vpop.permute.xlu0 %1854
    %1856 = vrot.lane.b32.xlu0 %v503, 64
    %v1857 = vpop.permute.xlu0 %1856
    %1858 = vrot.lane.b32.xlu0 %v507, 64
    %v1859 = vpop.permute.xlu0 %1858
    %v1860 = vsel %vm546, %v1835, 0
    %v1862 = vsel %vm546, %v1837, 0
    %v1864 = vsel %vm546, %v1839, 0
    %v1866 = vsel %vm546, %v1841, 0
    %v1868 = vsel %vm546, %v1843, 0
    %v1870 = vsel %vm546, %v1845, 0
    %v1872 = vsel %vm546, %v1847, 0
    %v1874 = vsel %vm546, %v1849, 0
    %v1876 = vsel %vm546, %v1851, 0
    %v1878 = vsel %vm546, %v1853, 0
    %v1880 = vsel %vm546, %v1855, 0
    %v1882 = vsel %vm546, %v1857, 0
    %v1884 = vsel %vm546, %v1859, 0
    %1886 = vmatprep.subr.mxu0 0.0
    %1887 = vmatpush1.msra.mxu0 %v538
    %1888 = vmatprep.subr.mxu0 0.0
    %1889 = vmatpush1.msra.mxu0 %v539
    %1890 = vmatprep.subr.mxu0 0.0
    %1891 = vmatpush1.msra.mxu0 %v540
    %1892 = vmatprep.subr.mxu0 0.0
    %1893 = vmatpush1.msra.mxu0 %v541
    %1894 = vmatprep.subr.mxu0 0.0
    %1895 = vmatpush1.msra.mxu0 0.0
    %1896 = vmatprep.subr.mxu0 0.0
    %1897 = vmatpush1.msra.mxu0 0.0
    %1898 = vmatprep.subr.mxu0 0.0
    %1899 = vmatpush1.msra.mxu0 0.0
    %1900 = vmatprep.subr.mxu0 0.0
    %1901 = vmatpush1.msra.mxu0 0.0
    %1902 = vmatprep.subr.mxu0 0.0
    %1903 = vmatpush1.msra.mxu0 0.0
    %1904 = vmatprep.subr.mxu0 0.0
    %1905 = vmatpush1.msra.mxu0 0.0
    %1906 = vmatprep.subr.mxu0 0.0
    %1907 = vmatpush1.msra.mxu0 0.0
    %1908 = vmatprep.subr.mxu0 0.0
    %1909 = vmatpush1.msra.mxu0 0.0
    %1910 = vmatprep.subr.mxu0 0.0
    %1911 = vmatpush1.msra.mxu0 0.0
    %1912 = vmatprep.subr.mxu0 0.0
    %1913 = vmatpush1.msra.mxu0 0.0
    %1914 = vmatprep.subr.mxu0 0.0
    %1915 = vmatpush1.msra.mxu0 0.0
    %1916 = vmatprep.subr.mxu0 0.0
    %1917 = vmatpush1.msra.mxu0 0.0
    %1918 = vmatprep.subr.mxu0 0.0
    %1919 = vmatpush1.msra.mxu0 0.0
    %1920 = vmatprep.subr.mxu0 0.0
    %1921 = vmatpush1.msra.mxu0 0.0
    %1922 = vmatprep.subr.mxu0 0.0
    %1923 = vmatpush1.msra.mxu0 0.0
    %1924 = vmatprep.subr.mxu0 0.0
    %1925 = vmatpush1.msra.mxu0 0.0
    %1926 = vmatprep.subr.mxu0 0.0
    %1927 = vmatpush1.msra.mxu0 0.0
    %1928 = vmatprep.subr.mxu0 0.0
    %1929 = vmatpush1.msra.mxu0 0.0
    %1930 = vmatprep.subr.mxu0 0.0
    %1931 = vmatpush1.msra.mxu0 0.0
    %1932 = vmatprep.subr.mxu0 0.0
    %1933 = vmatpush1.msra.mxu0 0.0
    %1934 = vmatprep.subr.mxu0 0.0
    %1935 = vmatpush1.msra.mxu0 0.0
    %1936 = vmatprep.subr.mxu0 0.0
    %1937 = vmatpush1.msra.mxu0 0.0
    %1938 = vmatprep.subr.mxu0 0.0
    %1939 = vmatpush1.msra.mxu0 0.0
    %1940 = vmatprep.subr.mxu0 0.0
    %1941 = vmatpush1.msra.mxu0 0.0
    %1942 = vmatprep.subr.mxu0 0.0
    %1943 = vmatpush1.msra.mxu0 0.0
    %1944 = vmatprep.subr.mxu0 0.0
    %1945 = vmatpush1.msra.mxu0 0.0
    %1946 = vmatprep.subr.mxu0 0.0
    %1947 = vmatpush1.msra.mxu0 0.0
    %1948 = vmatprep.subr.mxu0 0.0
    %1949 = vmatpush1.msra.mxu0 0.0
    %1950 = vmatprep.mubr.f32.mxu0 0.0
    %1951 = vmatmul.mubr.f32.gmra.mrb[0].mxu0 %v1860
    %v1952 = vpop.f32.mrb[0].mxu0
    %v1953 = vadd.f32 0.0, %v1952
    %v1954 = vpop.f32.mrb[0].mxu0
    %1955 = vmatprep.mubr.f32.mxu0 0.0
    %1956 = vmatmul.mubr.f32.gmra.mrb[0].mxu0 %v1862
    %v1957 = vpop.f32.mrb[0].mxu0
    %v1958 = vadd.f32 0.0, %v1957
    %v1959 = vpop.f32.mrb[0].mxu0
    %1960 = vmatprep.mubr.f32.mxu0 0.0
    %1961 = vmatmul.mubr.f32.gmra.mrb[0].mxu0 %v1864
    %v1962 = vpop.f32.mrb[0].mxu0
    %v1963 = vadd.f32 0.0, %v1962
    %v1964 = vpop.f32.mrb[0].mxu0
    %1965 = vmatprep.mubr.f32.mxu0 0.0
    %1966 = vmatmul.mubr.f32.gmra.mrb[0].mxu0 %v1866
    %v1967 = vpop.f32.mrb[0].mxu0
    %v1968 = vadd.f32 0.0, %v1967
    %v1969 = vpop.f32.mrb[0].mxu0
    %1970 = vmatprep.mubr.f32.mxu0 0.0
    %1971 = vmatmul.mubr.f32.gmra.mrb[0].mxu0 %v1868
    %v1972 = vpop.f32.mrb[0].mxu0
    %v1973 = vadd.f32 0.0, %v1972
    %v1974 = vpop.f32.mrb[0].mxu0
    %1975 = vmatprep.mubr.f32.mxu0 0.0
    %1976 = vmatmul.mubr.f32.gmra.mrb[0].mxu0 %v1870
    %v1977 = vpop.f32.mrb[0].mxu0
    %v1978 = vadd.f32 0.0, %v1977
    %v1979 = vpop.f32.mrb[0].mxu0
    %1980 = vmatprep.mubr.f32.mxu0 0.0
    %1981 = vmatmul.mubr.f32.gmra.mrb[0].mxu0 %v1872
    %v1982 = vpop.f32.mrb[0].mxu0
    %v1983 = vadd.f32 0.0, %v1982
    %v1984 = vpop.f32.mrb[0].mxu0
    %1985 = vmatprep.mubr.f32.mxu0 0.0
    %1986 = vmatmul.mubr.f32.gmra.mrb[0].mxu0 %v1874
    %v1987 = vpop.f32.mrb[0].mxu0
    %v1988 = vadd.f32 0.0, %v1987
    %v1989 = vpop.f32.mrb[0].mxu0
    %1990 = vmatprep.mubr.f32.mxu0 0.0
    %1991 = vmatmul.mubr.f32.gmra.mrb[0].mxu0 %v1876
    %v1992 = vpop.f32.mrb[0].mxu0
    %v1993 = vadd.f32 0.0, %v1992
    %v1994 = vpop.f32.mrb[0].mxu0
    %1995 = vmatprep.mubr.f32.mxu0 0.0
    %1996 = vmatmul.mubr.f32.gmra.mrb[0].mxu0 %v1878
    %v1997 = vpop.f32.mrb[0].mxu0
    %v1998 = vadd.f32 0.0, %v1997
    %v1999 = vpop.f32.mrb[0].mxu0
    %2000 = vmatprep.mubr.f32.mxu0 0.0
    %2001 = vmatmul.mubr.f32.gmra.mrb[0].mxu0 %v1880
    %v2002 = vpop.f32.mrb[0].mxu0
    %v2003 = vadd.f32 0.0, %v2002
    %v2004 = vpop.f32.mrb[0].mxu0
    %2005 = vmatprep.mubr.f32.mxu0 0.0
    %2006 = vmatmul.mubr.f32.gmra.mrb[0].mxu0 %v1882
    %v2007 = vpop.f32.mrb[0].mxu0
    %v2008 = vadd.f32 0.0, %v2007
    %v2009 = vpop.f32.mrb[0].mxu0
    %2010 = vmatprep.mubr.f32.mxu0 0.0
    %2011 = vmatmul.mubr.f32.gmra.mrb[0].mxu0 %v1884
    %v2012 = vpop.f32.mrb[0].mxu0
    %v2013 = vadd.f32 0.0, %v2012
    %v2014 = vpop.f32.mrb[0].mxu0
    %2015 = vdwg.mxu0
    %v2016 = vadd.f32 %v1821, %v1953
    %v2017 = vadd.f32 %v1822, %v1958
    %v2018 = vadd.f32 %v1823, %v1963
    %v2019 = vadd.f32 %v1824, %v1968
    %v2020 = vadd.f32 %v1825, %v1973
    %v2021 = vadd.f32 %v1826, %v1978
    %v2022 = vadd.f32 %v1827, %v1983
    %v2023 = vadd.f32 %v1828, %v1988
    %v2024 = vadd.f32 %v1829, %v1993
    %v2025 = vadd.f32 %v1830, %v1998
    %v2026 = vadd.f32 %v1831, %v2003
    %v2027 = vadd.f32 %v1832, %v2008
    %v2028 = vadd.f32 %v1833, %v2013
    %2029 = vrot.lane.b32.xlu0 %v458, 32
    %v2030 = vpop.permute.xlu0 %2029
    %2031 = vrot.lane.b32.xlu0 %v462, 32
    %v2032 = vpop.permute.xlu0 %2031
    %2033 = vrot.lane.b32.xlu0 %v466, 32
    %v2034 = vpop.permute.xlu0 %2033
    %2035 = vrot.lane.b32.xlu0 %v470, 32
    %v2036 = vpop.permute.xlu0 %2035
    %2037 = vrot.lane.b32.xlu0 %v474, 32
    %v2038 = vpop.permute.xlu0 %2037
    %2039 = vrot.lane.b32.xlu0 %v478, 32
    %v2040 = vpop.permute.xlu0 %2039
    %2041 = vrot.lane.b32.xlu0 %v482, 32
    %v2042 = vpop.permute.xlu0 %2041
    %2043 = vrot.lane.b32.xlu0 %v486, 32
    %v2044 = vpop.permute.xlu0 %2043
    %2045 = vrot.lane.b32.xlu0 %v490, 32
    %v2046 = vpop.permute.xlu0 %2045
    %2047 = vrot.lane.b32.xlu0 %v494, 32
    %v2048 = vpop.permute.xlu0 %2047
    %2049 = vrot.lane.b32.xlu0 %v498, 32
    %v2050 = vpop.permute.xlu0 %2049
    %2051 = vrot.lane.b32.xlu0 %v502, 32
    %v2052 = vpop.permute.xlu0 %2051
    %2053 = vrot.lane.b32.xlu0 %v506, 32
    %v2054 = vpop.permute.xlu0 %2053
    %v2055 = vsel %vm546, %v2030, 0
    %v2057 = vsel %vm546, %v2032, 0
    %v2059 = vsel %vm546, %v2034, 0
    %v2061 = vsel %vm546, %v2036, 0
    %v2063 = vsel %vm546, %v2038, 0
    %v2065 = vsel %vm546, %v2040, 0
    %v2067 = vsel %vm546, %v2042, 0
    %v2069 = vsel %vm546, %v2044, 0
    %v2071 = vsel %vm546, %v2046, 0
    %v2073 = vsel %vm546, %v2048, 0
    %v2075 = vsel %vm546, %v2050, 0
    %v2077 = vsel %vm546, %v2052, 0
    %v2079 = vsel %vm546, %v2054, 0
    %2081 = vmatprep.subr.mxu0 0.0
    %2082 = vmatpush1.msra.mxu0 %v542
    %2083 = vmatprep.subr.mxu0 0.0
    %2084 = vmatpush1.msra.mxu0 %v543
    %2085 = vmatprep.subr.mxu0 0.0
    %2086 = vmatpush1.msra.mxu0 %v544
    %2087 = vmatprep.subr.mxu0 0.0
    %2088 = vmatpush1.msra.mxu0 %v545
    %2089 = vmatprep.subr.mxu0 0.0
    %2090 = vmatpush1.msra.mxu0 0.0
    %2091 = vmatprep.subr.mxu0 0.0
    %2092 = vmatpush1.msra.mxu0 0.0
    %2093 = vmatprep.subr.mxu0 0.0
    %2094 = vmatpush1.msra.mxu0 0.0
    %2095 = vmatprep.subr.mxu0 0.0
    %2096 = vmatpush1.msra.mxu0 0.0
    %2097 = vmatprep.subr.mxu0 0.0
    %2098 = vmatpush1.msra.mxu0 0.0
    %2099 = vmatprep.subr.mxu0 0.0
    %2100 = vmatpush1.msra.mxu0 0.0
    %2101 = vmatprep.subr.mxu0 0.0
    %2102 = vmatpush1.msra.mxu0 0.0
    %2103 = vmatprep.subr.mxu0 0.0
    %2104 = vmatpush1.msra.mxu0 0.0
    %2105 = vmatprep.subr.mxu0 0.0
    %2106 = vmatpush1.msra.mxu0 0.0
    %2107 = vmatprep.subr.mxu0 0.0
    %2108 = vmatpush1.msra.mxu0 0.0
    %2109 = vmatprep.subr.mxu0 0.0
    %2110 = vmatpush1.msra.mxu0 0.0
    %2111 = vmatprep.subr.mxu0 0.0
    %2112 = vmatpush1.msra.mxu0 0.0
    %2113 = vmatprep.subr.mxu0 0.0
    %2114 = vmatpush1.msra.mxu0 0.0
    %2115 = vmatprep.subr.mxu0 0.0
    %2116 = vmatpush1.msra.mxu0 0.0
    %2117 = vmatprep.subr.mxu0 0.0
    %2118 = vmatpush1.msra.mxu0 0.0
    %2119 = vmatprep.subr.mxu0 0.0
    %2120 = vmatpush1.msra.mxu0 0.0
    %2121 = vmatprep.subr.mxu0 0.0
    %2122 = vmatpush1.msra.mxu0 0.0
    %2123 = vmatprep.subr.mxu0 0.0
    %2124 = vmatpush1.msra.mxu0 0.0
    %2125 = vmatprep.subr.mxu0 0.0
    %2126 = vmatpush1.msra.mxu0 0.0
    %2127 = vmatprep.subr.mxu0 0.0
    %2128 = vmatpush1.msra.mxu0 0.0
    %2129 = vmatprep.subr.mxu0 0.0
    %2130 = vmatpush1.msra.mxu0 0.0
    %2131 = vmatprep.subr.mxu0 0.0
    %2132 = vmatpush1.msra.mxu0 0.0
    %2133 = vmatprep.subr.mxu0 0.0
    %2134 = vmatpush1.msra.mxu0 0.0
    %2135 = vmatprep.subr.mxu0 0.0
    %2136 = vmatpush1.msra.mxu0 0.0
    %2137 = vmatprep.subr.mxu0 0.0
    %2138 = vmatpush1.msra.mxu0 0.0
    %2139 = vmatprep.subr.mxu0 0.0
    %2140 = vmatpush1.msra.mxu0 0.0
    %2141 = vmatprep.subr.mxu0 0.0
    %2142 = vmatpush1.msra.mxu0 0.0
    %2143 = vmatprep.subr.mxu0 0.0
    %2144 = vmatpush1.msra.mxu0 0.0
    %2145 = vmatprep.mubr.f32.mxu0 0.0
    %2146 = vmatmul.mubr.f32.gmra.mrb[0].mxu0 %v2055
    %v2147 = vpop.f32.mrb[0].mxu0
    %v2148 = vadd.f32 0.0, %v2147
    %v2149 = vpop.f32.mrb[0].mxu0
    %2150 = vmatprep.mubr.f32.mxu0 0.0
    %2151 = vmatmul.mubr.f32.gmra.mrb[0].mxu0 %v2057
    %v2152 = vpop.f32.mrb[0].mxu0
    %v2153 = vadd.f32 0.0, %v2152
    %v2154 = vpop.f32.mrb[0].mxu0
    %2155 = vmatprep.mubr.f32.mxu0 0.0
    %2156 = vmatmul.mubr.f32.gmra.mrb[0].mxu0 %v2059
    %v2157 = vpop.f32.mrb[0].mxu0
    %v2158 = vadd.f32 0.0, %v2157
    %v2159 = vpop.f32.mrb[0].mxu0
    %2160 = vmatprep.mubr.f32.mxu0 0.0
    %2161 = vmatmul.mubr.f32.gmra.mrb[0].mxu0 %v2061
    %v2162 = vpop.f32.mrb[0].mxu0
    %v2163 = vadd.f32 0.0, %v2162
    %v2164 = vpop.f32.mrb[0].mxu0
    %2165 = vmatprep.mubr.f32.mxu0 0.0
    %2166 = vmatmul.mubr.f32.gmra.mrb[0].mxu0 %v2063
    %v2167 = vpop.f32.mrb[0].mxu0
    %v2168 = vadd.f32 0.0, %v2167
    %v2169 = vpop.f32.mrb[0].mxu0
    %2170 = vmatprep.mubr.f32.mxu0 0.0
    %2171 = vmatmul.mubr.f32.gmra.mrb[0].mxu0 %v2065
    %v2172 = vpop.f32.mrb[0].mxu0
    %v2173 = vadd.f32 0.0, %v2172
    %v2174 = vpop.f32.mrb[0].mxu0
    %2175 = vmatprep.mubr.f32.mxu0 0.0
    %2176 = vmatmul.mubr.f32.gmra.mrb[0].mxu0 %v2067
    %v2177 = vpop.f32.mrb[0].mxu0
    %v2178 = vadd.f32 0.0, %v2177
    %v2179 = vpop.f32.mrb[0].mxu0
    %2180 = vmatprep.mubr.f32.mxu0 0.0
    %2181 = vmatmul.mubr.f32.gmra.mrb[0].mxu0 %v2069
    %v2182 = vpop.f32.mrb[0].mxu0
    %v2183 = vadd.f32 0.0, %v2182
    %v2184 = vpop.f32.mrb[0].mxu0
    %2185 = vmatprep.mubr.f32.mxu0 0.0
    %2186 = vmatmul.mubr.f32.gmra.mrb[0].mxu0 %v2071
    %v2187 = vpop.f32.mrb[0].mxu0
    %v2188 = vadd.f32 0.0, %v2187
    %v2189 = vpop.f32.mrb[0].mxu0
    %2190 = vmatprep.mubr.f32.mxu0 0.0
    %2191 = vmatmul.mubr.f32.gmra.mrb[0].mxu0 %v2073
    %v2192 = vpop.f32.mrb[0].mxu0
    %v2193 = vadd.f32 0.0, %v2192
    %v2194 = vpop.f32.mrb[0].mxu0
    %2195 = vmatprep.mubr.f32.mxu0 0.0
    %2196 = vmatmul.mubr.f32.gmra.mrb[0].mxu0 %v2075
    %v2197 = vpop.f32.mrb[0].mxu0
    %v2198 = vadd.f32 0.0, %v2197
    %v2199 = vpop.f32.mrb[0].mxu0
    %2200 = vmatprep.mubr.f32.mxu0 0.0
    %2201 = vmatmul.mubr.f32.gmra.mrb[0].mxu0 %v2077
    %v2202 = vpop.f32.mrb[0].mxu0
    %v2203 = vadd.f32 0.0, %v2202
    %v2204 = vpop.f32.mrb[0].mxu0
    %2205 = vmatprep.mubr.f32.mxu0 0.0
    %2206 = vmatmul.mubr.f32.gmra.mrb[0].mxu0 %v2079
    %v2207 = vpop.f32.mrb[0].mxu0
    %v2208 = vadd.f32 0.0, %v2207
    %v2209 = vpop.f32.mrb[0].mxu0
    %2210 = vdwg.mxu0
    %v2211 = vadd.f32 %v2016, %v2148
    %v2212 = vadd.f32 %v2017, %v2153
    %v2213 = vadd.f32 %v2018, %v2158
    %v2214 = vadd.f32 %v2019, %v2163
    %v2215 = vadd.f32 %v2020, %v2168
    %v2216 = vadd.f32 %v2021, %v2173
    %v2217 = vadd.f32 %v2022, %v2178
    %v2218 = vadd.f32 %v2023, %v2183
    %v2219 = vadd.f32 %v2024, %v2188
    %v2220 = vadd.f32 %v2025, %v2193
    %v2221 = vadd.f32 %v2026, %v2198
    %v2222 = vadd.f32 %v2027, %v2203
    %v2223 = vadd.f32 %v2028, %v2208
    %2224 = vmatprep.subr.mxu0 0.0
    %2225 = vmatpush1.msra.mxu0 %v514
    %2226 = vmatprep.subr.mxu0 0.0
    %2227 = vmatpush1.msra.mxu0 %v515
    %2228 = vmatprep.subr.mxu0 0.0
    %2229 = vmatpush1.msra.mxu0 %v516
    %2230 = vmatprep.subr.mxu0 0.0
    %2231 = vmatpush1.msra.mxu0 %v517
    %2232 = vmatprep.subr.mxu0 0.0
    %2233 = vmatpush1.msra.mxu0 0.0
    %2234 = vmatprep.subr.mxu0 0.0
    %2235 = vmatpush1.msra.mxu0 0.0
    %2236 = vmatprep.subr.mxu0 0.0
    %2237 = vmatpush1.msra.mxu0 0.0
    %2238 = vmatprep.subr.mxu0 0.0
    %2239 = vmatpush1.msra.mxu0 0.0
    %2240 = vmatprep.subr.mxu0 0.0
    %2241 = vmatpush1.msra.mxu0 0.0
    %2242 = vmatprep.subr.mxu0 0.0
    %2243 = vmatpush1.msra.mxu0 0.0
    %2244 = vmatprep.subr.mxu0 0.0
    %2245 = vmatpush1.msra.mxu0 0.0
    %2246 = vmatprep.subr.mxu0 0.0
    %2247 = vmatpush1.msra.mxu0 0.0
    %2248 = vmatprep.subr.mxu0 0.0
    %2249 = vmatpush1.msra.mxu0 0.0
    %2250 = vmatprep.subr.mxu0 0.0
    %2251 = vmatpush1.msra.mxu0 0.0
    %2252 = vmatprep.subr.mxu0 0.0
    %2253 = vmatpush1.msra.mxu0 0.0
    %2254 = vmatprep.subr.mxu0 0.0
    %2255 = vmatpush1.msra.mxu0 0.0
    %2256 = vmatprep.subr.mxu0 0.0
    %2257 = vmatpush1.msra.mxu0 0.0
    %2258 = vmatprep.subr.mxu0 0.0
    %2259 = vmatpush1.msra.mxu0 0.0
    %2260 = vmatprep.subr.mxu0 0.0
    %2261 = vmatpush1.msra.mxu0 0.0
    %2262 = vmatprep.subr.mxu0 0.0
    %2263 = vmatpush1.msra.mxu0 0.0
    %2264 = vmatprep.subr.mxu0 0.0
    %2265 = vmatpush1.msra.mxu0 0.0
    %2266 = vmatprep.subr.mxu0 0.0
    %2267 = vmatpush1.msra.mxu0 0.0
    %2268 = vmatprep.subr.mxu0 0.0
    %2269 = vmatpush1.msra.mxu0 0.0
    %2270 = vmatprep.subr.mxu0 0.0
    %2271 = vmatpush1.msra.mxu0 0.0
    %2272 = vmatprep.subr.mxu0 0.0
    %2273 = vmatpush1.msra.mxu0 0.0
    %2274 = vmatprep.subr.mxu0 0.0
    %2275 = vmatpush1.msra.mxu0 0.0
    %2276 = vmatprep.subr.mxu0 0.0
    %2277 = vmatpush1.msra.mxu0 0.0
    %2278 = vmatprep.subr.mxu0 0.0
    %2279 = vmatpush1.msra.mxu0 0.0
    %2280 = vmatprep.subr.mxu0 0.0
    %2281 = vmatpush1.msra.mxu0 0.0
    %2282 = vmatprep.subr.mxu0 0.0
    %2283 = vmatpush1.msra.mxu0 0.0
    %2284 = vmatprep.subr.mxu0 0.0
    %2285 = vmatpush1.msra.mxu0 0.0
    %2286 = vmatprep.subr.mxu0 0.0
    %2287 = vmatpush1.msra.mxu0 0.0
    %2288 = vmatprep.mubr.f32.mxu0 0.0
    %2289 = vmatmul.mubr.f32.gmra.mrb[0].mxu0 %v911
    %v2290 = vpop.f32.mrb[0].mxu0
    %v2291 = vadd.f32 0.0, %v2290
    %v2292 = vpop.f32.mrb[0].mxu0
    %2293 = vmatprep.mubr.f32.mxu0 0.0
    %2294 = vmatmul.mubr.f32.gmra.mrb[0].mxu0 %v913
    %v2295 = vpop.f32.mrb[0].mxu0
    %v2296 = vadd.f32 0.0, %v2295
    %v2297 = vpop.f32.mrb[0].mxu0
    %2298 = vmatprep.mubr.f32.mxu0 0.0
    %2299 = vmatmul.mubr.f32.gmra.mrb[0].mxu0 %v915
    %v2300 = vpop.f32.mrb[0].mxu0
    %v2301 = vadd.f32 0.0, %v2300
    %v2302 = vpop.f32.mrb[0].mxu0
    %2303 = vmatprep.mubr.f32.mxu0 0.0
    %2304 = vmatmul.mubr.f32.gmra.mrb[0].mxu0 %v917
    %v2305 = vpop.f32.mrb[0].mxu0
    %v2306 = vadd.f32 0.0, %v2305
    %v2307 = vpop.f32.mrb[0].mxu0
    %2308 = vmatprep.mubr.f32.mxu0 0.0
    %2309 = vmatmul.mubr.f32.gmra.mrb[0].mxu0 %v919
    %v2310 = vpop.f32.mrb[0].mxu0
    %v2311 = vadd.f32 0.0, %v2310
    %v2312 = vpop.f32.mrb[0].mxu0
    %2313 = vmatprep.mubr.f32.mxu0 0.0
    %2314 = vmatmul.mubr.f32.gmra.mrb[0].mxu0 %v921
    %v2315 = vpop.f32.mrb[0].mxu0
    %v2316 = vadd.f32 0.0, %v2315
    %v2317 = vpop.f32.mrb[0].mxu0
    %2318 = vmatprep.mubr.f32.mxu0 0.0
    %2319 = vmatmul.mubr.f32.gmra.mrb[0].mxu0 %v923
    %v2320 = vpop.f32.mrb[0].mxu0
    %v2321 = vadd.f32 0.0, %v2320
    %v2322 = vpop.f32.mrb[0].mxu0
    %2323 = vmatprep.mubr.f32.mxu0 0.0
    %2324 = vmatmul.mubr.f32.gmra.mrb[0].mxu0 %v925
    %v2325 = vpop.f32.mrb[0].mxu0
    %v2326 = vadd.f32 0.0, %v2325
    %v2327 = vpop.f32.mrb[0].mxu0
    %2328 = vmatprep.mubr.f32.mxu0 0.0
    %2329 = vmatmul.mubr.f32.gmra.mrb[0].mxu0 %v927
    %v2330 = vpop.f32.mrb[0].mxu0
    %v2331 = vadd.f32 0.0, %v2330
    %v2332 = vpop.f32.mrb[0].mxu0
    %2333 = vmatprep.mubr.f32.mxu0 0.0
    %2334 = vmatmul.mubr.f32.gmra.mrb[0].mxu0 %v929
    %v2335 = vpop.f32.mrb[0].mxu0
    %v2336 = vadd.f32 0.0, %v2335
    %v2337 = vpop.f32.mrb[0].mxu0
    %2338 = vmatprep.mubr.f32.mxu0 0.0
    %2339 = vmatmul.mubr.f32.gmra.mrb[0].mxu0 %v931
    %v2340 = vpop.f32.mrb[0].mxu0
    %v2341 = vadd.f32 0.0, %v2340
    %v2342 = vpop.f32.mrb[0].mxu0
    %2343 = vmatprep.mubr.f32.mxu0 0.0
    %2344 = vmatmul.mubr.f32.gmra.mrb[0].mxu0 %v933
    %v2345 = vpop.f32.mrb[0].mxu0
    %v2346 = vadd.f32 0.0, %v2345
    %v2347 = vpop.f32.mrb[0].mxu0
    %2348 = vmatprep.mubr.f32.mxu0 0.0
    %2349 = vmatmul.mubr.f32.gmra.mrb[0].mxu0 %v935
    %v2350 = vpop.f32.mrb[0].mxu0
    %v2351 = vadd.f32 0.0, %v2350
    %v2352 = vpop.f32.mrb[0].mxu0
    %2353 = vdwg.mxu0
    %2354 = vmatprep.subr.mxu0 0.0
    %2355 = vmatpush1.msra.mxu0 %v510
    %2356 = vmatprep.subr.mxu0 0.0
    %2357 = vmatpush1.msra.mxu0 %v511
    %2358 = vmatprep.subr.mxu0 0.0
    %2359 = vmatpush1.msra.mxu0 %v512
    %2360 = vmatprep.subr.mxu0 0.0
    %2361 = vmatpush1.msra.mxu0 %v513
    %2362 = vmatprep.subr.mxu0 0.0
    %2363 = vmatpush1.msra.mxu0 0.0
    %2364 = vmatprep.subr.mxu0 0.0
    %2365 = vmatpush1.msra.mxu0 0.0
    %2366 = vmatprep.subr.mxu0 0.0
    %2367 = vmatpush1.msra.mxu0 0.0
    %2368 = vmatprep.subr.mxu0 0.0
    %2369 = vmatpush1.msra.mxu0 0.0
    %2370 = vmatprep.subr.mxu0 0.0
    %2371 = vmatpush1.msra.mxu0 0.0
    %2372 = vmatprep.subr.mxu0 0.0
    %2373 = vmatpush1.msra.mxu0 0.0
    %2374 = vmatprep.subr.mxu0 0.0
    %2375 = vmatpush1.msra.mxu0 0.0
    %2376 = vmatprep.subr.mxu0 0.0
    %2377 = vmatpush1.msra.mxu0 0.0
    %2378 = vmatprep.subr.mxu0 0.0
    %2379 = vmatpush1.msra.mxu0 0.0
    %2380 = vmatprep.subr.mxu0 0.0
    %2381 = vmatpush1.msra.mxu0 0.0
    %2382 = vmatprep.subr.mxu0 0.0
    %2383 = vmatpush1.msra.mxu0 0.0
    %2384 = vmatprep.subr.mxu0 0.0
    %2385 = vmatpush1.msra.mxu0 0.0
    %2386 = vmatprep.subr.mxu0 0.0
    %2387 = vmatpush1.msra.mxu0 0.0
    %2388 = vmatprep.subr.mxu0 0.0
    %2389 = vmatpush1.msra.mxu0 0.0
    %2390 = vmatprep.subr.mxu0 0.0
    %2391 = vmatpush1.msra.mxu0 0.0
    %2392 = vmatprep.subr.mxu0 0.0
    %2393 = vmatpush1.msra.mxu0 0.0
    %2394 = vmatprep.subr.mxu0 0.0
    %2395 = vmatpush1.msra.mxu0 0.0
    %2396 = vmatprep.subr.mxu0 0.0
    %2397 = vmatpush1.msra.mxu0 0.0
    %2398 = vmatprep.subr.mxu0 0.0
    %2399 = vmatpush1.msra.mxu0 0.0
    %2400 = vmatprep.subr.mxu0 0.0
    %2401 = vmatpush1.msra.mxu0 0.0
    %2402 = vmatprep.subr.mxu0 0.0
    %2403 = vmatpush1.msra.mxu0 0.0
    %2404 = vmatprep.subr.mxu0 0.0
    %2405 = vmatpush1.msra.mxu0 0.0
    %2406 = vmatprep.subr.mxu0 0.0
    %2407 = vmatpush1.msra.mxu0 0.0
    %2408 = vmatprep.subr.mxu0 0.0
    %2409 = vmatpush1.msra.mxu0 0.0
    %2410 = vmatprep.subr.mxu0 0.0
    %2411 = vmatpush1.msra.mxu0 0.0
    %2412 = vmatprep.subr.mxu0 0.0
    %2413 = vmatpush1.msra.mxu0 0.0
    %2414 = vmatprep.subr.mxu0 0.0
    %2415 = vmatpush1.msra.mxu0 0.0
    %2416 = vmatprep.subr.mxu0 0.0
    %2417 = vmatpush1.msra.mxu0 0.0
    %2418 = vmatprep.mubr.f32.mxu0 0.0
    %2419 = vmatmul.mubr.f32.gmra.mrb[0].mxu0 %v548
    %v2420 = vpop.f32.mrb[0].mxu0
    %v2421 = vadd.f32 %v2291, %v2420
    %v2422 = vpop.f32.mrb[0].mxu0
    %2423 = vmatprep.mubr.f32.mxu0 0.0
    %2424 = vmatmul.mubr.f32.gmra.mrb[0].mxu0 %v551
    %v2425 = vpop.f32.mrb[0].mxu0
    %v2426 = vadd.f32 %v2296, %v2425
    %v2427 = vpop.f32.mrb[0].mxu0
    %2428 = vmatprep.mubr.f32.mxu0 0.0
    %2429 = vmatmul.mubr.f32.gmra.mrb[0].mxu0 %v554
    %v2430 = vpop.f32.mrb[0].mxu0
    %v2431 = vadd.f32 %v2301, %v2430
    %v2432 = vpop.f32.mrb[0].mxu0
    %2433 = vmatprep.mubr.f32.mxu0 0.0
    %2434 = vmatmul.mubr.f32.gmra.mrb[0].mxu0 %v557
    %v2435 = vpop.f32.mrb[0].mxu0
    %v2436 = vadd.f32 %v2306, %v2435
    %v2437 = vpop.f32.mrb[0].mxu0
    %2438 = vmatprep.mubr.f32.mxu0 0.0
    %2439 = vmatmul.mubr.f32.gmra.mrb[0].mxu0 %v560
    %v2440 = vpop.f32.mrb[0].mxu0
    %v2441 = vadd.f32 %v2311, %v2440
    %v2442 = vpop.f32.mrb[0].mxu0
    %2443 = vmatprep.mubr.f32.mxu0 0.0
    %2444 = vmatmul.mubr.f32.gmra.mrb[0].mxu0 %v563
    %v2445 = vpop.f32.mrb[0].mxu0
    %v2446 = vadd.f32 %v2316, %v2445
    %v2447 = vpop.f32.mrb[0].mxu0
    %2448 = vmatprep.mubr.f32.mxu0 0.0
    %2449 = vmatmul.mubr.f32.gmra.mrb[0].mxu0 %v566
    %v2450 = vpop.f32.mrb[0].mxu0
    %v2451 = vadd.f32 %v2321, %v2450
    %v2452 = vpop.f32.mrb[0].mxu0
    %2453 = vmatprep.mubr.f32.mxu0 0.0
    %2454 = vmatmul.mubr.f32.gmra.mrb[0].mxu0 %v569
    %v2455 = vpop.f32.mrb[0].mxu0
    %v2456 = vadd.f32 %v2326, %v2455
    %v2457 = vpop.f32.mrb[0].mxu0
    %2458 = vmatprep.mubr.f32.mxu0 0.0
    %2459 = vmatmul.mubr.f32.gmra.mrb[0].mxu0 %v572
    %v2460 = vpop.f32.mrb[0].mxu0
    %v2461 = vadd.f32 %v2331, %v2460
    %v2462 = vpop.f32.mrb[0].mxu0
    %2463 = vmatprep.mubr.f32.mxu0 0.0
    %2464 = vmatmul.mubr.f32.gmra.mrb[0].mxu0 %v575
    %v2465 = vpop.f32.mrb[0].mxu0
    %v2466 = vadd.f32 %v2336, %v2465
    %v2467 = vpop.f32.mrb[0].mxu0
    %2468 = vmatprep.mubr.f32.mxu0 0.0
    %2469 = vmatmul.mubr.f32.gmra.mrb[0].mxu0 %v578
    %v2470 = vpop.f32.mrb[0].mxu0
    %v2471 = vadd.f32 %v2341, %v2470
    %v2472 = vpop.f32.mrb[0].mxu0
    %2473 = vmatprep.mubr.f32.mxu0 0.0
    %2474 = vmatmul.mubr.f32.gmra.mrb[0].mxu0 %v581
    %v2475 = vpop.f32.mrb[0].mxu0
    %v2476 = vadd.f32 %v2346, %v2475
    %v2477 = vpop.f32.mrb[0].mxu0
    %2478 = vmatprep.mubr.f32.mxu0 0.0
    %2479 = vmatmul.mubr.f32.gmra.mrb[0].mxu0 %v584
    %v2480 = vpop.f32.mrb[0].mxu0
    %v2481 = vadd.f32 %v2351, %v2480
    %v2482 = vpop.f32.mrb[0].mxu0
    %2483 = vdwg.mxu0
    %2484 = vrot.lane.b32.xlu0 %v459, 96
    %v2485 = vpop.permute.xlu0 %2484
    %2486 = vrot.lane.b32.xlu0 %v463, 96
    %v2487 = vpop.permute.xlu0 %2486
    %2488 = vrot.lane.b32.xlu0 %v467, 96
    %v2489 = vpop.permute.xlu0 %2488
    %2490 = vrot.lane.b32.xlu0 %v471, 96
    %v2491 = vpop.permute.xlu0 %2490
    %2492 = vrot.lane.b32.xlu0 %v475, 96
    %v2493 = vpop.permute.xlu0 %2492
    %2494 = vrot.lane.b32.xlu0 %v479, 96
    %v2495 = vpop.permute.xlu0 %2494
    %2496 = vrot.lane.b32.xlu0 %v483, 96
    %v2497 = vpop.permute.xlu0 %2496
    %2498 = vrot.lane.b32.xlu0 %v487, 96
    %v2499 = vpop.permute.xlu0 %2498
    %2500 = vrot.lane.b32.xlu0 %v491, 96
    %v2501 = vpop.permute.xlu0 %2500
    %2502 = vrot.lane.b32.xlu0 %v495, 96
    %v2503 = vpop.permute.xlu0 %2502
    %2504 = vrot.lane.b32.xlu0 %v499, 96
    %v2505 = vpop.permute.xlu0 %2504
    %2506 = vrot.lane.b32.xlu0 %v503, 96
    %v2507 = vpop.permute.xlu0 %2506
    %2508 = vrot.lane.b32.xlu0 %v507, 96
    %v2509 = vpop.permute.xlu0 %2508
    %v2510 = vsel %vm546, %v2485, 0
    %v2512 = vsel %vm546, %v2487, 0
    %v2514 = vsel %vm546, %v2489, 0
    %v2516 = vsel %vm546, %v2491, 0
    %v2518 = vsel %vm546, %v2493, 0
    %v2520 = vsel %vm546, %v2495, 0
    %v2522 = vsel %vm546, %v2497, 0
    %v2524 = vsel %vm546, %v2499, 0
    %v2526 = vsel %vm546, %v2501, 0
    %v2528 = vsel %vm546, %v2503, 0
    %v2530 = vsel %vm546, %v2505, 0
    %v2532 = vsel %vm546, %v2507, 0
    %v2534 = vsel %vm546, %v2509, 0
    %2536 = vmatprep.subr.mxu0 0.0
    %2537 = vmatpush1.msra.mxu0 %v518
    %2538 = vmatprep.subr.mxu0 0.0
    %2539 = vmatpush1.msra.mxu0 %v519
    %2540 = vmatprep.subr.mxu0 0.0
    %2541 = vmatpush1.msra.mxu0 %v520
    %2542 = vmatprep.subr.mxu0 0.0
    %2543 = vmatpush1.msra.mxu0 %v521
    %2544 = vmatprep.subr.mxu0 0.0
    %2545 = vmatpush1.msra.mxu0 0.0
    %2546 = vmatprep.subr.mxu0 0.0
    %2547 = vmatpush1.msra.mxu0 0.0
    %2548 = vmatprep.subr.mxu0 0.0
    %2549 = vmatpush1.msra.mxu0 0.0
    %2550 = vmatprep.subr.mxu0 0.0
    %2551 = vmatpush1.msra.mxu0 0.0
    %2552 = vmatprep.subr.mxu0 0.0
    %2553 = vmatpush1.msra.mxu0 0.0
    %2554 = vmatprep.subr.mxu0 0.0
    %2555 = vmatpush1.msra.mxu0 0.0
    %2556 = vmatprep.subr.mxu0 0.0
    %2557 = vmatpush1.msra.mxu0 0.0
    %2558 = vmatprep.subr.mxu0 0.0
    %2559 = vmatpush1.msra.mxu0 0.0
    %2560 = vmatprep.subr.mxu0 0.0
    %2561 = vmatpush1.msra.mxu0 0.0
    %2562 = vmatprep.subr.mxu0 0.0
    %2563 = vmatpush1.msra.mxu0 0.0
    %2564 = vmatprep.subr.mxu0 0.0
    %2565 = vmatpush1.msra.mxu0 0.0
    %2566 = vmatprep.subr.mxu0 0.0
    %2567 = vmatpush1.msra.mxu0 0.0
    %2568 = vmatprep.subr.mxu0 0.0
    %2569 = vmatpush1.msra.mxu0 0.0
    %2570 = vmatprep.subr.mxu0 0.0
    %2571 = vmatpush1.msra.mxu0 0.0
    %2572 = vmatprep.subr.mxu0 0.0
    %2573 = vmatpush1.msra.mxu0 0.0
    %2574 = vmatprep.subr.mxu0 0.0
    %2575 = vmatpush1.msra.mxu0 0.0
    %2576 = vmatprep.subr.mxu0 0.0
    %2577 = vmatpush1.msra.mxu0 0.0
    %2578 = vmatprep.subr.mxu0 0.0
    %2579 = vmatpush1.msra.mxu0 0.0
    %2580 = vmatprep.subr.mxu0 0.0
    %2581 = vmatpush1.msra.mxu0 0.0
    %2582 = vmatprep.subr.mxu0 0.0
    %2583 = vmatpush1.msra.mxu0 0.0
    %2584 = vmatprep.subr.mxu0 0.0
    %2585 = vmatpush1.msra.mxu0 0.0
    %2586 = vmatprep.subr.mxu0 0.0
    %2587 = vmatpush1.msra.mxu0 0.0
    %2588 = vmatprep.subr.mxu0 0.0
    %2589 = vmatpush1.msra.mxu0 0.0
    %2590 = vmatprep.subr.mxu0 0.0
    %2591 = vmatpush1.msra.mxu0 0.0
    %2592 = vmatprep.subr.mxu0 0.0
    %2593 = vmatpush1.msra.mxu0 0.0
    %2594 = vmatprep.subr.mxu0 0.0
    %2595 = vmatpush1.msra.mxu0 0.0
    %2596 = vmatprep.subr.mxu0 0.0
    %2597 = vmatpush1.msra.mxu0 0.0
    %2598 = vmatprep.subr.mxu0 0.0
    %2599 = vmatpush1.msra.mxu0 0.0
    %2600 = vmatprep.mubr.f32.mxu0 0.0
    %2601 = vmatmul.mubr.f32.gmra.mrb[0].mxu0 %v2510
    %v2602 = vpop.f32.mrb[0].mxu0
    %v2603 = vadd.f32 0.0, %v2602
    %v2604 = vpop.f32.mrb[0].mxu0
    %2605 = vmatprep.mubr.f32.mxu0 0.0
    %2606 = vmatmul.mubr.f32.gmra.mrb[0].mxu0 %v2512
    %v2607 = vpop.f32.mrb[0].mxu0
    %v2608 = vadd.f32 0.0, %v2607
    %v2609 = vpop.f32.mrb[0].mxu0
    %2610 = vmatprep.mubr.f32.mxu0 0.0
    %2611 = vmatmul.mubr.f32.gmra.mrb[0].mxu0 %v2514
    %v2612 = vpop.f32.mrb[0].mxu0
    %v2613 = vadd.f32 0.0, %v2612
    %v2614 = vpop.f32.mrb[0].mxu0
    %2615 = vmatprep.mubr.f32.mxu0 0.0
    %2616 = vmatmul.mubr.f32.gmra.mrb[0].mxu0 %v2516
    %v2617 = vpop.f32.mrb[0].mxu0
    %v2618 = vadd.f32 0.0, %v2617
    %v2619 = vpop.f32.mrb[0].mxu0
    %2620 = vmatprep.mubr.f32.mxu0 0.0
    %2621 = vmatmul.mubr.f32.gmra.mrb[0].mxu0 %v2518
    %v2622 = vpop.f32.mrb[0].mxu0
    %v2623 = vadd.f32 0.0, %v2622
    %v2624 = vpop.f32.mrb[0].mxu0
    %2625 = vmatprep.mubr.f32.mxu0 0.0
    %2626 = vmatmul.mubr.f32.gmra.mrb[0].mxu0 %v2520
    %v2627 = vpop.f32.mrb[0].mxu0
    %v2628 = vadd.f32 0.0, %v2627
    %v2629 = vpop.f32.mrb[0].mxu0
    %2630 = vmatprep.mubr.f32.mxu0 0.0
    %2631 = vmatmul.mubr.f32.gmra.mrb[0].mxu0 %v2522
    %v2632 = vpop.f32.mrb[0].mxu0
    %v2633 = vadd.f32 0.0, %v2632
    %v2634 = vpop.f32.mrb[0].mxu0
    %2635 = vmatprep.mubr.f32.mxu0 0.0
    %2636 = vmatmul.mubr.f32.gmra.mrb[0].mxu0 %v2524
    %v2637 = vpop.f32.mrb[0].mxu0
    %v2638 = vadd.f32 0.0, %v2637
    %v2639 = vpop.f32.mrb[0].mxu0
    %2640 = vmatprep.mubr.f32.mxu0 0.0
    %2641 = vmatmul.mubr.f32.gmra.mrb[0].mxu0 %v2526
    %v2642 = vpop.f32.mrb[0].mxu0
    %v2643 = vadd.f32 0.0, %v2642
    %v2644 = vpop.f32.mrb[0].mxu0
    %2645 = vmatprep.mubr.f32.mxu0 0.0
    %2646 = vmatmul.mubr.f32.gmra.mrb[0].mxu0 %v2528
    %v2647 = vpop.f32.mrb[0].mxu0
    %v2648 = vadd.f32 0.0, %v2647
    %v2649 = vpop.f32.mrb[0].mxu0
    %2650 = vmatprep.mubr.f32.mxu0 0.0
    %2651 = vmatmul.mubr.f32.gmra.mrb[0].mxu0 %v2530
    %v2652 = vpop.f32.mrb[0].mxu0
    %v2653 = vadd.f32 0.0, %v2652
    %v2654 = vpop.f32.mrb[0].mxu0
    %2655 = vmatprep.mubr.f32.mxu0 0.0
    %2656 = vmatmul.mubr.f32.gmra.mrb[0].mxu0 %v2532
    %v2657 = vpop.f32.mrb[0].mxu0
    %v2658 = vadd.f32 0.0, %v2657
    %v2659 = vpop.f32.mrb[0].mxu0
    %2660 = vmatprep.mubr.f32.mxu0 0.0
    %2661 = vmatmul.mubr.f32.gmra.mrb[0].mxu0 %v2534
    %v2662 = vpop.f32.mrb[0].mxu0
    %v2663 = vadd.f32 0.0, %v2662
    %v2664 = vpop.f32.mrb[0].mxu0
    %2665 = vdwg.mxu0
    %v2666 = vadd.f32 %v2421, %v2603
    %v2667 = vadd.f32 %v2426, %v2608
    %v2668 = vadd.f32 %v2431, %v2613
    %v2669 = vadd.f32 %v2436, %v2618
    %v2670 = vadd.f32 %v2441, %v2623
    %v2671 = vadd.f32 %v2446, %v2628
    %v2672 = vadd.f32 %v2451, %v2633
    %v2673 = vadd.f32 %v2456, %v2638
    %v2674 = vadd.f32 %v2461, %v2643
    %v2675 = vadd.f32 %v2466, %v2648
    %v2676 = vadd.f32 %v2471, %v2653
    %v2677 = vadd.f32 %v2476, %v2658
    %v2678 = vadd.f32 %v2481, %v2663
    %2679 = vmatprep.subr.mxu0 0.0
    %2680 = vmatpush1.msra.mxu0 %v522
    %2681 = vmatprep.subr.mxu0 0.0
    %2682 = vmatpush1.msra.mxu0 %v523
    %2683 = vmatprep.subr.mxu0 0.0
    %2684 = vmatpush1.msra.mxu0 %v524
    %2685 = vmatprep.subr.mxu0 0.0
    %2686 = vmatpush1.msra.mxu0 %v525
    %2687 = vmatprep.subr.mxu0 0.0
    %2688 = vmatpush1.msra.mxu0 0.0
    %2689 = vmatprep.subr.mxu0 0.0
    %2690 = vmatpush1.msra.mxu0 0.0
    %2691 = vmatprep.subr.mxu0 0.0
    %2692 = vmatpush1.msra.mxu0 0.0
    %2693 = vmatprep.subr.mxu0 0.0
    %2694 = vmatpush1.msra.mxu0 0.0
    %2695 = vmatprep.subr.mxu0 0.0
    %2696 = vmatpush1.msra.mxu0 0.0
    %2697 = vmatprep.subr.mxu0 0.0
    %2698 = vmatpush1.msra.mxu0 0.0
    %2699 = vmatprep.subr.mxu0 0.0
    %2700 = vmatpush1.msra.mxu0 0.0
    %2701 = vmatprep.subr.mxu0 0.0
    %2702 = vmatpush1.msra.mxu0 0.0
    %2703 = vmatprep.subr.mxu0 0.0
    %2704 = vmatpush1.msra.mxu0 0.0
    %2705 = vmatprep.subr.mxu0 0.0
    %2706 = vmatpush1.msra.mxu0 0.0
    %2707 = vmatprep.subr.mxu0 0.0
    %2708 = vmatpush1.msra.mxu0 0.0
    %2709 = vmatprep.subr.mxu0 0.0
    %2710 = vmatpush1.msra.mxu0 0.0
    %2711 = vmatprep.subr.mxu0 0.0
    %2712 = vmatpush1.msra.mxu0 0.0
    %2713 = vmatprep.subr.mxu0 0.0
    %2714 = vmatpush1.msra.mxu0 0.0
    %2715 = vmatprep.subr.mxu0 0.0
    %2716 = vmatpush1.msra.mxu0 0.0
    %2717 = vmatprep.subr.mxu0 0.0
    %2718 = vmatpush1.msra.mxu0 0.0
    %2719 = vmatprep.subr.mxu0 0.0
    %2720 = vmatpush1.msra.mxu0 0.0
    %2721 = vmatprep.subr.mxu0 0.0
    %2722 = vmatpush1.msra.mxu0 0.0
    %2723 = vmatprep.subr.mxu0 0.0
    %2724 = vmatpush1.msra.mxu0 0.0
    %2725 = vmatprep.subr.mxu0 0.0
    %2726 = vmatpush1.msra.mxu0 0.0
    %2727 = vmatprep.subr.mxu0 0.0
    %2728 = vmatpush1.msra.mxu0 0.0
    %2729 = vmatprep.subr.mxu0 0.0
    %2730 = vmatpush1.msra.mxu0 0.0
    %2731 = vmatprep.subr.mxu0 0.0
    %2732 = vmatpush1.msra.mxu0 0.0
    %2733 = vmatprep.subr.mxu0 0.0
    %2734 = vmatpush1.msra.mxu0 0.0
    %2735 = vmatprep.subr.mxu0 0.0
    %2736 = vmatpush1.msra.mxu0 0.0
    %2737 = vmatprep.subr.mxu0 0.0
    %2738 = vmatpush1.msra.mxu0 0.0
    %2739 = vmatprep.subr.mxu0 0.0
    %2740 = vmatpush1.msra.mxu0 0.0
    %2741 = vmatprep.subr.mxu0 0.0
    %2742 = vmatpush1.msra.mxu0 0.0
    %2743 = vmatprep.mubr.f32.mxu0 0.0
    %2744 = vmatmul.mubr.f32.gmra.mrb[0].mxu0 %v1263
    %v2745 = vpop.f32.mrb[0].mxu0
    %v2746 = vadd.f32 0.0, %v2745
    %v2747 = vpop.f32.mrb[0].mxu0
    %2748 = vmatprep.mubr.f32.mxu0 0.0
    %2749 = vmatmul.mubr.f32.gmra.mrb[0].mxu0 %v1266
    %v2750 = vpop.f32.mrb[0].mxu0
    %v2751 = vadd.f32 0.0, %v2750
    %v2752 = vpop.f32.mrb[0].mxu0
    %2753 = vmatprep.mubr.f32.mxu0 0.0
    %2754 = vmatmul.mubr.f32.gmra.mrb[0].mxu0 %v1269
    %v2755 = vpop.f32.mrb[0].mxu0
    %v2756 = vadd.f32 0.0, %v2755
    %v2757 = vpop.f32.mrb[0].mxu0
    %2758 = vmatprep.mubr.f32.mxu0 0.0
    %2759 = vmatmul.mubr.f32.gmra.mrb[0].mxu0 %v1272
    %v2760 = vpop.f32.mrb[0].mxu0
    %v2761 = vadd.f32 0.0, %v2760
    %v2762 = vpop.f32.mrb[0].mxu0
    %2763 = vmatprep.mubr.f32.mxu0 0.0
    %2764 = vmatmul.mubr.f32.gmra.mrb[0].mxu0 %v1275
    %v2765 = vpop.f32.mrb[0].mxu0
    %v2766 = vadd.f32 0.0, %v2765
    %v2767 = vpop.f32.mrb[0].mxu0
    %2768 = vmatprep.mubr.f32.mxu0 0.0
    %2769 = vmatmul.mubr.f32.gmra.mrb[0].mxu0 %v1278
    %v2770 = vpop.f32.mrb[0].mxu0
    %v2771 = vadd.f32 0.0, %v2770
    %v2772 = vpop.f32.mrb[0].mxu0
    %2773 = vmatprep.mubr.f32.mxu0 0.0
    %2774 = vmatmul.mubr.f32.gmra.mrb[0].mxu0 %v1281
    %v2775 = vpop.f32.mrb[0].mxu0
    %v2776 = vadd.f32 0.0, %v2775
    %v2777 = vpop.f32.mrb[0].mxu0
    %2778 = vmatprep.mubr.f32.mxu0 0.0
    %2779 = vmatmul.mubr.f32.gmra.mrb[0].mxu0 %v1284
    %v2780 = vpop.f32.mrb[0].mxu0
    %v2781 = vadd.f32 0.0, %v2780
    %v2782 = vpop.f32.mrb[0].mxu0
    %2783 = vmatprep.mubr.f32.mxu0 0.0
    %2784 = vmatmul.mubr.f32.gmra.mrb[0].mxu0 %v1287
    %v2785 = vpop.f32.mrb[0].mxu0
    %v2786 = vadd.f32 0.0, %v2785
    %v2787 = vpop.f32.mrb[0].mxu0
    %2788 = vmatprep.mubr.f32.mxu0 0.0
    %2789 = vmatmul.mubr.f32.gmra.mrb[0].mxu0 %v1290
    %v2790 = vpop.f32.mrb[0].mxu0
    %v2791 = vadd.f32 0.0, %v2790
    %v2792 = vpop.f32.mrb[0].mxu0
    %2793 = vmatprep.mubr.f32.mxu0 0.0
    %2794 = vmatmul.mubr.f32.gmra.mrb[0].mxu0 %v1293
    %v2795 = vpop.f32.mrb[0].mxu0
    %v2796 = vadd.f32 0.0, %v2795
    %v2797 = vpop.f32.mrb[0].mxu0
    %2798 = vmatprep.mubr.f32.mxu0 0.0
    %2799 = vmatmul.mubr.f32.gmra.mrb[0].mxu0 %v1296
    %v2800 = vpop.f32.mrb[0].mxu0
    %v2801 = vadd.f32 0.0, %v2800
    %v2802 = vpop.f32.mrb[0].mxu0
    %2803 = vmatprep.mubr.f32.mxu0 0.0
    %2804 = vmatmul.mubr.f32.gmra.mrb[0].mxu0 %v1299
    %v2805 = vpop.f32.mrb[0].mxu0
    %v2806 = vadd.f32 0.0, %v2805
    %v2807 = vpop.f32.mrb[0].mxu0
    %2808 = vdwg.mxu0
    %v2809 = vadd.f32 %v2666, %v2746
    %v2810 = vadd.f32 %v2667, %v2751
    %v2811 = vadd.f32 %v2668, %v2756
    %v2812 = vadd.f32 %v2669, %v2761
    %v2813 = vadd.f32 %v2670, %v2766
    %v2814 = vadd.f32 %v2671, %v2771
    %v2815 = vadd.f32 %v2672, %v2776
    %v2816 = vadd.f32 %v2673, %v2781
    %v2817 = vadd.f32 %v2674, %v2786
    %v2818 = vadd.f32 %v2675, %v2791
    %v2819 = vadd.f32 %v2676, %v2796
    %v2820 = vadd.f32 %v2677, %v2801
    %v2821 = vadd.f32 %v2678, %v2806
    %2822 = vmatprep.subr.mxu0 0.0
    %2823 = vmatpush1.msra.mxu0 %v526
    %2824 = vmatprep.subr.mxu0 0.0
    %2825 = vmatpush1.msra.mxu0 %v527
    %2826 = vmatprep.subr.mxu0 0.0
    %2827 = vmatpush1.msra.mxu0 %v528
    %2828 = vmatprep.subr.mxu0 0.0
    %2829 = vmatpush1.msra.mxu0 %v529
    %2830 = vmatprep.subr.mxu0 0.0
    %2831 = vmatpush1.msra.mxu0 0.0
    %2832 = vmatprep.subr.mxu0 0.0
    %2833 = vmatpush1.msra.mxu0 0.0
    %2834 = vmatprep.subr.mxu0 0.0
    %2835 = vmatpush1.msra.mxu0 0.0
    %2836 = vmatprep.subr.mxu0 0.0
    %2837 = vmatpush1.msra.mxu0 0.0
    %2838 = vmatprep.subr.mxu0 0.0
    %2839 = vmatpush1.msra.mxu0 0.0
    %2840 = vmatprep.subr.mxu0 0.0
    %2841 = vmatpush1.msra.mxu0 0.0
    %2842 = vmatprep.subr.mxu0 0.0
    %2843 = vmatpush1.msra.mxu0 0.0
    %2844 = vmatprep.subr.mxu0 0.0
    %2845 = vmatpush1.msra.mxu0 0.0
    %2846 = vmatprep.subr.mxu0 0.0
    %2847 = vmatpush1.msra.mxu0 0.0
    %2848 = vmatprep.subr.mxu0 0.0
    %2849 = vmatpush1.msra.mxu0 0.0
    %2850 = vmatprep.subr.mxu0 0.0
    %2851 = vmatpush1.msra.mxu0 0.0
    %2852 = vmatprep.subr.mxu0 0.0
    %2853 = vmatpush1.msra.mxu0 0.0
    %2854 = vmatprep.subr.mxu0 0.0
    %2855 = vmatpush1.msra.mxu0 0.0
    %2856 = vmatprep.subr.mxu0 0.0
    %2857 = vmatpush1.msra.mxu0 0.0
    %2858 = vmatprep.subr.mxu0 0.0
    %2859 = vmatpush1.msra.mxu0 0.0
    %2860 = vmatprep.subr.mxu0 0.0
    %2861 = vmatpush1.msra.mxu0 0.0
    %2862 = vmatprep.subr.mxu0 0.0
    %2863 = vmatpush1.msra.mxu0 0.0
    %2864 = vmatprep.subr.mxu0 0.0
    %2865 = vmatpush1.msra.mxu0 0.0
    %2866 = vmatprep.subr.mxu0 0.0
    %2867 = vmatpush1.msra.mxu0 0.0
    %2868 = vmatprep.subr.mxu0 0.0
    %2869 = vmatpush1.msra.mxu0 0.0
    %2870 = vmatprep.subr.mxu0 0.0
    %2871 = vmatpush1.msra.mxu0 0.0
    %2872 = vmatprep.subr.mxu0 0.0
    %2873 = vmatpush1.msra.mxu0 0.0
    %2874 = vmatprep.subr.mxu0 0.0
    %2875 = vmatpush1.msra.mxu0 0.0
    %2876 = vmatprep.subr.mxu0 0.0
    %2877 = vmatpush1.msra.mxu0 0.0
    %2878 = vmatprep.subr.mxu0 0.0
    %2879 = vmatpush1.msra.mxu0 0.0
    %2880 = vmatprep.subr.mxu0 0.0
    %2881 = vmatpush1.msra.mxu0 0.0
    %2882 = vmatprep.subr.mxu0 0.0
    %2883 = vmatpush1.msra.mxu0 0.0
    %2884 = vmatprep.subr.mxu0 0.0
    %2885 = vmatpush1.msra.mxu0 0.0
    %2886 = vmatprep.mubr.f32.mxu0 0.0
    %2887 = vmatmul.mubr.f32.gmra.mrb[0].mxu0 %v1470
    %v2888 = vpop.f32.mrb[0].mxu0
    %v2889 = vadd.f32 0.0, %v2888
    %v2890 = vpop.f32.mrb[0].mxu0
    %2891 = vmatprep.mubr.f32.mxu0 0.0
    %2892 = vmatmul.mubr.f32.gmra.mrb[0].mxu0 %v1472
    %v2893 = vpop.f32.mrb[0].mxu0
    %v2894 = vadd.f32 0.0, %v2893
    %v2895 = vpop.f32.mrb[0].mxu0
    %2896 = vmatprep.mubr.f32.mxu0 0.0
    %2897 = vmatmul.mubr.f32.gmra.mrb[0].mxu0 %v1474
    %v2898 = vpop.f32.mrb[0].mxu0
    %v2899 = vadd.f32 0.0, %v2898
    %v2900 = vpop.f32.mrb[0].mxu0
    %2901 = vmatprep.mubr.f32.mxu0 0.0
    %2902 = vmatmul.mubr.f32.gmra.mrb[0].mxu0 %v1476
    %v2903 = vpop.f32.mrb[0].mxu0
    %v2904 = vadd.f32 0.0, %v2903
    %v2905 = vpop.f32.mrb[0].mxu0
    %2906 = vmatprep.mubr.f32.mxu0 0.0
    %2907 = vmatmul.mubr.f32.gmra.mrb[0].mxu0 %v1478
    %v2908 = vpop.f32.mrb[0].mxu0
    %v2909 = vadd.f32 0.0, %v2908
    %v2910 = vpop.f32.mrb[0].mxu0
    %2911 = vmatprep.mubr.f32.mxu0 0.0
    %2912 = vmatmul.mubr.f32.gmra.mrb[0].mxu0 %v1480
    %v2913 = vpop.f32.mrb[0].mxu0
    %v2914 = vadd.f32 0.0, %v2913
    %v2915 = vpop.f32.mrb[0].mxu0
    %2916 = vmatprep.mubr.f32.mxu0 0.0
    %2917 = vmatmul.mubr.f32.gmra.mrb[0].mxu0 %v1482
    %v2918 = vpop.f32.mrb[0].mxu0
    %v2919 = vadd.f32 0.0, %v2918
    %v2920 = vpop.f32.mrb[0].mxu0
    %2921 = vmatprep.mubr.f32.mxu0 0.0
    %2922 = vmatmul.mubr.f32.gmra.mrb[0].mxu0 %v1484
    %v2923 = vpop.f32.mrb[0].mxu0
    %v2924 = vadd.f32 0.0, %v2923
    %v2925 = vpop.f32.mrb[0].mxu0
    %2926 = vmatprep.mubr.f32.mxu0 0.0
    %2927 = vmatmul.mubr.f32.gmra.mrb[0].mxu0 %v1486
    %v2928 = vpop.f32.mrb[0].mxu0
    %v2929 = vadd.f32 0.0, %v2928
    %v2930 = vpop.f32.mrb[0].mxu0
    %2931 = vmatprep.mubr.f32.mxu0 0.0
    %2932 = vmatmul.mubr.f32.gmra.mrb[0].mxu0 %v1488
    %v2933 = vpop.f32.mrb[0].mxu0
    %v2934 = vadd.f32 0.0, %v2933
    %v2935 = vpop.f32.mrb[0].mxu0
    %2936 = vmatprep.mubr.f32.mxu0 0.0
    %2937 = vmatmul.mubr.f32.gmra.mrb[0].mxu0 %v1490
    %v2938 = vpop.f32.mrb[0].mxu0
    %v2939 = vadd.f32 0.0, %v2938
    %v2940 = vpop.f32.mrb[0].mxu0
    %2941 = vmatprep.mubr.f32.mxu0 0.0
    %2942 = vmatmul.mubr.f32.gmra.mrb[0].mxu0 %v1492
    %v2943 = vpop.f32.mrb[0].mxu0
    %v2944 = vadd.f32 0.0, %v2943
    %v2945 = vpop.f32.mrb[0].mxu0
    %2946 = vmatprep.mubr.f32.mxu0 0.0
    %2947 = vmatmul.mubr.f32.gmra.mrb[0].mxu0 %v1494
    %v2948 = vpop.f32.mrb[0].mxu0
    %v2949 = vadd.f32 0.0, %v2948
    %v2950 = vpop.f32.mrb[0].mxu0
    %2951 = vdwg.mxu0
    %v2952 = vadd.f32 %v2809, %v2889
    %v2953 = vadd.f32 %v2810, %v2894
    %v2954 = vadd.f32 %v2811, %v2899
    %v2955 = vadd.f32 %v2812, %v2904
    %v2956 = vadd.f32 %v2813, %v2909
    %v2957 = vadd.f32 %v2814, %v2914
    %v2958 = vadd.f32 %v2815, %v2919
    %v2959 = vadd.f32 %v2816, %v2924
    %v2960 = vadd.f32 %v2817, %v2929
    %v2961 = vadd.f32 %v2818, %v2934
    %v2962 = vadd.f32 %v2819, %v2939
    %v2963 = vadd.f32 %v2820, %v2944
    %v2964 = vadd.f32 %v2821, %v2949
    %2965 = vrot.lane.b32.xlu0 %v461, 96
    %v2966 = vpop.permute.xlu0 %2965
    %2967 = vrot.lane.b32.xlu0 %v465, 96
    %v2968 = vpop.permute.xlu0 %2967
    %2969 = vrot.lane.b32.xlu0 %v469, 96
    %v2970 = vpop.permute.xlu0 %2969
    %2971 = vrot.lane.b32.xlu0 %v473, 96
    %v2972 = vpop.permute.xlu0 %2971
    %2973 = vrot.lane.b32.xlu0 %v477, 96
    %v2974 = vpop.permute.xlu0 %2973
    %2975 = vrot.lane.b32.xlu0 %v481, 96
    %v2976 = vpop.permute.xlu0 %2975
    %2977 = vrot.lane.b32.xlu0 %v485, 96
    %v2978 = vpop.permute.xlu0 %2977
    %2979 = vrot.lane.b32.xlu0 %v489, 96
    %v2980 = vpop.permute.xlu0 %2979
    %2981 = vrot.lane.b32.xlu0 %v493, 96
    %v2982 = vpop.permute.xlu0 %2981
    %2983 = vrot.lane.b32.xlu0 %v497, 96
    %v2984 = vpop.permute.xlu0 %2983
    %2985 = vrot.lane.b32.xlu0 %v501, 96
    %v2986 = vpop.permute.xlu0 %2985
    %2987 = vrot.lane.b32.xlu0 %v505, 96
    %v2988 = vpop.permute.xlu0 %2987
    %2989 = vrot.lane.b32.xlu0 %v509, 96
    %v2990 = vpop.permute.xlu0 %2989
    %v2991 = vsel %vm546, %v2966, 0
    %v2993 = vsel %vm546, %v2968, 0
    %v2995 = vsel %vm546, %v2970, 0
    %v2997 = vsel %vm546, %v2972, 0
    %v2999 = vsel %vm546, %v2974, 0
    %v3001 = vsel %vm546, %v2976, 0
    %v3003 = vsel %vm546, %v2978, 0
    %v3005 = vsel %vm546, %v2980, 0
    %v3007 = vsel %vm546, %v2982, 0
    %v3009 = vsel %vm546, %v2984, 0
    %v3011 = vsel %vm546, %v2986, 0
    %v3013 = vsel %vm546, %v2988, 0
    %v3015 = vsel %vm546, %v2990, 0
    %3017 = vmatprep.subr.mxu0 0.0
    %3018 = vmatpush1.msra.mxu0 %v530
    %3019 = vmatprep.subr.mxu0 0.0
    %3020 = vmatpush1.msra.mxu0 %v531
    %3021 = vmatprep.subr.mxu0 0.0
    %3022 = vmatpush1.msra.mxu0 %v532
    %3023 = vmatprep.subr.mxu0 0.0
    %3024 = vmatpush1.msra.mxu0 %v533
    %3025 = vmatprep.subr.mxu0 0.0
    %3026 = vmatpush1.msra.mxu0 0.0
    %3027 = vmatprep.subr.mxu0 0.0
    %3028 = vmatpush1.msra.mxu0 0.0
    %3029 = vmatprep.subr.mxu0 0.0
    %3030 = vmatpush1.msra.mxu0 0.0
    %3031 = vmatprep.subr.mxu0 0.0
    %3032 = vmatpush1.msra.mxu0 0.0
    %3033 = vmatprep.subr.mxu0 0.0
    %3034 = vmatpush1.msra.mxu0 0.0
    %3035 = vmatprep.subr.mxu0 0.0
    %3036 = vmatpush1.msra.mxu0 0.0
    %3037 = vmatprep.subr.mxu0 0.0
    %3038 = vmatpush1.msra.mxu0 0.0
    %3039 = vmatprep.subr.mxu0 0.0
    %3040 = vmatpush1.msra.mxu0 0.0
    %3041 = vmatprep.subr.mxu0 0.0
    %3042 = vmatpush1.msra.mxu0 0.0
    %3043 = vmatprep.subr.mxu0 0.0
    %3044 = vmatpush1.msra.mxu0 0.0
    %3045 = vmatprep.subr.mxu0 0.0
    %3046 = vmatpush1.msra.mxu0 0.0
    %3047 = vmatprep.subr.mxu0 0.0
    %3048 = vmatpush1.msra.mxu0 0.0
    %3049 = vmatprep.subr.mxu0 0.0
    %3050 = vmatpush1.msra.mxu0 0.0
    %3051 = vmatprep.subr.mxu0 0.0
    %3052 = vmatpush1.msra.mxu0 0.0
    %3053 = vmatprep.subr.mxu0 0.0
    %3054 = vmatpush1.msra.mxu0 0.0
    %3055 = vmatprep.subr.mxu0 0.0
    %3056 = vmatpush1.msra.mxu0 0.0
    %3057 = vmatprep.subr.mxu0 0.0
    %3058 = vmatpush1.msra.mxu0 0.0
    %3059 = vmatprep.subr.mxu0 0.0
    %3060 = vmatpush1.msra.mxu0 0.0
    %3061 = vmatprep.subr.mxu0 0.0
    %3062 = vmatpush1.msra.mxu0 0.0
    %3063 = vmatprep.subr.mxu0 0.0
    %3064 = vmatpush1.msra.mxu0 0.0
    %3065 = vmatprep.subr.mxu0 0.0
    %3066 = vmatpush1.msra.mxu0 0.0
    %3067 = vmatprep.subr.mxu0 0.0
    %3068 = vmatpush1.msra.mxu0 0.0
    %3069 = vmatprep.subr.mxu0 0.0
    %3070 = vmatpush1.msra.mxu0 0.0
    %3071 = vmatprep.subr.mxu0 0.0
    %3072 = vmatpush1.msra.mxu0 0.0
    %3073 = vmatprep.subr.mxu0 0.0
    %3074 = vmatpush1.msra.mxu0 0.0
    %3075 = vmatprep.subr.mxu0 0.0
    %3076 = vmatpush1.msra.mxu0 0.0
    %3077 = vmatprep.subr.mxu0 0.0
    %3078 = vmatpush1.msra.mxu0 0.0
    %3079 = vmatprep.subr.mxu0 0.0
    %3080 = vmatpush1.msra.mxu0 0.0
    %3081 = vmatprep.mubr.f32.mxu0 0.0
    %3082 = vmatmul.mubr.f32.gmra.mrb[0].mxu0 %v2991
    %v3083 = vpop.f32.mrb[0].mxu0
    %v3084 = vadd.f32 0.0, %v3083
    %v3085 = vpop.f32.mrb[0].mxu0
    %3086 = vmatprep.mubr.f32.mxu0 0.0
    %3087 = vmatmul.mubr.f32.gmra.mrb[0].mxu0 %v2993
    %v3088 = vpop.f32.mrb[0].mxu0
    %v3089 = vadd.f32 0.0, %v3088
    %v3090 = vpop.f32.mrb[0].mxu0
    %3091 = vmatprep.mubr.f32.mxu0 0.0
    %3092 = vmatmul.mubr.f32.gmra.mrb[0].mxu0 %v2995
    %v3093 = vpop.f32.mrb[0].mxu0
    %v3094 = vadd.f32 0.0, %v3093
    %v3095 = vpop.f32.mrb[0].mxu0
    %3096 = vmatprep.mubr.f32.mxu0 0.0
    %3097 = vmatmul.mubr.f32.gmra.mrb[0].mxu0 %v2997
    %v3098 = vpop.f32.mrb[0].mxu0
    %v3099 = vadd.f32 0.0, %v3098
    %v3100 = vpop.f32.mrb[0].mxu0
    %3101 = vmatprep.mubr.f32.mxu0 0.0
    %3102 = vmatmul.mubr.f32.gmra.mrb[0].mxu0 %v2999
    %v3103 = vpop.f32.mrb[0].mxu0
    %v3104 = vadd.f32 0.0, %v3103
    %v3105 = vpop.f32.mrb[0].mxu0
    %3106 = vmatprep.mubr.f32.mxu0 0.0
    %3107 = vmatmul.mubr.f32.gmra.mrb[0].mxu0 %v3001
    %v3108 = vpop.f32.mrb[0].mxu0
    %v3109 = vadd.f32 0.0, %v3108
    %v3110 = vpop.f32.mrb[0].mxu0
    %3111 = vmatprep.mubr.f32.mxu0 0.0
    %3112 = vmatmul.mubr.f32.gmra.mrb[0].mxu0 %v3003
    %v3113 = vpop.f32.mrb[0].mxu0
    %v3114 = vadd.f32 0.0, %v3113
    %v3115 = vpop.f32.mrb[0].mxu0
    %3116 = vmatprep.mubr.f32.mxu0 0.0
    %3117 = vmatmul.mubr.f32.gmra.mrb[0].mxu0 %v3005
    %v3118 = vpop.f32.mrb[0].mxu0
    %v3119 = vadd.f32 0.0, %v3118
    %v3120 = vpop.f32.mrb[0].mxu0
    %3121 = vmatprep.mubr.f32.mxu0 0.0
    %3122 = vmatmul.mubr.f32.gmra.mrb[0].mxu0 %v3007
    %v3123 = vpop.f32.mrb[0].mxu0
    %v3124 = vadd.f32 0.0, %v3123
    %v3125 = vpop.f32.mrb[0].mxu0
    %3126 = vmatprep.mubr.f32.mxu0 0.0
    %3127 = vmatmul.mubr.f32.gmra.mrb[0].mxu0 %v3009
    %v3128 = vpop.f32.mrb[0].mxu0
    %v3129 = vadd.f32 0.0, %v3128
    %v3130 = vpop.f32.mrb[0].mxu0
    %3131 = vmatprep.mubr.f32.mxu0 0.0
    %3132 = vmatmul.mubr.f32.gmra.mrb[0].mxu0 %v3011
    %v3133 = vpop.f32.mrb[0].mxu0
    %v3134 = vadd.f32 0.0, %v3133
    %v3135 = vpop.f32.mrb[0].mxu0
    %3136 = vmatprep.mubr.f32.mxu0 0.0
    %3137 = vmatmul.mubr.f32.gmra.mrb[0].mxu0 %v3013
    %v3138 = vpop.f32.mrb[0].mxu0
    %v3139 = vadd.f32 0.0, %v3138
    %v3140 = vpop.f32.mrb[0].mxu0
    %3141 = vmatprep.mubr.f32.mxu0 0.0
    %3142 = vmatmul.mubr.f32.gmra.mrb[0].mxu0 %v3015
    %v3143 = vpop.f32.mrb[0].mxu0
    %v3144 = vadd.f32 0.0, %v3143
    %v3145 = vpop.f32.mrb[0].mxu0
    %3146 = vdwg.mxu0
    %v3147 = vadd.f32 %v2952, %v3084
    %v3148 = vadd.f32 %v2953, %v3089
    %v3149 = vadd.f32 %v2954, %v3094
    %v3150 = vadd.f32 %v2955, %v3099
    %v3151 = vadd.f32 %v2956, %v3104
    %v3152 = vadd.f32 %v2957, %v3109
    %v3153 = vadd.f32 %v2958, %v3114
    %v3154 = vadd.f32 %v2959, %v3119
    %v3155 = vadd.f32 %v2960, %v3124
    %v3156 = vadd.f32 %v2961, %v3129
    %v3157 = vadd.f32 %v2962, %v3134
    %v3158 = vadd.f32 %v2963, %v3139
    %v3159 = vadd.f32 %v2964, %v3144
    %3160 = vmatprep.subr.mxu0 0.0
    %3161 = vmatpush1.msra.mxu0 %v534
    %3162 = vmatprep.subr.mxu0 0.0
    %3163 = vmatpush1.msra.mxu0 %v535
    %3164 = vmatprep.subr.mxu0 0.0
    %3165 = vmatpush1.msra.mxu0 %v536
    %3166 = vmatprep.subr.mxu0 0.0
    %3167 = vmatpush1.msra.mxu0 %v537
    %3168 = vmatprep.subr.mxu0 0.0
    %3169 = vmatpush1.msra.mxu0 0.0
    %3170 = vmatprep.subr.mxu0 0.0
    %3171 = vmatpush1.msra.mxu0 0.0
    %3172 = vmatprep.subr.mxu0 0.0
    %3173 = vmatpush1.msra.mxu0 0.0
    %3174 = vmatprep.subr.mxu0 0.0
    %3175 = vmatpush1.msra.mxu0 0.0
    %3176 = vmatprep.subr.mxu0 0.0
    %3177 = vmatpush1.msra.mxu0 0.0
    %3178 = vmatprep.subr.mxu0 0.0
    %3179 = vmatpush1.msra.mxu0 0.0
    %3180 = vmatprep.subr.mxu0 0.0
    %3181 = vmatpush1.msra.mxu0 0.0
    %3182 = vmatprep.subr.mxu0 0.0
    %3183 = vmatpush1.msra.mxu0 0.0
    %3184 = vmatprep.subr.mxu0 0.0
    %3185 = vmatpush1.msra.mxu0 0.0
    %3186 = vmatprep.subr.mxu0 0.0
    %3187 = vmatpush1.msra.mxu0 0.0
    %3188 = vmatprep.subr.mxu0 0.0
    %3189 = vmatpush1.msra.mxu0 0.0
    %3190 = vmatprep.subr.mxu0 0.0
    %3191 = vmatpush1.msra.mxu0 0.0
    %3192 = vmatprep.subr.mxu0 0.0
    %3193 = vmatpush1.msra.mxu0 0.0
    %3194 = vmatprep.subr.mxu0 0.0
    %3195 = vmatpush1.msra.mxu0 0.0
    %3196 = vmatprep.subr.mxu0 0.0
    %3197 = vmatpush1.msra.mxu0 0.0
    %3198 = vmatprep.subr.mxu0 0.0
    %3199 = vmatpush1.msra.mxu0 0.0
    %3200 = vmatprep.subr.mxu0 0.0
    %3201 = vmatpush1.msra.mxu0 0.0
    %3202 = vmatprep.subr.mxu0 0.0
    %3203 = vmatpush1.msra.mxu0 0.0
    %3204 = vmatprep.subr.mxu0 0.0
    %3205 = vmatpush1.msra.mxu0 0.0
    %3206 = vmatprep.subr.mxu0 0.0
    %3207 = vmatpush1.msra.mxu0 0.0
    %3208 = vmatprep.subr.mxu0 0.0
    %3209 = vmatpush1.msra.mxu0 0.0
    %3210 = vmatprep.subr.mxu0 0.0
    %3211 = vmatpush1.msra.mxu0 0.0
    %3212 = vmatprep.subr.mxu0 0.0
    %3213 = vmatpush1.msra.mxu0 0.0
    %3214 = vmatprep.subr.mxu0 0.0
    %3215 = vmatpush1.msra.mxu0 0.0
    %3216 = vmatprep.subr.mxu0 0.0
    %3217 = vmatpush1.msra.mxu0 0.0
    %3218 = vmatprep.subr.mxu0 0.0
    %3219 = vmatpush1.msra.mxu0 0.0
    %3220 = vmatprep.subr.mxu0 0.0
    %3221 = vmatpush1.msra.mxu0 0.0
    %3222 = vmatprep.subr.mxu0 0.0
    %3223 = vmatpush1.msra.mxu0 0.0
    %3224 = vmatprep.mubr.f32.mxu0 0.0
    %3225 = vmatmul.mubr.f32.gmra.mrb[0].mxu0 %v1860
    %v3226 = vpop.f32.mrb[0].mxu0
    %v3227 = vadd.f32 0.0, %v3226
    %v3228 = vpop.f32.mrb[0].mxu0
    %3229 = vmatprep.mubr.f32.mxu0 0.0
    %3230 = vmatmul.mubr.f32.gmra.mrb[0].mxu0 %v1862
    %v3231 = vpop.f32.mrb[0].mxu0
    %v3232 = vadd.f32 0.0, %v3231
    %v3233 = vpop.f32.mrb[0].mxu0
    %3234 = vmatprep.mubr.f32.mxu0 0.0
    %3235 = vmatmul.mubr.f32.gmra.mrb[0].mxu0 %v1864
    %v3236 = vpop.f32.mrb[0].mxu0
    %v3237 = vadd.f32 0.0, %v3236
    %v3238 = vpop.f32.mrb[0].mxu0
    %3239 = vmatprep.mubr.f32.mxu0 0.0
    %3240 = vmatmul.mubr.f32.gmra.mrb[0].mxu0 %v1866
    %v3241 = vpop.f32.mrb[0].mxu0
    %v3242 = vadd.f32 0.0, %v3241
    %v3243 = vpop.f32.mrb[0].mxu0
    %3244 = vmatprep.mubr.f32.mxu0 0.0
    %3245 = vmatmul.mubr.f32.gmra.mrb[0].mxu0 %v1868
    %v3246 = vpop.f32.mrb[0].mxu0
    %v3247 = vadd.f32 0.0, %v3246
    %v3248 = vpop.f32.mrb[0].mxu0
    %3249 = vmatprep.mubr.f32.mxu0 0.0
    %3250 = vmatmul.mubr.f32.gmra.mrb[0].mxu0 %v1870
    %v3251 = vpop.f32.mrb[0].mxu0
    %v3252 = vadd.f32 0.0, %v3251
    %v3253 = vpop.f32.mrb[0].mxu0
    %3254 = vmatprep.mubr.f32.mxu0 0.0
    %3255 = vmatmul.mubr.f32.gmra.mrb[0].mxu0 %v1872
    %v3256 = vpop.f32.mrb[0].mxu0
    %v3257 = vadd.f32 0.0, %v3256
    %v3258 = vpop.f32.mrb[0].mxu0
    %3259 = vmatprep.mubr.f32.mxu0 0.0
    %3260 = vmatmul.mubr.f32.gmra.mrb[0].mxu0 %v1874
    %v3261 = vpop.f32.mrb[0].mxu0
    %v3262 = vadd.f32 0.0, %v3261
    %v3263 = vpop.f32.mrb[0].mxu0
    %3264 = vmatprep.mubr.f32.mxu0 0.0
    %3265 = vmatmul.mubr.f32.gmra.mrb[0].mxu0 %v1876
    %v3266 = vpop.f32.mrb[0].mxu0
    %v3267 = vadd.f32 0.0, %v3266
    %v3268 = vpop.f32.mrb[0].mxu0
    %3269 = vmatprep.mubr.f32.mxu0 0.0
    %3270 = vmatmul.mubr.f32.gmra.mrb[0].mxu0 %v1878
    %v3271 = vpop.f32.mrb[0].mxu0
    %v3272 = vadd.f32 0.0, %v3271
    %v3273 = vpop.f32.mrb[0].mxu0
    %3274 = vmatprep.mubr.f32.mxu0 0.0
    %3275 = vmatmul.mubr.f32.gmra.mrb[0].mxu0 %v1880
    %v3276 = vpop.f32.mrb[0].mxu0
    %v3277 = vadd.f32 0.0, %v3276
    %v3278 = vpop.f32.mrb[0].mxu0
    %3279 = vmatprep.mubr.f32.mxu0 0.0
    %3280 = vmatmul.mubr.f32.gmra.mrb[0].mxu0 %v1882
    %v3281 = vpop.f32.mrb[0].mxu0
    %v3282 = vadd.f32 0.0, %v3281
    %v3283 = vpop.f32.mrb[0].mxu0
    %3284 = vmatprep.mubr.f32.mxu0 0.0
    %3285 = vmatmul.mubr.f32.gmra.mrb[0].mxu0 %v1884
    %v3286 = vpop.f32.mrb[0].mxu0
    %v3287 = vadd.f32 0.0, %v3286
    %v3288 = vpop.f32.mrb[0].mxu0
    %3289 = vdwg.mxu0
    %v3290 = vadd.f32 %v3147, %v3227
    %v3291 = vadd.f32 %v3148, %v3232
    %v3292 = vadd.f32 %v3149, %v3237
    %v3293 = vadd.f32 %v3150, %v3242
    %v3294 = vadd.f32 %v3151, %v3247
    %v3295 = vadd.f32 %v3152, %v3252
    %v3296 = vadd.f32 %v3153, %v3257
    %v3297 = vadd.f32 %v3154, %v3262
    %v3298 = vadd.f32 %v3155, %v3267
    %v3299 = vadd.f32 %v3156, %v3272
    %v3300 = vadd.f32 %v3157, %v3277
    %v3301 = vadd.f32 %v3158, %v3282
    %v3302 = vadd.f32 %v3159, %v3287
    %3303 = vmatprep.subr.mxu0 0.0
    %3304 = vmatpush1.msra.mxu0 %v538
    %3305 = vmatprep.subr.mxu0 0.0
    %3306 = vmatpush1.msra.mxu0 %v539
    %3307 = vmatprep.subr.mxu0 0.0
    %3308 = vmatpush1.msra.mxu0 %v540
    %3309 = vmatprep.subr.mxu0 0.0
    %3310 = vmatpush1.msra.mxu0 %v541
    %3311 = vmatprep.subr.mxu0 0.0
    %3312 = vmatpush1.msra.mxu0 0.0
    %3313 = vmatprep.subr.mxu0 0.0
    %3314 = vmatpush1.msra.mxu0 0.0
    %3315 = vmatprep.subr.mxu0 0.0
    %3316 = vmatpush1.msra.mxu0 0.0
    %3317 = vmatprep.subr.mxu0 0.0
    %3318 = vmatpush1.msra.mxu0 0.0
    %3319 = vmatprep.subr.mxu0 0.0
    %3320 = vmatpush1.msra.mxu0 0.0
    %3321 = vmatprep.subr.mxu0 0.0
    %3322 = vmatpush1.msra.mxu0 0.0
    %3323 = vmatprep.subr.mxu0 0.0
    %3324 = vmatpush1.msra.mxu0 0.0
    %3325 = vmatprep.subr.mxu0 0.0
    %3326 = vmatpush1.msra.mxu0 0.0
    %3327 = vmatprep.subr.mxu0 0.0
    %3328 = vmatpush1.msra.mxu0 0.0
    %3329 = vmatprep.subr.mxu0 0.0
    %3330 = vmatpush1.msra.mxu0 0.0
    %3331 = vmatprep.subr.mxu0 0.0
    %3332 = vmatpush1.msra.mxu0 0.0
    %3333 = vmatprep.subr.mxu0 0.0
    %3334 = vmatpush1.msra.mxu0 0.0
    %3335 = vmatprep.subr.mxu0 0.0
    %3336 = vmatpush1.msra.mxu0 0.0
    %3337 = vmatprep.subr.mxu0 0.0
    %3338 = vmatpush1.msra.mxu0 0.0
    %3339 = vmatprep.subr.mxu0 0.0
    %3340 = vmatpush1.msra.mxu0 0.0
    %3341 = vmatprep.subr.mxu0 0.0
    %3342 = vmatpush1.msra.mxu0 0.0
    %3343 = vmatprep.subr.mxu0 0.0
    %3344 = vmatpush1.msra.mxu0 0.0
    %3345 = vmatprep.subr.mxu0 0.0
    %3346 = vmatpush1.msra.mxu0 0.0
    %3347 = vmatprep.subr.mxu0 0.0
    %3348 = vmatpush1.msra.mxu0 0.0
    %3349 = vmatprep.subr.mxu0 0.0
    %3350 = vmatpush1.msra.mxu0 0.0
    %3351 = vmatprep.subr.mxu0 0.0
    %3352 = vmatpush1.msra.mxu0 0.0
    %3353 = vmatprep.subr.mxu0 0.0
    %3354 = vmatpush1.msra.mxu0 0.0
    %3355 = vmatprep.subr.mxu0 0.0
    %3356 = vmatpush1.msra.mxu0 0.0
    %3357 = vmatprep.subr.mxu0 0.0
    %3358 = vmatpush1.msra.mxu0 0.0
    %3359 = vmatprep.subr.mxu0 0.0
    %3360 = vmatpush1.msra.mxu0 0.0
    %3361 = vmatprep.subr.mxu0 0.0
    %3362 = vmatpush1.msra.mxu0 0.0
    %3363 = vmatprep.subr.mxu0 0.0
    %3364 = vmatpush1.msra.mxu0 0.0
    %3365 = vmatprep.subr.mxu0 0.0
    %3366 = vmatpush1.msra.mxu0 0.0
    %3367 = vmatprep.mubr.f32.mxu0 0.0
    %3368 = vmatmul.mubr.f32.gmra.mrb[0].mxu0 %v2055
    %v3369 = vpop.f32.mrb[0].mxu0
    %v3370 = vadd.f32 0.0, %v3369
    %v3371 = vpop.f32.mrb[0].mxu0
    %3372 = vmatprep.mubr.f32.mxu0 0.0
    %3373 = vmatmul.mubr.f32.gmra.mrb[0].mxu0 %v2057
    %v3374 = vpop.f32.mrb[0].mxu0
    %v3375 = vadd.f32 0.0, %v3374
    %v3376 = vpop.f32.mrb[0].mxu0
    %3377 = vmatprep.mubr.f32.mxu0 0.0
    %3378 = vmatmul.mubr.f32.gmra.mrb[0].mxu0 %v2059
    %v3379 = vpop.f32.mrb[0].mxu0
    %v3380 = vadd.f32 0.0, %v3379
    %v3381 = vpop.f32.mrb[0].mxu0
    %3382 = vmatprep.mubr.f32.mxu0 0.0
    %3383 = vmatmul.mubr.f32.gmra.mrb[0].mxu0 %v2061
    %v3384 = vpop.f32.mrb[0].mxu0
    %v3385 = vadd.f32 0.0, %v3384
    %v3386 = vpop.f32.mrb[0].mxu0
    %3387 = vmatprep.mubr.f32.mxu0 0.0
    %3388 = vmatmul.mubr.f32.gmra.mrb[0].mxu0 %v2063
    %v3389 = vpop.f32.mrb[0].mxu0
    %v3390 = vadd.f32 0.0, %v3389
    %v3391 = vpop.f32.mrb[0].mxu0
    %3392 = vmatprep.mubr.f32.mxu0 0.0
    %3393 = vmatmul.mubr.f32.gmra.mrb[0].mxu0 %v2065
    %v3394 = vpop.f32.mrb[0].mxu0
    %v3395 = vadd.f32 0.0, %v3394
    %v3396 = vpop.f32.mrb[0].mxu0
    %3397 = vmatprep.mubr.f32.mxu0 0.0
    %3398 = vmatmul.mubr.f32.gmra.mrb[0].mxu0 %v2067
    %v3399 = vpop.f32.mrb[0].mxu0
    %v3400 = vadd.f32 0.0, %v3399
    %v3401 = vpop.f32.mrb[0].mxu0
    %3402 = vmatprep.mubr.f32.mxu0 0.0
    %3403 = vmatmul.mubr.f32.gmra.mrb[0].mxu0 %v2069
    %v3404 = vpop.f32.mrb[0].mxu0
    %v3405 = vadd.f32 0.0, %v3404
    %v3406 = vpop.f32.mrb[0].mxu0
    %3407 = vmatprep.mubr.f32.mxu0 0.0
    %3408 = vmatmul.mubr.f32.gmra.mrb[0].mxu0 %v2071
    %v3409 = vpop.f32.mrb[0].mxu0
    %v3410 = vadd.f32 0.0, %v3409
    %v3411 = vpop.f32.mrb[0].mxu0
    %3412 = vmatprep.mubr.f32.mxu0 0.0
    %3413 = vmatmul.mubr.f32.gmra.mrb[0].mxu0 %v2073
    %v3414 = vpop.f32.mrb[0].mxu0
    %v3415 = vadd.f32 0.0, %v3414
    %v3416 = vpop.f32.mrb[0].mxu0
    %3417 = vmatprep.mubr.f32.mxu0 0.0
    %3418 = vmatmul.mubr.f32.gmra.mrb[0].mxu0 %v2075
    %v3419 = vpop.f32.mrb[0].mxu0
    %v3420 = vadd.f32 0.0, %v3419
    %v3421 = vpop.f32.mrb[0].mxu0
    %3422 = vmatprep.mubr.f32.mxu0 0.0
    %3423 = vmatmul.mubr.f32.gmra.mrb[0].mxu0 %v2077
    %v3424 = vpop.f32.mrb[0].mxu0
    %v3425 = vadd.f32 0.0, %v3424
    %v3426 = vpop.f32.mrb[0].mxu0
    %3427 = vmatprep.mubr.f32.mxu0 0.0
    %3428 = vmatmul.mubr.f32.gmra.mrb[0].mxu0 %v2079
    %v3429 = vpop.f32.mrb[0].mxu0
    %v3430 = vadd.f32 0.0, %v3429
    %v3431 = vpop.f32.mrb[0].mxu0
    %3432 = vdwg.mxu0
    %v3433 = vadd.f32 %v3290, %v3370
    %v3434 = vadd.f32 %v3291, %v3375
    %v3435 = vadd.f32 %v3292, %v3380
    %v3436 = vadd.f32 %v3293, %v3385
    %v3437 = vadd.f32 %v3294, %v3390
    %v3438 = vadd.f32 %v3295, %v3395
    %v3439 = vadd.f32 %v3296, %v3400
    %v3440 = vadd.f32 %v3297, %v3405
    %v3441 = vadd.f32 %v3298, %v3410
    %v3442 = vadd.f32 %v3299, %v3415
    %v3443 = vadd.f32 %v3300, %v3420
    %v3444 = vadd.f32 %v3301, %v3425
    %v3445 = vadd.f32 %v3302, %v3430
    %3446 = vrot.lane.b32.xlu0 %v459, 32
    %v3447 = vpop.permute.xlu0 %3446
    %3448 = vrot.lane.b32.xlu0 %v463, 32
    %v3449 = vpop.permute.xlu0 %3448
    %3450 = vrot.lane.b32.xlu0 %v467, 32
    %v3451 = vpop.permute.xlu0 %3450
    %3452 = vrot.lane.b32.xlu0 %v471, 32
    %v3453 = vpop.permute.xlu0 %3452
    %3454 = vrot.lane.b32.xlu0 %v475, 32
    %v3455 = vpop.permute.xlu0 %3454
    %3456 = vrot.lane.b32.xlu0 %v479, 32
    %v3457 = vpop.permute.xlu0 %3456
    %3458 = vrot.lane.b32.xlu0 %v483, 32
    %v3459 = vpop.permute.xlu0 %3458
    %3460 = vrot.lane.b32.xlu0 %v487, 32
    %v3461 = vpop.permute.xlu0 %3460
    %3462 = vrot.lane.b32.xlu0 %v491, 32
    %v3463 = vpop.permute.xlu0 %3462
    %3464 = vrot.lane.b32.xlu0 %v495, 32
    %v3465 = vpop.permute.xlu0 %3464
    %3466 = vrot.lane.b32.xlu0 %v499, 32
    %v3467 = vpop.permute.xlu0 %3466
    %3468 = vrot.lane.b32.xlu0 %v503, 32
    %v3469 = vpop.permute.xlu0 %3468
    %3470 = vrot.lane.b32.xlu0 %v507, 32
    %v3471 = vpop.permute.xlu0 %3470
    %v3472 = vsel %vm546, %v3447, 0
    %v3474 = vsel %vm546, %v3449, 0
    %v3476 = vsel %vm546, %v3451, 0
    %v3478 = vsel %vm546, %v3453, 0
    %v3480 = vsel %vm546, %v3455, 0
    %v3482 = vsel %vm546, %v3457, 0
    %v3484 = vsel %vm546, %v3459, 0
    %v3486 = vsel %vm546, %v3461, 0
    %v3488 = vsel %vm546, %v3463, 0
    %v3490 = vsel %vm546, %v3465, 0
    %v3492 = vsel %vm546, %v3467, 0
    %v3494 = vsel %vm546, %v3469, 0
    %v3496 = vsel %vm546, %v3471, 0
    %3498 = vmatprep.subr.mxu0 0.0
    %3499 = vmatpush1.msra.mxu0 %v542
    %3500 = vmatprep.subr.mxu0 0.0
    %3501 = vmatpush1.msra.mxu0 %v543
    %3502 = vmatprep.subr.mxu0 0.0
    %3503 = vmatpush1.msra.mxu0 %v544
    %3504 = vmatprep.subr.mxu0 0.0
    %3505 = vmatpush1.msra.mxu0 %v545
    %3506 = vmatprep.subr.mxu0 0.0
    %3507 = vmatpush1.msra.mxu0 0.0
    %3508 = vmatprep.subr.mxu0 0.0
    %3509 = vmatpush1.msra.mxu0 0.0
    %3510 = vmatprep.subr.mxu0 0.0
    %3511 = vmatpush1.msra.mxu0 0.0
    %3512 = vmatprep.subr.mxu0 0.0
    %3513 = vmatpush1.msra.mxu0 0.0
    %3514 = vmatprep.subr.mxu0 0.0
    %3515 = vmatpush1.msra.mxu0 0.0
    %3516 = vmatprep.subr.mxu0 0.0
    %3517 = vmatpush1.msra.mxu0 0.0
    %3518 = vmatprep.subr.mxu0 0.0
    %3519 = vmatpush1.msra.mxu0 0.0
    %3520 = vmatprep.subr.mxu0 0.0
    %3521 = vmatpush1.msra.mxu0 0.0
    %3522 = vmatprep.subr.mxu0 0.0
    %3523 = vmatpush1.msra.mxu0 0.0
    %3524 = vmatprep.subr.mxu0 0.0
    %3525 = vmatpush1.msra.mxu0 0.0
    %3526 = vmatprep.subr.mxu0 0.0
    %3527 = vmatpush1.msra.mxu0 0.0
    %3528 = vmatprep.subr.mxu0 0.0
    %3529 = vmatpush1.msra.mxu0 0.0
    %3530 = vmatprep.subr.mxu0 0.0
    %3531 = vmatpush1.msra.mxu0 0.0
    %3532 = vmatprep.subr.mxu0 0.0
    %3533 = vmatpush1.msra.mxu0 0.0
    %3534 = vmatprep.subr.mxu0 0.0
    %3535 = vmatpush1.msra.mxu0 0.0
    %3536 = vmatprep.subr.mxu0 0.0
    %3537 = vmatpush1.msra.mxu0 0.0
    %3538 = vmatprep.subr.mxu0 0.0
    %3539 = vmatpush1.msra.mxu0 0.0
    %3540 = vmatprep.subr.mxu0 0.0
    %3541 = vmatpush1.msra.mxu0 0.0
    %3542 = vmatprep.subr.mxu0 0.0
    %3543 = vmatpush1.msra.mxu0 0.0
    %3544 = vmatprep.subr.mxu0 0.0
    %3545 = vmatpush1.msra.mxu0 0.0
    %3546 = vmatprep.subr.mxu0 0.0
    %3547 = vmatpush1.msra.mxu0 0.0
    %3548 = vmatprep.subr.mxu0 0.0
    %3549 = vmatpush1.msra.mxu0 0.0
    %3550 = vmatprep.subr.mxu0 0.0
    %3551 = vmatpush1.msra.mxu0 0.0
    %3552 = vmatprep.subr.mxu0 0.0
    %3553 = vmatpush1.msra.mxu0 0.0
    %3554 = vmatprep.subr.mxu0 0.0
    %3555 = vmatpush1.msra.mxu0 0.0
    %3556 = vmatprep.subr.mxu0 0.0
    %3557 = vmatpush1.msra.mxu0 0.0
    %3558 = vmatprep.subr.mxu0 0.0
    %3559 = vmatpush1.msra.mxu0 0.0
    %3560 = vmatprep.subr.mxu0 0.0
    %3561 = vmatpush1.msra.mxu0 0.0
    %3562 = vmatprep.mubr.f32.mxu0 0.0
    %3563 = vmatmul.mubr.f32.gmra.mrb[0].mxu0 %v3472
    %v3564 = vpop.f32.mrb[0].mxu0
    %v3565 = vadd.f32 0.0, %v3564
    %v3566 = vpop.f32.mrb[0].mxu0
    %3567 = vmatprep.mubr.f32.mxu0 0.0
    %3568 = vmatmul.mubr.f32.gmra.mrb[0].mxu0 %v3474
    %v3569 = vpop.f32.mrb[0].mxu0
    %v3570 = vadd.f32 0.0, %v3569
    %v3571 = vpop.f32.mrb[0].mxu0
    %3572 = vmatprep.mubr.f32.mxu0 0.0
    %3573 = vmatmul.mubr.f32.gmra.mrb[0].mxu0 %v3476
    %v3574 = vpop.f32.mrb[0].mxu0
    %v3575 = vadd.f32 0.0, %v3574
    %v3576 = vpop.f32.mrb[0].mxu0
    %3577 = vmatprep.mubr.f32.mxu0 0.0
    %3578 = vmatmul.mubr.f32.gmra.mrb[0].mxu0 %v3478
    %v3579 = vpop.f32.mrb[0].mxu0
    %v3580 = vadd.f32 0.0, %v3579
    %v3581 = vpop.f32.mrb[0].mxu0
    %3582 = vmatprep.mubr.f32.mxu0 0.0
    %3583 = vmatmul.mubr.f32.gmra.mrb[0].mxu0 %v3480
    %v3584 = vpop.f32.mrb[0].mxu0
    %v3585 = vadd.f32 0.0, %v3584
    %v3586 = vpop.f32.mrb[0].mxu0
    %3587 = vmatprep.mubr.f32.mxu0 0.0
    %3588 = vmatmul.mubr.f32.gmra.mrb[0].mxu0 %v3482
    %v3589 = vpop.f32.mrb[0].mxu0
    %v3590 = vadd.f32 0.0, %v3589
    %v3591 = vpop.f32.mrb[0].mxu0
    %3592 = vmatprep.mubr.f32.mxu0 0.0
    %3593 = vmatmul.mubr.f32.gmra.mrb[0].mxu0 %v3484
    %v3594 = vpop.f32.mrb[0].mxu0
    %v3595 = vadd.f32 0.0, %v3594
    %v3596 = vpop.f32.mrb[0].mxu0
    %3597 = vmatprep.mubr.f32.mxu0 0.0
    %3598 = vmatmul.mubr.f32.gmra.mrb[0].mxu0 %v3486
    %v3599 = vpop.f32.mrb[0].mxu0
    %v3600 = vadd.f32 0.0, %v3599
    %v3601 = vpop.f32.mrb[0].mxu0
    %3602 = vmatprep.mubr.f32.mxu0 0.0
    %3603 = vmatmul.mubr.f32.gmra.mrb[0].mxu0 %v3488
    %v3604 = vpop.f32.mrb[0].mxu0
    %v3605 = vadd.f32 0.0, %v3604
    %v3606 = vpop.f32.mrb[0].mxu0
    %3607 = vmatprep.mubr.f32.mxu0 0.0
    %3608 = vmatmul.mubr.f32.gmra.mrb[0].mxu0 %v3490
    %v3609 = vpop.f32.mrb[0].mxu0
    %v3610 = vadd.f32 0.0, %v3609
    %v3611 = vpop.f32.mrb[0].mxu0
    %3612 = vmatprep.mubr.f32.mxu0 0.0
    %3613 = vmatmul.mubr.f32.gmra.mrb[0].mxu0 %v3492
    %v3614 = vpop.f32.mrb[0].mxu0
    %v3615 = vadd.f32 0.0, %v3614
    %v3616 = vpop.f32.mrb[0].mxu0
    %3617 = vmatprep.mubr.f32.mxu0 0.0
    %3618 = vmatmul.mubr.f32.gmra.mrb[0].mxu0 %v3494
    %v3619 = vpop.f32.mrb[0].mxu0
    %v3620 = vadd.f32 0.0, %v3619
    %v3621 = vpop.f32.mrb[0].mxu0
    %3622 = vmatprep.mubr.f32.mxu0 0.0
    %3623 = vmatmul.mubr.f32.gmra.mrb[0].mxu0 %v3496
    %v3624 = vpop.f32.mrb[0].mxu0
    %v3625 = vadd.f32 0.0, %v3624
    %v3626 = vpop.f32.mrb[0].mxu0
    %3627 = vdwg.mxu0
    %v3628 = vadd.f32 %v3433, %v3565
    %v3629 = vadd.f32 %v3434, %v3570
    %v3630 = vadd.f32 %v3435, %v3575
    %v3631 = vadd.f32 %v3436, %v3580
    %v3632 = vadd.f32 %v3437, %v3585
    %v3633 = vadd.f32 %v3438, %v3590
    %v3634 = vadd.f32 %v3439, %v3595
    %v3635 = vadd.f32 %v3440, %v3600
    %v3636 = vadd.f32 %v3441, %v3605
    %v3637 = vadd.f32 %v3442, %v3610
    %v3638 = vadd.f32 %v3443, %v3615
    %v3639 = vadd.f32 %v3444, %v3620
    %v3640 = vadd.f32 %v3445, %v3625
    %v3641 = vmax.f32 %v2211, %v3628
    %v3642 = vmax.f32 %v2212, %v3629
    %v3643 = vmax.f32 %v2213, %v3630
    %v3644 = vmax.f32 %v2214, %v3631
    %v3645 = vmax.f32 %v2215, %v3632
    %v3646 = vmax.f32 %v2216, %v3633
    %v3647 = vmax.f32 %v2217, %v3634
    %v3648 = vmax.f32 %v2218, %v3635
    %v3649 = vmax.f32 %v2219, %v3636
    %v3650 = vmax.f32 %v2220, %v3637
    %v3651 = vmax.f32 %v2221, %v3638
    %v3652 = vmax.f32 %v2222, %v3639
    %v3653 = vmax.f32 %v2223, %v3640
    %3654 = vmatprep.subr.mxu0 0.0
    %3655 = vmatpush1.msra.mxu0 %v514
    %3656 = vmatprep.subr.mxu0 0.0
    %3657 = vmatpush1.msra.mxu0 %v515
    %3658 = vmatprep.subr.mxu0 0.0
    %3659 = vmatpush1.msra.mxu0 %v516
    %3660 = vmatprep.subr.mxu0 0.0
    %3661 = vmatpush1.msra.mxu0 %v517
    %3662 = vmatprep.subr.mxu0 0.0
    %3663 = vmatpush1.msra.mxu0 0.0
    %3664 = vmatprep.subr.mxu0 0.0
    %3665 = vmatpush1.msra.mxu0 0.0
    %3666 = vmatprep.subr.mxu0 0.0
    %3667 = vmatpush1.msra.mxu0 0.0
    %3668 = vmatprep.subr.mxu0 0.0
    %3669 = vmatpush1.msra.mxu0 0.0
    %3670 = vmatprep.subr.mxu0 0.0
    %3671 = vmatpush1.msra.mxu0 0.0
    %3672 = vmatprep.subr.mxu0 0.0
    %3673 = vmatpush1.msra.mxu0 0.0
    %3674 = vmatprep.subr.mxu0 0.0
    %3675 = vmatpush1.msra.mxu0 0.0
    %3676 = vmatprep.subr.mxu0 0.0
    %3677 = vmatpush1.msra.mxu0 0.0
    %3678 = vmatprep.subr.mxu0 0.0
    %3679 = vmatpush1.msra.mxu0 0.0
    %3680 = vmatprep.subr.mxu0 0.0
    %3681 = vmatpush1.msra.mxu0 0.0
    %3682 = vmatprep.subr.mxu0 0.0
    %3683 = vmatpush1.msra.mxu0 0.0
    %3684 = vmatprep.subr.mxu0 0.0
    %3685 = vmatpush1.msra.mxu0 0.0
    %3686 = vmatprep.subr.mxu0 0.0
    %3687 = vmatpush1.msra.mxu0 0.0
    %3688 = vmatprep.subr.mxu0 0.0
    %3689 = vmatpush1.msra.mxu0 0.0
    %3690 = vmatprep.subr.mxu0 0.0
    %3691 = vmatpush1.msra.mxu0 0.0
    %3692 = vmatprep.subr.mxu0 0.0
    %3693 = vmatpush1.msra.mxu0 0.0
    %3694 = vmatprep.subr.mxu0 0.0
    %3695 = vmatpush1.msra.mxu0 0.0
    %3696 = vmatprep.subr.mxu0 0.0
    %3697 = vmatpush1.msra.mxu0 0.0
    %3698 = vmatprep.subr.mxu0 0.0
    %3699 = vmatpush1.msra.mxu0 0.0
    %3700 = vmatprep.subr.mxu0 0.0
    %3701 = vmatpush1.msra.mxu0 0.0
    %3702 = vmatprep.subr.mxu0 0.0
    %3703 = vmatpush1.msra.mxu0 0.0
    %3704 = vmatprep.subr.mxu0 0.0
    %3705 = vmatpush1.msra.mxu0 0.0
    %3706 = vmatprep.subr.mxu0 0.0
    %3707 = vmatpush1.msra.mxu0 0.0
    %3708 = vmatprep.subr.mxu0 0.0
    %3709 = vmatpush1.msra.mxu0 0.0
    %3710 = vmatprep.subr.mxu0 0.0
    %3711 = vmatpush1.msra.mxu0 0.0
    %3712 = vmatprep.subr.mxu0 0.0
    %3713 = vmatpush1.msra.mxu0 0.0
    %3714 = vmatprep.subr.mxu0 0.0
    %3715 = vmatpush1.msra.mxu0 0.0
    %3716 = vmatprep.subr.mxu0 0.0
    %3717 = vmatpush1.msra.mxu0 0.0
    %3718 = vmatprep.mubr.f32.mxu0 0.0
    %3719 = vmatmul.mubr.f32.gmra.mrb[0].mxu0 %v1263
    %v3720 = vpop.f32.mrb[0].mxu0
    %v3721 = vadd.f32 0.0, %v3720
    %v3722 = vpop.f32.mrb[0].mxu0
    %3723 = vmatprep.mubr.f32.mxu0 0.0
    %3724 = vmatmul.mubr.f32.gmra.mrb[0].mxu0 %v1266
    %v3725 = vpop.f32.mrb[0].mxu0
    %v3726 = vadd.f32 0.0, %v3725
    %v3727 = vpop.f32.mrb[0].mxu0
    %3728 = vmatprep.mubr.f32.mxu0 0.0
    %3729 = vmatmul.mubr.f32.gmra.mrb[0].mxu0 %v1269
    %v3730 = vpop.f32.mrb[0].mxu0
    %v3731 = vadd.f32 0.0, %v3730
    %v3732 = vpop.f32.mrb[0].mxu0
    %3733 = vmatprep.mubr.f32.mxu0 0.0
    %3734 = vmatmul.mubr.f32.gmra.mrb[0].mxu0 %v1272
    %v3735 = vpop.f32.mrb[0].mxu0
    %v3736 = vadd.f32 0.0, %v3735
    %v3737 = vpop.f32.mrb[0].mxu0
    %3738 = vmatprep.mubr.f32.mxu0 0.0
    %3739 = vmatmul.mubr.f32.gmra.mrb[0].mxu0 %v1275
    %v3740 = vpop.f32.mrb[0].mxu0
    %v3741 = vadd.f32 0.0, %v3740
    %v3742 = vpop.f32.mrb[0].mxu0
    %3743 = vmatprep.mubr.f32.mxu0 0.0
    %3744 = vmatmul.mubr.f32.gmra.mrb[0].mxu0 %v1278
    %v3745 = vpop.f32.mrb[0].mxu0
    %v3746 = vadd.f32 0.0, %v3745
    %v3747 = vpop.f32.mrb[0].mxu0
    %3748 = vmatprep.mubr.f32.mxu0 0.0
    %3749 = vmatmul.mubr.f32.gmra.mrb[0].mxu0 %v1281
    %v3750 = vpop.f32.mrb[0].mxu0
    %v3751 = vadd.f32 0.0, %v3750
    %v3752 = vpop.f32.mrb[0].mxu0
    %3753 = vmatprep.mubr.f32.mxu0 0.0
    %3754 = vmatmul.mubr.f32.gmra.mrb[0].mxu0 %v1284
    %v3755 = vpop.f32.mrb[0].mxu0
    %v3756 = vadd.f32 0.0, %v3755
    %v3757 = vpop.f32.mrb[0].mxu0
    %3758 = vmatprep.mubr.f32.mxu0 0.0
    %3759 = vmatmul.mubr.f32.gmra.mrb[0].mxu0 %v1287
    %v3760 = vpop.f32.mrb[0].mxu0
    %v3761 = vadd.f32 0.0, %v3760
    %v3762 = vpop.f32.mrb[0].mxu0
    %3763 = vmatprep.mubr.f32.mxu0 0.0
    %3764 = vmatmul.mubr.f32.gmra.mrb[0].mxu0 %v1290
    %v3765 = vpop.f32.mrb[0].mxu0
    %v3766 = vadd.f32 0.0, %v3765
    %v3767 = vpop.f32.mrb[0].mxu0
    %3768 = vmatprep.mubr.f32.mxu0 0.0
    %3769 = vmatmul.mubr.f32.gmra.mrb[0].mxu0 %v1293
    %v3770 = vpop.f32.mrb[0].mxu0
    %v3771 = vadd.f32 0.0, %v3770
    %v3772 = vpop.f32.mrb[0].mxu0
    %3773 = vmatprep.mubr.f32.mxu0 0.0
    %3774 = vmatmul.mubr.f32.gmra.mrb[0].mxu0 %v1296
    %v3775 = vpop.f32.mrb[0].mxu0
    %v3776 = vadd.f32 0.0, %v3775
    %v3777 = vpop.f32.mrb[0].mxu0
    %3778 = vmatprep.mubr.f32.mxu0 0.0
    %3779 = vmatmul.mubr.f32.gmra.mrb[0].mxu0 %v1299
    %v3780 = vpop.f32.mrb[0].mxu0
    %v3781 = vadd.f32 0.0, %v3780
    %v3782 = vpop.f32.mrb[0].mxu0
    %3783 = vdwg.mxu0
    %3784 = vmatprep.subr.mxu0 0.0
    %3785 = vmatpush1.msra.mxu0 %v510
    %3786 = vmatprep.subr.mxu0 0.0
    %3787 = vmatpush1.msra.mxu0 %v511
    %3788 = vmatprep.subr.mxu0 0.0
    %3789 = vmatpush1.msra.mxu0 %v512
    %3790 = vmatprep.subr.mxu0 0.0
    %3791 = vmatpush1.msra.mxu0 %v513
    %3792 = vmatprep.subr.mxu0 0.0
    %3793 = vmatpush1.msra.mxu0 0.0
    %3794 = vmatprep.subr.mxu0 0.0
    %3795 = vmatpush1.msra.mxu0 0.0
    %3796 = vmatprep.subr.mxu0 0.0
    %3797 = vmatpush1.msra.mxu0 0.0
    %3798 = vmatprep.subr.mxu0 0.0
    %3799 = vmatpush1.msra.mxu0 0.0
    %3800 = vmatprep.subr.mxu0 0.0
    %3801 = vmatpush1.msra.mxu0 0.0
    %3802 = vmatprep.subr.mxu0 0.0
    %3803 = vmatpush1.msra.mxu0 0.0
    %3804 = vmatprep.subr.mxu0 0.0
    %3805 = vmatpush1.msra.mxu0 0.0
    %3806 = vmatprep.subr.mxu0 0.0
    %3807 = vmatpush1.msra.mxu0 0.0
    %3808 = vmatprep.subr.mxu0 0.0
    %3809 = vmatpush1.msra.mxu0 0.0
    %3810 = vmatprep.subr.mxu0 0.0
    %3811 = vmatpush1.msra.mxu0 0.0
    %3812 = vmatprep.subr.mxu0 0.0
    %3813 = vmatpush1.msra.mxu0 0.0
    %3814 = vmatprep.subr.mxu0 0.0
    %3815 = vmatpush1.msra.mxu0 0.0
    %3816 = vmatprep.subr.mxu0 0.0
    %3817 = vmatpush1.msra.mxu0 0.0
    %3818 = vmatprep.subr.mxu0 0.0
    %3819 = vmatpush1.msra.mxu0 0.0
    %3820 = vmatprep.subr.mxu0 0.0
    %3821 = vmatpush1.msra.mxu0 0.0
    %3822 = vmatprep.subr.mxu0 0.0
    %3823 = vmatpush1.msra.mxu0 0.0
    %3824 = vmatprep.subr.mxu0 0.0
    %3825 = vmatpush1.msra.mxu0 0.0
    %3826 = vmatprep.subr.mxu0 0.0
    %3827 = vmatpush1.msra.mxu0 0.0
    %3828 = vmatprep.subr.mxu0 0.0
    %3829 = vmatpush1.msra.mxu0 0.0
    %3830 = vmatprep.subr.mxu0 0.0
    %3831 = vmatpush1.msra.mxu0 0.0
    %3832 = vmatprep.subr.mxu0 0.0
    %3833 = vmatpush1.msra.mxu0 0.0
    %3834 = vmatprep.subr.mxu0 0.0
    %3835 = vmatpush1.msra.mxu0 0.0
    %3836 = vmatprep.subr.mxu0 0.0
    %3837 = vmatpush1.msra.mxu0 0.0
    %3838 = vmatprep.subr.mxu0 0.0
    %3839 = vmatpush1.msra.mxu0 0.0
    %3840 = vmatprep.subr.mxu0 0.0
    %3841 = vmatpush1.msra.mxu0 0.0
    %3842 = vmatprep.subr.mxu0 0.0
    %3843 = vmatpush1.msra.mxu0 0.0
    %3844 = vmatprep.subr.mxu0 0.0
    %3845 = vmatpush1.msra.mxu0 0.0
    %3846 = vmatprep.subr.mxu0 0.0
    %3847 = vmatpush1.msra.mxu0 0.0
    %3848 = vmatprep.mubr.f32.mxu0 0.0
    %3849 = vmatmul.mubr.f32.gmra.mrb[0].mxu0 %v1081
    %v3850 = vpop.f32.mrb[0].mxu0
    %v3851 = vadd.f32 %v3721, %v3850
    %v3852 = vpop.f32.mrb[0].mxu0
    %3853 = vmatprep.mubr.f32.mxu0 0.0
    %3854 = vmatmul.mubr.f32.gmra.mrb[0].mxu0 %v1084
    %v3855 = vpop.f32.mrb[0].mxu0
    %v3856 = vadd.f32 %v3726, %v3855
    %v3857 = vpop.f32.mrb[0].mxu0
    %3858 = vmatprep.mubr.f32.mxu0 0.0
    %3859 = vmatmul.mubr.f32.gmra.mrb[0].mxu0 %v1087
    %v3860 = vpop.f32.mrb[0].mxu0
    %v3861 = vadd.f32 %v3731, %v3860
    %v3862 = vpop.f32.mrb[0].mxu0
    %3863 = vmatprep.mubr.f32.mxu0 0.0
    %3864 = vmatmul.mubr.f32.gmra.mrb[0].mxu0 %v1090
    %v3865 = vpop.f32.mrb[0].mxu0
    %v3866 = vadd.f32 %v3736, %v3865
    %v3867 = vpop.f32.mrb[0].mxu0
    %3868 = vmatprep.mubr.f32.mxu0 0.0
    %3869 = vmatmul.mubr.f32.gmra.mrb[0].mxu0 %v1093
    %v3870 = vpop.f32.mrb[0].mxu0
    %v3871 = vadd.f32 %v3741, %v3870
    %v3872 = vpop.f32.mrb[0].mxu0
    %3873 = vmatprep.mubr.f32.mxu0 0.0
    %3874 = vmatmul.mubr.f32.gmra.mrb[0].mxu0 %v1096
    %v3875 = vpop.f32.mrb[0].mxu0
    %v3876 = vadd.f32 %v3746, %v3875
    %v3877 = vpop.f32.mrb[0].mxu0
    %3878 = vmatprep.mubr.f32.mxu0 0.0
    %3879 = vmatmul.mubr.f32.gmra.mrb[0].mxu0 %v1099
    %v3880 = vpop.f32.mrb[0].mxu0
    %v3881 = vadd.f32 %v3751, %v3880
    %v3882 = vpop.f32.mrb[0].mxu0
    %3883 = vmatprep.mubr.f32.mxu0 0.0
    %3884 = vmatmul.mubr.f32.gmra.mrb[0].mxu0 %v1102
    %v3885 = vpop.f32.mrb[0].mxu0
    %v3886 = vadd.f32 %v3756, %v3885
    %v3887 = vpop.f32.mrb[0].mxu0
    %3888 = vmatprep.mubr.f32.mxu0 0.0
    %3889 = vmatmul.mubr.f32.gmra.mrb[0].mxu0 %v1105
    %v3890 = vpop.f32.mrb[0].mxu0
    %v3891 = vadd.f32 %v3761, %v3890
    %v3892 = vpop.f32.mrb[0].mxu0
    %3893 = vmatprep.mubr.f32.mxu0 0.0
    %3894 = vmatmul.mubr.f32.gmra.mrb[0].mxu0 %v1108
    %v3895 = vpop.f32.mrb[0].mxu0
    %v3896 = vadd.f32 %v3766, %v3895
    %v3897 = vpop.f32.mrb[0].mxu0
    %3898 = vmatprep.mubr.f32.mxu0 0.0
    %3899 = vmatmul.mubr.f32.gmra.mrb[0].mxu0 %v1111
    %v3900 = vpop.f32.mrb[0].mxu0
    %v3901 = vadd.f32 %v3771, %v3900
    %v3902 = vpop.f32.mrb[0].mxu0
    %3903 = vmatprep.mubr.f32.mxu0 0.0
    %3904 = vmatmul.mubr.f32.gmra.mrb[0].mxu0 %v1114
    %v3905 = vpop.f32.mrb[0].mxu0
    %v3906 = vadd.f32 %v3776, %v3905
    %v3907 = vpop.f32.mrb[0].mxu0
    %3908 = vmatprep.mubr.f32.mxu0 0.0
    %3909 = vmatmul.mubr.f32.gmra.mrb[0].mxu0 %v1117
    %v3910 = vpop.f32.mrb[0].mxu0
    %v3911 = vadd.f32 %v3781, %v3910
    %v3912 = vpop.f32.mrb[0].mxu0
    %3913 = vdwg.mxu0
    %3914 = vmatprep.subr.mxu0 0.0
    %3915 = vmatpush1.msra.mxu0 %v518
    %3916 = vmatprep.subr.mxu0 0.0
    %3917 = vmatpush1.msra.mxu0 %v519
    %3918 = vmatprep.subr.mxu0 0.0
    %3919 = vmatpush1.msra.mxu0 %v520
    %3920 = vmatprep.subr.mxu0 0.0
    %3921 = vmatpush1.msra.mxu0 %v521
    %3922 = vmatprep.subr.mxu0 0.0
    %3923 = vmatpush1.msra.mxu0 0.0
    %3924 = vmatprep.subr.mxu0 0.0
    %3925 = vmatpush1.msra.mxu0 0.0
    %3926 = vmatprep.subr.mxu0 0.0
    %3927 = vmatpush1.msra.mxu0 0.0
    %3928 = vmatprep.subr.mxu0 0.0
    %3929 = vmatpush1.msra.mxu0 0.0
    %3930 = vmatprep.subr.mxu0 0.0
    %3931 = vmatpush1.msra.mxu0 0.0
    %3932 = vmatprep.subr.mxu0 0.0
    %3933 = vmatpush1.msra.mxu0 0.0
    %3934 = vmatprep.subr.mxu0 0.0
    %3935 = vmatpush1.msra.mxu0 0.0
    %3936 = vmatprep.subr.mxu0 0.0
    %3937 = vmatpush1.msra.mxu0 0.0
    %3938 = vmatprep.subr.mxu0 0.0
    %3939 = vmatpush1.msra.mxu0 0.0
    %3940 = vmatprep.subr.mxu0 0.0
    %3941 = vmatpush1.msra.mxu0 0.0
    %3942 = vmatprep.subr.mxu0 0.0
    %3943 = vmatpush1.msra.mxu0 0.0
    %3944 = vmatprep.subr.mxu0 0.0
    %3945 = vmatpush1.msra.mxu0 0.0
    %3946 = vmatprep.subr.mxu0 0.0
    %3947 = vmatpush1.msra.mxu0 0.0
    %3948 = vmatprep.subr.mxu0 0.0
    %3949 = vmatpush1.msra.mxu0 0.0
    %3950 = vmatprep.subr.mxu0 0.0
    %3951 = vmatpush1.msra.mxu0 0.0
    %3952 = vmatprep.subr.mxu0 0.0
    %3953 = vmatpush1.msra.mxu0 0.0
    %3954 = vmatprep.subr.mxu0 0.0
    %3955 = vmatpush1.msra.mxu0 0.0
    %3956 = vmatprep.subr.mxu0 0.0
    %3957 = vmatpush1.msra.mxu0 0.0
    %3958 = vmatprep.subr.mxu0 0.0
    %3959 = vmatpush1.msra.mxu0 0.0
    %3960 = vmatprep.subr.mxu0 0.0
    %3961 = vmatpush1.msra.mxu0 0.0
    %3962 = vmatprep.subr.mxu0 0.0
    %3963 = vmatpush1.msra.mxu0 0.0
    %3964 = vmatprep.subr.mxu0 0.0
    %3965 = vmatpush1.msra.mxu0 0.0
    %3966 = vmatprep.subr.mxu0 0.0
    %3967 = vmatpush1.msra.mxu0 0.0
    %3968 = vmatprep.subr.mxu0 0.0
    %3969 = vmatpush1.msra.mxu0 0.0
    %3970 = vmatprep.subr.mxu0 0.0
    %3971 = vmatpush1.msra.mxu0 0.0
    %3972 = vmatprep.subr.mxu0 0.0
    %3973 = vmatpush1.msra.mxu0 0.0
    %3974 = vmatprep.subr.mxu0 0.0
    %3975 = vmatpush1.msra.mxu0 0.0
    %3976 = vmatprep.subr.mxu0 0.0
    %3977 = vmatpush1.msra.mxu0 0.0
    %3978 = vmatprep.mubr.f32.mxu0 0.0
    %3979 = vmatmul.mubr.f32.gmra.mrb[0].mxu0 %v1470
    %v3980 = vpop.f32.mrb[0].mxu0
    %v3981 = vadd.f32 0.0, %v3980
    %v3982 = vpop.f32.mrb[0].mxu0
    %3983 = vmatprep.mubr.f32.mxu0 0.0
    %3984 = vmatmul.mubr.f32.gmra.mrb[0].mxu0 %v1472
    %v3985 = vpop.f32.mrb[0].mxu0
    %v3986 = vadd.f32 0.0, %v3985
    %v3987 = vpop.f32.mrb[0].mxu0
    %3988 = vmatprep.mubr.f32.mxu0 0.0
    %3989 = vmatmul.mubr.f32.gmra.mrb[0].mxu0 %v1474
    %v3990 = vpop.f32.mrb[0].mxu0
    %v3991 = vadd.f32 0.0, %v3990
    %v3992 = vpop.f32.mrb[0].mxu0
    %3993 = vmatprep.mubr.f32.mxu0 0.0
    %3994 = vmatmul.mubr.f32.gmra.mrb[0].mxu0 %v1476
    %v3995 = vpop.f32.mrb[0].mxu0
    %v3996 = vadd.f32 0.0, %v3995
    %v3997 = vpop.f32.mrb[0].mxu0
    %3998 = vmatprep.mubr.f32.mxu0 0.0
    %3999 = vmatmul.mubr.f32.gmra.mrb[0].mxu0 %v1478
    %v4000 = vpop.f32.mrb[0].mxu0
    %v4001 = vadd.f32 0.0, %v4000
    %v4002 = vpop.f32.mrb[0].mxu0
    %4003 = vmatprep.mubr.f32.mxu0 0.0
    %4004 = vmatmul.mubr.f32.gmra.mrb[0].mxu0 %v1480
    %v4005 = vpop.f32.mrb[0].mxu0
    %v4006 = vadd.f32 0.0, %v4005
    %v4007 = vpop.f32.mrb[0].mxu0
    %4008 = vmatprep.mubr.f32.mxu0 0.0
    %4009 = vmatmul.mubr.f32.gmra.mrb[0].mxu0 %v1482
    %v4010 = vpop.f32.mrb[0].mxu0
    %v4011 = vadd.f32 0.0, %v4010
    %v4012 = vpop.f32.mrb[0].mxu0
    %4013 = vmatprep.mubr.f32.mxu0 0.0
    %4014 = vmatmul.mubr.f32.gmra.mrb[0].mxu0 %v1484
    %v4015 = vpop.f32.mrb[0].mxu0
    %v4016 = vadd.f32 0.0, %v4015
    %v4017 = vpop.f32.mrb[0].mxu0
    %4018 = vmatprep.mubr.f32.mxu0 0.0
    %4019 = vmatmul.mubr.f32.gmra.mrb[0].mxu0 %v1486
    %v4020 = vpop.f32.mrb[0].mxu0
    %v4021 = vadd.f32 0.0, %v4020
    %v4022 = vpop.f32.mrb[0].mxu0
    %4023 = vmatprep.mubr.f32.mxu0 0.0
    %4024 = vmatmul.mubr.f32.gmra.mrb[0].mxu0 %v1488
    %v4025 = vpop.f32.mrb[0].mxu0
    %v4026 = vadd.f32 0.0, %v4025
    %v4027 = vpop.f32.mrb[0].mxu0
    %4028 = vmatprep.mubr.f32.mxu0 0.0
    %4029 = vmatmul.mubr.f32.gmra.mrb[0].mxu0 %v1490
    %v4030 = vpop.f32.mrb[0].mxu0
    %v4031 = vadd.f32 0.0, %v4030
    %v4032 = vpop.f32.mrb[0].mxu0
    %4033 = vmatprep.mubr.f32.mxu0 0.0
    %4034 = vmatmul.mubr.f32.gmra.mrb[0].mxu0 %v1492
    %v4035 = vpop.f32.mrb[0].mxu0
    %v4036 = vadd.f32 0.0, %v4035
    %v4037 = vpop.f32.mrb[0].mxu0
    %4038 = vmatprep.mubr.f32.mxu0 0.0
    %4039 = vmatmul.mubr.f32.gmra.mrb[0].mxu0 %v1494
    %v4040 = vpop.f32.mrb[0].mxu0
    %v4041 = vadd.f32 0.0, %v4040
    %v4042 = vpop.f32.mrb[0].mxu0
    %4043 = vdwg.mxu0
    %v4044 = vadd.f32 %v3851, %v3981
    %v4045 = vadd.f32 %v3856, %v3986
    %v4046 = vadd.f32 %v3861, %v3991
    %v4047 = vadd.f32 %v3866, %v3996
    %v4048 = vadd.f32 %v3871, %v4001
    %v4049 = vadd.f32 %v3876, %v4006
    %v4050 = vadd.f32 %v3881, %v4011
    %v4051 = vadd.f32 %v3886, %v4016
    %v4052 = vadd.f32 %v3891, %v4021
    %v4053 = vadd.f32 %v3896, %v4026
    %v4054 = vadd.f32 %v3901, %v4031
    %v4055 = vadd.f32 %v3906, %v4036
    %v4056 = vadd.f32 %v3911, %v4041
    %4057 = vmatprep.subr.mxu0 0.0
    %4058 = vmatpush1.msra.mxu0 %v522
    %4059 = vmatprep.subr.mxu0 0.0
    %4060 = vmatpush1.msra.mxu0 %v523
    %4061 = vmatprep.subr.mxu0 0.0
    %4062 = vmatpush1.msra.mxu0 %v524
    %4063 = vmatprep.subr.mxu0 0.0
    %4064 = vmatpush1.msra.mxu0 %v525
    %4065 = vmatprep.subr.mxu0 0.0
    %4066 = vmatpush1.msra.mxu0 0.0
    %4067 = vmatprep.subr.mxu0 0.0
    %4068 = vmatpush1.msra.mxu0 0.0
    %4069 = vmatprep.subr.mxu0 0.0
    %4070 = vmatpush1.msra.mxu0 0.0
    %4071 = vmatprep.subr.mxu0 0.0
    %4072 = vmatpush1.msra.mxu0 0.0
    %4073 = vmatprep.subr.mxu0 0.0
    %4074 = vmatpush1.msra.mxu0 0.0
    %4075 = vmatprep.subr.mxu0 0.0
    %4076 = vmatpush1.msra.mxu0 0.0
    %4077 = vmatprep.subr.mxu0 0.0
    %4078 = vmatpush1.msra.mxu0 0.0
    %4079 = vmatprep.subr.mxu0 0.0
    %4080 = vmatpush1.msra.mxu0 0.0
    %4081 = vmatprep.subr.mxu0 0.0
    %4082 = vmatpush1.msra.mxu0 0.0
    %4083 = vmatprep.subr.mxu0 0.0
    %4084 = vmatpush1.msra.mxu0 0.0
    %4085 = vmatprep.subr.mxu0 0.0
    %4086 = vmatpush1.msra.mxu0 0.0
    %4087 = vmatprep.subr.mxu0 0.0
    %4088 = vmatpush1.msra.mxu0 0.0
    %4089 = vmatprep.subr.mxu0 0.0
    %4090 = vmatpush1.msra.mxu0 0.0
    %4091 = vmatprep.subr.mxu0 0.0
    %4092 = vmatpush1.msra.mxu0 0.0
    %4093 = vmatprep.subr.mxu0 0.0
    %4094 = vmatpush1.msra.mxu0 0.0
    %4095 = vmatprep.subr.mxu0 0.0
    %4096 = vmatpush1.msra.mxu0 0.0
    %4097 = vmatprep.subr.mxu0 0.0
    %4098 = vmatpush1.msra.mxu0 0.0
    %4099 = vmatprep.subr.mxu0 0.0
    %4100 = vmatpush1.msra.mxu0 0.0
    %4101 = vmatprep.subr.mxu0 0.0
    %4102 = vmatpush1.msra.mxu0 0.0
    %4103 = vmatprep.subr.mxu0 0.0
    %4104 = vmatpush1.msra.mxu0 0.0
    %4105 = vmatprep.subr.mxu0 0.0
    %4106 = vmatpush1.msra.mxu0 0.0
    %4107 = vmatprep.subr.mxu0 0.0
    %4108 = vmatpush1.msra.mxu0 0.0
    %4109 = vmatprep.subr.mxu0 0.0
    %4110 = vmatpush1.msra.mxu0 0.0
    %4111 = vmatprep.subr.mxu0 0.0
    %4112 = vmatpush1.msra.mxu0 0.0
    %4113 = vmatprep.subr.mxu0 0.0
    %4114 = vmatpush1.msra.mxu0 0.0
    %4115 = vmatprep.subr.mxu0 0.0
    %4116 = vmatpush1.msra.mxu0 0.0
    %4117 = vmatprep.subr.mxu0 0.0
    %4118 = vmatpush1.msra.mxu0 0.0
    %4119 = vmatprep.subr.mxu0 0.0
    %4120 = vmatpush1.msra.mxu0 0.0
    %4121 = vmatprep.mubr.f32.mxu0 0.0
    %4122 = vmatmul.mubr.f32.gmra.mrb[0].mxu0 %v1665
    %v4123 = vpop.f32.mrb[0].mxu0
    %v4124 = vadd.f32 0.0, %v4123
    %v4125 = vpop.f32.mrb[0].mxu0
    %4126 = vmatprep.mubr.f32.mxu0 0.0
    %4127 = vmatmul.mubr.f32.gmra.mrb[0].mxu0 %v1667
    %v4128 = vpop.f32.mrb[0].mxu0
    %v4129 = vadd.f32 0.0, %v4128
    %v4130 = vpop.f32.mrb[0].mxu0
    %4131 = vmatprep.mubr.f32.mxu0 0.0
    %4132 = vmatmul.mubr.f32.gmra.mrb[0].mxu0 %v1669
    %v4133 = vpop.f32.mrb[0].mxu0
    %v4134 = vadd.f32 0.0, %v4133
    %v4135 = vpop.f32.mrb[0].mxu0
    %4136 = vmatprep.mubr.f32.mxu0 0.0
    %4137 = vmatmul.mubr.f32.gmra.mrb[0].mxu0 %v1671
    %v4138 = vpop.f32.mrb[0].mxu0
    %v4139 = vadd.f32 0.0, %v4138
    %v4140 = vpop.f32.mrb[0].mxu0
    %4141 = vmatprep.mubr.f32.mxu0 0.0
    %4142 = vmatmul.mubr.f32.gmra.mrb[0].mxu0 %v1673
    %v4143 = vpop.f32.mrb[0].mxu0
    %v4144 = vadd.f32 0.0, %v4143
    %v4145 = vpop.f32.mrb[0].mxu0
    %4146 = vmatprep.mubr.f32.mxu0 0.0
    %4147 = vmatmul.mubr.f32.gmra.mrb[0].mxu0 %v1675
    %v4148 = vpop.f32.mrb[0].mxu0
    %v4149 = vadd.f32 0.0, %v4148
    %v4150 = vpop.f32.mrb[0].mxu0
    %4151 = vmatprep.mubr.f32.mxu0 0.0
    %4152 = vmatmul.mubr.f32.gmra.mrb[0].mxu0 %v1677
    %v4153 = vpop.f32.mrb[0].mxu0
    %v4154 = vadd.f32 0.0, %v4153
    %v4155 = vpop.f32.mrb[0].mxu0
    %4156 = vmatprep.mubr.f32.mxu0 0.0
    %4157 = vmatmul.mubr.f32.gmra.mrb[0].mxu0 %v1679
    %v4158 = vpop.f32.mrb[0].mxu0
    %v4159 = vadd.f32 0.0, %v4158
    %v4160 = vpop.f32.mrb[0].mxu0
    %4161 = vmatprep.mubr.f32.mxu0 0.0
    %4162 = vmatmul.mubr.f32.gmra.mrb[0].mxu0 %v1681
    %v4163 = vpop.f32.mrb[0].mxu0
    %v4164 = vadd.f32 0.0, %v4163
    %v4165 = vpop.f32.mrb[0].mxu0
    %4166 = vmatprep.mubr.f32.mxu0 0.0
    %4167 = vmatmul.mubr.f32.gmra.mrb[0].mxu0 %v1683
    %v4168 = vpop.f32.mrb[0].mxu0
    %v4169 = vadd.f32 0.0, %v4168
    %v4170 = vpop.f32.mrb[0].mxu0
    %4171 = vmatprep.mubr.f32.mxu0 0.0
    %4172 = vmatmul.mubr.f32.gmra.mrb[0].mxu0 %v1685
    %v4173 = vpop.f32.mrb[0].mxu0
    %v4174 = vadd.f32 0.0, %v4173
    %v4175 = vpop.f32.mrb[0].mxu0
    %4176 = vmatprep.mubr.f32.mxu0 0.0
    %4177 = vmatmul.mubr.f32.gmra.mrb[0].mxu0 %v1687
    %v4178 = vpop.f32.mrb[0].mxu0
    %v4179 = vadd.f32 0.0, %v4178
    %v4180 = vpop.f32.mrb[0].mxu0
    %4181 = vmatprep.mubr.f32.mxu0 0.0
    %4182 = vmatmul.mubr.f32.gmra.mrb[0].mxu0 %v1689
    %v4183 = vpop.f32.mrb[0].mxu0
    %v4184 = vadd.f32 0.0, %v4183
    %v4185 = vpop.f32.mrb[0].mxu0
    %4186 = vdwg.mxu0
    %v4187 = vadd.f32 %v4044, %v4124
    %v4188 = vadd.f32 %v4045, %v4129
    %v4189 = vadd.f32 %v4046, %v4134
    %v4190 = vadd.f32 %v4047, %v4139
    %v4191 = vadd.f32 %v4048, %v4144
    %v4192 = vadd.f32 %v4049, %v4149
    %v4193 = vadd.f32 %v4050, %v4154
    %v4194 = vadd.f32 %v4051, %v4159
    %v4195 = vadd.f32 %v4052, %v4164
    %v4196 = vadd.f32 %v4053, %v4169
    %v4197 = vadd.f32 %v4054, %v4174
    %v4198 = vadd.f32 %v4055, %v4179
    %v4199 = vadd.f32 %v4056, %v4184
    %4200 = vmatprep.subr.mxu0 0.0
    %4201 = vmatpush1.msra.mxu0 %v526
    %4202 = vmatprep.subr.mxu0 0.0
    %4203 = vmatpush1.msra.mxu0 %v527
    %4204 = vmatprep.subr.mxu0 0.0
    %4205 = vmatpush1.msra.mxu0 %v528
    %4206 = vmatprep.subr.mxu0 0.0
    %4207 = vmatpush1.msra.mxu0 %v529
    %4208 = vmatprep.subr.mxu0 0.0
    %4209 = vmatpush1.msra.mxu0 0.0
    %4210 = vmatprep.subr.mxu0 0.0
    %4211 = vmatpush1.msra.mxu0 0.0
    %4212 = vmatprep.subr.mxu0 0.0
    %4213 = vmatpush1.msra.mxu0 0.0
    %4214 = vmatprep.subr.mxu0 0.0
    %4215 = vmatpush1.msra.mxu0 0.0
    %4216 = vmatprep.subr.mxu0 0.0
    %4217 = vmatpush1.msra.mxu0 0.0
    %4218 = vmatprep.subr.mxu0 0.0
    %4219 = vmatpush1.msra.mxu0 0.0
    %4220 = vmatprep.subr.mxu0 0.0
    %4221 = vmatpush1.msra.mxu0 0.0
    %4222 = vmatprep.subr.mxu0 0.0
    %4223 = vmatpush1.msra.mxu0 0.0
    %4224 = vmatprep.subr.mxu0 0.0
    %4225 = vmatpush1.msra.mxu0 0.0
    %4226 = vmatprep.subr.mxu0 0.0
    %4227 = vmatpush1.msra.mxu0 0.0
    %4228 = vmatprep.subr.mxu0 0.0
    %4229 = vmatpush1.msra.mxu0 0.0
    %4230 = vmatprep.subr.mxu0 0.0
    %4231 = vmatpush1.msra.mxu0 0.0
    %4232 = vmatprep.subr.mxu0 0.0
    %4233 = vmatpush1.msra.mxu0 0.0
    %4234 = vmatprep.subr.mxu0 0.0
    %4235 = vmatpush1.msra.mxu0 0.0
    %4236 = vmatprep.subr.mxu0 0.0
    %4237 = vmatpush1.msra.mxu0 0.0
    %4238 = vmatprep.subr.mxu0 0.0
    %4239 = vmatpush1.msra.mxu0 0.0
    %4240 = vmatprep.subr.mxu0 0.0
    %4241 = vmatpush1.msra.mxu0 0.0
    %4242 = vmatprep.subr.mxu0 0.0
    %4243 = vmatpush1.msra.mxu0 0.0
    %4244 = vmatprep.subr.mxu0 0.0
    %4245 = vmatpush1.msra.mxu0 0.0
    %4246 = vmatprep.subr.mxu0 0.0
    %4247 = vmatpush1.msra.mxu0 0.0
    %4248 = vmatprep.subr.mxu0 0.0
    %4249 = vmatpush1.msra.mxu0 0.0
    %4250 = vmatprep.subr.mxu0 0.0
    %4251 = vmatpush1.msra.mxu0 0.0
    %4252 = vmatprep.subr.mxu0 0.0
    %4253 = vmatpush1.msra.mxu0 0.0
    %4254 = vmatprep.subr.mxu0 0.0
    %4255 = vmatpush1.msra.mxu0 0.0
    %4256 = vmatprep.subr.mxu0 0.0
    %4257 = vmatpush1.msra.mxu0 0.0
    %4258 = vmatprep.subr.mxu0 0.0
    %4259 = vmatpush1.msra.mxu0 0.0
    %4260 = vmatprep.subr.mxu0 0.0
    %4261 = vmatpush1.msra.mxu0 0.0
    %4262 = vmatprep.subr.mxu0 0.0
    %4263 = vmatpush1.msra.mxu0 0.0
    %4264 = vmatprep.mubr.f32.mxu0 0.0
    %4265 = vmatmul.mubr.f32.gmra.mrb[0].mxu0 %v1860
    %v4266 = vpop.f32.mrb[0].mxu0
    %v4267 = vadd.f32 0.0, %v4266
    %v4268 = vpop.f32.mrb[0].mxu0
    %4269 = vmatprep.mubr.f32.mxu0 0.0
    %4270 = vmatmul.mubr.f32.gmra.mrb[0].mxu0 %v1862
    %v4271 = vpop.f32.mrb[0].mxu0
    %v4272 = vadd.f32 0.0, %v4271
    %v4273 = vpop.f32.mrb[0].mxu0
    %4274 = vmatprep.mubr.f32.mxu0 0.0
    %4275 = vmatmul.mubr.f32.gmra.mrb[0].mxu0 %v1864
    %v4276 = vpop.f32.mrb[0].mxu0
    %v4277 = vadd.f32 0.0, %v4276
    %v4278 = vpop.f32.mrb[0].mxu0
    %4279 = vmatprep.mubr.f32.mxu0 0.0
    %4280 = vmatmul.mubr.f32.gmra.mrb[0].mxu0 %v1866
    %v4281 = vpop.f32.mrb[0].mxu0
    %v4282 = vadd.f32 0.0, %v4281
    %v4283 = vpop.f32.mrb[0].mxu0
    %4284 = vmatprep.mubr.f32.mxu0 0.0
    %4285 = vmatmul.mubr.f32.gmra.mrb[0].mxu0 %v1868
    %v4286 = vpop.f32.mrb[0].mxu0
    %v4287 = vadd.f32 0.0, %v4286
    %v4288 = vpop.f32.mrb[0].mxu0
    %4289 = vmatprep.mubr.f32.mxu0 0.0
    %4290 = vmatmul.mubr.f32.gmra.mrb[0].mxu0 %v1870
    %v4291 = vpop.f32.mrb[0].mxu0
    %v4292 = vadd.f32 0.0, %v4291
    %v4293 = vpop.f32.mrb[0].mxu0
    %4294 = vmatprep.mubr.f32.mxu0 0.0
    %4295 = vmatmul.mubr.f32.gmra.mrb[0].mxu0 %v1872
    %v4296 = vpop.f32.mrb[0].mxu0
    %v4297 = vadd.f32 0.0, %v4296
    %v4298 = vpop.f32.mrb[0].mxu0
    %4299 = vmatprep.mubr.f32.mxu0 0.0
    %4300 = vmatmul.mubr.f32.gmra.mrb[0].mxu0 %v1874
    %v4301 = vpop.f32.mrb[0].mxu0
    %v4302 = vadd.f32 0.0, %v4301
    %v4303 = vpop.f32.mrb[0].mxu0
    %4304 = vmatprep.mubr.f32.mxu0 0.0
    %4305 = vmatmul.mubr.f32.gmra.mrb[0].mxu0 %v1876
    %v4306 = vpop.f32.mrb[0].mxu0
    %v4307 = vadd.f32 0.0, %v4306
    %v4308 = vpop.f32.mrb[0].mxu0
    %4309 = vmatprep.mubr.f32.mxu0 0.0
    %4310 = vmatmul.mubr.f32.gmra.mrb[0].mxu0 %v1878
    %v4311 = vpop.f32.mrb[0].mxu0
    %v4312 = vadd.f32 0.0, %v4311
    %v4313 = vpop.f32.mrb[0].mxu0
    %4314 = vmatprep.mubr.f32.mxu0 0.0
    %4315 = vmatmul.mubr.f32.gmra.mrb[0].mxu0 %v1880
    %v4316 = vpop.f32.mrb[0].mxu0
    %v4317 = vadd.f32 0.0, %v4316
    %v4318 = vpop.f32.mrb[0].mxu0
    %4319 = vmatprep.mubr.f32.mxu0 0.0
    %4320 = vmatmul.mubr.f32.gmra.mrb[0].mxu0 %v1882
    %v4321 = vpop.f32.mrb[0].mxu0
    %v4322 = vadd.f32 0.0, %v4321
    %v4323 = vpop.f32.mrb[0].mxu0
    %4324 = vmatprep.mubr.f32.mxu0 0.0
    %4325 = vmatmul.mubr.f32.gmra.mrb[0].mxu0 %v1884
    %v4326 = vpop.f32.mrb[0].mxu0
    %v4327 = vadd.f32 0.0, %v4326
    %v4328 = vpop.f32.mrb[0].mxu0
    %4329 = vdwg.mxu0
    %v4330 = vadd.f32 %v4187, %v4267
    %v4331 = vadd.f32 %v4188, %v4272
    %v4332 = vadd.f32 %v4189, %v4277
    %v4333 = vadd.f32 %v4190, %v4282
    %v4334 = vadd.f32 %v4191, %v4287
    %v4335 = vadd.f32 %v4192, %v4292
    %v4336 = vadd.f32 %v4193, %v4297
    %v4337 = vadd.f32 %v4194, %v4302
    %v4338 = vadd.f32 %v4195, %v4307
    %v4339 = vadd.f32 %v4196, %v4312
    %v4340 = vadd.f32 %v4197, %v4317
    %v4341 = vadd.f32 %v4198, %v4322
    %v4342 = vadd.f32 %v4199, %v4327
    %4343 = vmatprep.subr.mxu0 0.0
    %4344 = vmatpush1.msra.mxu0 %v530
    %4345 = vmatprep.subr.mxu0 0.0
    %4346 = vmatpush1.msra.mxu0 %v531
    %4347 = vmatprep.subr.mxu0 0.0
    %4348 = vmatpush1.msra.mxu0 %v532
    %4349 = vmatprep.subr.mxu0 0.0
    %4350 = vmatpush1.msra.mxu0 %v533
    %4351 = vmatprep.subr.mxu0 0.0
    %4352 = vmatpush1.msra.mxu0 0.0
    %4353 = vmatprep.subr.mxu0 0.0
    %4354 = vmatpush1.msra.mxu0 0.0
    %4355 = vmatprep.subr.mxu0 0.0
    %4356 = vmatpush1.msra.mxu0 0.0
    %4357 = vmatprep.subr.mxu0 0.0
    %4358 = vmatpush1.msra.mxu0 0.0
    %4359 = vmatprep.subr.mxu0 0.0
    %4360 = vmatpush1.msra.mxu0 0.0
    %4361 = vmatprep.subr.mxu0 0.0
    %4362 = vmatpush1.msra.mxu0 0.0
    %4363 = vmatprep.subr.mxu0 0.0
    %4364 = vmatpush1.msra.mxu0 0.0
    %4365 = vmatprep.subr.mxu0 0.0
    %4366 = vmatpush1.msra.mxu0 0.0
    %4367 = vmatprep.subr.mxu0 0.0
    %4368 = vmatpush1.msra.mxu0 0.0
    %4369 = vmatprep.subr.mxu0 0.0
    %4370 = vmatpush1.msra.mxu0 0.0
    %4371 = vmatprep.subr.mxu0 0.0
    %4372 = vmatpush1.msra.mxu0 0.0
    %4373 = vmatprep.subr.mxu0 0.0
    %4374 = vmatpush1.msra.mxu0 0.0
    %4375 = vmatprep.subr.mxu0 0.0
    %4376 = vmatpush1.msra.mxu0 0.0
    %4377 = vmatprep.subr.mxu0 0.0
    %4378 = vmatpush1.msra.mxu0 0.0
    %4379 = vmatprep.subr.mxu0 0.0
    %4380 = vmatpush1.msra.mxu0 0.0
    %4381 = vmatprep.subr.mxu0 0.0
    %4382 = vmatpush1.msra.mxu0 0.0
    %4383 = vmatprep.subr.mxu0 0.0
    %4384 = vmatpush1.msra.mxu0 0.0
    %4385 = vmatprep.subr.mxu0 0.0
    %4386 = vmatpush1.msra.mxu0 0.0
    %4387 = vmatprep.subr.mxu0 0.0
    %4388 = vmatpush1.msra.mxu0 0.0
    %4389 = vmatprep.subr.mxu0 0.0
    %4390 = vmatpush1.msra.mxu0 0.0
    %4391 = vmatprep.subr.mxu0 0.0
    %4392 = vmatpush1.msra.mxu0 0.0
    %4393 = vmatprep.subr.mxu0 0.0
    %4394 = vmatpush1.msra.mxu0 0.0
    %4395 = vmatprep.subr.mxu0 0.0
    %4396 = vmatpush1.msra.mxu0 0.0
    %4397 = vmatprep.subr.mxu0 0.0
    %4398 = vmatpush1.msra.mxu0 0.0
    %4399 = vmatprep.subr.mxu0 0.0
    %4400 = vmatpush1.msra.mxu0 0.0
    %4401 = vmatprep.subr.mxu0 0.0
    %4402 = vmatpush1.msra.mxu0 0.0
    %4403 = vmatprep.subr.mxu0 0.0
    %4404 = vmatpush1.msra.mxu0 0.0
    %4405 = vmatprep.subr.mxu0 0.0
    %4406 = vmatpush1.msra.mxu0 0.0
    %4407 = vmatprep.mubr.f32.mxu0 0.0
    %4408 = vmatmul.mubr.f32.gmra.mrb[0].mxu0 %v2055
    %v4409 = vpop.f32.mrb[0].mxu0
    %v4410 = vadd.f32 0.0, %v4409
    %v4411 = vpop.f32.mrb[0].mxu0
    %4412 = vmatprep.mubr.f32.mxu0 0.0
    %4413 = vmatmul.mubr.f32.gmra.mrb[0].mxu0 %v2057
    %v4414 = vpop.f32.mrb[0].mxu0
    %v4415 = vadd.f32 0.0, %v4414
    %v4416 = vpop.f32.mrb[0].mxu0
    %4417 = vmatprep.mubr.f32.mxu0 0.0
    %4418 = vmatmul.mubr.f32.gmra.mrb[0].mxu0 %v2059
    %v4419 = vpop.f32.mrb[0].mxu0
    %v4420 = vadd.f32 0.0, %v4419
    %v4421 = vpop.f32.mrb[0].mxu0
    %4422 = vmatprep.mubr.f32.mxu0 0.0
    %4423 = vmatmul.mubr.f32.gmra.mrb[0].mxu0 %v2061
    %v4424 = vpop.f32.mrb[0].mxu0
    %v4425 = vadd.f32 0.0, %v4424
    %v4426 = vpop.f32.mrb[0].mxu0
    %4427 = vmatprep.mubr.f32.mxu0 0.0
    %4428 = vmatmul.mubr.f32.gmra.mrb[0].mxu0 %v2063
    %v4429 = vpop.f32.mrb[0].mxu0
    %v4430 = vadd.f32 0.0, %v4429
    %v4431 = vpop.f32.mrb[0].mxu0
    %4432 = vmatprep.mubr.f32.mxu0 0.0
    %4433 = vmatmul.mubr.f32.gmra.mrb[0].mxu0 %v2065
    %v4434 = vpop.f32.mrb[0].mxu0
    %v4435 = vadd.f32 0.0, %v4434
    %v4436 = vpop.f32.mrb[0].mxu0
    %4437 = vmatprep.mubr.f32.mxu0 0.0
    %4438 = vmatmul.mubr.f32.gmra.mrb[0].mxu0 %v2067
    %v4439 = vpop.f32.mrb[0].mxu0
    %v4440 = vadd.f32 0.0, %v4439
    %v4441 = vpop.f32.mrb[0].mxu0
    %4442 = vmatprep.mubr.f32.mxu0 0.0
    %4443 = vmatmul.mubr.f32.gmra.mrb[0].mxu0 %v2069
    %v4444 = vpop.f32.mrb[0].mxu0
    %v4445 = vadd.f32 0.0, %v4444
    %v4446 = vpop.f32.mrb[0].mxu0
    %4447 = vmatprep.mubr.f32.mxu0 0.0
    %4448 = vmatmul.mubr.f32.gmra.mrb[0].mxu0 %v2071
    %v4449 = vpop.f32.mrb[0].mxu0
    %v4450 = vadd.f32 0.0, %v4449
    %v4451 = vpop.f32.mrb[0].mxu0
    %4452 = vmatprep.mubr.f32.mxu0 0.0
    %4453 = vmatmul.mubr.f32.gmra.mrb[0].mxu0 %v2073
    %v4454 = vpop.f32.mrb[0].mxu0
    %v4455 = vadd.f32 0.0, %v4454
    %v4456 = vpop.f32.mrb[0].mxu0
    %4457 = vmatprep.mubr.f32.mxu0 0.0
    %4458 = vmatmul.mubr.f32.gmra.mrb[0].mxu0 %v2075
    %v4459 = vpop.f32.mrb[0].mxu0
    %v4460 = vadd.f32 0.0, %v4459
    %v4461 = vpop.f32.mrb[0].mxu0
    %4462 = vmatprep.mubr.f32.mxu0 0.0
    %4463 = vmatmul.mubr.f32.gmra.mrb[0].mxu0 %v2077
    %v4464 = vpop.f32.mrb[0].mxu0
    %v4465 = vadd.f32 0.0, %v4464
    %v4466 = vpop.f32.mrb[0].mxu0
    %4467 = vmatprep.mubr.f32.mxu0 0.0
    %4468 = vmatmul.mubr.f32.gmra.mrb[0].mxu0 %v2079
    %v4469 = vpop.f32.mrb[0].mxu0
    %v4470 = vadd.f32 0.0, %v4469
    %v4471 = vpop.f32.mrb[0].mxu0
    %4472 = vdwg.mxu0
    %v4473 = vadd.f32 %v4330, %v4410
    %v4474 = vadd.f32 %v4331, %v4415
    %v4475 = vadd.f32 %v4332, %v4420
    %v4476 = vadd.f32 %v4333, %v4425
    %v4477 = vadd.f32 %v4334, %v4430
    %v4478 = vadd.f32 %v4335, %v4435
    %v4479 = vadd.f32 %v4336, %v4440
    %v4480 = vadd.f32 %v4337, %v4445
    %v4481 = vadd.f32 %v4338, %v4450
    %v4482 = vadd.f32 %v4339, %v4455
    %v4483 = vadd.f32 %v4340, %v4460
    %v4484 = vadd.f32 %v4341, %v4465
    %v4485 = vadd.f32 %v4342, %v4470
    %4486 = vrot.lane.b32.xlu0 %v460, 64
    %v4487 = vpop.permute.xlu0 %4486
    %4488 = vrot.lane.b32.xlu0 %v464, 64
    %v4489 = vpop.permute.xlu0 %4488
    %4490 = vrot.lane.b32.xlu0 %v468, 64
    %v4491 = vpop.permute.xlu0 %4490
    %4492 = vrot.lane.b32.xlu0 %v472, 64
    %v4493 = vpop.permute.xlu0 %4492
    %4494 = vrot.lane.b32.xlu0 %v476, 64
    %v4495 = vpop.permute.xlu0 %4494
    %4496 = vrot.lane.b32.xlu0 %v480, 64
    %v4497 = vpop.permute.xlu0 %4496
    %4498 = vrot.lane.b32.xlu0 %v484, 64
    %v4499 = vpop.permute.xlu0 %4498
    %4500 = vrot.lane.b32.xlu0 %v488, 64
    %v4501 = vpop.permute.xlu0 %4500
    %4502 = vrot.lane.b32.xlu0 %v492, 64
    %v4503 = vpop.permute.xlu0 %4502
    %4504 = vrot.lane.b32.xlu0 %v496, 64
    %v4505 = vpop.permute.xlu0 %4504
    %4506 = vrot.lane.b32.xlu0 %v500, 64
    %v4507 = vpop.permute.xlu0 %4506
    %4508 = vrot.lane.b32.xlu0 %v504, 64
    %v4509 = vpop.permute.xlu0 %4508
    %4510 = vrot.lane.b32.xlu0 %v508, 64
    %v4511 = vpop.permute.xlu0 %4510
    %v4512 = vsel %vm546, %v4487, 0
    %v4514 = vsel %vm546, %v4489, 0
    %v4516 = vsel %vm546, %v4491, 0
    %v4518 = vsel %vm546, %v4493, 0
    %v4520 = vsel %vm546, %v4495, 0
    %v4522 = vsel %vm546, %v4497, 0
    %v4524 = vsel %vm546, %v4499, 0
    %v4526 = vsel %vm546, %v4501, 0
    %v4528 = vsel %vm546, %v4503, 0
    %v4530 = vsel %vm546, %v4505, 0
    %v4532 = vsel %vm546, %v4507, 0
    %v4534 = vsel %vm546, %v4509, 0
    %v4536 = vsel %vm546, %v4511, 0
    %4538 = vmatprep.subr.mxu0 0.0
    %4539 = vmatpush1.msra.mxu0 %v534
    %4540 = vmatprep.subr.mxu0 0.0
    %4541 = vmatpush1.msra.mxu0 %v535
    %4542 = vmatprep.subr.mxu0 0.0
    %4543 = vmatpush1.msra.mxu0 %v536
    %4544 = vmatprep.subr.mxu0 0.0
    %4545 = vmatpush1.msra.mxu0 %v537
    %4546 = vmatprep.subr.mxu0 0.0
    %4547 = vmatpush1.msra.mxu0 0.0
    %4548 = vmatprep.subr.mxu0 0.0
    %4549 = vmatpush1.msra.mxu0 0.0
    %4550 = vmatprep.subr.mxu0 0.0
    %4551 = vmatpush1.msra.mxu0 0.0
    %4552 = vmatprep.subr.mxu0 0.0
    %4553 = vmatpush1.msra.mxu0 0.0
    %4554 = vmatprep.subr.mxu0 0.0
    %4555 = vmatpush1.msra.mxu0 0.0
    %4556 = vmatprep.subr.mxu0 0.0
    %4557 = vmatpush1.msra.mxu0 0.0
    %4558 = vmatprep.subr.mxu0 0.0
    %4559 = vmatpush1.msra.mxu0 0.0
    %4560 = vmatprep.subr.mxu0 0.0
    %4561 = vmatpush1.msra.mxu0 0.0
    %4562 = vmatprep.subr.mxu0 0.0
    %4563 = vmatpush1.msra.mxu0 0.0
    %4564 = vmatprep.subr.mxu0 0.0
    %4565 = vmatpush1.msra.mxu0 0.0
    %4566 = vmatprep.subr.mxu0 0.0
    %4567 = vmatpush1.msra.mxu0 0.0
    %4568 = vmatprep.subr.mxu0 0.0
    %4569 = vmatpush1.msra.mxu0 0.0
    %4570 = vmatprep.subr.mxu0 0.0
    %4571 = vmatpush1.msra.mxu0 0.0
    %4572 = vmatprep.subr.mxu0 0.0
    %4573 = vmatpush1.msra.mxu0 0.0
    %4574 = vmatprep.subr.mxu0 0.0
    %4575 = vmatpush1.msra.mxu0 0.0
    %4576 = vmatprep.subr.mxu0 0.0
    %4577 = vmatpush1.msra.mxu0 0.0
    %4578 = vmatprep.subr.mxu0 0.0
    %4579 = vmatpush1.msra.mxu0 0.0
    %4580 = vmatprep.subr.mxu0 0.0
    %4581 = vmatpush1.msra.mxu0 0.0
    %4582 = vmatprep.subr.mxu0 0.0
    %4583 = vmatpush1.msra.mxu0 0.0
    %4584 = vmatprep.subr.mxu0 0.0
    %4585 = vmatpush1.msra.mxu0 0.0
    %4586 = vmatprep.subr.mxu0 0.0
    %4587 = vmatpush1.msra.mxu0 0.0
    %4588 = vmatprep.subr.mxu0 0.0
    %4589 = vmatpush1.msra.mxu0 0.0
    %4590 = vmatprep.subr.mxu0 0.0
    %4591 = vmatpush1.msra.mxu0 0.0
    %4592 = vmatprep.subr.mxu0 0.0
    %4593 = vmatpush1.msra.mxu0 0.0
    %4594 = vmatprep.subr.mxu0 0.0
    %4595 = vmatpush1.msra.mxu0 0.0
    %4596 = vmatprep.subr.mxu0 0.0
    %4597 = vmatpush1.msra.mxu0 0.0
    %4598 = vmatprep.subr.mxu0 0.0
    %4599 = vmatpush1.msra.mxu0 0.0
    %4600 = vmatprep.subr.mxu0 0.0
    %4601 = vmatpush1.msra.mxu0 0.0
    %4602 = vmatprep.mubr.f32.mxu0 0.0
    %4603 = vmatmul.mubr.f32.gmra.mrb[0].mxu0 %v4512
    %v4604 = vpop.f32.mrb[0].mxu0
    %v4605 = vadd.f32 0.0, %v4604
    %v4606 = vpop.f32.mrb[0].mxu0
    %4607 = vmatprep.mubr.f32.mxu0 0.0
    %4608 = vmatmul.mubr.f32.gmra.mrb[0].mxu0 %v4514
    %v4609 = vpop.f32.mrb[0].mxu0
    %v4610 = vadd.f32 0.0, %v4609
    %v4611 = vpop.f32.mrb[0].mxu0
    %4612 = vmatprep.mubr.f32.mxu0 0.0
    %4613 = vmatmul.mubr.f32.gmra.mrb[0].mxu0 %v4516
    %v4614 = vpop.f32.mrb[0].mxu0
    %v4615 = vadd.f32 0.0, %v4614
    %v4616 = vpop.f32.mrb[0].mxu0
    %4617 = vmatprep.mubr.f32.mxu0 0.0
    %4618 = vmatmul.mubr.f32.gmra.mrb[0].mxu0 %v4518
    %v4619 = vpop.f32.mrb[0].mxu0
    %v4620 = vadd.f32 0.0, %v4619
    %v4621 = vpop.f32.mrb[0].mxu0
    %4622 = vmatprep.mubr.f32.mxu0 0.0
    %4623 = vmatmul.mubr.f32.gmra.mrb[0].mxu0 %v4520
    %v4624 = vpop.f32.mrb[0].mxu0
    %v4625 = vadd.f32 0.0, %v4624
    %v4626 = vpop.f32.mrb[0].mxu0
    %4627 = vmatprep.mubr.f32.mxu0 0.0
    %4628 = vmatmul.mubr.f32.gmra.mrb[0].mxu0 %v4522
    %v4629 = vpop.f32.mrb[0].mxu0
    %v4630 = vadd.f32 0.0, %v4629
    %v4631 = vpop.f32.mrb[0].mxu0
    %4632 = vmatprep.mubr.f32.mxu0 0.0
    %4633 = vmatmul.mubr.f32.gmra.mrb[0].mxu0 %v4524
    %v4634 = vpop.f32.mrb[0].mxu0
    %v4635 = vadd.f32 0.0, %v4634
    %v4636 = vpop.f32.mrb[0].mxu0
    %4637 = vmatprep.mubr.f32.mxu0 0.0
    %4638 = vmatmul.mubr.f32.gmra.mrb[0].mxu0 %v4526
    %v4639 = vpop.f32.mrb[0].mxu0
    %v4640 = vadd.f32 0.0, %v4639
    %v4641 = vpop.f32.mrb[0].mxu0
    %4642 = vmatprep.mubr.f32.mxu0 0.0
    %4643 = vmatmul.mubr.f32.gmra.mrb[0].mxu0 %v4528
    %v4644 = vpop.f32.mrb[0].mxu0
    %v4645 = vadd.f32 0.0, %v4644
    %v4646 = vpop.f32.mrb[0].mxu0
    %4647 = vmatprep.mubr.f32.mxu0 0.0
    %4648 = vmatmul.mubr.f32.gmra.mrb[0].mxu0 %v4530
    %v4649 = vpop.f32.mrb[0].mxu0
    %v4650 = vadd.f32 0.0, %v4649
    %v4651 = vpop.f32.mrb[0].mxu0
    %4652 = vmatprep.mubr.f32.mxu0 0.0
    %4653 = vmatmul.mubr.f32.gmra.mrb[0].mxu0 %v4532
    %v4654 = vpop.f32.mrb[0].mxu0
    %v4655 = vadd.f32 0.0, %v4654
    %v4656 = vpop.f32.mrb[0].mxu0
    %4657 = vmatprep.mubr.f32.mxu0 0.0
    %4658 = vmatmul.mubr.f32.gmra.mrb[0].mxu0 %v4534
    %v4659 = vpop.f32.mrb[0].mxu0
    %v4660 = vadd.f32 0.0, %v4659
    %v4661 = vpop.f32.mrb[0].mxu0
    %4662 = vmatprep.mubr.f32.mxu0 0.0
    %4663 = vmatmul.mubr.f32.gmra.mrb[0].mxu0 %v4536
    %v4664 = vpop.f32.mrb[0].mxu0
    %v4665 = vadd.f32 0.0, %v4664
    %v4666 = vpop.f32.mrb[0].mxu0
    %4667 = vdwg.mxu0
    %v4668 = vadd.f32 %v4473, %v4605
    %v4669 = vadd.f32 %v4474, %v4610
    %v4670 = vadd.f32 %v4475, %v4615
    %v4671 = vadd.f32 %v4476, %v4620
    %v4672 = vadd.f32 %v4477, %v4625
    %v4673 = vadd.f32 %v4478, %v4630
    %v4674 = vadd.f32 %v4479, %v4635
    %v4675 = vadd.f32 %v4480, %v4640
    %v4676 = vadd.f32 %v4481, %v4645
    %v4677 = vadd.f32 %v4482, %v4650
    %v4678 = vadd.f32 %v4483, %v4655
    %v4679 = vadd.f32 %v4484, %v4660
    %v4680 = vadd.f32 %v4485, %v4665
    %4681 = vrot.lane.b32.xlu0 %v461, 64
    %v4682 = vpop.permute.xlu0 %4681
    %4683 = vrot.lane.b32.xlu0 %v465, 64
    %v4684 = vpop.permute.xlu0 %4683
    %4685 = vrot.lane.b32.xlu0 %v469, 64
    %v4686 = vpop.permute.xlu0 %4685
    %4687 = vrot.lane.b32.xlu0 %v473, 64
    %v4688 = vpop.permute.xlu0 %4687
    %4689 = vrot.lane.b32.xlu0 %v477, 64
    %v4690 = vpop.permute.xlu0 %4689
    %4691 = vrot.lane.b32.xlu0 %v481, 64
    %v4692 = vpop.permute.xlu0 %4691
    %4693 = vrot.lane.b32.xlu0 %v485, 64
    %v4694 = vpop.permute.xlu0 %4693
    %4695 = vrot.lane.b32.xlu0 %v489, 64
    %v4696 = vpop.permute.xlu0 %4695
    %4697 = vrot.lane.b32.xlu0 %v493, 64
    %v4698 = vpop.permute.xlu0 %4697
    %4699 = vrot.lane.b32.xlu0 %v497, 64
    %v4700 = vpop.permute.xlu0 %4699
    %4701 = vrot.lane.b32.xlu0 %v501, 64
    %v4702 = vpop.permute.xlu0 %4701
    %4703 = vrot.lane.b32.xlu0 %v505, 64
    %v4704 = vpop.permute.xlu0 %4703
    %4705 = vrot.lane.b32.xlu0 %v509, 64
    %v4706 = vpop.permute.xlu0 %4705
    %v4707 = vsel %vm546, %v4682, 0
    %v4709 = vsel %vm546, %v4684, 0
    %v4711 = vsel %vm546, %v4686, 0
    %v4713 = vsel %vm546, %v4688, 0
    %v4715 = vsel %vm546, %v4690, 0
    %v4717 = vsel %vm546, %v4692, 0
    %v4719 = vsel %vm546, %v4694, 0
    %v4721 = vsel %vm546, %v4696, 0
    %v4723 = vsel %vm546, %v4698, 0
    %v4725 = vsel %vm546, %v4700, 0
    %v4727 = vsel %vm546, %v4702, 0
    %v4729 = vsel %vm546, %v4704, 0
    %v4731 = vsel %vm546, %v4706, 0
    %4733 = vmatprep.subr.mxu0 0.0
    %4734 = vmatpush1.msra.mxu0 %v538
    %4735 = vmatprep.subr.mxu0 0.0
    %4736 = vmatpush1.msra.mxu0 %v539
    %4737 = vmatprep.subr.mxu0 0.0
    %4738 = vmatpush1.msra.mxu0 %v540
    %4739 = vmatprep.subr.mxu0 0.0
    %4740 = vmatpush1.msra.mxu0 %v541
    %4741 = vmatprep.subr.mxu0 0.0
    %4742 = vmatpush1.msra.mxu0 0.0
    %4743 = vmatprep.subr.mxu0 0.0
    %4744 = vmatpush1.msra.mxu0 0.0
    %4745 = vmatprep.subr.mxu0 0.0
    %4746 = vmatpush1.msra.mxu0 0.0
    %4747 = vmatprep.subr.mxu0 0.0
    %4748 = vmatpush1.msra.mxu0 0.0
    %4749 = vmatprep.subr.mxu0 0.0
    %4750 = vmatpush1.msra.mxu0 0.0
    %4751 = vmatprep.subr.mxu0 0.0
    %4752 = vmatpush1.msra.mxu0 0.0
    %4753 = vmatprep.subr.mxu0 0.0
    %4754 = vmatpush1.msra.mxu0 0.0
    %4755 = vmatprep.subr.mxu0 0.0
    %4756 = vmatpush1.msra.mxu0 0.0
    %4757 = vmatprep.subr.mxu0 0.0
    %4758 = vmatpush1.msra.mxu0 0.0
    %4759 = vmatprep.subr.mxu0 0.0
    %4760 = vmatpush1.msra.mxu0 0.0
    %4761 = vmatprep.subr.mxu0 0.0
    %4762 = vmatpush1.msra.mxu0 0.0
    %4763 = vmatprep.subr.mxu0 0.0
    %4764 = vmatpush1.msra.mxu0 0.0
    %4765 = vmatprep.subr.mxu0 0.0
    %4766 = vmatpush1.msra.mxu0 0.0
    %4767 = vmatprep.subr.mxu0 0.0
    %4768 = vmatpush1.msra.mxu0 0.0
    %4769 = vmatprep.subr.mxu0 0.0
    %4770 = vmatpush1.msra.mxu0 0.0
    %4771 = vmatprep.subr.mxu0 0.0
    %4772 = vmatpush1.msra.mxu0 0.0
    %4773 = vmatprep.subr.mxu0 0.0
    %4774 = vmatpush1.msra.mxu0 0.0
    %4775 = vmatprep.subr.mxu0 0.0
    %4776 = vmatpush1.msra.mxu0 0.0
    %4777 = vmatprep.subr.mxu0 0.0
    %4778 = vmatpush1.msra.mxu0 0.0
    %4779 = vmatprep.subr.mxu0 0.0
    %4780 = vmatpush1.msra.mxu0 0.0
    %4781 = vmatprep.subr.mxu0 0.0
    %4782 = vmatpush1.msra.mxu0 0.0
    %4783 = vmatprep.subr.mxu0 0.0
    %4784 = vmatpush1.msra.mxu0 0.0
    %4785 = vmatprep.subr.mxu0 0.0
    %4786 = vmatpush1.msra.mxu0 0.0
    %4787 = vmatprep.subr.mxu0 0.0
    %4788 = vmatpush1.msra.mxu0 0.0
    %4789 = vmatprep.subr.mxu0 0.0
    %4790 = vmatpush1.msra.mxu0 0.0
    %4791 = vmatprep.subr.mxu0 0.0
    %4792 = vmatpush1.msra.mxu0 0.0
    %4793 = vmatprep.subr.mxu0 0.0
    %4794 = vmatpush1.msra.mxu0 0.0
    %4795 = vmatprep.subr.mxu0 0.0
    %4796 = vmatpush1.msra.mxu0 0.0
    %4797 = vmatprep.mubr.f32.mxu0 0.0
    %4798 = vmatmul.mubr.f32.gmra.mrb[0].mxu0 %v4707
    %v4799 = vpop.f32.mrb[0].mxu0
    %v4800 = vadd.f32 0.0, %v4799
    %v4801 = vpop.f32.mrb[0].mxu0
    %4802 = vmatprep.mubr.f32.mxu0 0.0
    %4803 = vmatmul.mubr.f32.gmra.mrb[0].mxu0 %v4709
    %v4804 = vpop.f32.mrb[0].mxu0
    %v4805 = vadd.f32 0.0, %v4804
    %v4806 = vpop.f32.mrb[0].mxu0
    %4807 = vmatprep.mubr.f32.mxu0 0.0
    %4808 = vmatmul.mubr.f32.gmra.mrb[0].mxu0 %v4711
    %v4809 = vpop.f32.mrb[0].mxu0
    %v4810 = vadd.f32 0.0, %v4809
    %v4811 = vpop.f32.mrb[0].mxu0
    %4812 = vmatprep.mubr.f32.mxu0 0.0
    %4813 = vmatmul.mubr.f32.gmra.mrb[0].mxu0 %v4713
    %v4814 = vpop.f32.mrb[0].mxu0
    %v4815 = vadd.f32 0.0, %v4814
    %v4816 = vpop.f32.mrb[0].mxu0
    %4817 = vmatprep.mubr.f32.mxu0 0.0
    %4818 = vmatmul.mubr.f32.gmra.mrb[0].mxu0 %v4715
    %v4819 = vpop.f32.mrb[0].mxu0
    %v4820 = vadd.f32 0.0, %v4819
    %v4821 = vpop.f32.mrb[0].mxu0
    %4822 = vmatprep.mubr.f32.mxu0 0.0
    %4823 = vmatmul.mubr.f32.gmra.mrb[0].mxu0 %v4717
    %v4824 = vpop.f32.mrb[0].mxu0
    %v4825 = vadd.f32 0.0, %v4824
    %v4826 = vpop.f32.mrb[0].mxu0
    %4827 = vmatprep.mubr.f32.mxu0 0.0
    %4828 = vmatmul.mubr.f32.gmra.mrb[0].mxu0 %v4719
    %v4829 = vpop.f32.mrb[0].mxu0
    %v4830 = vadd.f32 0.0, %v4829
    %v4831 = vpop.f32.mrb[0].mxu0
    %4832 = vmatprep.mubr.f32.mxu0 0.0
    %4833 = vmatmul.mubr.f32.gmra.mrb[0].mxu0 %v4721
    %v4834 = vpop.f32.mrb[0].mxu0
    %v4835 = vadd.f32 0.0, %v4834
    %v4836 = vpop.f32.mrb[0].mxu0
    %4837 = vmatprep.mubr.f32.mxu0 0.0
    %4838 = vmatmul.mubr.f32.gmra.mrb[0].mxu0 %v4723
    %v4839 = vpop.f32.mrb[0].mxu0
    %v4840 = vadd.f32 0.0, %v4839
    %v4841 = vpop.f32.mrb[0].mxu0
    %4842 = vmatprep.mubr.f32.mxu0 0.0
    %4843 = vmatmul.mubr.f32.gmra.mrb[0].mxu0 %v4725
    %v4844 = vpop.f32.mrb[0].mxu0
    %v4845 = vadd.f32 0.0, %v4844
    %v4846 = vpop.f32.mrb[0].mxu0
    %4847 = vmatprep.mubr.f32.mxu0 0.0
    %4848 = vmatmul.mubr.f32.gmra.mrb[0].mxu0 %v4727
    %v4849 = vpop.f32.mrb[0].mxu0
    %v4850 = vadd.f32 0.0, %v4849
    %v4851 = vpop.f32.mrb[0].mxu0
    %4852 = vmatprep.mubr.f32.mxu0 0.0
    %4853 = vmatmul.mubr.f32.gmra.mrb[0].mxu0 %v4729
    %v4854 = vpop.f32.mrb[0].mxu0
    %v4855 = vadd.f32 0.0, %v4854
    %v4856 = vpop.f32.mrb[0].mxu0
    %4857 = vmatprep.mubr.f32.mxu0 0.0
    %4858 = vmatmul.mubr.f32.gmra.mrb[0].mxu0 %v4731
    %v4859 = vpop.f32.mrb[0].mxu0
    %v4860 = vadd.f32 0.0, %v4859
    %v4861 = vpop.f32.mrb[0].mxu0
    %4862 = vdwg.mxu0
    %v4863 = vadd.f32 %v4668, %v4800
    %v4864 = vadd.f32 %v4669, %v4805
    %v4865 = vadd.f32 %v4670, %v4810
    %v4866 = vadd.f32 %v4671, %v4815
    %v4867 = vadd.f32 %v4672, %v4820
    %v4868 = vadd.f32 %v4673, %v4825
    %v4869 = vadd.f32 %v4674, %v4830
    %v4870 = vadd.f32 %v4675, %v4835
    %v4871 = vadd.f32 %v4676, %v4840
    %v4872 = vadd.f32 %v4677, %v4845
    %v4873 = vadd.f32 %v4678, %v4850
    %v4874 = vadd.f32 %v4679, %v4855
    %v4875 = vadd.f32 %v4680, %v4860
    %4876 = vrot.lane.b32.xlu0 %v460, 32
    %v4877 = vpop.permute.xlu0 %4876
    %4878 = vrot.lane.b32.xlu0 %v464, 32
    %v4879 = vpop.permute.xlu0 %4878
    %4880 = vrot.lane.b32.xlu0 %v468, 32
    %v4881 = vpop.permute.xlu0 %4880
    %4882 = vrot.lane.b32.xlu0 %v472, 32
    %v4883 = vpop.permute.xlu0 %4882
    %4884 = vrot.lane.b32.xlu0 %v476, 32
    %v4885 = vpop.permute.xlu0 %4884
    %4886 = vrot.lane.b32.xlu0 %v480, 32
    %v4887 = vpop.permute.xlu0 %4886
    %4888 = vrot.lane.b32.xlu0 %v484, 32
    %v4889 = vpop.permute.xlu0 %4888
    %4890 = vrot.lane.b32.xlu0 %v488, 32
    %v4891 = vpop.permute.xlu0 %4890
    %4892 = vrot.lane.b32.xlu0 %v492, 32
    %v4893 = vpop.permute.xlu0 %4892
    %4894 = vrot.lane.b32.xlu0 %v496, 32
    %v4895 = vpop.permute.xlu0 %4894
    %4896 = vrot.lane.b32.xlu0 %v500, 32
    %v4897 = vpop.permute.xlu0 %4896
    %4898 = vrot.lane.b32.xlu0 %v504, 32
    %v4899 = vpop.permute.xlu0 %4898
    %4900 = vrot.lane.b32.xlu0 %v508, 32
    %v4901 = vpop.permute.xlu0 %4900
    %v4902 = vsel %vm546, %v4877, 0
    %v4904 = vsel %vm546, %v4879, 0
    %v4906 = vsel %vm546, %v4881, 0
    %v4908 = vsel %vm546, %v4883, 0
    %v4910 = vsel %vm546, %v4885, 0
    %v4912 = vsel %vm546, %v4887, 0
    %v4914 = vsel %vm546, %v4889, 0
    %v4916 = vsel %vm546, %v4891, 0
    %v4918 = vsel %vm546, %v4893, 0
    %v4920 = vsel %vm546, %v4895, 0
    %v4922 = vsel %vm546, %v4897, 0
    %v4924 = vsel %vm546, %v4899, 0
    %v4926 = vsel %vm546, %v4901, 0
    %4928 = vmatprep.subr.mxu0 0.0
    %4929 = vmatpush1.msra.mxu0 %v542
    %4930 = vmatprep.subr.mxu0 0.0
    %4931 = vmatpush1.msra.mxu0 %v543
    %4932 = vmatprep.subr.mxu0 0.0
    %4933 = vmatpush1.msra.mxu0 %v544
    %4934 = vmatprep.subr.mxu0 0.0
    %4935 = vmatpush1.msra.mxu0 %v545
    %4936 = vmatprep.subr.mxu0 0.0
    %4937 = vmatpush1.msra.mxu0 0.0
    %4938 = vmatprep.subr.mxu0 0.0
    %4939 = vmatpush1.msra.mxu0 0.0
    %4940 = vmatprep.subr.mxu0 0.0
    %4941 = vmatpush1.msra.mxu0 0.0
    %4942 = vmatprep.subr.mxu0 0.0
    %4943 = vmatpush1.msra.mxu0 0.0
    %4944 = vmatprep.subr.mxu0 0.0
    %4945 = vmatpush1.msra.mxu0 0.0
    %4946 = vmatprep.subr.mxu0 0.0
    %4947 = vmatpush1.msra.mxu0 0.0
    %4948 = vmatprep.subr.mxu0 0.0
    %4949 = vmatpush1.msra.mxu0 0.0
    %4950 = vmatprep.subr.mxu0 0.0
    %4951 = vmatpush1.msra.mxu0 0.0
    %4952 = vmatprep.subr.mxu0 0.0
    %4953 = vmatpush1.msra.mxu0 0.0
    %4954 = vmatprep.subr.mxu0 0.0
    %4955 = vmatpush1.msra.mxu0 0.0
    %4956 = vmatprep.subr.mxu0 0.0
    %4957 = vmatpush1.msra.mxu0 0.0
    %4958 = vmatprep.subr.mxu0 0.0
    %4959 = vmatpush1.msra.mxu0 0.0
    %4960 = vmatprep.subr.mxu0 0.0
    %4961 = vmatpush1.msra.mxu0 0.0
    %4962 = vmatprep.subr.mxu0 0.0
    %4963 = vmatpush1.msra.mxu0 0.0
    %4964 = vmatprep.subr.mxu0 0.0
    %4965 = vmatpush1.msra.mxu0 0.0
    %4966 = vmatprep.subr.mxu0 0.0
    %4967 = vmatpush1.msra.mxu0 0.0
    %4968 = vmatprep.subr.mxu0 0.0
    %4969 = vmatpush1.msra.mxu0 0.0
    %4970 = vmatprep.subr.mxu0 0.0
    %4971 = vmatpush1.msra.mxu0 0.0
    %4972 = vmatprep.subr.mxu0 0.0
    %4973 = vmatpush1.msra.mxu0 0.0
    %4974 = vmatprep.subr.mxu0 0.0
    %4975 = vmatpush1.msra.mxu0 0.0
    %4976 = vmatprep.subr.mxu0 0.0
    %4977 = vmatpush1.msra.mxu0 0.0
    %4978 = vmatprep.subr.mxu0 0.0
    %4979 = vmatpush1.msra.mxu0 0.0
    %4980 = vmatprep.subr.mxu0 0.0
    %4981 = vmatpush1.msra.mxu0 0.0
    %4982 = vmatprep.subr.mxu0 0.0
    %4983 = vmatpush1.msra.mxu0 0.0
    %4984 = vmatprep.subr.mxu0 0.0
    %4985 = vmatpush1.msra.mxu0 0.0
    %4986 = vmatprep.subr.mxu0 0.0
    %4987 = vmatpush1.msra.mxu0 0.0
    %4988 = vmatprep.subr.mxu0 0.0
    %4989 = vmatpush1.msra.mxu0 0.0
    %4990 = vmatprep.subr.mxu0 0.0
    %4991 = vmatpush1.msra.mxu0 0.0
    %4992 = vmatprep.mubr.f32.mxu0 0.0
    %4993 = vmatmul.mubr.f32.gmra.mrb[0].mxu0 %v4902
    %v4994 = vpop.f32.mrb[0].mxu0
    %v4995 = vadd.f32 0.0, %v4994
    %v4996 = vpop.f32.mrb[0].mxu0
    %4997 = vmatprep.mubr.f32.mxu0 0.0
    %4998 = vmatmul.mubr.f32.gmra.mrb[0].mxu0 %v4904
    %v4999 = vpop.f32.mrb[0].mxu0
    %v5000 = vadd.f32 0.0, %v4999
    %v5001 = vpop.f32.mrb[0].mxu0
    %5002 = vmatprep.mubr.f32.mxu0 0.0
    %5003 = vmatmul.mubr.f32.gmra.mrb[0].mxu0 %v4906
    %v5004 = vpop.f32.mrb[0].mxu0
    %v5005 = vadd.f32 0.0, %v5004
    %v5006 = vpop.f32.mrb[0].mxu0
    %5007 = vmatprep.mubr.f32.mxu0 0.0
    %5008 = vmatmul.mubr.f32.gmra.mrb[0].mxu0 %v4908
    %v5009 = vpop.f32.mrb[0].mxu0
    %v5010 = vadd.f32 0.0, %v5009
    %v5011 = vpop.f32.mrb[0].mxu0
    %5012 = vmatprep.mubr.f32.mxu0 0.0
    %5013 = vmatmul.mubr.f32.gmra.mrb[0].mxu0 %v4910
    %v5014 = vpop.f32.mrb[0].mxu0
    %v5015 = vadd.f32 0.0, %v5014
    %v5016 = vpop.f32.mrb[0].mxu0
    %5017 = vmatprep.mubr.f32.mxu0 0.0
    %5018 = vmatmul.mubr.f32.gmra.mrb[0].mxu0 %v4912
    %v5019 = vpop.f32.mrb[0].mxu0
    %v5020 = vadd.f32 0.0, %v5019
    %v5021 = vpop.f32.mrb[0].mxu0
    %5022 = vmatprep.mubr.f32.mxu0 0.0
    %5023 = vmatmul.mubr.f32.gmra.mrb[0].mxu0 %v4914
    %v5024 = vpop.f32.mrb[0].mxu0
    %v5025 = vadd.f32 0.0, %v5024
    %v5026 = vpop.f32.mrb[0].mxu0
    %5027 = vmatprep.mubr.f32.mxu0 0.0
    %5028 = vmatmul.mubr.f32.gmra.mrb[0].mxu0 %v4916
    %v5029 = vpop.f32.mrb[0].mxu0
    %v5030 = vadd.f32 0.0, %v5029
    %v5031 = vpop.f32.mrb[0].mxu0
    %5032 = vmatprep.mubr.f32.mxu0 0.0
    %5033 = vmatmul.mubr.f32.gmra.mrb[0].mxu0 %v4918
    %v5034 = vpop.f32.mrb[0].mxu0
    %v5035 = vadd.f32 0.0, %v5034
    %v5036 = vpop.f32.mrb[0].mxu0
    %5037 = vmatprep.mubr.f32.mxu0 0.0
    %5038 = vmatmul.mubr.f32.gmra.mrb[0].mxu0 %v4920
    %v5039 = vpop.f32.mrb[0].mxu0
    %v5040 = vadd.f32 0.0, %v5039
    %v5041 = vpop.f32.mrb[0].mxu0
    %5042 = vmatprep.mubr.f32.mxu0 0.0
    %5043 = vmatmul.mubr.f32.gmra.mrb[0].mxu0 %v4922
    %v5044 = vpop.f32.mrb[0].mxu0
    %v5045 = vadd.f32 0.0, %v5044
    %v5046 = vpop.f32.mrb[0].mxu0
    %5047 = vmatprep.mubr.f32.mxu0 0.0
    %5048 = vmatmul.mubr.f32.gmra.mrb[0].mxu0 %v4924
    %v5049 = vpop.f32.mrb[0].mxu0
    %v5050 = vadd.f32 0.0, %v5049
    %v5051 = vpop.f32.mrb[0].mxu0
    %5052 = vmatprep.mubr.f32.mxu0 0.0
    %5053 = vmatmul.mubr.f32.gmra.mrb[0].mxu0 %v4926
    %v5054 = vpop.f32.mrb[0].mxu0
    %v5055 = vadd.f32 0.0, %v5054
    %v5056 = vpop.f32.mrb[0].mxu0
    %5057 = vdwg.mxu0
    %v5058 = vadd.f32 %v4863, %v4995
    %v5059 = vadd.f32 %v4864, %v5000
    %v5060 = vadd.f32 %v4865, %v5005
    %v5061 = vadd.f32 %v4866, %v5010
    %v5062 = vadd.f32 %v4867, %v5015
    %v5063 = vadd.f32 %v4868, %v5020
    %v5064 = vadd.f32 %v4869, %v5025
    %v5065 = vadd.f32 %v4870, %v5030
    %v5066 = vadd.f32 %v4871, %v5035
    %v5067 = vadd.f32 %v4872, %v5040
    %v5068 = vadd.f32 %v4873, %v5045
    %v5069 = vadd.f32 %v4874, %v5050
    %v5070 = vadd.f32 %v4875, %v5055
    %5071 = vmatprep.subr.mxu0 0.0
    %5072 = vmatpush1.msra.mxu0 %v514
    %5073 = vmatprep.subr.mxu0 0.0
    %5074 = vmatpush1.msra.mxu0 %v515
    %5075 = vmatprep.subr.mxu0 0.0
    %5076 = vmatpush1.msra.mxu0 %v516
    %5077 = vmatprep.subr.mxu0 0.0
    %5078 = vmatpush1.msra.mxu0 %v517
    %5079 = vmatprep.subr.mxu0 0.0
    %5080 = vmatpush1.msra.mxu0 0.0
    %5081 = vmatprep.subr.mxu0 0.0
    %5082 = vmatpush1.msra.mxu0 0.0
    %5083 = vmatprep.subr.mxu0 0.0
    %5084 = vmatpush1.msra.mxu0 0.0
    %5085 = vmatprep.subr.mxu0 0.0
    %5086 = vmatpush1.msra.mxu0 0.0
    %5087 = vmatprep.subr.mxu0 0.0
    %5088 = vmatpush1.msra.mxu0 0.0
    %5089 = vmatprep.subr.mxu0 0.0
    %5090 = vmatpush1.msra.mxu0 0.0
    %5091 = vmatprep.subr.mxu0 0.0
    %5092 = vmatpush1.msra.mxu0 0.0
    %5093 = vmatprep.subr.mxu0 0.0
    %5094 = vmatpush1.msra.mxu0 0.0
    %5095 = vmatprep.subr.mxu0 0.0
    %5096 = vmatpush1.msra.mxu0 0.0
    %5097 = vmatprep.subr.mxu0 0.0
    %5098 = vmatpush1.msra.mxu0 0.0
    %5099 = vmatprep.subr.mxu0 0.0
    %5100 = vmatpush1.msra.mxu0 0.0
    %5101 = vmatprep.subr.mxu0 0.0
    %5102 = vmatpush1.msra.mxu0 0.0
    %5103 = vmatprep.subr.mxu0 0.0
    %5104 = vmatpush1.msra.mxu0 0.0
    %5105 = vmatprep.subr.mxu0 0.0
    %5106 = vmatpush1.msra.mxu0 0.0
    %5107 = vmatprep.subr.mxu0 0.0
    %5108 = vmatpush1.msra.mxu0 0.0
    %5109 = vmatprep.subr.mxu0 0.0
    %5110 = vmatpush1.msra.mxu0 0.0
    %5111 = vmatprep.subr.mxu0 0.0
    %5112 = vmatpush1.msra.mxu0 0.0
    %5113 = vmatprep.subr.mxu0 0.0
    %5114 = vmatpush1.msra.mxu0 0.0
    %5115 = vmatprep.subr.mxu0 0.0
    %5116 = vmatpush1.msra.mxu0 0.0
    %5117 = vmatprep.subr.mxu0 0.0
    %5118 = vmatpush1.msra.mxu0 0.0
    %5119 = vmatprep.subr.mxu0 0.0
    %5120 = vmatpush1.msra.mxu0 0.0
    %5121 = vmatprep.subr.mxu0 0.0
    %5122 = vmatpush1.msra.mxu0 0.0
    %5123 = vmatprep.subr.mxu0 0.0
    %5124 = vmatpush1.msra.mxu0 0.0
    %5125 = vmatprep.subr.mxu0 0.0
    %5126 = vmatpush1.msra.mxu0 0.0
    %5127 = vmatprep.subr.mxu0 0.0
    %5128 = vmatpush1.msra.mxu0 0.0
    %5129 = vmatprep.subr.mxu0 0.0
    %5130 = vmatpush1.msra.mxu0 0.0
    %5131 = vmatprep.subr.mxu0 0.0
    %5132 = vmatpush1.msra.mxu0 0.0
    %5133 = vmatprep.subr.mxu0 0.0
    %5134 = vmatpush1.msra.mxu0 0.0
    %5135 = vmatprep.mubr.f32.mxu0 0.0
    %5136 = vmatmul.mubr.f32.gmra.mrb[0].mxu0 %v1470
    %v5137 = vpop.f32.mrb[0].mxu0
    %v5138 = vadd.f32 0.0, %v5137
    %v5139 = vpop.f32.mrb[0].mxu0
    %5140 = vmatprep.mubr.f32.mxu0 0.0
    %5141 = vmatmul.mubr.f32.gmra.mrb[0].mxu0 %v1472
    %v5142 = vpop.f32.mrb[0].mxu0
    %v5143 = vadd.f32 0.0, %v5142
    %v5144 = vpop.f32.mrb[0].mxu0
    %5145 = vmatprep.mubr.f32.mxu0 0.0
    %5146 = vmatmul.mubr.f32.gmra.mrb[0].mxu0 %v1474
    %v5147 = vpop.f32.mrb[0].mxu0
    %v5148 = vadd.f32 0.0, %v5147
    %v5149 = vpop.f32.mrb[0].mxu0
    %5150 = vmatprep.mubr.f32.mxu0 0.0
    %5151 = vmatmul.mubr.f32.gmra.mrb[0].mxu0 %v1476
    %v5152 = vpop.f32.mrb[0].mxu0
    %v5153 = vadd.f32 0.0, %v5152
    %v5154 = vpop.f32.mrb[0].mxu0
    %5155 = vmatprep.mubr.f32.mxu0 0.0
    %5156 = vmatmul.mubr.f32.gmra.mrb[0].mxu0 %v1478
    %v5157 = vpop.f32.mrb[0].mxu0
    %v5158 = vadd.f32 0.0, %v5157
    %v5159 = vpop.f32.mrb[0].mxu0
    %5160 = vmatprep.mubr.f32.mxu0 0.0
    %5161 = vmatmul.mubr.f32.gmra.mrb[0].mxu0 %v1480
    %v5162 = vpop.f32.mrb[0].mxu0
    %v5163 = vadd.f32 0.0, %v5162
    %v5164 = vpop.f32.mrb[0].mxu0
    %5165 = vmatprep.mubr.f32.mxu0 0.0
    %5166 = vmatmul.mubr.f32.gmra.mrb[0].mxu0 %v1482
    %v5167 = vpop.f32.mrb[0].mxu0
    %v5168 = vadd.f32 0.0, %v5167
    %v5169 = vpop.f32.mrb[0].mxu0
    %5170 = vmatprep.mubr.f32.mxu0 0.0
    %5171 = vmatmul.mubr.f32.gmra.mrb[0].mxu0 %v1484
    %v5172 = vpop.f32.mrb[0].mxu0
    %v5173 = vadd.f32 0.0, %v5172
    %v5174 = vpop.f32.mrb[0].mxu0
    %5175 = vmatprep.mubr.f32.mxu0 0.0
    %5176 = vmatmul.mubr.f32.gmra.mrb[0].mxu0 %v1486
    %v5177 = vpop.f32.mrb[0].mxu0
    %v5178 = vadd.f32 0.0, %v5177
    %v5179 = vpop.f32.mrb[0].mxu0
    %5180 = vmatprep.mubr.f32.mxu0 0.0
    %5181 = vmatmul.mubr.f32.gmra.mrb[0].mxu0 %v1488
    %v5182 = vpop.f32.mrb[0].mxu0
    %v5183 = vadd.f32 0.0, %v5182
    %v5184 = vpop.f32.mrb[0].mxu0
    %5185 = vmatprep.mubr.f32.mxu0 0.0
    %5186 = vmatmul.mubr.f32.gmra.mrb[0].mxu0 %v1490
    %v5187 = vpop.f32.mrb[0].mxu0
    %v5188 = vadd.f32 0.0, %v5187
    %v5189 = vpop.f32.mrb[0].mxu0
    %5190 = vmatprep.mubr.f32.mxu0 0.0
    %5191 = vmatmul.mubr.f32.gmra.mrb[0].mxu0 %v1492
    %v5192 = vpop.f32.mrb[0].mxu0
    %v5193 = vadd.f32 0.0, %v5192
    %v5194 = vpop.f32.mrb[0].mxu0
    %5195 = vmatprep.mubr.f32.mxu0 0.0
    %5196 = vmatmul.mubr.f32.gmra.mrb[0].mxu0 %v1494
    %v5197 = vpop.f32.mrb[0].mxu0
    %v5198 = vadd.f32 0.0, %v5197
    %v5199 = vpop.f32.mrb[0].mxu0
    %5200 = vdwg.mxu0
    %5201 = vmatprep.subr.mxu0 0.0
    %5202 = vmatpush1.msra.mxu0 %v510
    %5203 = vmatprep.subr.mxu0 0.0
    %5204 = vmatpush1.msra.mxu0 %v511
    %5205 = vmatprep.subr.mxu0 0.0
    %5206 = vmatpush1.msra.mxu0 %v512
    %5207 = vmatprep.subr.mxu0 0.0
    %5208 = vmatpush1.msra.mxu0 %v513
    %5209 = vmatprep.subr.mxu0 0.0
    %5210 = vmatpush1.msra.mxu0 0.0
    %5211 = vmatprep.subr.mxu0 0.0
    %5212 = vmatpush1.msra.mxu0 0.0
    %5213 = vmatprep.subr.mxu0 0.0
    %5214 = vmatpush1.msra.mxu0 0.0
    %5215 = vmatprep.subr.mxu0 0.0
    %5216 = vmatpush1.msra.mxu0 0.0
    %5217 = vmatprep.subr.mxu0 0.0
    %5218 = vmatpush1.msra.mxu0 0.0
    %5219 = vmatprep.subr.mxu0 0.0
    %5220 = vmatpush1.msra.mxu0 0.0
    %5221 = vmatprep.subr.mxu0 0.0
    %5222 = vmatpush1.msra.mxu0 0.0
    %5223 = vmatprep.subr.mxu0 0.0
    %5224 = vmatpush1.msra.mxu0 0.0
    %5225 = vmatprep.subr.mxu0 0.0
    %5226 = vmatpush1.msra.mxu0 0.0
    %5227 = vmatprep.subr.mxu0 0.0
    %5228 = vmatpush1.msra.mxu0 0.0
    %5229 = vmatprep.subr.mxu0 0.0
    %5230 = vmatpush1.msra.mxu0 0.0
    %5231 = vmatprep.subr.mxu0 0.0
    %5232 = vmatpush1.msra.mxu0 0.0
    %5233 = vmatprep.subr.mxu0 0.0
    %5234 = vmatpush1.msra.mxu0 0.0
    %5235 = vmatprep.subr.mxu0 0.0
    %5236 = vmatpush1.msra.mxu0 0.0
    %5237 = vmatprep.subr.mxu0 0.0
    %5238 = vmatpush1.msra.mxu0 0.0
    %5239 = vmatprep.subr.mxu0 0.0
    %5240 = vmatpush1.msra.mxu0 0.0
    %5241 = vmatprep.subr.mxu0 0.0
    %5242 = vmatpush1.msra.mxu0 0.0
    %5243 = vmatprep.subr.mxu0 0.0
    %5244 = vmatpush1.msra.mxu0 0.0
    %5245 = vmatprep.subr.mxu0 0.0
    %5246 = vmatpush1.msra.mxu0 0.0
    %5247 = vmatprep.subr.mxu0 0.0
    %5248 = vmatpush1.msra.mxu0 0.0
    %5249 = vmatprep.subr.mxu0 0.0
    %5250 = vmatpush1.msra.mxu0 0.0
    %5251 = vmatprep.subr.mxu0 0.0
    %5252 = vmatpush1.msra.mxu0 0.0
    %5253 = vmatprep.subr.mxu0 0.0
    %5254 = vmatpush1.msra.mxu0 0.0
    %5255 = vmatprep.subr.mxu0 0.0
    %5256 = vmatpush1.msra.mxu0 0.0
    %5257 = vmatprep.subr.mxu0 0.0
    %5258 = vmatpush1.msra.mxu0 0.0
    %5259 = vmatprep.subr.mxu0 0.0
    %5260 = vmatpush1.msra.mxu0 0.0
    %5261 = vmatprep.subr.mxu0 0.0
    %5262 = vmatpush1.msra.mxu0 0.0
    %5263 = vmatprep.subr.mxu0 0.0
    %5264 = vmatpush1.msra.mxu0 0.0
    %5265 = vmatprep.mubr.f32.mxu0 0.0
    %5266 = vmatmul.mubr.f32.gmra.mrb[0].mxu0 %v1263
    %v5267 = vpop.f32.mrb[0].mxu0
    %v5268 = vadd.f32 %v5138, %v5267
    %v5269 = vpop.f32.mrb[0].mxu0
    %5270 = vmatprep.mubr.f32.mxu0 0.0
    %5271 = vmatmul.mubr.f32.gmra.mrb[0].mxu0 %v1266
    %v5272 = vpop.f32.mrb[0].mxu0
    %v5273 = vadd.f32 %v5143, %v5272
    %v5274 = vpop.f32.mrb[0].mxu0
    %5275 = vmatprep.mubr.f32.mxu0 0.0
    %5276 = vmatmul.mubr.f32.gmra.mrb[0].mxu0 %v1269
    %v5277 = vpop.f32.mrb[0].mxu0
    %v5278 = vadd.f32 %v5148, %v5277
    %v5279 = vpop.f32.mrb[0].mxu0
    %5280 = vmatprep.mubr.f32.mxu0 0.0
    %5281 = vmatmul.mubr.f32.gmra.mrb[0].mxu0 %v1272
    %v5282 = vpop.f32.mrb[0].mxu0
    %v5283 = vadd.f32 %v5153, %v5282
    %v5284 = vpop.f32.mrb[0].mxu0
    %5285 = vmatprep.mubr.f32.mxu0 0.0
    %5286 = vmatmul.mubr.f32.gmra.mrb[0].mxu0 %v1275
    %v5287 = vpop.f32.mrb[0].mxu0
    %v5288 = vadd.f32 %v5158, %v5287
    %v5289 = vpop.f32.mrb[0].mxu0
    %5290 = vmatprep.mubr.f32.mxu0 0.0
    %5291 = vmatmul.mubr.f32.gmra.mrb[0].mxu0 %v1278
    %v5292 = vpop.f32.mrb[0].mxu0
    %v5293 = vadd.f32 %v5163, %v5292
    %v5294 = vpop.f32.mrb[0].mxu0
    %5295 = vmatprep.mubr.f32.mxu0 0.0
    %5296 = vmatmul.mubr.f32.gmra.mrb[0].mxu0 %v1281
    %v5297 = vpop.f32.mrb[0].mxu0
    %v5298 = vadd.f32 %v5168, %v5297
    %v5299 = vpop.f32.mrb[0].mxu0
    %5300 = vmatprep.mubr.f32.mxu0 0.0
    %5301 = vmatmul.mubr.f32.gmra.mrb[0].mxu0 %v1284
    %v5302 = vpop.f32.mrb[0].mxu0
    %v5303 = vadd.f32 %v5173, %v5302
    %v5304 = vpop.f32.mrb[0].mxu0
    %5305 = vmatprep.mubr.f32.mxu0 0.0
    %5306 = vmatmul.mubr.f32.gmra.mrb[0].mxu0 %v1287
    %v5307 = vpop.f32.mrb[0].mxu0
    %v5308 = vadd.f32 %v5178, %v5307
    %v5309 = vpop.f32.mrb[0].mxu0
    %5310 = vmatprep.mubr.f32.mxu0 0.0
    %5311 = vmatmul.mubr.f32.gmra.mrb[0].mxu0 %v1290
    %v5312 = vpop.f32.mrb[0].mxu0
    %v5313 = vadd.f32 %v5183, %v5312
    %v5314 = vpop.f32.mrb[0].mxu0
    %5315 = vmatprep.mubr.f32.mxu0 0.0
    %5316 = vmatmul.mubr.f32.gmra.mrb[0].mxu0 %v1293
    %v5317 = vpop.f32.mrb[0].mxu0
    %v5318 = vadd.f32 %v5188, %v5317
    %v5319 = vpop.f32.mrb[0].mxu0
    %5320 = vmatprep.mubr.f32.mxu0 0.0
    %5321 = vmatmul.mubr.f32.gmra.mrb[0].mxu0 %v1296
    %v5322 = vpop.f32.mrb[0].mxu0
    %v5323 = vadd.f32 %v5193, %v5322
    %v5324 = vpop.f32.mrb[0].mxu0
    %5325 = vmatprep.mubr.f32.mxu0 0.0
    %5326 = vmatmul.mubr.f32.gmra.mrb[0].mxu0 %v1299
    %v5327 = vpop.f32.mrb[0].mxu0
    %v5328 = vadd.f32 %v5198, %v5327
    %v5329 = vpop.f32.mrb[0].mxu0
    %5330 = vdwg.mxu0
    %5331 = vmatprep.subr.mxu0 0.0
    %5332 = vmatpush1.msra.mxu0 %v518
    %5333 = vmatprep.subr.mxu0 0.0
    %5334 = vmatpush1.msra.mxu0 %v519
    %5335 = vmatprep.subr.mxu0 0.0
    %5336 = vmatpush1.msra.mxu0 %v520
    %5337 = vmatprep.subr.mxu0 0.0
    %5338 = vmatpush1.msra.mxu0 %v521
    %5339 = vmatprep.subr.mxu0 0.0
    %5340 = vmatpush1.msra.mxu0 0.0
    %5341 = vmatprep.subr.mxu0 0.0
    %5342 = vmatpush1.msra.mxu0 0.0
    %5343 = vmatprep.subr.mxu0 0.0
    %5344 = vmatpush1.msra.mxu0 0.0
    %5345 = vmatprep.subr.mxu0 0.0
    %5346 = vmatpush1.msra.mxu0 0.0
    %5347 = vmatprep.subr.mxu0 0.0
    %5348 = vmatpush1.msra.mxu0 0.0
    %5349 = vmatprep.subr.mxu0 0.0
    %5350 = vmatpush1.msra.mxu0 0.0
    %5351 = vmatprep.subr.mxu0 0.0
    %5352 = vmatpush1.msra.mxu0 0.0
    %5353 = vmatprep.subr.mxu0 0.0
    %5354 = vmatpush1.msra.mxu0 0.0
    %5355 = vmatprep.subr.mxu0 0.0
    %5356 = vmatpush1.msra.mxu0 0.0
    %5357 = vmatprep.subr.mxu0 0.0
    %5358 = vmatpush1.msra.mxu0 0.0
    %5359 = vmatprep.subr.mxu0 0.0
    %5360 = vmatpush1.msra.mxu0 0.0
    %5361 = vmatprep.subr.mxu0 0.0
    %5362 = vmatpush1.msra.mxu0 0.0
    %5363 = vmatprep.subr.mxu0 0.0
    %5364 = vmatpush1.msra.mxu0 0.0
    %5365 = vmatprep.subr.mxu0 0.0
    %5366 = vmatpush1.msra.mxu0 0.0
    %5367 = vmatprep.subr.mxu0 0.0
    %5368 = vmatpush1.msra.mxu0 0.0
    %5369 = vmatprep.subr.mxu0 0.0
    %5370 = vmatpush1.msra.mxu0 0.0
    %5371 = vmatprep.subr.mxu0 0.0
    %5372 = vmatpush1.msra.mxu0 0.0
    %5373 = vmatprep.subr.mxu0 0.0
    %5374 = vmatpush1.msra.mxu0 0.0
    %5375 = vmatprep.subr.mxu0 0.0
    %5376 = vmatpush1.msra.mxu0 0.0
    %5377 = vmatprep.subr.mxu0 0.0
    %5378 = vmatpush1.msra.mxu0 0.0
    %5379 = vmatprep.subr.mxu0 0.0
    %5380 = vmatpush1.msra.mxu0 0.0
    %5381 = vmatprep.subr.mxu0 0.0
    %5382 = vmatpush1.msra.mxu0 0.0
    %5383 = vmatprep.subr.mxu0 0.0
    %5384 = vmatpush1.msra.mxu0 0.0
    %5385 = vmatprep.subr.mxu0 0.0
    %5386 = vmatpush1.msra.mxu0 0.0
    %5387 = vmatprep.subr.mxu0 0.0
    %5388 = vmatpush1.msra.mxu0 0.0
    %5389 = vmatprep.subr.mxu0 0.0
    %5390 = vmatpush1.msra.mxu0 0.0
    %5391 = vmatprep.subr.mxu0 0.0
    %5392 = vmatpush1.msra.mxu0 0.0
    %5393 = vmatprep.subr.mxu0 0.0
    %5394 = vmatpush1.msra.mxu0 0.0
    %5395 = vmatprep.mubr.f32.mxu0 0.0
    %5396 = vmatmul.mubr.f32.gmra.mrb[0].mxu0 %v2991
    %v5397 = vpop.f32.mrb[0].mxu0
    %v5398 = vadd.f32 0.0, %v5397
    %v5399 = vpop.f32.mrb[0].mxu0
    %5400 = vmatprep.mubr.f32.mxu0 0.0
    %5401 = vmatmul.mubr.f32.gmra.mrb[0].mxu0 %v2993
    %v5402 = vpop.f32.mrb[0].mxu0
    %v5403 = vadd.f32 0.0, %v5402
    %v5404 = vpop.f32.mrb[0].mxu0
    %5405 = vmatprep.mubr.f32.mxu0 0.0
    %5406 = vmatmul.mubr.f32.gmra.mrb[0].mxu0 %v2995
    %v5407 = vpop.f32.mrb[0].mxu0
    %v5408 = vadd.f32 0.0, %v5407
    %v5409 = vpop.f32.mrb[0].mxu0
    %5410 = vmatprep.mubr.f32.mxu0 0.0
    %5411 = vmatmul.mubr.f32.gmra.mrb[0].mxu0 %v2997
    %v5412 = vpop.f32.mrb[0].mxu0
    %v5413 = vadd.f32 0.0, %v5412
    %v5414 = vpop.f32.mrb[0].mxu0
    %5415 = vmatprep.mubr.f32.mxu0 0.0
    %5416 = vmatmul.mubr.f32.gmra.mrb[0].mxu0 %v2999
    %v5417 = vpop.f32.mrb[0].mxu0
    %v5418 = vadd.f32 0.0, %v5417
    %v5419 = vpop.f32.mrb[0].mxu0
    %5420 = vmatprep.mubr.f32.mxu0 0.0
    %5421 = vmatmul.mubr.f32.gmra.mrb[0].mxu0 %v3001
    %v5422 = vpop.f32.mrb[0].mxu0
    %v5423 = vadd.f32 0.0, %v5422
    %v5424 = vpop.f32.mrb[0].mxu0
    %5425 = vmatprep.mubr.f32.mxu0 0.0
    %5426 = vmatmul.mubr.f32.gmra.mrb[0].mxu0 %v3003
    %v5427 = vpop.f32.mrb[0].mxu0
    %v5428 = vadd.f32 0.0, %v5427
    %v5429 = vpop.f32.mrb[0].mxu0
    %5430 = vmatprep.mubr.f32.mxu0 0.0
    %5431 = vmatmul.mubr.f32.gmra.mrb[0].mxu0 %v3005
    %v5432 = vpop.f32.mrb[0].mxu0
    %v5433 = vadd.f32 0.0, %v5432
    %v5434 = vpop.f32.mrb[0].mxu0
    %5435 = vmatprep.mubr.f32.mxu0 0.0
    %5436 = vmatmul.mubr.f32.gmra.mrb[0].mxu0 %v3007
    %v5437 = vpop.f32.mrb[0].mxu0
    %v5438 = vadd.f32 0.0, %v5437
    %v5439 = vpop.f32.mrb[0].mxu0
    %5440 = vmatprep.mubr.f32.mxu0 0.0
    %5441 = vmatmul.mubr.f32.gmra.mrb[0].mxu0 %v3009
    %v5442 = vpop.f32.mrb[0].mxu0
    %v5443 = vadd.f32 0.0, %v5442
    %v5444 = vpop.f32.mrb[0].mxu0
    %5445 = vmatprep.mubr.f32.mxu0 0.0
    %5446 = vmatmul.mubr.f32.gmra.mrb[0].mxu0 %v3011
    %v5447 = vpop.f32.mrb[0].mxu0
    %v5448 = vadd.f32 0.0, %v5447
    %v5449 = vpop.f32.mrb[0].mxu0
    %5450 = vmatprep.mubr.f32.mxu0 0.0
    %5451 = vmatmul.mubr.f32.gmra.mrb[0].mxu0 %v3013
    %v5452 = vpop.f32.mrb[0].mxu0
    %v5453 = vadd.f32 0.0, %v5452
    %v5454 = vpop.f32.mrb[0].mxu0
    %5455 = vmatprep.mubr.f32.mxu0 0.0
    %5456 = vmatmul.mubr.f32.gmra.mrb[0].mxu0 %v3015
    %v5457 = vpop.f32.mrb[0].mxu0
    %v5458 = vadd.f32 0.0, %v5457
    %v5459 = vpop.f32.mrb[0].mxu0
    %5460 = vdwg.mxu0
    %v5461 = vadd.f32 %v5268, %v5398
    %v5462 = vadd.f32 %v5273, %v5403
    %v5463 = vadd.f32 %v5278, %v5408
    %v5464 = vadd.f32 %v5283, %v5413
    %v5465 = vadd.f32 %v5288, %v5418
    %v5466 = vadd.f32 %v5293, %v5423
    %v5467 = vadd.f32 %v5298, %v5428
    %v5468 = vadd.f32 %v5303, %v5433
    %v5469 = vadd.f32 %v5308, %v5438
    %v5470 = vadd.f32 %v5313, %v5443
    %v5471 = vadd.f32 %v5318, %v5448
    %v5472 = vadd.f32 %v5323, %v5453
    %v5473 = vadd.f32 %v5328, %v5458
    %5474 = vmatprep.subr.mxu0 0.0
    %5475 = vmatpush1.msra.mxu0 %v522
    %5476 = vmatprep.subr.mxu0 0.0
    %5477 = vmatpush1.msra.mxu0 %v523
    %5478 = vmatprep.subr.mxu0 0.0
    %5479 = vmatpush1.msra.mxu0 %v524
    %5480 = vmatprep.subr.mxu0 0.0
    %5481 = vmatpush1.msra.mxu0 %v525
    %5482 = vmatprep.subr.mxu0 0.0
    %5483 = vmatpush1.msra.mxu0 0.0
    %5484 = vmatprep.subr.mxu0 0.0
    %5485 = vmatpush1.msra.mxu0 0.0
    %5486 = vmatprep.subr.mxu0 0.0
    %5487 = vmatpush1.msra.mxu0 0.0
    %5488 = vmatprep.subr.mxu0 0.0
    %5489 = vmatpush1.msra.mxu0 0.0
    %5490 = vmatprep.subr.mxu0 0.0
    %5491 = vmatpush1.msra.mxu0 0.0
    %5492 = vmatprep.subr.mxu0 0.0
    %5493 = vmatpush1.msra.mxu0 0.0
    %5494 = vmatprep.subr.mxu0 0.0
    %5495 = vmatpush1.msra.mxu0 0.0
    %5496 = vmatprep.subr.mxu0 0.0
    %5497 = vmatpush1.msra.mxu0 0.0
    %5498 = vmatprep.subr.mxu0 0.0
    %5499 = vmatpush1.msra.mxu0 0.0
    %5500 = vmatprep.subr.mxu0 0.0
    %5501 = vmatpush1.msra.mxu0 0.0
    %5502 = vmatprep.subr.mxu0 0.0
    %5503 = vmatpush1.msra.mxu0 0.0
    %5504 = vmatprep.subr.mxu0 0.0
    %5505 = vmatpush1.msra.mxu0 0.0
    %5506 = vmatprep.subr.mxu0 0.0
    %5507 = vmatpush1.msra.mxu0 0.0
    %5508 = vmatprep.subr.mxu0 0.0
    %5509 = vmatpush1.msra.mxu0 0.0
    %5510 = vmatprep.subr.mxu0 0.0
    %5511 = vmatpush1.msra.mxu0 0.0
    %5512 = vmatprep.subr.mxu0 0.0
    %5513 = vmatpush1.msra.mxu0 0.0
    %5514 = vmatprep.subr.mxu0 0.0
    %5515 = vmatpush1.msra.mxu0 0.0
    %5516 = vmatprep.subr.mxu0 0.0
    %5517 = vmatpush1.msra.mxu0 0.0
    %5518 = vmatprep.subr.mxu0 0.0
    %5519 = vmatpush1.msra.mxu0 0.0
    %5520 = vmatprep.subr.mxu0 0.0
    %5521 = vmatpush1.msra.mxu0 0.0
    %5522 = vmatprep.subr.mxu0 0.0
    %5523 = vmatpush1.msra.mxu0 0.0
    %5524 = vmatprep.subr.mxu0 0.0
    %5525 = vmatpush1.msra.mxu0 0.0
    %5526 = vmatprep.subr.mxu0 0.0
    %5527 = vmatpush1.msra.mxu0 0.0
    %5528 = vmatprep.subr.mxu0 0.0
    %5529 = vmatpush1.msra.mxu0 0.0
    %5530 = vmatprep.subr.mxu0 0.0
    %5531 = vmatpush1.msra.mxu0 0.0
    %5532 = vmatprep.subr.mxu0 0.0
    %5533 = vmatpush1.msra.mxu0 0.0
    %5534 = vmatprep.subr.mxu0 0.0
    %5535 = vmatpush1.msra.mxu0 0.0
    %5536 = vmatprep.subr.mxu0 0.0
    %5537 = vmatpush1.msra.mxu0 0.0
    %5538 = vmatprep.mubr.f32.mxu0 0.0
    %5539 = vmatmul.mubr.f32.gmra.mrb[0].mxu0 %v1860
    %v5540 = vpop.f32.mrb[0].mxu0
    %v5541 = vadd.f32 0.0, %v5540
    %v5542 = vpop.f32.mrb[0].mxu0
    %5543 = vmatprep.mubr.f32.mxu0 0.0
    %5544 = vmatmul.mubr.f32.gmra.mrb[0].mxu0 %v1862
    %v5545 = vpop.f32.mrb[0].mxu0
    %v5546 = vadd.f32 0.0, %v5545
    %v5547 = vpop.f32.mrb[0].mxu0
    %5548 = vmatprep.mubr.f32.mxu0 0.0
    %5549 = vmatmul.mubr.f32.gmra.mrb[0].mxu0 %v1864
    %v5550 = vpop.f32.mrb[0].mxu0
    %v5551 = vadd.f32 0.0, %v5550
    %v5552 = vpop.f32.mrb[0].mxu0
    %5553 = vmatprep.mubr.f32.mxu0 0.0
    %5554 = vmatmul.mubr.f32.gmra.mrb[0].mxu0 %v1866
    %v5555 = vpop.f32.mrb[0].mxu0
    %v5556 = vadd.f32 0.0, %v5555
    %v5557 = vpop.f32.mrb[0].mxu0
    %5558 = vmatprep.mubr.f32.mxu0 0.0
    %5559 = vmatmul.mubr.f32.gmra.mrb[0].mxu0 %v1868
    %v5560 = vpop.f32.mrb[0].mxu0
    %v5561 = vadd.f32 0.0, %v5560
    %v5562 = vpop.f32.mrb[0].mxu0
    %5563 = vmatprep.mubr.f32.mxu0 0.0
    %5564 = vmatmul.mubr.f32.gmra.mrb[0].mxu0 %v1870
    %v5565 = vpop.f32.mrb[0].mxu0
    %v5566 = vadd.f32 0.0, %v5565
    %v5567 = vpop.f32.mrb[0].mxu0
    %5568 = vmatprep.mubr.f32.mxu0 0.0
    %5569 = vmatmul.mubr.f32.gmra.mrb[0].mxu0 %v1872
    %v5570 = vpop.f32.mrb[0].mxu0
    %v5571 = vadd.f32 0.0, %v5570
    %v5572 = vpop.f32.mrb[0].mxu0
    %5573 = vmatprep.mubr.f32.mxu0 0.0
    %5574 = vmatmul.mubr.f32.gmra.mrb[0].mxu0 %v1874
    %v5575 = vpop.f32.mrb[0].mxu0
    %v5576 = vadd.f32 0.0, %v5575
    %v5577 = vpop.f32.mrb[0].mxu0
    %5578 = vmatprep.mubr.f32.mxu0 0.0
    %5579 = vmatmul.mubr.f32.gmra.mrb[0].mxu0 %v1876
    %v5580 = vpop.f32.mrb[0].mxu0
    %v5581 = vadd.f32 0.0, %v5580
    %v5582 = vpop.f32.mrb[0].mxu0
    %5583 = vmatprep.mubr.f32.mxu0 0.0
    %5584 = vmatmul.mubr.f32.gmra.mrb[0].mxu0 %v1878
    %v5585 = vpop.f32.mrb[0].mxu0
    %v5586 = vadd.f32 0.0, %v5585
    %v5587 = vpop.f32.mrb[0].mxu0
    %5588 = vmatprep.mubr.f32.mxu0 0.0
    %5589 = vmatmul.mubr.f32.gmra.mrb[0].mxu0 %v1880
    %v5590 = vpop.f32.mrb[0].mxu0
    %v5591 = vadd.f32 0.0, %v5590
    %v5592 = vpop.f32.mrb[0].mxu0
    %5593 = vmatprep.mubr.f32.mxu0 0.0
    %5594 = vmatmul.mubr.f32.gmra.mrb[0].mxu0 %v1882
    %v5595 = vpop.f32.mrb[0].mxu0
    %v5596 = vadd.f32 0.0, %v5595
    %v5597 = vpop.f32.mrb[0].mxu0
    %5598 = vmatprep.mubr.f32.mxu0 0.0
    %5599 = vmatmul.mubr.f32.gmra.mrb[0].mxu0 %v1884
    %v5600 = vpop.f32.mrb[0].mxu0
    %v5601 = vadd.f32 0.0, %v5600
    %v5602 = vpop.f32.mrb[0].mxu0
    %5603 = vdwg.mxu0
    %v5604 = vadd.f32 %v5461, %v5541
    %v5605 = vadd.f32 %v5462, %v5546
    %v5606 = vadd.f32 %v5463, %v5551
    %v5607 = vadd.f32 %v5464, %v5556
    %v5608 = vadd.f32 %v5465, %v5561
    %v5609 = vadd.f32 %v5466, %v5566
    %v5610 = vadd.f32 %v5467, %v5571
    %v5611 = vadd.f32 %v5468, %v5576
    %v5612 = vadd.f32 %v5469, %v5581
    %v5613 = vadd.f32 %v5470, %v5586
    %v5614 = vadd.f32 %v5471, %v5591
    %v5615 = vadd.f32 %v5472, %v5596
    %v5616 = vadd.f32 %v5473, %v5601
    %5617 = vmatprep.subr.mxu0 0.0
    %5618 = vmatpush1.msra.mxu0 %v526
    %5619 = vmatprep.subr.mxu0 0.0
    %5620 = vmatpush1.msra.mxu0 %v527
    %5621 = vmatprep.subr.mxu0 0.0
    %5622 = vmatpush1.msra.mxu0 %v528
    %5623 = vmatprep.subr.mxu0 0.0
    %5624 = vmatpush1.msra.mxu0 %v529
    %5625 = vmatprep.subr.mxu0 0.0
    %5626 = vmatpush1.msra.mxu0 0.0
    %5627 = vmatprep.subr.mxu0 0.0
    %5628 = vmatpush1.msra.mxu0 0.0
    %5629 = vmatprep.subr.mxu0 0.0
    %5630 = vmatpush1.msra.mxu0 0.0
    %5631 = vmatprep.subr.mxu0 0.0
    %5632 = vmatpush1.msra.mxu0 0.0
    %5633 = vmatprep.subr.mxu0 0.0
    %5634 = vmatpush1.msra.mxu0 0.0
    %5635 = vmatprep.subr.mxu0 0.0
    %5636 = vmatpush1.msra.mxu0 0.0
    %5637 = vmatprep.subr.mxu0 0.0
    %5638 = vmatpush1.msra.mxu0 0.0
    %5639 = vmatprep.subr.mxu0 0.0
    %5640 = vmatpush1.msra.mxu0 0.0
    %5641 = vmatprep.subr.mxu0 0.0
    %5642 = vmatpush1.msra.mxu0 0.0
    %5643 = vmatprep.subr.mxu0 0.0
    %5644 = vmatpush1.msra.mxu0 0.0
    %5645 = vmatprep.subr.mxu0 0.0
    %5646 = vmatpush1.msra.mxu0 0.0
    %5647 = vmatprep.subr.mxu0 0.0
    %5648 = vmatpush1.msra.mxu0 0.0
    %5649 = vmatprep.subr.mxu0 0.0
    %5650 = vmatpush1.msra.mxu0 0.0
    %5651 = vmatprep.subr.mxu0 0.0
    %5652 = vmatpush1.msra.mxu0 0.0
    %5653 = vmatprep.subr.mxu0 0.0
    %5654 = vmatpush1.msra.mxu0 0.0
    %5655 = vmatprep.subr.mxu0 0.0
    %5656 = vmatpush1.msra.mxu0 0.0
    %5657 = vmatprep.subr.mxu0 0.0
    %5658 = vmatpush1.msra.mxu0 0.0
    %5659 = vmatprep.subr.mxu0 0.0
    %5660 = vmatpush1.msra.mxu0 0.0
    %5661 = vmatprep.subr.mxu0 0.0
    %5662 = vmatpush1.msra.mxu0 0.0
    %5663 = vmatprep.subr.mxu0 0.0
    %5664 = vmatpush1.msra.mxu0 0.0
    %5665 = vmatprep.subr.mxu0 0.0
    %5666 = vmatpush1.msra.mxu0 0.0
    %5667 = vmatprep.subr.mxu0 0.0
    %5668 = vmatpush1.msra.mxu0 0.0
    %5669 = vmatprep.subr.mxu0 0.0
    %5670 = vmatpush1.msra.mxu0 0.0
    %5671 = vmatprep.subr.mxu0 0.0
    %5672 = vmatpush1.msra.mxu0 0.0
    %5673 = vmatprep.subr.mxu0 0.0
    %5674 = vmatpush1.msra.mxu0 0.0
    %5675 = vmatprep.subr.mxu0 0.0
    %5676 = vmatpush1.msra.mxu0 0.0
    %5677 = vmatprep.subr.mxu0 0.0
    %5678 = vmatpush1.msra.mxu0 0.0
    %5679 = vmatprep.subr.mxu0 0.0
    %5680 = vmatpush1.msra.mxu0 0.0
    %5681 = vmatprep.mubr.f32.mxu0 0.0
    %5682 = vmatmul.mubr.f32.gmra.mrb[0].mxu0 %v2055
    %v5683 = vpop.f32.mrb[0].mxu0
    %v5684 = vadd.f32 0.0, %v5683
    %v5685 = vpop.f32.mrb[0].mxu0
    %5686 = vmatprep.mubr.f32.mxu0 0.0
    %5687 = vmatmul.mubr.f32.gmra.mrb[0].mxu0 %v2057
    %v5688 = vpop.f32.mrb[0].mxu0
    %v5689 = vadd.f32 0.0, %v5688
    %v5690 = vpop.f32.mrb[0].mxu0
    %5691 = vmatprep.mubr.f32.mxu0 0.0
    %5692 = vmatmul.mubr.f32.gmra.mrb[0].mxu0 %v2059
    %v5693 = vpop.f32.mrb[0].mxu0
    %v5694 = vadd.f32 0.0, %v5693
    %v5695 = vpop.f32.mrb[0].mxu0
    %5696 = vmatprep.mubr.f32.mxu0 0.0
    %5697 = vmatmul.mubr.f32.gmra.mrb[0].mxu0 %v2061
    %v5698 = vpop.f32.mrb[0].mxu0
    %v5699 = vadd.f32 0.0, %v5698
    %v5700 = vpop.f32.mrb[0].mxu0
    %5701 = vmatprep.mubr.f32.mxu0 0.0
    %5702 = vmatmul.mubr.f32.gmra.mrb[0].mxu0 %v2063
    %v5703 = vpop.f32.mrb[0].mxu0
    %v5704 = vadd.f32 0.0, %v5703
    %v5705 = vpop.f32.mrb[0].mxu0
    %5706 = vmatprep.mubr.f32.mxu0 0.0
    %5707 = vmatmul.mubr.f32.gmra.mrb[0].mxu0 %v2065
    %v5708 = vpop.f32.mrb[0].mxu0
    %v5709 = vadd.f32 0.0, %v5708
    %v5710 = vpop.f32.mrb[0].mxu0
    %5711 = vmatprep.mubr.f32.mxu0 0.0
    %5712 = vmatmul.mubr.f32.gmra.mrb[0].mxu0 %v2067
    %v5713 = vpop.f32.mrb[0].mxu0
    %v5714 = vadd.f32 0.0, %v5713
    %v5715 = vpop.f32.mrb[0].mxu0
    %5716 = vmatprep.mubr.f32.mxu0 0.0
    %5717 = vmatmul.mubr.f32.gmra.mrb[0].mxu0 %v2069
    %v5718 = vpop.f32.mrb[0].mxu0
    %v5719 = vadd.f32 0.0, %v5718
    %v5720 = vpop.f32.mrb[0].mxu0
    %5721 = vmatprep.mubr.f32.mxu0 0.0
    %5722 = vmatmul.mubr.f32.gmra.mrb[0].mxu0 %v2071
    %v5723 = vpop.f32.mrb[0].mxu0
    %v5724 = vadd.f32 0.0, %v5723
    %v5725 = vpop.f32.mrb[0].mxu0
    %5726 = vmatprep.mubr.f32.mxu0 0.0
    %5727 = vmatmul.mubr.f32.gmra.mrb[0].mxu0 %v2073
    %v5728 = vpop.f32.mrb[0].mxu0
    %v5729 = vadd.f32 0.0, %v5728
    %v5730 = vpop.f32.mrb[0].mxu0
    %5731 = vmatprep.mubr.f32.mxu0 0.0
    %5732 = vmatmul.mubr.f32.gmra.mrb[0].mxu0 %v2075
    %v5733 = vpop.f32.mrb[0].mxu0
    %v5734 = vadd.f32 0.0, %v5733
    %v5735 = vpop.f32.mrb[0].mxu0
    %5736 = vmatprep.mubr.f32.mxu0 0.0
    %5737 = vmatmul.mubr.f32.gmra.mrb[0].mxu0 %v2077
    %v5738 = vpop.f32.mrb[0].mxu0
    %v5739 = vadd.f32 0.0, %v5738
    %v5740 = vpop.f32.mrb[0].mxu0
    %5741 = vmatprep.mubr.f32.mxu0 0.0
    %5742 = vmatmul.mubr.f32.gmra.mrb[0].mxu0 %v2079
    %v5743 = vpop.f32.mrb[0].mxu0
    %v5744 = vadd.f32 0.0, %v5743
    %v5745 = vpop.f32.mrb[0].mxu0
    %5746 = vdwg.mxu0
    %v5747 = vadd.f32 %v5604, %v5684
    %v5748 = vadd.f32 %v5605, %v5689
    %v5749 = vadd.f32 %v5606, %v5694
    %v5750 = vadd.f32 %v5607, %v5699
    %v5751 = vadd.f32 %v5608, %v5704
    %v5752 = vadd.f32 %v5609, %v5709
    %v5753 = vadd.f32 %v5610, %v5714
    %v5754 = vadd.f32 %v5611, %v5719
    %v5755 = vadd.f32 %v5612, %v5724
    %v5756 = vadd.f32 %v5613, %v5729
    %v5757 = vadd.f32 %v5614, %v5734
    %v5758 = vadd.f32 %v5615, %v5739
    %v5759 = vadd.f32 %v5616, %v5744
    %5760 = vmatprep.subr.mxu0 0.0
    %5761 = vmatpush1.msra.mxu0 %v530
    %5762 = vmatprep.subr.mxu0 0.0
    %5763 = vmatpush1.msra.mxu0 %v531
    %5764 = vmatprep.subr.mxu0 0.0
    %5765 = vmatpush1.msra.mxu0 %v532
    %5766 = vmatprep.subr.mxu0 0.0
    %5767 = vmatpush1.msra.mxu0 %v533
    %5768 = vmatprep.subr.mxu0 0.0
    %5769 = vmatpush1.msra.mxu0 0.0
    %5770 = vmatprep.subr.mxu0 0.0
    %5771 = vmatpush1.msra.mxu0 0.0
    %5772 = vmatprep.subr.mxu0 0.0
    %5773 = vmatpush1.msra.mxu0 0.0
    %5774 = vmatprep.subr.mxu0 0.0
    %5775 = vmatpush1.msra.mxu0 0.0
    %5776 = vmatprep.subr.mxu0 0.0
    %5777 = vmatpush1.msra.mxu0 0.0
    %5778 = vmatprep.subr.mxu0 0.0
    %5779 = vmatpush1.msra.mxu0 0.0
    %5780 = vmatprep.subr.mxu0 0.0
    %5781 = vmatpush1.msra.mxu0 0.0
    %5782 = vmatprep.subr.mxu0 0.0
    %5783 = vmatpush1.msra.mxu0 0.0
    %5784 = vmatprep.subr.mxu0 0.0
    %5785 = vmatpush1.msra.mxu0 0.0
    %5786 = vmatprep.subr.mxu0 0.0
    %5787 = vmatpush1.msra.mxu0 0.0
    %5788 = vmatprep.subr.mxu0 0.0
    %5789 = vmatpush1.msra.mxu0 0.0
    %5790 = vmatprep.subr.mxu0 0.0
    %5791 = vmatpush1.msra.mxu0 0.0
    %5792 = vmatprep.subr.mxu0 0.0
    %5793 = vmatpush1.msra.mxu0 0.0
    %5794 = vmatprep.subr.mxu0 0.0
    %5795 = vmatpush1.msra.mxu0 0.0
    %5796 = vmatprep.subr.mxu0 0.0
    %5797 = vmatpush1.msra.mxu0 0.0
    %5798 = vmatprep.subr.mxu0 0.0
    %5799 = vmatpush1.msra.mxu0 0.0
    %5800 = vmatprep.subr.mxu0 0.0
    %5801 = vmatpush1.msra.mxu0 0.0
    %5802 = vmatprep.subr.mxu0 0.0
    %5803 = vmatpush1.msra.mxu0 0.0
    %5804 = vmatprep.subr.mxu0 0.0
    %5805 = vmatpush1.msra.mxu0 0.0
    %5806 = vmatprep.subr.mxu0 0.0
    %5807 = vmatpush1.msra.mxu0 0.0
    %5808 = vmatprep.subr.mxu0 0.0
    %5809 = vmatpush1.msra.mxu0 0.0
    %5810 = vmatprep.subr.mxu0 0.0
    %5811 = vmatpush1.msra.mxu0 0.0
    %5812 = vmatprep.subr.mxu0 0.0
    %5813 = vmatpush1.msra.mxu0 0.0
    %5814 = vmatprep.subr.mxu0 0.0
    %5815 = vmatpush1.msra.mxu0 0.0
    %5816 = vmatprep.subr.mxu0 0.0
    %5817 = vmatpush1.msra.mxu0 0.0
    %5818 = vmatprep.subr.mxu0 0.0
    %5819 = vmatpush1.msra.mxu0 0.0
    %5820 = vmatprep.subr.mxu0 0.0
    %5821 = vmatpush1.msra.mxu0 0.0
    %5822 = vmatprep.subr.mxu0 0.0
    %5823 = vmatpush1.msra.mxu0 0.0
    %5824 = vmatprep.mubr.f32.mxu0 0.0
    %5825 = vmatmul.mubr.f32.gmra.mrb[0].mxu0 %v3472
    %v5826 = vpop.f32.mrb[0].mxu0
    %v5827 = vadd.f32 0.0, %v5826
    %v5828 = vpop.f32.mrb[0].mxu0
    %5829 = vmatprep.mubr.f32.mxu0 0.0
    %5830 = vmatmul.mubr.f32.gmra.mrb[0].mxu0 %v3474
    %v5831 = vpop.f32.mrb[0].mxu0
    %v5832 = vadd.f32 0.0, %v5831
    %v5833 = vpop.f32.mrb[0].mxu0
    %5834 = vmatprep.mubr.f32.mxu0 0.0
    %5835 = vmatmul.mubr.f32.gmra.mrb[0].mxu0 %v3476
    %v5836 = vpop.f32.mrb[0].mxu0
    %v5837 = vadd.f32 0.0, %v5836
    %v5838 = vpop.f32.mrb[0].mxu0
    %5839 = vmatprep.mubr.f32.mxu0 0.0
    %5840 = vmatmul.mubr.f32.gmra.mrb[0].mxu0 %v3478
    %v5841 = vpop.f32.mrb[0].mxu0
    %v5842 = vadd.f32 0.0, %v5841
    %v5843 = vpop.f32.mrb[0].mxu0
    %5844 = vmatprep.mubr.f32.mxu0 0.0
    %5845 = vmatmul.mubr.f32.gmra.mrb[0].mxu0 %v3480
    %v5846 = vpop.f32.mrb[0].mxu0
    %v5847 = vadd.f32 0.0, %v5846
    %v5848 = vpop.f32.mrb[0].mxu0
    %5849 = vmatprep.mubr.f32.mxu0 0.0
    %5850 = vmatmul.mubr.f32.gmra.mrb[0].mxu0 %v3482
    %v5851 = vpop.f32.mrb[0].mxu0
    %v5852 = vadd.f32 0.0, %v5851
    %v5853 = vpop.f32.mrb[0].mxu0
    %5854 = vmatprep.mubr.f32.mxu0 0.0
    %5855 = vmatmul.mubr.f32.gmra.mrb[0].mxu0 %v3484
    %v5856 = vpop.f32.mrb[0].mxu0
    %v5857 = vadd.f32 0.0, %v5856
    %v5858 = vpop.f32.mrb[0].mxu0
    %5859 = vmatprep.mubr.f32.mxu0 0.0
    %5860 = vmatmul.mubr.f32.gmra.mrb[0].mxu0 %v3486
    %v5861 = vpop.f32.mrb[0].mxu0
    %v5862 = vadd.f32 0.0, %v5861
    %v5863 = vpop.f32.mrb[0].mxu0
    %5864 = vmatprep.mubr.f32.mxu0 0.0
    %5865 = vmatmul.mubr.f32.gmra.mrb[0].mxu0 %v3488
    %v5866 = vpop.f32.mrb[0].mxu0
    %v5867 = vadd.f32 0.0, %v5866
    %v5868 = vpop.f32.mrb[0].mxu0
    %5869 = vmatprep.mubr.f32.mxu0 0.0
    %5870 = vmatmul.mubr.f32.gmra.mrb[0].mxu0 %v3490
    %v5871 = vpop.f32.mrb[0].mxu0
    %v5872 = vadd.f32 0.0, %v5871
    %v5873 = vpop.f32.mrb[0].mxu0
    %5874 = vmatprep.mubr.f32.mxu0 0.0
    %5875 = vmatmul.mubr.f32.gmra.mrb[0].mxu0 %v3492
    %v5876 = vpop.f32.mrb[0].mxu0
    %v5877 = vadd.f32 0.0, %v5876
    %v5878 = vpop.f32.mrb[0].mxu0
    %5879 = vmatprep.mubr.f32.mxu0 0.0
    %5880 = vmatmul.mubr.f32.gmra.mrb[0].mxu0 %v3494
    %v5881 = vpop.f32.mrb[0].mxu0
    %v5882 = vadd.f32 0.0, %v5881
    %v5883 = vpop.f32.mrb[0].mxu0
    %5884 = vmatprep.mubr.f32.mxu0 0.0
    %5885 = vmatmul.mubr.f32.gmra.mrb[0].mxu0 %v3496
    %v5886 = vpop.f32.mrb[0].mxu0
    %v5887 = vadd.f32 0.0, %v5886
    %v5888 = vpop.f32.mrb[0].mxu0
    %5889 = vdwg.mxu0
    %v5890 = vadd.f32 %v5747, %v5827
    %v5891 = vadd.f32 %v5748, %v5832
    %v5892 = vadd.f32 %v5749, %v5837
    %v5893 = vadd.f32 %v5750, %v5842
    %v5894 = vadd.f32 %v5751, %v5847
    %v5895 = vadd.f32 %v5752, %v5852
    %v5896 = vadd.f32 %v5753, %v5857
    %v5897 = vadd.f32 %v5754, %v5862
    %v5898 = vadd.f32 %v5755, %v5867
    %v5899 = vadd.f32 %v5756, %v5872
    %v5900 = vadd.f32 %v5757, %v5877
    %v5901 = vadd.f32 %v5758, %v5882
    %v5902 = vadd.f32 %v5759, %v5887
    %5903 = vmatprep.subr.mxu0 0.0
    %5904 = vmatpush1.msra.mxu0 %v534
    %5905 = vmatprep.subr.mxu0 0.0
    %5906 = vmatpush1.msra.mxu0 %v535
    %5907 = vmatprep.subr.mxu0 0.0
    %5908 = vmatpush1.msra.mxu0 %v536
    %5909 = vmatprep.subr.mxu0 0.0
    %5910 = vmatpush1.msra.mxu0 %v537
    %5911 = vmatprep.subr.mxu0 0.0
    %5912 = vmatpush1.msra.mxu0 0.0
    %5913 = vmatprep.subr.mxu0 0.0
    %5914 = vmatpush1.msra.mxu0 0.0
    %5915 = vmatprep.subr.mxu0 0.0
    %5916 = vmatpush1.msra.mxu0 0.0
    %5917 = vmatprep.subr.mxu0 0.0
    %5918 = vmatpush1.msra.mxu0 0.0
    %5919 = vmatprep.subr.mxu0 0.0
    %5920 = vmatpush1.msra.mxu0 0.0
    %5921 = vmatprep.subr.mxu0 0.0
    %5922 = vmatpush1.msra.mxu0 0.0
    %5923 = vmatprep.subr.mxu0 0.0
    %5924 = vmatpush1.msra.mxu0 0.0
    %5925 = vmatprep.subr.mxu0 0.0
    %5926 = vmatpush1.msra.mxu0 0.0
    %5927 = vmatprep.subr.mxu0 0.0
    %5928 = vmatpush1.msra.mxu0 0.0
    %5929 = vmatprep.subr.mxu0 0.0
    %5930 = vmatpush1.msra.mxu0 0.0
    %5931 = vmatprep.subr.mxu0 0.0
    %5932 = vmatpush1.msra.mxu0 0.0
    %5933 = vmatprep.subr.mxu0 0.0
    %5934 = vmatpush1.msra.mxu0 0.0
    %5935 = vmatprep.subr.mxu0 0.0
    %5936 = vmatpush1.msra.mxu0 0.0
    %5937 = vmatprep.subr.mxu0 0.0
    %5938 = vmatpush1.msra.mxu0 0.0
    %5939 = vmatprep.subr.mxu0 0.0
    %5940 = vmatpush1.msra.mxu0 0.0
    %5941 = vmatprep.subr.mxu0 0.0
    %5942 = vmatpush1.msra.mxu0 0.0
    %5943 = vmatprep.subr.mxu0 0.0
    %5944 = vmatpush1.msra.mxu0 0.0
    %5945 = vmatprep.subr.mxu0 0.0
    %5946 = vmatpush1.msra.mxu0 0.0
    %5947 = vmatprep.subr.mxu0 0.0
    %5948 = vmatpush1.msra.mxu0 0.0
    %5949 = vmatprep.subr.mxu0 0.0
    %5950 = vmatpush1.msra.mxu0 0.0
    %5951 = vmatprep.subr.mxu0 0.0
    %5952 = vmatpush1.msra.mxu0 0.0
    %5953 = vmatprep.subr.mxu0 0.0
    %5954 = vmatpush1.msra.mxu0 0.0
    %5955 = vmatprep.subr.mxu0 0.0
    %5956 = vmatpush1.msra.mxu0 0.0
    %5957 = vmatprep.subr.mxu0 0.0
    %5958 = vmatpush1.msra.mxu0 0.0
    %5959 = vmatprep.subr.mxu0 0.0
    %5960 = vmatpush1.msra.mxu0 0.0
    %5961 = vmatprep.subr.mxu0 0.0
    %5962 = vmatpush1.msra.mxu0 0.0
    %5963 = vmatprep.subr.mxu0 0.0
    %5964 = vmatpush1.msra.mxu0 0.0
    %5965 = vmatprep.subr.mxu0 0.0
    %5966 = vmatpush1.msra.mxu0 0.0
    %5967 = vmatprep.mubr.f32.mxu0 0.0
    %5968 = vmatmul.mubr.f32.gmra.mrb[0].mxu0 %v4707
    %v5969 = vpop.f32.mrb[0].mxu0
    %v5970 = vadd.f32 0.0, %v5969
    %v5971 = vpop.f32.mrb[0].mxu0
    %5972 = vmatprep.mubr.f32.mxu0 0.0
    %5973 = vmatmul.mubr.f32.gmra.mrb[0].mxu0 %v4709
    %v5974 = vpop.f32.mrb[0].mxu0
    %v5975 = vadd.f32 0.0, %v5974
    %v5976 = vpop.f32.mrb[0].mxu0
    %5977 = vmatprep.mubr.f32.mxu0 0.0
    %5978 = vmatmul.mubr.f32.gmra.mrb[0].mxu0 %v4711
    %v5979 = vpop.f32.mrb[0].mxu0
    %v5980 = vadd.f32 0.0, %v5979
    %v5981 = vpop.f32.mrb[0].mxu0
    %5982 = vmatprep.mubr.f32.mxu0 0.0
    %5983 = vmatmul.mubr.f32.gmra.mrb[0].mxu0 %v4713
    %v5984 = vpop.f32.mrb[0].mxu0
    %v5985 = vadd.f32 0.0, %v5984
    %v5986 = vpop.f32.mrb[0].mxu0
    %5987 = vmatprep.mubr.f32.mxu0 0.0
    %5988 = vmatmul.mubr.f32.gmra.mrb[0].mxu0 %v4715
    %v5989 = vpop.f32.mrb[0].mxu0
    %v5990 = vadd.f32 0.0, %v5989
    %v5991 = vpop.f32.mrb[0].mxu0
    %5992 = vmatprep.mubr.f32.mxu0 0.0
    %5993 = vmatmul.mubr.f32.gmra.mrb[0].mxu0 %v4717
    %v5994 = vpop.f32.mrb[0].mxu0
    %v5995 = vadd.f32 0.0, %v5994
    %v5996 = vpop.f32.mrb[0].mxu0
    %5997 = vmatprep.mubr.f32.mxu0 0.0
    %5998 = vmatmul.mubr.f32.gmra.mrb[0].mxu0 %v4719
    %v5999 = vpop.f32.mrb[0].mxu0
    %v6000 = vadd.f32 0.0, %v5999
    %v6001 = vpop.f32.mrb[0].mxu0
    %6002 = vmatprep.mubr.f32.mxu0 0.0
    %6003 = vmatmul.mubr.f32.gmra.mrb[0].mxu0 %v4721
    %v6004 = vpop.f32.mrb[0].mxu0
    %v6005 = vadd.f32 0.0, %v6004
    %v6006 = vpop.f32.mrb[0].mxu0
    %6007 = vmatprep.mubr.f32.mxu0 0.0
    %6008 = vmatmul.mubr.f32.gmra.mrb[0].mxu0 %v4723
    %v6009 = vpop.f32.mrb[0].mxu0
    %v6010 = vadd.f32 0.0, %v6009
    %v6011 = vpop.f32.mrb[0].mxu0
    %6012 = vmatprep.mubr.f32.mxu0 0.0
    %6013 = vmatmul.mubr.f32.gmra.mrb[0].mxu0 %v4725
    %v6014 = vpop.f32.mrb[0].mxu0
    %v6015 = vadd.f32 0.0, %v6014
    %v6016 = vpop.f32.mrb[0].mxu0
    %6017 = vmatprep.mubr.f32.mxu0 0.0
    %6018 = vmatmul.mubr.f32.gmra.mrb[0].mxu0 %v4727
    %v6019 = vpop.f32.mrb[0].mxu0
    %v6020 = vadd.f32 0.0, %v6019
    %v6021 = vpop.f32.mrb[0].mxu0
    %6022 = vmatprep.mubr.f32.mxu0 0.0
    %6023 = vmatmul.mubr.f32.gmra.mrb[0].mxu0 %v4729
    %v6024 = vpop.f32.mrb[0].mxu0
    %v6025 = vadd.f32 0.0, %v6024
    %v6026 = vpop.f32.mrb[0].mxu0
    %6027 = vmatprep.mubr.f32.mxu0 0.0
    %6028 = vmatmul.mubr.f32.gmra.mrb[0].mxu0 %v4731
    %v6029 = vpop.f32.mrb[0].mxu0
    %v6030 = vadd.f32 0.0, %v6029
    %v6031 = vpop.f32.mrb[0].mxu0
    %6032 = vdwg.mxu0
    %v6033 = vadd.f32 %v5890, %v5970
    %v6034 = vadd.f32 %v5891, %v5975
    %v6035 = vadd.f32 %v5892, %v5980
    %v6036 = vadd.f32 %v5893, %v5985
    %v6037 = vadd.f32 %v5894, %v5990
    %v6038 = vadd.f32 %v5895, %v5995
    %v6039 = vadd.f32 %v5896, %v6000
    %v6040 = vadd.f32 %v5897, %v6005
    %v6041 = vadd.f32 %v5898, %v6010
    %v6042 = vadd.f32 %v5899, %v6015
    %v6043 = vadd.f32 %v5900, %v6020
    %v6044 = vadd.f32 %v5901, %v6025
    %v6045 = vadd.f32 %v5902, %v6030
    %6046 = vmatprep.subr.mxu0 0.0
    %6047 = vmatpush1.msra.mxu0 %v538
    %6048 = vmatprep.subr.mxu0 0.0
    %6049 = vmatpush1.msra.mxu0 %v539
    %6050 = vmatprep.subr.mxu0 0.0
    %6051 = vmatpush1.msra.mxu0 %v540
    %6052 = vmatprep.subr.mxu0 0.0
    %6053 = vmatpush1.msra.mxu0 %v541
    %6054 = vmatprep.subr.mxu0 0.0
    %6055 = vmatpush1.msra.mxu0 0.0
    %6056 = vmatprep.subr.mxu0 0.0
    %6057 = vmatpush1.msra.mxu0 0.0
    %6058 = vmatprep.subr.mxu0 0.0
    %6059 = vmatpush1.msra.mxu0 0.0
    %6060 = vmatprep.subr.mxu0 0.0
    %6061 = vmatpush1.msra.mxu0 0.0
    %6062 = vmatprep.subr.mxu0 0.0
    %6063 = vmatpush1.msra.mxu0 0.0
    %6064 = vmatprep.subr.mxu0 0.0
    %6065 = vmatpush1.msra.mxu0 0.0
    %6066 = vmatprep.subr.mxu0 0.0
    %6067 = vmatpush1.msra.mxu0 0.0
    %6068 = vmatprep.subr.mxu0 0.0
    %6069 = vmatpush1.msra.mxu0 0.0
    %6070 = vmatprep.subr.mxu0 0.0
    %6071 = vmatpush1.msra.mxu0 0.0
    %6072 = vmatprep.subr.mxu0 0.0
    %6073 = vmatpush1.msra.mxu0 0.0
    %6074 = vmatprep.subr.mxu0 0.0
    %6075 = vmatpush1.msra.mxu0 0.0
    %6076 = vmatprep.subr.mxu0 0.0
    %6077 = vmatpush1.msra.mxu0 0.0
    %6078 = vmatprep.subr.mxu0 0.0
    %6079 = vmatpush1.msra.mxu0 0.0
    %6080 = vmatprep.subr.mxu0 0.0
    %6081 = vmatpush1.msra.mxu0 0.0
    %6082 = vmatprep.subr.mxu0 0.0
    %6083 = vmatpush1.msra.mxu0 0.0
    %6084 = vmatprep.subr.mxu0 0.0
    %6085 = vmatpush1.msra.mxu0 0.0
    %6086 = vmatprep.subr.mxu0 0.0
    %6087 = vmatpush1.msra.mxu0 0.0
    %6088 = vmatprep.subr.mxu0 0.0
    %6089 = vmatpush1.msra.mxu0 0.0
    %6090 = vmatprep.subr.mxu0 0.0
    %6091 = vmatpush1.msra.mxu0 0.0
    %6092 = vmatprep.subr.mxu0 0.0
    %6093 = vmatpush1.msra.mxu0 0.0
    %6094 = vmatprep.subr.mxu0 0.0
    %6095 = vmatpush1.msra.mxu0 0.0
    %6096 = vmatprep.subr.mxu0 0.0
    %6097 = vmatpush1.msra.mxu0 0.0
    %6098 = vmatprep.subr.mxu0 0.0
    %6099 = vmatpush1.msra.mxu0 0.0
    %6100 = vmatprep.subr.mxu0 0.0
    %6101 = vmatpush1.msra.mxu0 0.0
    %6102 = vmatprep.subr.mxu0 0.0
    %6103 = vmatpush1.msra.mxu0 0.0
    %6104 = vmatprep.subr.mxu0 0.0
    %6105 = vmatpush1.msra.mxu0 0.0
    %6106 = vmatprep.subr.mxu0 0.0
    %6107 = vmatpush1.msra.mxu0 0.0
    %6108 = vmatprep.subr.mxu0 0.0
    %6109 = vmatpush1.msra.mxu0 0.0
    %6110 = vmatprep.mubr.f32.mxu0 0.0
    %6111 = vmatmul.mubr.f32.gmra.mrb[0].mxu0 %v4902
    %v6112 = vpop.f32.mrb[0].mxu0
    %v6113 = vadd.f32 0.0, %v6112
    %v6114 = vpop.f32.mrb[0].mxu0
    %6115 = vmatprep.mubr.f32.mxu0 0.0
    %6116 = vmatmul.mubr.f32.gmra.mrb[0].mxu0 %v4904
    %v6117 = vpop.f32.mrb[0].mxu0
    %v6118 = vadd.f32 0.0, %v6117
    %v6119 = vpop.f32.mrb[0].mxu0
    %6120 = vmatprep.mubr.f32.mxu0 0.0
    %6121 = vmatmul.mubr.f32.gmra.mrb[0].mxu0 %v4906
    %v6122 = vpop.f32.mrb[0].mxu0
    %v6123 = vadd.f32 0.0, %v6122
    %v6124 = vpop.f32.mrb[0].mxu0
    %6125 = vmatprep.mubr.f32.mxu0 0.0
    %6126 = vmatmul.mubr.f32.gmra.mrb[0].mxu0 %v4908
    %v6127 = vpop.f32.mrb[0].mxu0
    %v6128 = vadd.f32 0.0, %v6127
    %v6129 = vpop.f32.mrb[0].mxu0
    %6130 = vmatprep.mubr.f32.mxu0 0.0
    %6131 = vmatmul.mubr.f32.gmra.mrb[0].mxu0 %v4910
    %v6132 = vpop.f32.mrb[0].mxu0
    %v6133 = vadd.f32 0.0, %v6132
    %v6134 = vpop.f32.mrb[0].mxu0
    %6135 = vmatprep.mubr.f32.mxu0 0.0
    %6136 = vmatmul.mubr.f32.gmra.mrb[0].mxu0 %v4912
    %v6137 = vpop.f32.mrb[0].mxu0
    %v6138 = vadd.f32 0.0, %v6137
    %v6139 = vpop.f32.mrb[0].mxu0
    %6140 = vmatprep.mubr.f32.mxu0 0.0
    %6141 = vmatmul.mubr.f32.gmra.mrb[0].mxu0 %v4914
    %v6142 = vpop.f32.mrb[0].mxu0
    %v6143 = vadd.f32 0.0, %v6142
    %v6144 = vpop.f32.mrb[0].mxu0
    %6145 = vmatprep.mubr.f32.mxu0 0.0
    %6146 = vmatmul.mubr.f32.gmra.mrb[0].mxu0 %v4916
    %v6147 = vpop.f32.mrb[0].mxu0
    %v6148 = vadd.f32 0.0, %v6147
    %v6149 = vpop.f32.mrb[0].mxu0
    %6150 = vmatprep.mubr.f32.mxu0 0.0
    %6151 = vmatmul.mubr.f32.gmra.mrb[0].mxu0 %v4918
    %v6152 = vpop.f32.mrb[0].mxu0
    %v6153 = vadd.f32 0.0, %v6152
    %v6154 = vpop.f32.mrb[0].mxu0
    %6155 = vmatprep.mubr.f32.mxu0 0.0
    %6156 = vmatmul.mubr.f32.gmra.mrb[0].mxu0 %v4920
    %v6157 = vpop.f32.mrb[0].mxu0
    %v6158 = vadd.f32 0.0, %v6157
    %v6159 = vpop.f32.mrb[0].mxu0
    %6160 = vmatprep.mubr.f32.mxu0 0.0
    %6161 = vmatmul.mubr.f32.gmra.mrb[0].mxu0 %v4922
    %v6162 = vpop.f32.mrb[0].mxu0
    %v6163 = vadd.f32 0.0, %v6162
    %v6164 = vpop.f32.mrb[0].mxu0
    %6165 = vmatprep.mubr.f32.mxu0 0.0
    %6166 = vmatmul.mubr.f32.gmra.mrb[0].mxu0 %v4924
    %v6167 = vpop.f32.mrb[0].mxu0
    %v6168 = vadd.f32 0.0, %v6167
    %v6169 = vpop.f32.mrb[0].mxu0
    %6170 = vmatprep.mubr.f32.mxu0 0.0
    %6171 = vmatmul.mubr.f32.gmra.mrb[0].mxu0 %v4926
    %v6172 = vpop.f32.mrb[0].mxu0
    %v6173 = vadd.f32 0.0, %v6172
    %v6174 = vpop.f32.mrb[0].mxu0
    %6175 = vdwg.mxu0
    %v6176 = vadd.f32 %v6033, %v6113
    %v6177 = vadd.f32 %v6034, %v6118
    %v6178 = vadd.f32 %v6035, %v6123
    %v6179 = vadd.f32 %v6036, %v6128
    %v6180 = vadd.f32 %v6037, %v6133
    %v6181 = vadd.f32 %v6038, %v6138
    %v6182 = vadd.f32 %v6039, %v6143
    %v6183 = vadd.f32 %v6040, %v6148
    %v6184 = vadd.f32 %v6041, %v6153
    %v6185 = vadd.f32 %v6042, %v6158
    %v6186 = vadd.f32 %v6043, %v6163
    %v6187 = vadd.f32 %v6044, %v6168
    %v6188 = vadd.f32 %v6045, %v6173
    %6189 = vrot.lane.b32.xlu0 %v461, 32
    %v6190 = vpop.permute.xlu0 %6189
    %6191 = vrot.lane.b32.xlu0 %v465, 32
    %v6192 = vpop.permute.xlu0 %6191
    %6193 = vrot.lane.b32.xlu0 %v469, 32
    %v6194 = vpop.permute.xlu0 %6193
    %6195 = vrot.lane.b32.xlu0 %v473, 32
    %v6196 = vpop.permute.xlu0 %6195
    %6197 = vrot.lane.b32.xlu0 %v477, 32
    %v6198 = vpop.permute.xlu0 %6197
    %6199 = vrot.lane.b32.xlu0 %v481, 32
    %v6200 = vpop.permute.xlu0 %6199
    %6201 = vrot.lane.b32.xlu0 %v485, 32
    %v6202 = vpop.permute.xlu0 %6201
    %6203 = vrot.lane.b32.xlu0 %v489, 32
    %v6204 = vpop.permute.xlu0 %6203
    %6205 = vrot.lane.b32.xlu0 %v493, 32
    %v6206 = vpop.permute.xlu0 %6205
    %6207 = vrot.lane.b32.xlu0 %v497, 32
    %v6208 = vpop.permute.xlu0 %6207
    %6209 = vrot.lane.b32.xlu0 %v501, 32
    %v6210 = vpop.permute.xlu0 %6209
    %6211 = vrot.lane.b32.xlu0 %v505, 32
    %v6212 = vpop.permute.xlu0 %6211
    %6213 = vrot.lane.b32.xlu0 %v509, 32
    %v6214 = vpop.permute.xlu0 %6213
    %v6215 = vsel %vm546, %v6190, 0
    %v6217 = vsel %vm546, %v6192, 0
    %v6219 = vsel %vm546, %v6194, 0
    %v6221 = vsel %vm546, %v6196, 0
    %v6223 = vsel %vm546, %v6198, 0
    %v6225 = vsel %vm546, %v6200, 0
    %v6227 = vsel %vm546, %v6202, 0
    %v6229 = vsel %vm546, %v6204, 0
    %v6231 = vsel %vm546, %v6206, 0
    %v6233 = vsel %vm546, %v6208, 0
    %v6235 = vsel %vm546, %v6210, 0
    %v6237 = vsel %vm546, %v6212, 0
    %v6239 = vsel %vm546, %v6214, 0
    %6241 = vmatprep.subr.mxu0 0.0
    %6242 = vmatpush1.msra.mxu0 %v542
    %6243 = vmatprep.subr.mxu0 0.0
    %6244 = vmatpush1.msra.mxu0 %v543
    %6245 = vmatprep.subr.mxu0 0.0
    %6246 = vmatpush1.msra.mxu0 %v544
    %6247 = vmatprep.subr.mxu0 0.0
    %6248 = vmatpush1.msra.mxu0 %v545
    %6249 = vmatprep.subr.mxu0 0.0
    %6250 = vmatpush1.msra.mxu0 0.0
    %6251 = vmatprep.subr.mxu0 0.0
    %6252 = vmatpush1.msra.mxu0 0.0
    %6253 = vmatprep.subr.mxu0 0.0
    %6254 = vmatpush1.msra.mxu0 0.0
    %6255 = vmatprep.subr.mxu0 0.0
    %6256 = vmatpush1.msra.mxu0 0.0
    %6257 = vmatprep.subr.mxu0 0.0
    %6258 = vmatpush1.msra.mxu0 0.0
    %6259 = vmatprep.subr.mxu0 0.0
    %6260 = vmatpush1.msra.mxu0 0.0
    %6261 = vmatprep.subr.mxu0 0.0
    %6262 = vmatpush1.msra.mxu0 0.0
    %6263 = vmatprep.subr.mxu0 0.0
    %6264 = vmatpush1.msra.mxu0 0.0
    %6265 = vmatprep.subr.mxu0 0.0
    %6266 = vmatpush1.msra.mxu0 0.0
    %6267 = vmatprep.subr.mxu0 0.0
    %6268 = vmatpush1.msra.mxu0 0.0
    %6269 = vmatprep.subr.mxu0 0.0
    %6270 = vmatpush1.msra.mxu0 0.0
    %6271 = vmatprep.subr.mxu0 0.0
    %6272 = vmatpush1.msra.mxu0 0.0
    %6273 = vmatprep.subr.mxu0 0.0
    %6274 = vmatpush1.msra.mxu0 0.0
    %6275 = vmatprep.subr.mxu0 0.0
    %6276 = vmatpush1.msra.mxu0 0.0
    %6277 = vmatprep.subr.mxu0 0.0
    %6278 = vmatpush1.msra.mxu0 0.0
    %6279 = vmatprep.subr.mxu0 0.0
    %6280 = vmatpush1.msra.mxu0 0.0
    %6281 = vmatprep.subr.mxu0 0.0
    %6282 = vmatpush1.msra.mxu0 0.0
    %6283 = vmatprep.subr.mxu0 0.0
    %6284 = vmatpush1.msra.mxu0 0.0
    %6285 = vmatprep.subr.mxu0 0.0
    %6286 = vmatpush1.msra.mxu0 0.0
    %6287 = vmatprep.subr.mxu0 0.0
    %6288 = vmatpush1.msra.mxu0 0.0
    %6289 = vmatprep.subr.mxu0 0.0
    %6290 = vmatpush1.msra.mxu0 0.0
    %6291 = vmatprep.subr.mxu0 0.0
    %6292 = vmatpush1.msra.mxu0 0.0
    %6293 = vmatprep.subr.mxu0 0.0
    %6294 = vmatpush1.msra.mxu0 0.0
    %6295 = vmatprep.subr.mxu0 0.0
    %6296 = vmatpush1.msra.mxu0 0.0
    %6297 = vmatprep.subr.mxu0 0.0
    %6298 = vmatpush1.msra.mxu0 0.0
    %6299 = vmatprep.subr.mxu0 0.0
    %6300 = vmatpush1.msra.mxu0 0.0
    %6301 = vmatprep.subr.mxu0 0.0
    %6302 = vmatpush1.msra.mxu0 0.0
    %6303 = vmatprep.subr.mxu0 0.0
    %6304 = vmatpush1.msra.mxu0 0.0
    %6305 = vmatprep.mubr.f32.mxu0 0.0
    %6306 = vmatmul.mubr.f32.gmra.mrb[0].mxu0 %v6215
    %v6307 = vpop.f32.mrb[0].mxu0
    %v6308 = vadd.f32 0.0, %v6307
    %v6309 = vpop.f32.mrb[0].mxu0
    %6310 = vmatprep.mubr.f32.mxu0 0.0
    %6311 = vmatmul.mubr.f32.gmra.mrb[0].mxu0 %v6217
    %v6312 = vpop.f32.mrb[0].mxu0
    %v6313 = vadd.f32 0.0, %v6312
    %v6314 = vpop.f32.mrb[0].mxu0
    %6315 = vmatprep.mubr.f32.mxu0 0.0
    %6316 = vmatmul.mubr.f32.gmra.mrb[0].mxu0 %v6219
    %v6317 = vpop.f32.mrb[0].mxu0
    %v6318 = vadd.f32 0.0, %v6317
    %v6319 = vpop.f32.mrb[0].mxu0
    %6320 = vmatprep.mubr.f32.mxu0 0.0
    %6321 = vmatmul.mubr.f32.gmra.mrb[0].mxu0 %v6221
    %v6322 = vpop.f32.mrb[0].mxu0
    %v6323 = vadd.f32 0.0, %v6322
    %v6324 = vpop.f32.mrb[0].mxu0
    %6325 = vmatprep.mubr.f32.mxu0 0.0
    %6326 = vmatmul.mubr.f32.gmra.mrb[0].mxu0 %v6223
    %v6327 = vpop.f32.mrb[0].mxu0
    %v6328 = vadd.f32 0.0, %v6327
    %v6329 = vpop.f32.mrb[0].mxu0
    %6330 = vmatprep.mubr.f32.mxu0 0.0
    %6331 = vmatmul.mubr.f32.gmra.mrb[0].mxu0 %v6225
    %v6332 = vpop.f32.mrb[0].mxu0
    %v6333 = vadd.f32 0.0, %v6332
    %v6334 = vpop.f32.mrb[0].mxu0
    %6335 = vmatprep.mubr.f32.mxu0 0.0
    %6336 = vmatmul.mubr.f32.gmra.mrb[0].mxu0 %v6227
    %v6337 = vpop.f32.mrb[0].mxu0
    %v6338 = vadd.f32 0.0, %v6337
    %v6339 = vpop.f32.mrb[0].mxu0
    %6340 = vmatprep.mubr.f32.mxu0 0.0
    %6341 = vmatmul.mubr.f32.gmra.mrb[0].mxu0 %v6229
    %v6342 = vpop.f32.mrb[0].mxu0
    %v6343 = vadd.f32 0.0, %v6342
    %v6344 = vpop.f32.mrb[0].mxu0
    %6345 = vmatprep.mubr.f32.mxu0 0.0
    %6346 = vmatmul.mubr.f32.gmra.mrb[0].mxu0 %v6231
    %v6347 = vpop.f32.mrb[0].mxu0
    %v6348 = vadd.f32 0.0, %v6347
    %v6349 = vpop.f32.mrb[0].mxu0
    %6350 = vmatprep.mubr.f32.mxu0 0.0
    %6351 = vmatmul.mubr.f32.gmra.mrb[0].mxu0 %v6233
    %v6352 = vpop.f32.mrb[0].mxu0
    %v6353 = vadd.f32 0.0, %v6352
    %v6354 = vpop.f32.mrb[0].mxu0
    %6355 = vmatprep.mubr.f32.mxu0 0.0
    %6356 = vmatmul.mubr.f32.gmra.mrb[0].mxu0 %v6235
    %v6357 = vpop.f32.mrb[0].mxu0
    %v6358 = vadd.f32 0.0, %v6357
    %v6359 = vpop.f32.mrb[0].mxu0
    %6360 = vmatprep.mubr.f32.mxu0 0.0
    %6361 = vmatmul.mubr.f32.gmra.mrb[0].mxu0 %v6237
    %v6362 = vpop.f32.mrb[0].mxu0
    %v6363 = vadd.f32 0.0, %v6362
    %v6364 = vpop.f32.mrb[0].mxu0
    %6365 = vmatprep.mubr.f32.mxu0 0.0
    %6366 = vmatmul.mubr.f32.gmra.mrb[0].mxu0 %v6239
    %v6367 = vpop.f32.mrb[0].mxu0
    %v6368 = vadd.f32 0.0, %v6367
    %v6369 = vpop.f32.mrb[0].mxu0
    %6370 = vdwg.mxu0
    %v6371 = vadd.f32 %v6176, %v6308
    %v6372 = vadd.f32 %v6177, %v6313
    %v6373 = vadd.f32 %v6178, %v6318
    %v6374 = vadd.f32 %v6179, %v6323
    %v6375 = vadd.f32 %v6180, %v6328
    %v6376 = vadd.f32 %v6181, %v6333
    %v6377 = vadd.f32 %v6182, %v6338
    %v6378 = vadd.f32 %v6183, %v6343
    %v6379 = vadd.f32 %v6184, %v6348
    %v6380 = vadd.f32 %v6185, %v6353
    %v6381 = vadd.f32 %v6186, %v6358
    %v6382 = vadd.f32 %v6187, %v6363
    %v6383 = vadd.f32 %v6188, %v6368
    %v6384 = vmax.f32 %v5058, %v6371
    %v6385 = vmax.f32 %v5059, %v6372
    %v6386 = vmax.f32 %v5060, %v6373
    %v6387 = vmax.f32 %v5061, %v6374
    %v6388 = vmax.f32 %v5062, %v6375
    %v6389 = vmax.f32 %v5063, %v6376
    %v6390 = vmax.f32 %v5064, %v6377
    %v6391 = vmax.f32 %v5065, %v6378
    %v6392 = vmax.f32 %v5066, %v6379
    %v6393 = vmax.f32 %v5067, %v6380
    %v6394 = vmax.f32 %v5068, %v6381
    %v6395 = vmax.f32 %v5069, %v6382
    %v6396 = vmax.f32 %v5070, %v6383
    %v6397 = vmax.f32 %v3641, %v6384
    %v6398 = vmax.f32 %v3642, %v6385
    %v6399 = vmax.f32 %v3643, %v6386
    %v6400 = vmax.f32 %v3644, %v6387
    %v6401 = vmax.f32 %v3645, %v6388
    %v6402 = vmax.f32 %v3646, %v6389
    %v6403 = vmax.f32 %v3647, %v6390
    %v6404 = vmax.f32 %v3648, %v6391
    %v6405 = vmax.f32 %v3649, %v6392
    %v6406 = vmax.f32 %v3650, %v6393
    %v6407 = vmax.f32 %v3651, %v6394
    %v6408 = vmax.f32 %v3652, %v6395
    %v6409 = vmax.f32 %v3653, %v6396
    %v6410 = vld [vmem:[%s2] sm:$0x1]
    %v6412 = vlaneseq
    %v6413 = vshrl.u32 %v6412, 7
    %v6414 = vsub.s32 0, %v6413
    %v6415 = vrot.slane %v6410, %v6414
    %v6417 = vadd.f32 %v6397, %v6415
    %v6418 = vadd.f32 %v6398, %v6415
    %v6419 = vadd.f32 %v6399, %v6415
    %v6420 = vadd.f32 %v6400, %v6415
    %v6421 = vadd.f32 %v6401, %v6415
    %v6422 = vadd.f32 %v6402, %v6415
    %v6423 = vadd.f32 %v6403, %v6415
    %v6424 = vadd.f32 %v6404, %v6415
    %v6425 = vadd.f32 %v6405, %v6415
    %v6426 = vadd.f32 %v6406, %v6415
    %v6427 = vadd.f32 %v6407, %v6415
    %v6428 = vadd.f32 %v6408, %v6415
    %v6429 = vadd.f32 %v6409, %v6415
    %v6430 = vmax.f32 %v6417, 0.0
    %v6431 = vmax.f32 %v6418, 0.0
    %v6432 = vmax.f32 %v6419, 0.0
    %v6433 = vmax.f32 %v6420, 0.0
    %v6434 = vmax.f32 %v6421, 0.0
    %v6435 = vmax.f32 %v6422, 0.0
    %v6436 = vmax.f32 %v6423, 0.0
    %v6437 = vmax.f32 %v6424, 0.0
    %v6438 = vmax.f32 %v6425, 0.0
    %v6439 = vmax.f32 %v6426, 0.0
    %v6440 = vmax.f32 %v6427, 0.0
    %v6441 = vmax.f32 %v6428, 0.0
    %v6442 = vmax.f32 %v6429, 0.0
    %s6443 = smul.u32 4, 392
    %s6444 = smul.u32 %s6443, 1
    %s6445 = sshll.u32 %s6444, 4
    %6446 = dma.done [#allocation3], %s6445
    %v6447 = vpack.c.bf16 %v6430, %v6430
    %v6448 = vld [vmem:[#allocation2] sm:$0xff]
    %v6449 = vld [vmem:[#allocation2 + $0x8] sm:$0xff]
    %v6450 = vld [vmem:[#allocation2 + $0x10] sm:$0xff]
    %v6451 = vld [vmem:[#allocation2 + $0x18] sm:$0xff]
    %v6452 = vld [vmem:[#allocation2 + $0x20] sm:$0xff]
    %v6453 = vld [vmem:[#allocation2 + $0x28] sm:$0xff]
    %v6454 = vld [vmem:[#allocation2 + $0x30] sm:$0xff]
    %v6455 = vld [vmem:[#allocation2 + $0x38] sm:$0xff]
    %v6457 = vrot.slane %v6447, 1
    %vm6458 = vcmask 523264
    %v6460 = vsel %vm6458, %v6457, 0
    %6462 = vmatprep.subr.bf16.mxu0 0
    %6463 = vmatpush1.bf16.msra.mxu0 %v6452
    %6464 = vmatprep.subr.bf16.mxu0 0
    %6465 = vmatpush1.bf16.msra.mxu0 %v6453
    %6466 = vmatprep.subr.bf16.mxu0 0
    %6467 = vmatpush1.bf16.msra.mxu0 %v6454
    %6468 = vmatprep.subr.bf16.mxu0 0
    %6469 = vmatpush1.bf16.msra.mxu0 %v6455
    %6470 = vmatprep.subr.bf16.mxu0 0
    %6471 = vmatpush1.bf16.msra.mxu0 0
    %6472 = vmatprep.subr.bf16.mxu0 0
    %6473 = vmatpush1.bf16.msra.mxu0 0
    %6474 = vmatprep.subr.bf16.mxu0 0
    %6475 = vmatpush1.bf16.msra.mxu0 0
    %6476 = vmatprep.subr.bf16.mxu0 0
    %6477 = vmatpush1.bf16.msra.mxu0 0
    %6478 = vmatprep.subr.bf16.mxu0 0
    %6479 = vmatpush1.bf16.msra.mxu0 0
    %6480 = vmatprep.subr.bf16.mxu0 0
    %6481 = vmatpush1.bf16.msra.mxu0 0
    %6482 = vmatprep.subr.bf16.mxu0 0
    %6483 = vmatpush1.bf16.msra.mxu0 0
    %6484 = vmatprep.subr.bf16.mxu0 0
    %6485 = vmatpush1.bf16.msra.mxu0 0
    %6486 = vmatprep.subr.bf16.mxu0 0
    %6487 = vmatpush1.bf16.msra.mxu0 0
    %6488 = vmatprep.subr.bf16.mxu0 0
    %6489 = vmatpush1.bf16.msra.mxu0 0
    %6490 = vmatprep.subr.bf16.mxu0 0
    %6491 = vmatpush1.bf16.msra.mxu0 0
    %6492 = vmatprep.subr.bf16.mxu0 0
    %6493 = vmatpush1.bf16.msra.mxu0 0
    %6494 = vmatprep.mubr.bf16.mxu0 0
    %6495 = vmatmul.mubr.bf16.gmra.mrb[0].mxu0 %v6460
    %v6496 = vpop.f32.mrb[0].mxu0
    %v6497 = vadd.f32 0.0, %v6496
    %v6498 = vpop.f32.mrb[0].mxu0
    %v6499 = vpop.f32.mrb[0].mxu0
    %v6500 = vpop.f32.mrb[0].mxu0
    %6501 = vdwg.mxu0
    %v6503 = vsel %vm6458, %v6447, 0
    %6505 = vmatprep.subr.bf16.mxu0 0
    %6506 = vmatpush1.bf16.msra.mxu0 %v6448
    %6507 = vmatprep.subr.bf16.mxu0 0
    %6508 = vmatpush1.bf16.msra.mxu0 %v6449
    %6509 = vmatprep.subr.bf16.mxu0 0
    %6510 = vmatpush1.bf16.msra.mxu0 %v6450
    %6511 = vmatprep.subr.bf16.mxu0 0
    %6512 = vmatpush1.bf16.msra.mxu0 %v6451
    %6513 = vmatprep.subr.bf16.mxu0 0
    %6514 = vmatpush1.bf16.msra.mxu0 0
    %6515 = vmatprep.subr.bf16.mxu0 0
    %6516 = vmatpush1.bf16.msra.mxu0 0
    %6517 = vmatprep.subr.bf16.mxu0 0
    %6518 = vmatpush1.bf16.msra.mxu0 0
    %6519 = vmatprep.subr.bf16.mxu0 0
    %6520 = vmatpush1.bf16.msra.mxu0 0
    %6521 = vmatprep.subr.bf16.mxu0 0
    %6522 = vmatpush1.bf16.msra.mxu0 0
    %6523 = vmatprep.subr.bf16.mxu0 0
    %6524 = vmatpush1.bf16.msra.mxu0 0
    %6525 = vmatprep.subr.bf16.mxu0 0
    %6526 = vmatpush1.bf16.msra.mxu0 0
    %6527 = vmatprep.subr.bf16.mxu0 0
    %6528 = vmatpush1.bf16.msra.mxu0 0
    %6529 = vmatprep.subr.bf16.mxu0 0
    %6530 = vmatpush1.bf16.msra.mxu0 0
    %6531 = vmatprep.subr.bf16.mxu0 0
    %6532 = vmatpush1.bf16.msra.mxu0 0
    %6533 = vmatprep.subr.bf16.mxu0 0
    %6534 = vmatpush1.bf16.msra.mxu0 0
    %6535 = vmatprep.subr.bf16.mxu0 0
    %6536 = vmatpush1.bf16.msra.mxu0 0
    %6537 = vmatprep.mubr.bf16.mxu0 0
    %6538 = vmatmul.mubr.bf16.gmra.mrb[0].mxu0 %v6503
    %v6539 = vpop.f32.mrb[0].mxu0
    %v6540 = vadd.f32 %v6497, %v6539
    %v6541 = vpop.f32.mrb[0].mxu0
    %v6542 = vpop.f32.mrb[0].mxu0
    %v6543 = vpop.f32.mrb[0].mxu0
    %6544 = vdwg.mxu0
    %v6545 = vld [vmem:[#allocation2 + $0x40] sm:$0xff]
    %v6546 = vld [vmem:[#allocation2 + $0x48] sm:$0xff]
    %v6547 = vld [vmem:[#allocation2 + $0x50] sm:$0xff]
    %v6548 = vld [vmem:[#allocation2 + $0x58] sm:$0xff]
    %v6549 = vrot.slane %v6447, 2
    %v6551 = vsel %vm6458, %v6549, 0
    %6553 = vmatprep.subr.bf16.mxu0 0
    %6554 = vmatpush1.bf16.msra.mxu0 %v6545
    %6555 = vmatprep.subr.bf16.mxu0 0
    %6556 = vmatpush1.bf16.msra.mxu0 %v6546
    %6557 = vmatprep.subr.bf16.mxu0 0
    %6558 = vmatpush1.bf16.msra.mxu0 %v6547
    %6559 = vmatprep.subr.bf16.mxu0 0
    %6560 = vmatpush1.bf16.msra.mxu0 %v6548
    %6561 = vmatprep.subr.bf16.mxu0 0
    %6562 = vmatpush1.bf16.msra.mxu0 0
    %6563 = vmatprep.subr.bf16.mxu0 0
    %6564 = vmatpush1.bf16.msra.mxu0 0
    %6565 = vmatprep.subr.bf16.mxu0 0
    %6566 = vmatpush1.bf16.msra.mxu0 0
    %6567 = vmatprep.subr.bf16.mxu0 0
    %6568 = vmatpush1.bf16.msra.mxu0 0
    %6569 = vmatprep.subr.bf16.mxu0 0
    %6570 = vmatpush1.bf16.msra.mxu0 0
    %6571 = vmatprep.subr.bf16.mxu0 0
    %6572 = vmatpush1.bf16.msra.mxu0 0
    %6573 = vmatprep.subr.bf16.mxu0 0
    %6574 = vmatpush1.bf16.msra.mxu0 0
    %6575 = vmatprep.subr.bf16.mxu0 0
    %6576 = vmatpush1.bf16.msra.mxu0 0
    %6577 = vmatprep.subr.bf16.mxu0 0
    %6578 = vmatpush1.bf16.msra.mxu0 0
    %6579 = vmatprep.subr.bf16.mxu0 0
    %6580 = vmatpush1.bf16.msra.mxu0 0
    %6581 = vmatprep.subr.bf16.mxu0 0
    %6582 = vmatpush1.bf16.msra.mxu0 0
    %6583 = vmatprep.subr.bf16.mxu0 0
    %6584 = vmatpush1.bf16.msra.mxu0 0
    %6585 = vmatprep.mubr.bf16.mxu0 0
    %6586 = vmatmul.mubr.bf16.gmra.mrb[0].mxu0 %v6551
    %v6587 = vpop.f32.mrb[0].mxu0
    %v6588 = vadd.f32 0.0, %v6587
    %v6589 = vpop.f32.mrb[0].mxu0
    %v6590 = vpop.f32.mrb[0].mxu0
    %v6591 = vpop.f32.mrb[0].mxu0
    %6592 = vdwg.mxu0
    %v6593 = vadd.f32 %v6540, %v6588
    %v6594 = vld [vmem:[#allocation2 + $0x60] sm:$0xff]
    %v6595 = vld [vmem:[#allocation2 + $0x68] sm:$0xff]
    %v6596 = vld [vmem:[#allocation2 + $0x70] sm:$0xff]
    %v6597 = vld [vmem:[#allocation2 + $0x78] sm:$0xff]
    %v6598 = vrot.slane %v6447, 3
    %v6600 = vsel %vm6458, %v6598, 0
    %6602 = vmatprep.subr.bf16.mxu0 0
    %6603 = vmatpush1.bf16.msra.mxu0 %v6594
    %6604 = vmatprep.subr.bf16.mxu0 0
    %6605 = vmatpush1.bf16.msra.mxu0 %v6595
    %6606 = vmatprep.subr.bf16.mxu0 0
    %6607 = vmatpush1.bf16.msra.mxu0 %v6596
    %6608 = vmatprep.subr.bf16.mxu0 0
    %6609 = vmatpush1.bf16.msra.mxu0 %v6597
    %6610 = vmatprep.subr.bf16.mxu0 0
    %6611 = vmatpush1.bf16.msra.mxu0 0
    %6612 = vmatprep.subr.bf16.mxu0 0
    %6613 = vmatpush1.bf16.msra.mxu0 0
    %6614 = vmatprep.subr.bf16.mxu0 0
    %6615 = vmatpush1.bf16.msra.mxu0 0
    %6616 = vmatprep.subr.bf16.mxu0 0
    %6617 = vmatpush1.bf16.msra.mxu0 0
    %6618 = vmatprep.subr.bf16.mxu0 0
    %6619 = vmatpush1.bf16.msra.mxu0 0
    %6620 = vmatprep.subr.bf16.mxu0 0
    %6621 = vmatpush1.bf16.msra.mxu0 0
    %6622 = vmatprep.subr.bf16.mxu0 0
    %6623 = vmatpush1.bf16.msra.mxu0 0
    %6624 = vmatprep.subr.bf16.mxu0 0
    %6625 = vmatpush1.bf16.msra.mxu0 0
    %6626 = vmatprep.subr.bf16.mxu0 0
    %6627 = vmatpush1.bf16.msra.mxu0 0
    %6628 = vmatprep.subr.bf16.mxu0 0
    %6629 = vmatpush1.bf16.msra.mxu0 0
    %6630 = vmatprep.subr.bf16.mxu0 0
    %6631 = vmatpush1.bf16.msra.mxu0 0
    %6632 = vmatprep.subr.bf16.mxu0 0
    %6633 = vmatpush1.bf16.msra.mxu0 0
    %6634 = vmatprep.mubr.bf16.mxu0 0
    %6635 = vmatmul.mubr.bf16.gmra.mrb[0].mxu0 %v6600
    %v6636 = vpop.f32.mrb[0].mxu0
    %v6637 = vadd.f32 0.0, %v6636
    %v6638 = vpop.f32.mrb[0].mxu0
    %v6639 = vpop.f32.mrb[0].mxu0
    %v6640 = vpop.f32.mrb[0].mxu0
    %6641 = vdwg.mxu0
    %v6642 = vadd.f32 %v6593, %v6637
    %v6643 = vpack.c.bf16 %v6431, %v6431
    %v6644 = vld [vmem:[#allocation2 + $0x80] sm:$0xff]
    %v6645 = vld [vmem:[#allocation2 + $0x88] sm:$0xff]
    %v6646 = vld [vmem:[#allocation2 + $0x90] sm:$0xff]
    %v6647 = vld [vmem:[#allocation2 + $0x98] sm:$0xff]
    %v6649 = vsel %vm6458, %v6643, 0
    %6651 = vmatprep.subr.bf16.mxu0 0
    %6652 = vmatpush1.bf16.msra.mxu0 %v6644
    %6653 = vmatprep.subr.bf16.mxu0 0
    %6654 = vmatpush1.bf16.msra.mxu0 %v6645
    %6655 = vmatprep.subr.bf16.mxu0 0
    %6656 = vmatpush1.bf16.msra.mxu0 %v6646
    %6657 = vmatprep.subr.bf16.mxu0 0
    %6658 = vmatpush1.bf16.msra.mxu0 %v6647
    %6659 = vmatprep.subr.bf16.mxu0 0
    %6660 = vmatpush1.bf16.msra.mxu0 0
    %6661 = vmatprep.subr.bf16.mxu0 0
    %6662 = vmatpush1.bf16.msra.mxu0 0
    %6663 = vmatprep.subr.bf16.mxu0 0
    %6664 = vmatpush1.bf16.msra.mxu0 0
    %6665 = vmatprep.subr.bf16.mxu0 0
    %6666 = vmatpush1.bf16.msra.mxu0 0
    %6667 = vmatprep.subr.bf16.mxu0 0
    %6668 = vmatpush1.bf16.msra.mxu0 0
    %6669 = vmatprep.subr.bf16.mxu0 0
    %6670 = vmatpush1.bf16.msra.mxu0 0
    %6671 = vmatprep.subr.bf16.mxu0 0
    %6672 = vmatpush1.bf16.msra.mxu0 0
    %6673 = vmatprep.subr.bf16.mxu0 0
    %6674 = vmatpush1.bf16.msra.mxu0 0
    %6675 = vmatprep.subr.bf16.mxu0 0
    %6676 = vmatpush1.bf16.msra.mxu0 0
    %6677 = vmatprep.subr.bf16.mxu0 0
    %6678 = vmatpush1.bf16.msra.mxu0 0
    %6679 = vmatprep.subr.bf16.mxu0 0
    %6680 = vmatpush1.bf16.msra.mxu0 0
    %6681 = vmatprep.subr.bf16.mxu0 0
    %6682 = vmatpush1.bf16.msra.mxu0 0
    %6683 = vmatprep.mubr.bf16.mxu0 0
    %6684 = vmatmul.mubr.bf16.gmra.mrb[0].mxu0 %v6649
    %v6685 = vpop.f32.mrb[0].mxu0
    %v6686 = vadd.f32 0.0, %v6685
    %v6687 = vpop.f32.mrb[0].mxu0
    %v6688 = vpop.f32.mrb[0].mxu0
    %v6689 = vpop.f32.mrb[0].mxu0
    %6690 = vdwg.mxu0
    %v6691 = vadd.f32 %v6642, %v6686
    %v6692 = vld [vmem:[#allocation2 + $0xa0] sm:$0xff]
    %v6693 = vld [vmem:[#allocation2 + $0xa8] sm:$0xff]
    %v6694 = vld [vmem:[#allocation2 + $0xb0] sm:$0xff]
    %v6695 = vld [vmem:[#allocation2 + $0xb8] sm:$0xff]
    %v6697 = vrot.slane %v6643, 1
    %v6699 = vsel %vm6458, %v6697, 0
    %6701 = vmatprep.subr.bf16.mxu0 0
    %6702 = vmatpush1.bf16.msra.mxu0 %v6692
    %6703 = vmatprep.subr.bf16.mxu0 0
    %6704 = vmatpush1.bf16.msra.mxu0 %v6693
    %6705 = vmatprep.subr.bf16.mxu0 0
    %6706 = vmatpush1.bf16.msra.mxu0 %v6694
    %6707 = vmatprep.subr.bf16.mxu0 0
    %6708 = vmatpush1.bf16.msra.mxu0 %v6695
    %6709 = vmatprep.subr.bf16.mxu0 0
    %6710 = vmatpush1.bf16.msra.mxu0 0
    %6711 = vmatprep.subr.bf16.mxu0 0
    %6712 = vmatpush1.bf16.msra.mxu0 0
    %6713 = vmatprep.subr.bf16.mxu0 0
    %6714 = vmatpush1.bf16.msra.mxu0 0
    %6715 = vmatprep.subr.bf16.mxu0 0
    %6716 = vmatpush1.bf16.msra.mxu0 0
    %6717 = vmatprep.subr.bf16.mxu0 0
    %6718 = vmatpush1.bf16.msra.mxu0 0
    %6719 = vmatprep.subr.bf16.mxu0 0
    %6720 = vmatpush1.bf16.msra.mxu0 0
    %6721 = vmatprep.subr.bf16.mxu0 0
    %6722 = vmatpush1.bf16.msra.mxu0 0
    %6723 = vmatprep.subr.bf16.mxu0 0
    %6724 = vmatpush1.bf16.msra.mxu0 0
    %6725 = vmatprep.subr.bf16.mxu0 0
    %6726 = vmatpush1.bf16.msra.mxu0 0
    %6727 = vmatprep.subr.bf16.mxu0 0
    %6728 = vmatpush1.bf16.msra.mxu0 0
    %6729 = vmatprep.subr.bf16.mxu0 0
    %6730 = vmatpush1.bf16.msra.mxu0 0
    %6731 = vmatprep.subr.bf16.mxu0 0
    %6732 = vmatpush1.bf16.msra.mxu0 0
    %6733 = vmatprep.mubr.bf16.mxu0 0
    %6734 = vmatmul.mubr.bf16.gmra.mrb[0].mxu0 %v6699
    %v6735 = vpop.f32.mrb[0].mxu0
    %v6736 = vadd.f32 0.0, %v6735
    %v6737 = vpop.f32.mrb[0].mxu0
    %v6738 = vpop.f32.mrb[0].mxu0
    %v6739 = vpop.f32.mrb[0].mxu0
    %6740 = vdwg.mxu0
    %v6741 = vadd.f32 %v6691, %v6736
    %v6742 = vld [vmem:[#allocation2 + $0xc0] sm:$0xff]
    %v6743 = vld [vmem:[#allocation2 + $0xc8] sm:$0xff]
    %v6744 = vld [vmem:[#allocation2 + $0xd0] sm:$0xff]
    %v6745 = vld [vmem:[#allocation2 + $0xd8] sm:$0xff]
    %v6746 = vrot.slane %v6643, 2
    %v6748 = vsel %vm6458, %v6746, 0
    %6750 = vmatprep.subr.bf16.mxu0 0
    %6751 = vmatpush1.bf16.msra.mxu0 %v6742
    %6752 = vmatprep.subr.bf16.mxu0 0
    %6753 = vmatpush1.bf16.msra.mxu0 %v6743
    %6754 = vmatprep.subr.bf16.mxu0 0
    %6755 = vmatpush1.bf16.msra.mxu0 %v6744
    %6756 = vmatprep.subr.bf16.mxu0 0
    %6757 = vmatpush1.bf16.msra.mxu0 %v6745
    %6758 = vmatprep.subr.bf16.mxu0 0
    %6759 = vmatpush1.bf16.msra.mxu0 0
    %6760 = vmatprep.subr.bf16.mxu0 0
    %6761 = vmatpush1.bf16.msra.mxu0 0
    %6762 = vmatprep.subr.bf16.mxu0 0
    %6763 = vmatpush1.bf16.msra.mxu0 0
    %6764 = vmatprep.subr.bf16.mxu0 0
    %6765 = vmatpush1.bf16.msra.mxu0 0
    %6766 = vmatprep.subr.bf16.mxu0 0
    %6767 = vmatpush1.bf16.msra.mxu0 0
    %6768 = vmatprep.subr.bf16.mxu0 0
    %6769 = vmatpush1.bf16.msra.mxu0 0
    %6770 = vmatprep.subr.bf16.mxu0 0
    %6771 = vmatpush1.bf16.msra.mxu0 0
    %6772 = vmatprep.subr.bf16.mxu0 0
    %6773 = vmatpush1.bf16.msra.mxu0 0
    %6774 = vmatprep.subr.bf16.mxu0 0
    %6775 = vmatpush1.bf16.msra.mxu0 0
    %6776 = vmatprep.subr.bf16.mxu0 0
    %6777 = vmatpush1.bf16.msra.mxu0 0
    %6778 = vmatprep.subr.bf16.mxu0 0
    %6779 = vmatpush1.bf16.msra.mxu0 0
    %6780 = vmatprep.subr.bf16.mxu0 0
    %6781 = vmatpush1.bf16.msra.mxu0 0
    %6782 = vmatprep.mubr.bf16.mxu0 0
    %6783 = vmatmul.mubr.bf16.gmra.mrb[0].mxu0 %v6748
    %v6784 = vpop.f32.mrb[0].mxu0
    %v6785 = vadd.f32 0.0, %v6784
    %v6786 = vpop.f32.mrb[0].mxu0
    %v6787 = vpop.f32.mrb[0].mxu0
    %v6788 = vpop.f32.mrb[0].mxu0
    %6789 = vdwg.mxu0
    %v6790 = vadd.f32 %v6741, %v6785
    %v6791 = vld [vmem:[#allocation2 + $0xe0] sm:$0xff]
    %v6792 = vld [vmem:[#allocation2 + $0xe8] sm:$0xff]
    %v6793 = vld [vmem:[#allocation2 + $0xf0] sm:$0xff]
    %v6794 = vld [vmem:[#allocation2 + $0xf8] sm:$0xff]
    %v6795 = vrot.slane %v6643, 3
    %v6797 = vsel %vm6458, %v6795, 0
    %6799 = vmatprep.subr.bf16.mxu0 0
    %6800 = vmatpush1.bf16.msra.mxu0 %v6791
    %6801 = vmatprep.subr.bf16.mxu0 0
    %6802 = vmatpush1.bf16.msra.mxu0 %v6792
    %6803 = vmatprep.subr.bf16.mxu0 0
    %6804 = vmatpush1.bf16.msra.mxu0 %v6793
    %6805 = vmatprep.subr.bf16.mxu0 0
    %6806 = vmatpush1.bf16.msra.mxu0 %v6794
    %6807 = vmatprep.subr.bf16.mxu0 0
    %6808 = vmatpush1.bf16.msra.mxu0 0
    %6809 = vmatprep.subr.bf16.mxu0 0
    %6810 = vmatpush1.bf16.msra.mxu0 0
    %6811 = vmatprep.subr.bf16.mxu0 0
    %6812 = vmatpush1.bf16.msra.mxu0 0
    %6813 = vmatprep.subr.bf16.mxu0 0
    %6814 = vmatpush1.bf16.msra.mxu0 0
    %6815 = vmatprep.subr.bf16.mxu0 0
    %6816 = vmatpush1.bf16.msra.mxu0 0
    %6817 = vmatprep.subr.bf16.mxu0 0
    %6818 = vmatpush1.bf16.msra.mxu0 0
    %6819 = vmatprep.subr.bf16.mxu0 0
    %6820 = vmatpush1.bf16.msra.mxu0 0
    %6821 = vmatprep.subr.bf16.mxu0 0
    %6822 = vmatpush1.bf16.msra.mxu0 0
    %6823 = vmatprep.subr.bf16.mxu0 0
    %6824 = vmatpush1.bf16.msra.mxu0 0
    %6825 = vmatprep.subr.bf16.mxu0 0
    %6826 = vmatpush1.bf16.msra.mxu0 0
    %6827 = vmatprep.subr.bf16.mxu0 0
    %6828 = vmatpush1.bf16.msra.mxu0 0
    %6829 = vmatprep.subr.bf16.mxu0 0
    %6830 = vmatpush1.bf16.msra.mxu0 0
    %6831 = vmatprep.mubr.bf16.mxu0 0
    %6832 = vmatmul.mubr.bf16.gmra.mrb[0].mxu0 %v6797
    %v6833 = vpop.f32.mrb[0].mxu0
    %v6834 = vadd.f32 0.0, %v6833
    %v6835 = vpop.f32.mrb[0].mxu0
    %v6836 = vpop.f32.mrb[0].mxu0
    %v6837 = vpop.f32.mrb[0].mxu0
    %6838 = vdwg.mxu0
    %v6839 = vadd.f32 %v6790, %v6834
    %v6840 = vpack.c.bf16 %v6432, %v6432
    %v6841 = vld [vmem:[#allocation2 + $0x100] sm:$0xff]
    %v6842 = vld [vmem:[#allocation2 + $0x108] sm:$0xff]
    %v6843 = vld [vmem:[#allocation2 + $0x110] sm:$0xff]
    %v6844 = vld [vmem:[#allocation2 + $0x118] sm:$0xff]
    %v6846 = vsel %vm6458, %v6840, 0
    %6848 = vmatprep.subr.bf16.mxu0 0
    %6849 = vmatpush1.bf16.msra.mxu0 %v6841
    %6850 = vmatprep.subr.bf16.mxu0 0
    %6851 = vmatpush1.bf16.msra.mxu0 %v6842
    %6852 = vmatprep.subr.bf16.mxu0 0
    %6853 = vmatpush1.bf16.msra.mxu0 %v6843
    %6854 = vmatprep.subr.bf16.mxu0 0
    %6855 = vmatpush1.bf16.msra.mxu0 %v6844
    %6856 = vmatprep.subr.bf16.mxu0 0
    %6857 = vmatpush1.bf16.msra.mxu0 0
    %6858 = vmatprep.subr.bf16.mxu0 0
    %6859 = vmatpush1.bf16.msra.mxu0 0
    %6860 = vmatprep.subr.bf16.mxu0 0
    %6861 = vmatpush1.bf16.msra.mxu0 0
    %6862 = vmatprep.subr.bf16.mxu0 0
    %6863 = vmatpush1.bf16.msra.mxu0 0
    %6864 = vmatprep.subr.bf16.mxu0 0
    %6865 = vmatpush1.bf16.msra.mxu0 0
    %6866 = vmatprep.subr.bf16.mxu0 0
    %6867 = vmatpush1.bf16.msra.mxu0 0
    %6868 = vmatprep.subr.bf16.mxu0 0
    %6869 = vmatpush1.bf16.msra.mxu0 0
    %6870 = vmatprep.subr.bf16.mxu0 0
    %6871 = vmatpush1.bf16.msra.mxu0 0
    %6872 = vmatprep.subr.bf16.mxu0 0
    %6873 = vmatpush1.bf16.msra.mxu0 0
    %6874 = vmatprep.subr.bf16.mxu0 0
    %6875 = vmatpush1.bf16.msra.mxu0 0
    %6876 = vmatprep.subr.bf16.mxu0 0
    %6877 = vmatpush1.bf16.msra.mxu0 0
    %6878 = vmatprep.subr.bf16.mxu0 0
    %6879 = vmatpush1.bf16.msra.mxu0 0
    %6880 = vmatprep.mubr.bf16.mxu0 0
    %6881 = vmatmul.mubr.bf16.gmra.mrb[0].mxu0 %v6846
    %v6882 = vpop.f32.mrb[0].mxu0
    %v6883 = vadd.f32 0.0, %v6882
    %v6884 = vpop.f32.mrb[0].mxu0
    %v6885 = vpop.f32.mrb[0].mxu0
    %v6886 = vpop.f32.mrb[0].mxu0
    %6887 = vdwg.mxu0
    %v6888 = vadd.f32 %v6839, %v6883
    %v6889 = vld [vmem:[#allocation2 + $0x120] sm:$0xff]
    %v6890 = vld [vmem:[#allocation2 + $0x128] sm:$0xff]
    %v6891 = vld [vmem:[#allocation2 + $0x130] sm:$0xff]
    %v6892 = vld [vmem:[#allocation2 + $0x138] sm:$0xff]
    %v6894 = vrot.slane %v6840, 1
    %v6896 = vsel %vm6458, %v6894, 0
    %6898 = vmatprep.subr.bf16.mxu0 0
    %6899 = vmatpush1.bf16.msra.mxu0 %v6889
    %6900 = vmatprep.subr.bf16.mxu0 0
    %6901 = vmatpush1.bf16.msra.mxu0 %v6890
    %6902 = vmatprep.subr.bf16.mxu0 0
    %6903 = vmatpush1.bf16.msra.mxu0 %v6891
    %6904 = vmatprep.subr.bf16.mxu0 0
    %6905 = vmatpush1.bf16.msra.mxu0 %v6892
    %6906 = vmatprep.subr.bf16.mxu0 0
    %6907 = vmatpush1.bf16.msra.mxu0 0
    %6908 = vmatprep.subr.bf16.mxu0 0
    %6909 = vmatpush1.bf16.msra.mxu0 0
    %6910 = vmatprep.subr.bf16.mxu0 0
    %6911 = vmatpush1.bf16.msra.mxu0 0
    %6912 = vmatprep.subr.bf16.mxu0 0
    %6913 = vmatpush1.bf16.msra.mxu0 0
    %6914 = vmatprep.subr.bf16.mxu0 0
    %6915 = vmatpush1.bf16.msra.mxu0 0
    %6916 = vmatprep.subr.bf16.mxu0 0
    %6917 = vmatpush1.bf16.msra.mxu0 0
    %6918 = vmatprep.subr.bf16.mxu0 0
    %6919 = vmatpush1.bf16.msra.mxu0 0
    %6920 = vmatprep.subr.bf16.mxu0 0
    %6921 = vmatpush1.bf16.msra.mxu0 0
    %6922 = vmatprep.subr.bf16.mxu0 0
    %6923 = vmatpush1.bf16.msra.mxu0 0
    %6924 = vmatprep.subr.bf16.mxu0 0
    %6925 = vmatpush1.bf16.msra.mxu0 0
    %6926 = vmatprep.subr.bf16.mxu0 0
    %6927 = vmatpush1.bf16.msra.mxu0 0
    %6928 = vmatprep.subr.bf16.mxu0 0
    %6929 = vmatpush1.bf16.msra.mxu0 0
    %6930 = vmatprep.mubr.bf16.mxu0 0
    %6931 = vmatmul.mubr.bf16.gmra.mrb[0].mxu0 %v6896
    %v6932 = vpop.f32.mrb[0].mxu0
    %v6933 = vadd.f32 0.0, %v6932
    %v6934 = vpop.f32.mrb[0].mxu0
    %v6935 = vpop.f32.mrb[0].mxu0
    %v6936 = vpop.f32.mrb[0].mxu0
    %6937 = vdwg.mxu0
    %v6938 = vadd.f32 %v6888, %v6933
    %v6939 = vld [vmem:[#allocation2 + $0x140] sm:$0xff]
    %v6940 = vld [vmem:[#allocation2 + $0x148] sm:$0xff]
    %v6941 = vld [vmem:[#allocation2 + $0x150] sm:$0xff]
    %v6942 = vld [vmem:[#allocation2 + $0x158] sm:$0xff]
    %v6943 = vrot.slane %v6840, 2
    %v6945 = vsel %vm6458, %v6943, 0
    %6947 = vmatprep.subr.bf16.mxu0 0
    %6948 = vmatpush1.bf16.msra.mxu0 %v6939
    %6949 = vmatprep.subr.bf16.mxu0 0
    %6950 = vmatpush1.bf16.msra.mxu0 %v6940
    %6951 = vmatprep.subr.bf16.mxu0 0
    %6952 = vmatpush1.bf16.msra.mxu0 %v6941
    %6953 = vmatprep.subr.bf16.mxu0 0
    %6954 = vmatpush1.bf16.msra.mxu0 %v6942
    %6955 = vmatprep.subr.bf16.mxu0 0
    %6956 = vmatpush1.bf16.msra.mxu0 0
    %6957 = vmatprep.subr.bf16.mxu0 0
    %6958 = vmatpush1.bf16.msra.mxu0 0
    %6959 = vmatprep.subr.bf16.mxu0 0
    %6960 = vmatpush1.bf16.msra.mxu0 0
    %6961 = vmatprep.subr.bf16.mxu0 0
    %6962 = vmatpush1.bf16.msra.mxu0 0
    %6963 = vmatprep.subr.bf16.mxu0 0
    %6964 = vmatpush1.bf16.msra.mxu0 0
    %6965 = vmatprep.subr.bf16.mxu0 0
    %6966 = vmatpush1.bf16.msra.mxu0 0
    %6967 = vmatprep.subr.bf16.mxu0 0
    %6968 = vmatpush1.bf16.msra.mxu0 0
    %6969 = vmatprep.subr.bf16.mxu0 0
    %6970 = vmatpush1.bf16.msra.mxu0 0
    %6971 = vmatprep.subr.bf16.mxu0 0
    %6972 = vmatpush1.bf16.msra.mxu0 0
    %6973 = vmatprep.subr.bf16.mxu0 0
    %6974 = vmatpush1.bf16.msra.mxu0 0
    %6975 = vmatprep.subr.bf16.mxu0 0
    %6976 = vmatpush1.bf16.msra.mxu0 0
    %6977 = vmatprep.subr.bf16.mxu0 0
    %6978 = vmatpush1.bf16.msra.mxu0 0
    %6979 = vmatprep.mubr.bf16.mxu0 0
    %6980 = vmatmul.mubr.bf16.gmra.mrb[0].mxu0 %v6945
    %v6981 = vpop.f32.mrb[0].mxu0
    %v6982 = vadd.f32 0.0, %v6981
    %v6983 = vpop.f32.mrb[0].mxu0
    %v6984 = vpop.f32.mrb[0].mxu0
    %v6985 = vpop.f32.mrb[0].mxu0
    %6986 = vdwg.mxu0
    %v6987 = vadd.f32 %v6938, %v6982
    %v6988 = vld [vmem:[#allocation2 + $0x160] sm:$0xff]
    %v6989 = vld [vmem:[#allocation2 + $0x168] sm:$0xff]
    %v6990 = vld [vmem:[#allocation2 + $0x170] sm:$0xff]
    %v6991 = vld [vmem:[#allocation2 + $0x178] sm:$0xff]
    %v6992 = vrot.slane %v6840, 3
    %v6994 = vsel %vm6458, %v6992, 0
    %6996 = vmatprep.subr.bf16.mxu0 0
    %6997 = vmatpush1.bf16.msra.mxu0 %v6988
    %6998 = vmatprep.subr.bf16.mxu0 0
    %6999 = vmatpush1.bf16.msra.mxu0 %v6989
    %7000 = vmatprep.subr.bf16.mxu0 0
    %7001 = vmatpush1.bf16.msra.mxu0 %v6990
    %7002 = vmatprep.subr.bf16.mxu0 0
    %7003 = vmatpush1.bf16.msra.mxu0 %v6991
    %7004 = vmatprep.subr.bf16.mxu0 0
    %7005 = vmatpush1.bf16.msra.mxu0 0
    %7006 = vmatprep.subr.bf16.mxu0 0
    %7007 = vmatpush1.bf16.msra.mxu0 0
    %7008 = vmatprep.subr.bf16.mxu0 0
    %7009 = vmatpush1.bf16.msra.mxu0 0
    %7010 = vmatprep.subr.bf16.mxu0 0
    %7011 = vmatpush1.bf16.msra.mxu0 0
    %7012 = vmatprep.subr.bf16.mxu0 0
    %7013 = vmatpush1.bf16.msra.mxu0 0
    %7014 = vmatprep.subr.bf16.mxu0 0
    %7015 = vmatpush1.bf16.msra.mxu0 0
    %7016 = vmatprep.subr.bf16.mxu0 0
    %7017 = vmatpush1.bf16.msra.mxu0 0
    %7018 = vmatprep.subr.bf16.mxu0 0
    %7019 = vmatpush1.bf16.msra.mxu0 0
    %7020 = vmatprep.subr.bf16.mxu0 0
    %7021 = vmatpush1.bf16.msra.mxu0 0
    %7022 = vmatprep.subr.bf16.mxu0 0
    %7023 = vmatpush1.bf16.msra.mxu0 0
    %7024 = vmatprep.subr.bf16.mxu0 0
    %7025 = vmatpush1.bf16.msra.mxu0 0
    %7026 = vmatprep.subr.bf16.mxu0 0
    %7027 = vmatpush1.bf16.msra.mxu0 0
    %7028 = vmatprep.mubr.bf16.mxu0 0
    %7029 = vmatmul.mubr.bf16.gmra.mrb[0].mxu0 %v6994
    %v7030 = vpop.f32.mrb[0].mxu0
    %v7031 = vadd.f32 0.0, %v7030
    %v7032 = vpop.f32.mrb[0].mxu0
    %v7033 = vpop.f32.mrb[0].mxu0
    %v7034 = vpop.f32.mrb[0].mxu0
    %7035 = vdwg.mxu0
    %v7036 = vadd.f32 %v6987, %v7031
    %v7037 = vpack.c.bf16 %v6433, %v6433
    %v7038 = vld [vmem:[#allocation2 + $0x180] sm:$0xff]
    %v7039 = vld [vmem:[#allocation2 + $0x188] sm:$0xff]
    %v7040 = vld [vmem:[#allocation2 + $0x190] sm:$0xff]
    %v7041 = vld [vmem:[#allocation2 + $0x198] sm:$0xff]
    %v7043 = vsel %vm6458, %v7037, 0
    %7045 = vmatprep.subr.bf16.mxu0 0
    %7046 = vmatpush1.bf16.msra.mxu0 %v7038
    %7047 = vmatprep.subr.bf16.mxu0 0
    %7048 = vmatpush1.bf16.msra.mxu0 %v7039
    %7049 = vmatprep.subr.bf16.mxu0 0
    %7050 = vmatpush1.bf16.msra.mxu0 %v7040
    %7051 = vmatprep.subr.bf16.mxu0 0
    %7052 = vmatpush1.bf16.msra.mxu0 %v7041
    %7053 = vmatprep.subr.bf16.mxu0 0
    %7054 = vmatpush1.bf16.msra.mxu0 0
    %7055 = vmatprep.subr.bf16.mxu0 0
    %7056 = vmatpush1.bf16.msra.mxu0 0
    %7057 = vmatprep.subr.bf16.mxu0 0
    %7058 = vmatpush1.bf16.msra.mxu0 0
    %7059 = vmatprep.subr.bf16.mxu0 0
    %7060 = vmatpush1.bf16.msra.mxu0 0
    %7061 = vmatprep.subr.bf16.mxu0 0
    %7062 = vmatpush1.bf16.msra.mxu0 0
    %7063 = vmatprep.subr.bf16.mxu0 0
    %7064 = vmatpush1.bf16.msra.mxu0 0
    %7065 = vmatprep.subr.bf16.mxu0 0
    %7066 = vmatpush1.bf16.msra.mxu0 0
    %7067 = vmatprep.subr.bf16.mxu0 0
    %7068 = vmatpush1.bf16.msra.mxu0 0
    %7069 = vmatprep.subr.bf16.mxu0 0
    %7070 = vmatpush1.bf16.msra.mxu0 0
    %7071 = vmatprep.subr.bf16.mxu0 0
    %7072 = vmatpush1.bf16.msra.mxu0 0
    %7073 = vmatprep.subr.bf16.mxu0 0
    %7074 = vmatpush1.bf16.msra.mxu0 0
    %7075 = vmatprep.subr.bf16.mxu0 0
    %7076 = vmatpush1.bf16.msra.mxu0 0
    %7077 = vmatprep.mubr.bf16.mxu0 0
    %7078 = vmatmul.mubr.bf16.gmra.mrb[0].mxu0 %v7043
    %v7079 = vpop.f32.mrb[0].mxu0
    %v7080 = vadd.f32 0.0, %v7079
    %v7081 = vpop.f32.mrb[0].mxu0
    %v7082 = vpop.f32.mrb[0].mxu0
    %v7083 = vpop.f32.mrb[0].mxu0
    %7084 = vdwg.mxu0
    %v7085 = vadd.f32 %v7036, %v7080
    %v7086 = vld [vmem:[#allocation2 + $0x1a0] sm:$0xff]
    %v7087 = vld [vmem:[#allocation2 + $0x1a8] sm:$0xff]
    %v7088 = vld [vmem:[#allocation2 + $0x1b0] sm:$0xff]
    %v7089 = vld [vmem:[#allocation2 + $0x1b8] sm:$0xff]
    %v7091 = vrot.slane %v7037, 1
    %v7093 = vsel %vm6458, %v7091, 0
    %7095 = vmatprep.subr.bf16.mxu0 0
    %7096 = vmatpush1.bf16.msra.mxu0 %v7086
    %7097 = vmatprep.subr.bf16.mxu0 0
    %7098 = vmatpush1.bf16.msra.mxu0 %v7087
    %7099 = vmatprep.subr.bf16.mxu0 0
    %7100 = vmatpush1.bf16.msra.mxu0 %v7088
    %7101 = vmatprep.subr.bf16.mxu0 0
    %7102 = vmatpush1.bf16.msra.mxu0 %v7089
    %7103 = vmatprep.subr.bf16.mxu0 0
    %7104 = vmatpush1.bf16.msra.mxu0 0
    %7105 = vmatprep.subr.bf16.mxu0 0
    %7106 = vmatpush1.bf16.msra.mxu0 0
    %7107 = vmatprep.subr.bf16.mxu0 0
    %7108 = vmatpush1.bf16.msra.mxu0 0
    %7109 = vmatprep.subr.bf16.mxu0 0
    %7110 = vmatpush1.bf16.msra.mxu0 0
    %7111 = vmatprep.subr.bf16.mxu0 0
    %7112 = vmatpush1.bf16.msra.mxu0 0
    %7113 = vmatprep.subr.bf16.mxu0 0
    %7114 = vmatpush1.bf16.msra.mxu0 0
    %7115 = vmatprep.subr.bf16.mxu0 0
    %7116 = vmatpush1.bf16.msra.mxu0 0
    %7117 = vmatprep.subr.bf16.mxu0 0
    %7118 = vmatpush1.bf16.msra.mxu0 0
    %7119 = vmatprep.subr.bf16.mxu0 0
    %7120 = vmatpush1.bf16.msra.mxu0 0
    %7121 = vmatprep.subr.bf16.mxu0 0
    %7122 = vmatpush1.bf16.msra.mxu0 0
    %7123 = vmatprep.subr.bf16.mxu0 0
    %7124 = vmatpush1.bf16.msra.mxu0 0
    %7125 = vmatprep.subr.bf16.mxu0 0
    %7126 = vmatpush1.bf16.msra.mxu0 0
    %7127 = vmatprep.mubr.bf16.mxu0 0
    %7128 = vmatmul.mubr.bf16.gmra.mrb[0].mxu0 %v7093
    %v7129 = vpop.f32.mrb[0].mxu0
    %v7130 = vadd.f32 0.0, %v7129
    %v7131 = vpop.f32.mrb[0].mxu0
    %v7132 = vpop.f32.mrb[0].mxu0
    %v7133 = vpop.f32.mrb[0].mxu0
    %7134 = vdwg.mxu0
    %v7135 = vadd.f32 %v7085, %v7130
    %v7136 = vld [vmem:[#allocation2 + $0x1c0] sm:$0xff]
    %v7137 = vld [vmem:[#allocation2 + $0x1c8] sm:$0xff]
    %v7138 = vld [vmem:[#allocation2 + $0x1d0] sm:$0xff]
    %v7139 = vld [vmem:[#allocation2 + $0x1d8] sm:$0xff]
    %v7140 = vrot.slane %v7037, 2
    %v7142 = vsel %vm6458, %v7140, 0
    %7144 = vmatprep.subr.bf16.mxu0 0
    %7145 = vmatpush1.bf16.msra.mxu0 %v7136
    %7146 = vmatprep.subr.bf16.mxu0 0
    %7147 = vmatpush1.bf16.msra.mxu0 %v7137
    %7148 = vmatprep.subr.bf16.mxu0 0
    %7149 = vmatpush1.bf16.msra.mxu0 %v7138
    %7150 = vmatprep.subr.bf16.mxu0 0
    %7151 = vmatpush1.bf16.msra.mxu0 %v7139
    %7152 = vmatprep.subr.bf16.mxu0 0
    %7153 = vmatpush1.bf16.msra.mxu0 0
    %7154 = vmatprep.subr.bf16.mxu0 0
    %7155 = vmatpush1.bf16.msra.mxu0 0
    %7156 = vmatprep.subr.bf16.mxu0 0
    %7157 = vmatpush1.bf16.msra.mxu0 0
    %7158 = vmatprep.subr.bf16.mxu0 0
    %7159 = vmatpush1.bf16.msra.mxu0 0
    %7160 = vmatprep.subr.bf16.mxu0 0
    %7161 = vmatpush1.bf16.msra.mxu0 0
    %7162 = vmatprep.subr.bf16.mxu0 0
    %7163 = vmatpush1.bf16.msra.mxu0 0
    %7164 = vmatprep.subr.bf16.mxu0 0
    %7165 = vmatpush1.bf16.msra.mxu0 0
    %7166 = vmatprep.subr.bf16.mxu0 0
    %7167 = vmatpush1.bf16.msra.mxu0 0
    %7168 = vmatprep.subr.bf16.mxu0 0
    %7169 = vmatpush1.bf16.msra.mxu0 0
    %7170 = vmatprep.subr.bf16.mxu0 0
    %7171 = vmatpush1.bf16.msra.mxu0 0
    %7172 = vmatprep.subr.bf16.mxu0 0
    %7173 = vmatpush1.bf16.msra.mxu0 0
    %7174 = vmatprep.subr.bf16.mxu0 0
    %7175 = vmatpush1.bf16.msra.mxu0 0
    %7176 = vmatprep.mubr.bf16.mxu0 0
    %7177 = vmatmul.mubr.bf16.gmra.mrb[0].mxu0 %v7142
    %v7178 = vpop.f32.mrb[0].mxu0
    %v7179 = vadd.f32 0.0, %v7178
    %v7180 = vpop.f32.mrb[0].mxu0
    %v7181 = vpop.f32.mrb[0].mxu0
    %v7182 = vpop.f32.mrb[0].mxu0
    %7183 = vdwg.mxu0
    %v7184 = vadd.f32 %v7135, %v7179
    %v7185 = vld [vmem:[#allocation2 + $0x1e0] sm:$0xff]
    %v7186 = vld [vmem:[#allocation2 + $0x1e8] sm:$0xff]
    %v7187 = vld [vmem:[#allocation2 + $0x1f0] sm:$0xff]
    %v7188 = vld [vmem:[#allocation2 + $0x1f8] sm:$0xff]
    %v7189 = vrot.slane %v7037, 3
    %v7191 = vsel %vm6458, %v7189, 0
    %7193 = vmatprep.subr.bf16.mxu0 0
    %7194 = vmatpush1.bf16.msra.mxu0 %v7185
    %7195 = vmatprep.subr.bf16.mxu0 0
    %7196 = vmatpush1.bf16.msra.mxu0 %v7186
    %7197 = vmatprep.subr.bf16.mxu0 0
    %7198 = vmatpush1.bf16.msra.mxu0 %v7187
    %7199 = vmatprep.subr.bf16.mxu0 0
    %7200 = vmatpush1.bf16.msra.mxu0 %v7188
    %7201 = vmatprep.subr.bf16.mxu0 0
    %7202 = vmatpush1.bf16.msra.mxu0 0
    %7203 = vmatprep.subr.bf16.mxu0 0
    %7204 = vmatpush1.bf16.msra.mxu0 0
    %7205 = vmatprep.subr.bf16.mxu0 0
    %7206 = vmatpush1.bf16.msra.mxu0 0
    %7207 = vmatprep.subr.bf16.mxu0 0
    %7208 = vmatpush1.bf16.msra.mxu0 0
    %7209 = vmatprep.subr.bf16.mxu0 0
    %7210 = vmatpush1.bf16.msra.mxu0 0
    %7211 = vmatprep.subr.bf16.mxu0 0
    %7212 = vmatpush1.bf16.msra.mxu0 0
    %7213 = vmatprep.subr.bf16.mxu0 0
    %7214 = vmatpush1.bf16.msra.mxu0 0
    %7215 = vmatprep.subr.bf16.mxu0 0
    %7216 = vmatpush1.bf16.msra.mxu0 0
    %7217 = vmatprep.subr.bf16.mxu0 0
    %7218 = vmatpush1.bf16.msra.mxu0 0
    %7219 = vmatprep.subr.bf16.mxu0 0
    %7220 = vmatpush1.bf16.msra.mxu0 0
    %7221 = vmatprep.subr.bf16.mxu0 0
    %7222 = vmatpush1.bf16.msra.mxu0 0
    %7223 = vmatprep.subr.bf16.mxu0 0
    %7224 = vmatpush1.bf16.msra.mxu0 0
    %7225 = vmatprep.mubr.bf16.mxu0 0
    %7226 = vmatmul.mubr.bf16.gmra.mrb[0].mxu0 %v7191
    %v7227 = vpop.f32.mrb[0].mxu0
    %v7228 = vadd.f32 0.0, %v7227
    %v7229 = vpop.f32.mrb[0].mxu0
    %v7230 = vpop.f32.mrb[0].mxu0
    %v7231 = vpop.f32.mrb[0].mxu0
    %7232 = vdwg.mxu0
    %v7233 = vadd.f32 %v7184, %v7228
    %v7234 = vpack.c.bf16 %v6434, %v6434
    %v7235 = vld [vmem:[#allocation2 + $0x200] sm:$0xff]
    %v7236 = vld [vmem:[#allocation2 + $0x208] sm:$0xff]
    %v7237 = vld [vmem:[#allocation2 + $0x210] sm:$0xff]
    %v7238 = vld [vmem:[#allocation2 + $0x218] sm:$0xff]
    %v7240 = vsel %vm6458, %v7234, 0
    %7242 = vmatprep.subr.bf16.mxu0 0
    %7243 = vmatpush1.bf16.msra.mxu0 %v7235
    %7244 = vmatprep.subr.bf16.mxu0 0
    %7245 = vmatpush1.bf16.msra.mxu0 %v7236
    %7246 = vmatprep.subr.bf16.mxu0 0
    %7247 = vmatpush1.bf16.msra.mxu0 %v7237
    %7248 = vmatprep.subr.bf16.mxu0 0
    %7249 = vmatpush1.bf16.msra.mxu0 %v7238
    %7250 = vmatprep.subr.bf16.mxu0 0
    %7251 = vmatpush1.bf16.msra.mxu0 0
    %7252 = vmatprep.subr.bf16.mxu0 0
    %7253 = vmatpush1.bf16.msra.mxu0 0
    %7254 = vmatprep.subr.bf16.mxu0 0
    %7255 = vmatpush1.bf16.msra.mxu0 0
    %7256 = vmatprep.subr.bf16.mxu0 0
    %7257 = vmatpush1.bf16.msra.mxu0 0
    %7258 = vmatprep.subr.bf16.mxu0 0
    %7259 = vmatpush1.bf16.msra.mxu0 0
    %7260 = vmatprep.subr.bf16.mxu0 0
    %7261 = vmatpush1.bf16.msra.mxu0 0
    %7262 = vmatprep.subr.bf16.mxu0 0
    %7263 = vmatpush1.bf16.msra.mxu0 0
    %7264 = vmatprep.subr.bf16.mxu0 0
    %7265 = vmatpush1.bf16.msra.mxu0 0
    %7266 = vmatprep.subr.bf16.mxu0 0
    %7267 = vmatpush1.bf16.msra.mxu0 0
    %7268 = vmatprep.subr.bf16.mxu0 0
    %7269 = vmatpush1.bf16.msra.mxu0 0
    %7270 = vmatprep.subr.bf16.mxu0 0
    %7271 = vmatpush1.bf16.msra.mxu0 0
    %7272 = vmatprep.subr.bf16.mxu0 0
    %7273 = vmatpush1.bf16.msra.mxu0 0
    %7274 = vmatprep.mubr.bf16.mxu0 0
    %7275 = vmatmul.mubr.bf16.gmra.mrb[0].mxu0 %v7240
    %v7276 = vpop.f32.mrb[0].mxu0
    %v7277 = vadd.f32 0.0, %v7276
    %v7278 = vpop.f32.mrb[0].mxu0
    %v7279 = vpop.f32.mrb[0].mxu0
    %v7280 = vpop.f32.mrb[0].mxu0
    %7281 = vdwg.mxu0
    %v7282 = vadd.f32 %v7233, %v7277
    %v7283 = vld [vmem:[#allocation2 + $0x220] sm:$0xff]
    %v7284 = vld [vmem:[#allocation2 + $0x228] sm:$0xff]
    %v7285 = vld [vmem:[#allocation2 + $0x230] sm:$0xff]
    %v7286 = vld [vmem:[#allocation2 + $0x238] sm:$0xff]
    %v7288 = vrot.slane %v7234, 1
    %v7290 = vsel %vm6458, %v7288, 0
    %7292 = vmatprep.subr.bf16.mxu0 0
    %7293 = vmatpush1.bf16.msra.mxu0 %v7283
    %7294 = vmatprep.subr.bf16.mxu0 0
    %7295 = vmatpush1.bf16.msra.mxu0 %v7284
    %7296 = vmatprep.subr.bf16.mxu0 0
    %7297 = vmatpush1.bf16.msra.mxu0 %v7285
    %7298 = vmatprep.subr.bf16.mxu0 0
    %7299 = vmatpush1.bf16.msra.mxu0 %v7286
    %7300 = vmatprep.subr.bf16.mxu0 0
    %7301 = vmatpush1.bf16.msra.mxu0 0
    %7302 = vmatprep.subr.bf16.mxu0 0
    %7303 = vmatpush1.bf16.msra.mxu0 0
    %7304 = vmatprep.subr.bf16.mxu0 0
    %7305 = vmatpush1.bf16.msra.mxu0 0
    %7306 = vmatprep.subr.bf16.mxu0 0
    %7307 = vmatpush1.bf16.msra.mxu0 0
    %7308 = vmatprep.subr.bf16.mxu0 0
    %7309 = vmatpush1.bf16.msra.mxu0 0
    %7310 = vmatprep.subr.bf16.mxu0 0
    %7311 = vmatpush1.bf16.msra.mxu0 0
    %7312 = vmatprep.subr.bf16.mxu0 0
    %7313 = vmatpush1.bf16.msra.mxu0 0
    %7314 = vmatprep.subr.bf16.mxu0 0
    %7315 = vmatpush1.bf16.msra.mxu0 0
    %7316 = vmatprep.subr.bf16.mxu0 0
    %7317 = vmatpush1.bf16.msra.mxu0 0
    %7318 = vmatprep.subr.bf16.mxu0 0
    %7319 = vmatpush1.bf16.msra.mxu0 0
    %7320 = vmatprep.subr.bf16.mxu0 0
    %7321 = vmatpush1.bf16.msra.mxu0 0
    %7322 = vmatprep.subr.bf16.mxu0 0
    %7323 = vmatpush1.bf16.msra.mxu0 0
    %7324 = vmatprep.mubr.bf16.mxu0 0
    %7325 = vmatmul.mubr.bf16.gmra.mrb[0].mxu0 %v7290
    %v7326 = vpop.f32.mrb[0].mxu0
    %v7327 = vadd.f32 0.0, %v7326
    %v7328 = vpop.f32.mrb[0].mxu0
    %v7329 = vpop.f32.mrb[0].mxu0
    %v7330 = vpop.f32.mrb[0].mxu0
    %7331 = vdwg.mxu0
    %v7332 = vadd.f32 %v7282, %v7327
    %v7333 = vld [vmem:[#allocation2 + $0x240] sm:$0xff]
    %v7334 = vld [vmem:[#allocation2 + $0x248] sm:$0xff]
    %v7335 = vld [vmem:[#allocation2 + $0x250] sm:$0xff]
    %v7336 = vld [vmem:[#allocation2 + $0x258] sm:$0xff]
    %v7337 = vrot.slane %v7234, 2
    %v7339 = vsel %vm6458, %v7337, 0
    %7341 = vmatprep.subr.bf16.mxu0 0
    %7342 = vmatpush1.bf16.msra.mxu0 %v7333
    %7343 = vmatprep.subr.bf16.mxu0 0
    %7344 = vmatpush1.bf16.msra.mxu0 %v7334
    %7345 = vmatprep.subr.bf16.mxu0 0
    %7346 = vmatpush1.bf16.msra.mxu0 %v7335
    %7347 = vmatprep.subr.bf16.mxu0 0
    %7348 = vmatpush1.bf16.msra.mxu0 %v7336
    %7349 = vmatprep.subr.bf16.mxu0 0
    %7350 = vmatpush1.bf16.msra.mxu0 0
    %7351 = vmatprep.subr.bf16.mxu0 0
    %7352 = vmatpush1.bf16.msra.mxu0 0
    %7353 = vmatprep.subr.bf16.mxu0 0
    %7354 = vmatpush1.bf16.msra.mxu0 0
    %7355 = vmatprep.subr.bf16.mxu0 0
    %7356 = vmatpush1.bf16.msra.mxu0 0
    %7357 = vmatprep.subr.bf16.mxu0 0
    %7358 = vmatpush1.bf16.msra.mxu0 0
    %7359 = vmatprep.subr.bf16.mxu0 0
    %7360 = vmatpush1.bf16.msra.mxu0 0
    %7361 = vmatprep.subr.bf16.mxu0 0
    %7362 = vmatpush1.bf16.msra.mxu0 0
    %7363 = vmatprep.subr.bf16.mxu0 0
    %7364 = vmatpush1.bf16.msra.mxu0 0
    %7365 = vmatprep.subr.bf16.mxu0 0
    %7366 = vmatpush1.bf16.msra.mxu0 0
    %7367 = vmatprep.subr.bf16.mxu0 0
    %7368 = vmatpush1.bf16.msra.mxu0 0
    %7369 = vmatprep.subr.bf16.mxu0 0
    %7370 = vmatpush1.bf16.msra.mxu0 0
    %7371 = vmatprep.subr.bf16.mxu0 0
    %7372 = vmatpush1.bf16.msra.mxu0 0
    %7373 = vmatprep.mubr.bf16.mxu0 0
    %7374 = vmatmul.mubr.bf16.gmra.mrb[0].mxu0 %v7339
    %v7375 = vpop.f32.mrb[0].mxu0
    %v7376 = vadd.f32 0.0, %v7375
    %v7377 = vpop.f32.mrb[0].mxu0
    %v7378 = vpop.f32.mrb[0].mxu0
    %v7379 = vpop.f32.mrb[0].mxu0
    %7380 = vdwg.mxu0
    %v7381 = vadd.f32 %v7332, %v7376
    %v7382 = vld [vmem:[#allocation2 + $0x260] sm:$0xff]
    %v7383 = vld [vmem:[#allocation2 + $0x268] sm:$0xff]
    %v7384 = vld [vmem:[#allocation2 + $0x270] sm:$0xff]
    %v7385 = vld [vmem:[#allocation2 + $0x278] sm:$0xff]
    %v7386 = vrot.slane %v7234, 3
    %v7388 = vsel %vm6458, %v7386, 0
    %7390 = vmatprep.subr.bf16.mxu0 0
    %7391 = vmatpush1.bf16.msra.mxu0 %v7382
    %7392 = vmatprep.subr.bf16.mxu0 0
    %7393 = vmatpush1.bf16.msra.mxu0 %v7383
    %7394 = vmatprep.subr.bf16.mxu0 0
    %7395 = vmatpush1.bf16.msra.mxu0 %v7384
    %7396 = vmatprep.subr.bf16.mxu0 0
    %7397 = vmatpush1.bf16.msra.mxu0 %v7385
    %7398 = vmatprep.subr.bf16.mxu0 0
    %7399 = vmatpush1.bf16.msra.mxu0 0
    %7400 = vmatprep.subr.bf16.mxu0 0
    %7401 = vmatpush1.bf16.msra.mxu0 0
    %7402 = vmatprep.subr.bf16.mxu0 0
    %7403 = vmatpush1.bf16.msra.mxu0 0
    %7404 = vmatprep.subr.bf16.mxu0 0
    %7405 = vmatpush1.bf16.msra.mxu0 0
    %7406 = vmatprep.subr.bf16.mxu0 0
    %7407 = vmatpush1.bf16.msra.mxu0 0
    %7408 = vmatprep.subr.bf16.mxu0 0
    %7409 = vmatpush1.bf16.msra.mxu0 0
    %7410 = vmatprep.subr.bf16.mxu0 0
    %7411 = vmatpush1.bf16.msra.mxu0 0
    %7412 = vmatprep.subr.bf16.mxu0 0
    %7413 = vmatpush1.bf16.msra.mxu0 0
    %7414 = vmatprep.subr.bf16.mxu0 0
    %7415 = vmatpush1.bf16.msra.mxu0 0
    %7416 = vmatprep.subr.bf16.mxu0 0
    %7417 = vmatpush1.bf16.msra.mxu0 0
    %7418 = vmatprep.subr.bf16.mxu0 0
    %7419 = vmatpush1.bf16.msra.mxu0 0
    %7420 = vmatprep.subr.bf16.mxu0 0
    %7421 = vmatpush1.bf16.msra.mxu0 0
    %7422 = vmatprep.mubr.bf16.mxu0 0
    %7423 = vmatmul.mubr.bf16.gmra.mrb[0].mxu0 %v7388
    %v7424 = vpop.f32.mrb[0].mxu0
    %v7425 = vadd.f32 0.0, %v7424
    %v7426 = vpop.f32.mrb[0].mxu0
    %v7427 = vpop.f32.mrb[0].mxu0
    %v7428 = vpop.f32.mrb[0].mxu0
    %7429 = vdwg.mxu0
    %v7430 = vadd.f32 %v7381, %v7425
    %v7431 = vpack.c.bf16 %v6435, %v6435
    %v7432 = vld [vmem:[#allocation2 + $0x280] sm:$0xff]
    %v7433 = vld [vmem:[#allocation2 + $0x288] sm:$0xff]
    %v7434 = vld [vmem:[#allocation2 + $0x290] sm:$0xff]
    %v7435 = vld [vmem:[#allocation2 + $0x298] sm:$0xff]
    %v7437 = vsel %vm6458, %v7431, 0
    %7439 = vmatprep.subr.bf16.mxu0 0
    %7440 = vmatpush1.bf16.msra.mxu0 %v7432
    %7441 = vmatprep.subr.bf16.mxu0 0
    %7442 = vmatpush1.bf16.msra.mxu0 %v7433
    %7443 = vmatprep.subr.bf16.mxu0 0
    %7444 = vmatpush1.bf16.msra.mxu0 %v7434
    %7445 = vmatprep.subr.bf16.mxu0 0
    %7446 = vmatpush1.bf16.msra.mxu0 %v7435
    %7447 = vmatprep.subr.bf16.mxu0 0
    %7448 = vmatpush1.bf16.msra.mxu0 0
    %7449 = vmatprep.subr.bf16.mxu0 0
    %7450 = vmatpush1.bf16.msra.mxu0 0
    %7451 = vmatprep.subr.bf16.mxu0 0
    %7452 = vmatpush1.bf16.msra.mxu0 0
    %7453 = vmatprep.subr.bf16.mxu0 0
    %7454 = vmatpush1.bf16.msra.mxu0 0
    %7455 = vmatprep.subr.bf16.mxu0 0
    %7456 = vmatpush1.bf16.msra.mxu0 0
    %7457 = vmatprep.subr.bf16.mxu0 0
    %7458 = vmatpush1.bf16.msra.mxu0 0
    %7459 = vmatprep.subr.bf16.mxu0 0
    %7460 = vmatpush1.bf16.msra.mxu0 0
    %7461 = vmatprep.subr.bf16.mxu0 0
    %7462 = vmatpush1.bf16.msra.mxu0 0
    %7463 = vmatprep.subr.bf16.mxu0 0
    %7464 = vmatpush1.bf16.msra.mxu0 0
    %7465 = vmatprep.subr.bf16.mxu0 0
    %7466 = vmatpush1.bf16.msra.mxu0 0
    %7467 = vmatprep.subr.bf16.mxu0 0
    %7468 = vmatpush1.bf16.msra.mxu0 0
    %7469 = vmatprep.subr.bf16.mxu0 0
    %7470 = vmatpush1.bf16.msra.mxu0 0
    %7471 = vmatprep.mubr.bf16.mxu0 0
    %7472 = vmatmul.mubr.bf16.gmra.mrb[0].mxu0 %v7437
    %v7473 = vpop.f32.mrb[0].mxu0
    %v7474 = vadd.f32 0.0, %v7473
    %v7475 = vpop.f32.mrb[0].mxu0
    %v7476 = vpop.f32.mrb[0].mxu0
    %v7477 = vpop.f32.mrb[0].mxu0
    %7478 = vdwg.mxu0
    %v7479 = vadd.f32 %v7430, %v7474
    %v7480 = vld [vmem:[#allocation2 + $0x2a0] sm:$0xff]
    %v7481 = vld [vmem:[#allocation2 + $0x2a8] sm:$0xff]
    %v7482 = vld [vmem:[#allocation2 + $0x2b0] sm:$0xff]
    %v7483 = vld [vmem:[#allocation2 + $0x2b8] sm:$0xff]
    %v7485 = vrot.slane %v7431, 1
    %v7487 = vsel %vm6458, %v7485, 0
    %7489 = vmatprep.subr.bf16.mxu0 0
    %7490 = vmatpush1.bf16.msra.mxu0 %v7480
    %7491 = vmatprep.subr.bf16.mxu0 0
    %7492 = vmatpush1.bf16.msra.mxu0 %v7481
    %7493 = vmatprep.subr.bf16.mxu0 0
    %7494 = vmatpush1.bf16.msra.mxu0 %v7482
    %7495 = vmatprep.subr.bf16.mxu0 0
    %7496 = vmatpush1.bf16.msra.mxu0 %v7483
    %7497 = vmatprep.subr.bf16.mxu0 0
    %7498 = vmatpush1.bf16.msra.mxu0 0
    %7499 = vmatprep.subr.bf16.mxu0 0
    %7500 = vmatpush1.bf16.msra.mxu0 0
    %7501 = vmatprep.subr.bf16.mxu0 0
    %7502 = vmatpush1.bf16.msra.mxu0 0
    %7503 = vmatprep.subr.bf16.mxu0 0
    %7504 = vmatpush1.bf16.msra.mxu0 0
    %7505 = vmatprep.subr.bf16.mxu0 0
    %7506 = vmatpush1.bf16.msra.mxu0 0
    %7507 = vmatprep.subr.bf16.mxu0 0
    %7508 = vmatpush1.bf16.msra.mxu0 0
    %7509 = vmatprep.subr.bf16.mxu0 0
    %7510 = vmatpush1.bf16.msra.mxu0 0
    %7511 = vmatprep.subr.bf16.mxu0 0
    %7512 = vmatpush1.bf16.msra.mxu0 0
    %7513 = vmatprep.subr.bf16.mxu0 0
    %7514 = vmatpush1.bf16.msra.mxu0 0
    %7515 = vmatprep.subr.bf16.mxu0 0
    %7516 = vmatpush1.bf16.msra.mxu0 0
    %7517 = vmatprep.subr.bf16.mxu0 0
    %7518 = vmatpush1.bf16.msra.mxu0 0
    %7519 = vmatprep.subr.bf16.mxu0 0
    %7520 = vmatpush1.bf16.msra.mxu0 0
    %7521 = vmatprep.mubr.bf16.mxu0 0
    %7522 = vmatmul.mubr.bf16.gmra.mrb[0].mxu0 %v7487
    %v7523 = vpop.f32.mrb[0].mxu0
    %v7524 = vadd.f32 0.0, %v7523
    %v7525 = vpop.f32.mrb[0].mxu0
    %v7526 = vpop.f32.mrb[0].mxu0
    %v7527 = vpop.f32.mrb[0].mxu0
    %7528 = vdwg.mxu0
    %v7529 = vadd.f32 %v7479, %v7524
    %v7530 = vld [vmem:[#allocation2 + $0x2c0] sm:$0xff]
    %v7531 = vld [vmem:[#allocation2 + $0x2c8] sm:$0xff]
    %v7532 = vld [vmem:[#allocation2 + $0x2d0] sm:$0xff]
    %v7533 = vld [vmem:[#allocation2 + $0x2d8] sm:$0xff]
    %v7534 = vrot.slane %v7431, 2
    %v7536 = vsel %vm6458, %v7534, 0
    %7538 = vmatprep.subr.bf16.mxu0 0
    %7539 = vmatpush1.bf16.msra.mxu0 %v7530
    %7540 = vmatprep.subr.bf16.mxu0 0
    %7541 = vmatpush1.bf16.msra.mxu0 %v7531
    %7542 = vmatprep.subr.bf16.mxu0 0
    %7543 = vmatpush1.bf16.msra.mxu0 %v7532
    %7544 = vmatprep.subr.bf16.mxu0 0
    %7545 = vmatpush1.bf16.msra.mxu0 %v7533
    %7546 = vmatprep.subr.bf16.mxu0 0
    %7547 = vmatpush1.bf16.msra.mxu0 0
    %7548 = vmatprep.subr.bf16.mxu0 0
    %7549 = vmatpush1.bf16.msra.mxu0 0
    %7550 = vmatprep.subr.bf16.mxu0 0
    %7551 = vmatpush1.bf16.msra.mxu0 0
    %7552 = vmatprep.subr.bf16.mxu0 0
    %7553 = vmatpush1.bf16.msra.mxu0 0
    %7554 = vmatprep.subr.bf16.mxu0 0
    %7555 = vmatpush1.bf16.msra.mxu0 0
    %7556 = vmatprep.subr.bf16.mxu0 0
    %7557 = vmatpush1.bf16.msra.mxu0 0
    %7558 = vmatprep.subr.bf16.mxu0 0
    %7559 = vmatpush1.bf16.msra.mxu0 0
    %7560 = vmatprep.subr.bf16.mxu0 0
    %7561 = vmatpush1.bf16.msra.mxu0 0
    %7562 = vmatprep.subr.bf16.mxu0 0
    %7563 = vmatpush1.bf16.msra.mxu0 0
    %7564 = vmatprep.subr.bf16.mxu0 0
    %7565 = vmatpush1.bf16.msra.mxu0 0
    %7566 = vmatprep.subr.bf16.mxu0 0
    %7567 = vmatpush1.bf16.msra.mxu0 0
    %7568 = vmatprep.subr.bf16.mxu0 0
    %7569 = vmatpush1.bf16.msra.mxu0 0
    %7570 = vmatprep.mubr.bf16.mxu0 0
    %7571 = vmatmul.mubr.bf16.gmra.mrb[0].mxu0 %v7536
    %v7572 = vpop.f32.mrb[0].mxu0
    %v7573 = vadd.f32 0.0, %v7572
    %v7574 = vpop.f32.mrb[0].mxu0
    %v7575 = vpop.f32.mrb[0].mxu0
    %v7576 = vpop.f32.mrb[0].mxu0
    %7577 = vdwg.mxu0
    %v7578 = vadd.f32 %v7529, %v7573
    %v7579 = vld [vmem:[#allocation2 + $0x2e0] sm:$0xff]
    %v7580 = vld [vmem:[#allocation2 + $0x2e8] sm:$0xff]
    %v7581 = vld [vmem:[#allocation2 + $0x2f0] sm:$0xff]
    %v7582 = vld [vmem:[#allocation2 + $0x2f8] sm:$0xff]
    %v7583 = vrot.slane %v7431, 3
    %v7585 = vsel %vm6458, %v7583, 0
    %7587 = vmatprep.subr.bf16.mxu0 0
    %7588 = vmatpush1.bf16.msra.mxu0 %v7579
    %7589 = vmatprep.subr.bf16.mxu0 0
    %7590 = vmatpush1.bf16.msra.mxu0 %v7580
    %7591 = vmatprep.subr.bf16.mxu0 0
    %7592 = vmatpush1.bf16.msra.mxu0 %v7581
    %7593 = vmatprep.subr.bf16.mxu0 0
    %7594 = vmatpush1.bf16.msra.mxu0 %v7582
    %7595 = vmatprep.subr.bf16.mxu0 0
    %7596 = vmatpush1.bf16.msra.mxu0 0
    %7597 = vmatprep.subr.bf16.mxu0 0
    %7598 = vmatpush1.bf16.msra.mxu0 0
    %7599 = vmatprep.subr.bf16.mxu0 0
    %7600 = vmatpush1.bf16.msra.mxu0 0
    %7601 = vmatprep.subr.bf16.mxu0 0
    %7602 = vmatpush1.bf16.msra.mxu0 0
    %7603 = vmatprep.subr.bf16.mxu0 0
    %7604 = vmatpush1.bf16.msra.mxu0 0
    %7605 = vmatprep.subr.bf16.mxu0 0
    %7606 = vmatpush1.bf16.msra.mxu0 0
    %7607 = vmatprep.subr.bf16.mxu0 0
    %7608 = vmatpush1.bf16.msra.mxu0 0
    %7609 = vmatprep.subr.bf16.mxu0 0
    %7610 = vmatpush1.bf16.msra.mxu0 0
    %7611 = vmatprep.subr.bf16.mxu0 0
    %7612 = vmatpush1.bf16.msra.mxu0 0
    %7613 = vmatprep.subr.bf16.mxu0 0
    %7614 = vmatpush1.bf16.msra.mxu0 0
    %7615 = vmatprep.subr.bf16.mxu0 0
    %7616 = vmatpush1.bf16.msra.mxu0 0
    %7617 = vmatprep.subr.bf16.mxu0 0
    %7618 = vmatpush1.bf16.msra.mxu0 0
    %7619 = vmatprep.mubr.bf16.mxu0 0
    %7620 = vmatmul.mubr.bf16.gmra.mrb[0].mxu0 %v7585
    %v7621 = vpop.f32.mrb[0].mxu0
    %v7622 = vadd.f32 0.0, %v7621
    %v7623 = vpop.f32.mrb[0].mxu0
    %v7624 = vpop.f32.mrb[0].mxu0
    %v7625 = vpop.f32.mrb[0].mxu0
    %7626 = vdwg.mxu0
    %v7627 = vadd.f32 %v7578, %v7622
    %v7628 = vpack.c.bf16 %v6436, %v6436
    %v7629 = vld [vmem:[#allocation2 + $0x300] sm:$0xff]
    %v7630 = vld [vmem:[#allocation2 + $0x308] sm:$0xff]
    %v7631 = vld [vmem:[#allocation2 + $0x310] sm:$0xff]
    %v7632 = vld [vmem:[#allocation2 + $0x318] sm:$0xff]
    %v7634 = vsel %vm6458, %v7628, 0
    %7636 = vmatprep.subr.bf16.mxu0 0
    %7637 = vmatpush1.bf16.msra.mxu0 %v7629
    %7638 = vmatprep.subr.bf16.mxu0 0
    %7639 = vmatpush1.bf16.msra.mxu0 %v7630
    %7640 = vmatprep.subr.bf16.mxu0 0
    %7641 = vmatpush1.bf16.msra.mxu0 %v7631
    %7642 = vmatprep.subr.bf16.mxu0 0
    %7643 = vmatpush1.bf16.msra.mxu0 %v7632
    %7644 = vmatprep.subr.bf16.mxu0 0
    %7645 = vmatpush1.bf16.msra.mxu0 0
    %7646 = vmatprep.subr.bf16.mxu0 0
    %7647 = vmatpush1.bf16.msra.mxu0 0
    %7648 = vmatprep.subr.bf16.mxu0 0
    %7649 = vmatpush1.bf16.msra.mxu0 0
    %7650 = vmatprep.subr.bf16.mxu0 0
    %7651 = vmatpush1.bf16.msra.mxu0 0
    %7652 = vmatprep.subr.bf16.mxu0 0
    %7653 = vmatpush1.bf16.msra.mxu0 0
    %7654 = vmatprep.subr.bf16.mxu0 0
    %7655 = vmatpush1.bf16.msra.mxu0 0
    %7656 = vmatprep.subr.bf16.mxu0 0
    %7657 = vmatpush1.bf16.msra.mxu0 0
    %7658 = vmatprep.subr.bf16.mxu0 0
    %7659 = vmatpush1.bf16.msra.mxu0 0
    %7660 = vmatprep.subr.bf16.mxu0 0
    %7661 = vmatpush1.bf16.msra.mxu0 0
    %7662 = vmatprep.subr.bf16.mxu0 0
    %7663 = vmatpush1.bf16.msra.mxu0 0
    %7664 = vmatprep.subr.bf16.mxu0 0
    %7665 = vmatpush1.bf16.msra.mxu0 0
    %7666 = vmatprep.subr.bf16.mxu0 0
    %7667 = vmatpush1.bf16.msra.mxu0 0
    %7668 = vmatprep.mubr.bf16.mxu0 0
    %7669 = vmatmul.mubr.bf16.gmra.mrb[0].mxu0 %v7634
    %v7670 = vpop.f32.mrb[0].mxu0
    %v7671 = vadd.f32 0.0, %v7670
    %v7672 = vpop.f32.mrb[0].mxu0
    %v7673 = vpop.f32.mrb[0].mxu0
    %v7674 = vpop.f32.mrb[0].mxu0
    %7675 = vdwg.mxu0
    %v7676 = vadd.f32 %v7627, %v7671
    %v7677 = vld [vmem:[#allocation2 + $0x320] sm:$0xff]
    %v7678 = vld [vmem:[#allocation2 + $0x328] sm:$0xff]
    %v7679 = vld [vmem:[#allocation2 + $0x330] sm:$0xff]
    %v7680 = vld [vmem:[#allocation2 + $0x338] sm:$0xff]
    %v7682 = vrot.slane %v7628, 1
    %v7684 = vsel %vm6458, %v7682, 0
    %7686 = vmatprep.subr.bf16.mxu0 0
    %7687 = vmatpush1.bf16.msra.mxu0 %v7677
    %7688 = vmatprep.subr.bf16.mxu0 0
    %7689 = vmatpush1.bf16.msra.mxu0 %v7678
    %7690 = vmatprep.subr.bf16.mxu0 0
    %7691 = vmatpush1.bf16.msra.mxu0 %v7679
    %7692 = vmatprep.subr.bf16.mxu0 0
    %7693 = vmatpush1.bf16.msra.mxu0 %v7680
    %7694 = vmatprep.subr.bf16.mxu0 0
    %7695 = vmatpush1.bf16.msra.mxu0 0
    %7696 = vmatprep.subr.bf16.mxu0 0
    %7697 = vmatpush1.bf16.msra.mxu0 0
    %7698 = vmatprep.subr.bf16.mxu0 0
    %7699 = vmatpush1.bf16.msra.mxu0 0
    %7700 = vmatprep.subr.bf16.mxu0 0
    %7701 = vmatpush1.bf16.msra.mxu0 0
    %7702 = vmatprep.subr.bf16.mxu0 0
    %7703 = vmatpush1.bf16.msra.mxu0 0
    %7704 = vmatprep.subr.bf16.mxu0 0
    %7705 = vmatpush1.bf16.msra.mxu0 0
    %7706 = vmatprep.subr.bf16.mxu0 0
    %7707 = vmatpush1.bf16.msra.mxu0 0
    %7708 = vmatprep.subr.bf16.mxu0 0
    %7709 = vmatpush1.bf16.msra.mxu0 0
    %7710 = vmatprep.subr.bf16.mxu0 0
    %7711 = vmatpush1.bf16.msra.mxu0 0
    %7712 = vmatprep.subr.bf16.mxu0 0
    %7713 = vmatpush1.bf16.msra.mxu0 0
    %7714 = vmatprep.subr.bf16.mxu0 0
    %7715 = vmatpush1.bf16.msra.mxu0 0
    %7716 = vmatprep.subr.bf16.mxu0 0
    %7717 = vmatpush1.bf16.msra.mxu0 0
    %7718 = vmatprep.mubr.bf16.mxu0 0
    %7719 = vmatmul.mubr.bf16.gmra.mrb[0].mxu0 %v7684
    %v7720 = vpop.f32.mrb[0].mxu0
    %v7721 = vadd.f32 0.0, %v7720
    %v7722 = vpop.f32.mrb[0].mxu0
    %v7723 = vpop.f32.mrb[0].mxu0
    %v7724 = vpop.f32.mrb[0].mxu0
    %7725 = vdwg.mxu0
    %v7726 = vadd.f32 %v7676, %v7721
    %v7727 = vld [vmem:[#allocation2 + $0x340] sm:$0xff]
    %v7728 = vld [vmem:[#allocation2 + $0x348] sm:$0xff]
    %v7729 = vld [vmem:[#allocation2 + $0x350] sm:$0xff]
    %v7730 = vld [vmem:[#allocation2 + $0x358] sm:$0xff]
    %v7731 = vrot.slane %v7628, 2
    %v7733 = vsel %vm6458, %v7731, 0
    %7735 = vmatprep.subr.bf16.mxu0 0
    %7736 = vmatpush1.bf16.msra.mxu0 %v7727
    %7737 = vmatprep.subr.bf16.mxu0 0
    %7738 = vmatpush1.bf16.msra.mxu0 %v7728
    %7739 = vmatprep.subr.bf16.mxu0 0
    %7740 = vmatpush1.bf16.msra.mxu0 %v7729
    %7741 = vmatprep.subr.bf16.mxu0 0
    %7742 = vmatpush1.bf16.msra.mxu0 %v7730
    %7743 = vmatprep.subr.bf16.mxu0 0
    %7744 = vmatpush1.bf16.msra.mxu0 0
    %7745 = vmatprep.subr.bf16.mxu0 0
    %7746 = vmatpush1.bf16.msra.mxu0 0
    %7747 = vmatprep.subr.bf16.mxu0 0
    %7748 = vmatpush1.bf16.msra.mxu0 0
    %7749 = vmatprep.subr.bf16.mxu0 0
    %7750 = vmatpush1.bf16.msra.mxu0 0
    %7751 = vmatprep.subr.bf16.mxu0 0
    %7752 = vmatpush1.bf16.msra.mxu0 0
    %7753 = vmatprep.subr.bf16.mxu0 0
    %7754 = vmatpush1.bf16.msra.mxu0 0
    %7755 = vmatprep.subr.bf16.mxu0 0
    %7756 = vmatpush1.bf16.msra.mxu0 0
    %7757 = vmatprep.subr.bf16.mxu0 0
    %7758 = vmatpush1.bf16.msra.mxu0 0
    %7759 = vmatprep.subr.bf16.mxu0 0
    %7760 = vmatpush1.bf16.msra.mxu0 0
    %7761 = vmatprep.subr.bf16.mxu0 0
    %7762 = vmatpush1.bf16.msra.mxu0 0
    %7763 = vmatprep.subr.bf16.mxu0 0
    %7764 = vmatpush1.bf16.msra.mxu0 0
    %7765 = vmatprep.subr.bf16.mxu0 0
    %7766 = vmatpush1.bf16.msra.mxu0 0
    %7767 = vmatprep.mubr.bf16.mxu0 0
    %7768 = vmatmul.mubr.bf16.gmra.mrb[0].mxu0 %v7733
    %v7769 = vpop.f32.mrb[0].mxu0
    %v7770 = vadd.f32 0.0, %v7769
    %v7771 = vpop.f32.mrb[0].mxu0
    %v7772 = vpop.f32.mrb[0].mxu0
    %v7773 = vpop.f32.mrb[0].mxu0
    %7774 = vdwg.mxu0
    %v7775 = vadd.f32 %v7726, %v7770
    %v7776 = vld [vmem:[#allocation2 + $0x360] sm:$0xff]
    %v7777 = vld [vmem:[#allocation2 + $0x368] sm:$0xff]
    %v7778 = vld [vmem:[#allocation2 + $0x370] sm:$0xff]
    %v7779 = vld [vmem:[#allocation2 + $0x378] sm:$0xff]
    %v7780 = vrot.slane %v7628, 3
    %v7782 = vsel %vm6458, %v7780, 0
    %7784 = vmatprep.subr.bf16.mxu0 0
    %7785 = vmatpush1.bf16.msra.mxu0 %v7776
    %7786 = vmatprep.subr.bf16.mxu0 0
    %7787 = vmatpush1.bf16.msra.mxu0 %v7777
    %7788 = vmatprep.subr.bf16.mxu0 0
    %7789 = vmatpush1.bf16.msra.mxu0 %v7778
    %7790 = vmatprep.subr.bf16.mxu0 0
    %7791 = vmatpush1.bf16.msra.mxu0 %v7779
    %7792 = vmatprep.subr.bf16.mxu0 0
    %7793 = vmatpush1.bf16.msra.mxu0 0
    %7794 = vmatprep.subr.bf16.mxu0 0
    %7795 = vmatpush1.bf16.msra.mxu0 0
    %7796 = vmatprep.subr.bf16.mxu0 0
    %7797 = vmatpush1.bf16.msra.mxu0 0
    %7798 = vmatprep.subr.bf16.mxu0 0
    %7799 = vmatpush1.bf16.msra.mxu0 0
    %7800 = vmatprep.subr.bf16.mxu0 0
    %7801 = vmatpush1.bf16.msra.mxu0 0
    %7802 = vmatprep.subr.bf16.mxu0 0
    %7803 = vmatpush1.bf16.msra.mxu0 0
    %7804 = vmatprep.subr.bf16.mxu0 0
    %7805 = vmatpush1.bf16.msra.mxu0 0
    %7806 = vmatprep.subr.bf16.mxu0 0
    %7807 = vmatpush1.bf16.msra.mxu0 0
    %7808 = vmatprep.subr.bf16.mxu0 0
    %7809 = vmatpush1.bf16.msra.mxu0 0
    %7810 = vmatprep.subr.bf16.mxu0 0
    %7811 = vmatpush1.bf16.msra.mxu0 0
    %7812 = vmatprep.subr.bf16.mxu0 0
    %7813 = vmatpush1.bf16.msra.mxu0 0
    %7814 = vmatprep.subr.bf16.mxu0 0
    %7815 = vmatpush1.bf16.msra.mxu0 0
    %7816 = vmatprep.mubr.bf16.mxu0 0
    %7817 = vmatmul.mubr.bf16.gmra.mrb[0].mxu0 %v7782
    %v7818 = vpop.f32.mrb[0].mxu0
    %v7819 = vadd.f32 0.0, %v7818
    %v7820 = vpop.f32.mrb[0].mxu0
    %v7821 = vpop.f32.mrb[0].mxu0
    %v7822 = vpop.f32.mrb[0].mxu0
    %7823 = vdwg.mxu0
    %v7824 = vadd.f32 %v7775, %v7819
    %v7825 = vpack.c.bf16 %v6437, %v6437
    %v7826 = vld [vmem:[#allocation2 + $0x380] sm:$0xff]
    %v7827 = vld [vmem:[#allocation2 + $0x388] sm:$0xff]
    %v7828 = vld [vmem:[#allocation2 + $0x390] sm:$0xff]
    %v7829 = vld [vmem:[#allocation2 + $0x398] sm:$0xff]
    %v7831 = vsel %vm6458, %v7825, 0
    %7833 = vmatprep.subr.bf16.mxu0 0
    %7834 = vmatpush1.bf16.msra.mxu0 %v7826
    %7835 = vmatprep.subr.bf16.mxu0 0
    %7836 = vmatpush1.bf16.msra.mxu0 %v7827
    %7837 = vmatprep.subr.bf16.mxu0 0
    %7838 = vmatpush1.bf16.msra.mxu0 %v7828
    %7839 = vmatprep.subr.bf16.mxu0 0
    %7840 = vmatpush1.bf16.msra.mxu0 %v7829
    %7841 = vmatprep.subr.bf16.mxu0 0
    %7842 = vmatpush1.bf16.msra.mxu0 0
    %7843 = vmatprep.subr.bf16.mxu0 0
    %7844 = vmatpush1.bf16.msra.mxu0 0
    %7845 = vmatprep.subr.bf16.mxu0 0
    %7846 = vmatpush1.bf16.msra.mxu0 0
    %7847 = vmatprep.subr.bf16.mxu0 0
    %7848 = vmatpush1.bf16.msra.mxu0 0
    %7849 = vmatprep.subr.bf16.mxu0 0
    %7850 = vmatpush1.bf16.msra.mxu0 0
    %7851 = vmatprep.subr.bf16.mxu0 0
    %7852 = vmatpush1.bf16.msra.mxu0 0
    %7853 = vmatprep.subr.bf16.mxu0 0
    %7854 = vmatpush1.bf16.msra.mxu0 0
    %7855 = vmatprep.subr.bf16.mxu0 0
    %7856 = vmatpush1.bf16.msra.mxu0 0
    %7857 = vmatprep.subr.bf16.mxu0 0
    %7858 = vmatpush1.bf16.msra.mxu0 0
    %7859 = vmatprep.subr.bf16.mxu0 0
    %7860 = vmatpush1.bf16.msra.mxu0 0
    %7861 = vmatprep.subr.bf16.mxu0 0
    %7862 = vmatpush1.bf16.msra.mxu0 0
    %7863 = vmatprep.subr.bf16.mxu0 0
    %7864 = vmatpush1.bf16.msra.mxu0 0
    %7865 = vmatprep.mubr.bf16.mxu0 0
    %7866 = vmatmul.mubr.bf16.gmra.mrb[0].mxu0 %v7831
    %v7867 = vpop.f32.mrb[0].mxu0
    %v7868 = vadd.f32 0.0, %v7867
    %v7869 = vpop.f32.mrb[0].mxu0
    %v7870 = vpop.f32.mrb[0].mxu0
    %v7871 = vpop.f32.mrb[0].mxu0
    %7872 = vdwg.mxu0
    %v7873 = vadd.f32 %v7824, %v7868
    %v7874 = vld [vmem:[#allocation2 + $0x3a0] sm:$0xff]
    %v7875 = vld [vmem:[#allocation2 + $0x3a8] sm:$0xff]
    %v7876 = vld [vmem:[#allocation2 + $0x3b0] sm:$0xff]
    %v7877 = vld [vmem:[#allocation2 + $0x3b8] sm:$0xff]
    %v7879 = vrot.slane %v7825, 1
    %v7881 = vsel %vm6458, %v7879, 0
    %7883 = vmatprep.subr.bf16.mxu0 0
    %7884 = vmatpush1.bf16.msra.mxu0 %v7874
    %7885 = vmatprep.subr.bf16.mxu0 0
    %7886 = vmatpush1.bf16.msra.mxu0 %v7875
    %7887 = vmatprep.subr.bf16.mxu0 0
    %7888 = vmatpush1.bf16.msra.mxu0 %v7876
    %7889 = vmatprep.subr.bf16.mxu0 0
    %7890 = vmatpush1.bf16.msra.mxu0 %v7877
    %7891 = vmatprep.subr.bf16.mxu0 0
    %7892 = vmatpush1.bf16.msra.mxu0 0
    %7893 = vmatprep.subr.bf16.mxu0 0
    %7894 = vmatpush1.bf16.msra.mxu0 0
    %7895 = vmatprep.subr.bf16.mxu0 0
    %7896 = vmatpush1.bf16.msra.mxu0 0
    %7897 = vmatprep.subr.bf16.mxu0 0
    %7898 = vmatpush1.bf16.msra.mxu0 0
    %7899 = vmatprep.subr.bf16.mxu0 0
    %7900 = vmatpush1.bf16.msra.mxu0 0
    %7901 = vmatprep.subr.bf16.mxu0 0
    %7902 = vmatpush1.bf16.msra.mxu0 0
    %7903 = vmatprep.subr.bf16.mxu0 0
    %7904 = vmatpush1.bf16.msra.mxu0 0
    %7905 = vmatprep.subr.bf16.mxu0 0
    %7906 = vmatpush1.bf16.msra.mxu0 0
    %7907 = vmatprep.subr.bf16.mxu0 0
    %7908 = vmatpush1.bf16.msra.mxu0 0
    %7909 = vmatprep.subr.bf16.mxu0 0
    %7910 = vmatpush1.bf16.msra.mxu0 0
    %7911 = vmatprep.subr.bf16.mxu0 0
    %7912 = vmatpush1.bf16.msra.mxu0 0
    %7913 = vmatprep.subr.bf16.mxu0 0
    %7914 = vmatpush1.bf16.msra.mxu0 0
    %7915 = vmatprep.mubr.bf16.mxu0 0
    %7916 = vmatmul.mubr.bf16.gmra.mrb[0].mxu0 %v7881
    %v7917 = vpop.f32.mrb[0].mxu0
    %v7918 = vadd.f32 0.0, %v7917
    %v7919 = vpop.f32.mrb[0].mxu0
    %v7920 = vpop.f32.mrb[0].mxu0
    %v7921 = vpop.f32.mrb[0].mxu0
    %7922 = vdwg.mxu0
    %v7923 = vadd.f32 %v7873, %v7918
    %v7924 = vld [vmem:[#allocation2 + $0x3c0] sm:$0xff]
    %v7925 = vld [vmem:[#allocation2 + $0x3c8] sm:$0xff]
    %v7926 = vld [vmem:[#allocation2 + $0x3d0] sm:$0xff]
    %v7927 = vld [vmem:[#allocation2 + $0x3d8] sm:$0xff]
    %v7928 = vrot.slane %v7825, 2
    %v7930 = vsel %vm6458, %v7928, 0
    %7932 = vmatprep.subr.bf16.mxu0 0
    %7933 = vmatpush1.bf16.msra.mxu0 %v7924
    %7934 = vmatprep.subr.bf16.mxu0 0
    %7935 = vmatpush1.bf16.msra.mxu0 %v7925
    %7936 = vmatprep.subr.bf16.mxu0 0
    %7937 = vmatpush1.bf16.msra.mxu0 %v7926
    %7938 = vmatprep.subr.bf16.mxu0 0
    %7939 = vmatpush1.bf16.msra.mxu0 %v7927
    %7940 = vmatprep.subr.bf16.mxu0 0
    %7941 = vmatpush1.bf16.msra.mxu0 0
    %7942 = vmatprep.subr.bf16.mxu0 0
    %7943 = vmatpush1.bf16.msra.mxu0 0
    %7944 = vmatprep.subr.bf16.mxu0 0
    %7945 = vmatpush1.bf16.msra.mxu0 0
    %7946 = vmatprep.subr.bf16.mxu0 0
    %7947 = vmatpush1.bf16.msra.mxu0 0
    %7948 = vmatprep.subr.bf16.mxu0 0
    %7949 = vmatpush1.bf16.msra.mxu0 0
    %7950 = vmatprep.subr.bf16.mxu0 0
    %7951 = vmatpush1.bf16.msra.mxu0 0
    %7952 = vmatprep.subr.bf16.mxu0 0
    %7953 = vmatpush1.bf16.msra.mxu0 0
    %7954 = vmatprep.subr.bf16.mxu0 0
    %7955 = vmatpush1.bf16.msra.mxu0 0
    %7956 = vmatprep.subr.bf16.mxu0 0
    %7957 = vmatpush1.bf16.msra.mxu0 0
    %7958 = vmatprep.subr.bf16.mxu0 0
    %7959 = vmatpush1.bf16.msra.mxu0 0
    %7960 = vmatprep.subr.bf16.mxu0 0
    %7961 = vmatpush1.bf16.msra.mxu0 0
    %7962 = vmatprep.subr.bf16.mxu0 0
    %7963 = vmatpush1.bf16.msra.mxu0 0
    %7964 = vmatprep.mubr.bf16.mxu0 0
    %7965 = vmatmul.mubr.bf16.gmra.mrb[0].mxu0 %v7930
    %v7966 = vpop.f32.mrb[0].mxu0
    %v7967 = vadd.f32 0.0, %v7966
    %v7968 = vpop.f32.mrb[0].mxu0
    %v7969 = vpop.f32.mrb[0].mxu0
    %v7970 = vpop.f32.mrb[0].mxu0
    %7971 = vdwg.mxu0
    %v7972 = vadd.f32 %v7923, %v7967
    %v7973 = vld [vmem:[#allocation2 + $0x3e0] sm:$0xff]
    %v7974 = vld [vmem:[#allocation2 + $0x3e8] sm:$0xff]
    %v7975 = vld [vmem:[#allocation2 + $0x3f0] sm:$0xff]
    %v7976 = vld [vmem:[#allocation2 + $0x3f8] sm:$0xff]
    %v7977 = vrot.slane %v7825, 3
    %v7979 = vsel %vm6458, %v7977, 0
    %7981 = vmatprep.subr.bf16.mxu0 0
    %7982 = vmatpush1.bf16.msra.mxu0 %v7973
    %7983 = vmatprep.subr.bf16.mxu0 0
    %7984 = vmatpush1.bf16.msra.mxu0 %v7974
    %7985 = vmatprep.subr.bf16.mxu0 0
    %7986 = vmatpush1.bf16.msra.mxu0 %v7975
    %7987 = vmatprep.subr.bf16.mxu0 0
    %7988 = vmatpush1.bf16.msra.mxu0 %v7976
    %7989 = vmatprep.subr.bf16.mxu0 0
    %7990 = vmatpush1.bf16.msra.mxu0 0
    %7991 = vmatprep.subr.bf16.mxu0 0
    %7992 = vmatpush1.bf16.msra.mxu0 0
    %7993 = vmatprep.subr.bf16.mxu0 0
    %7994 = vmatpush1.bf16.msra.mxu0 0
    %7995 = vmatprep.subr.bf16.mxu0 0
    %7996 = vmatpush1.bf16.msra.mxu0 0
    %7997 = vmatprep.subr.bf16.mxu0 0
    %7998 = vmatpush1.bf16.msra.mxu0 0
    %7999 = vmatprep.subr.bf16.mxu0 0
    %8000 = vmatpush1.bf16.msra.mxu0 0
    %8001 = vmatprep.subr.bf16.mxu0 0
    %8002 = vmatpush1.bf16.msra.mxu0 0
    %8003 = vmatprep.subr.bf16.mxu0 0
    %8004 = vmatpush1.bf16.msra.mxu0 0
    %8005 = vmatprep.subr.bf16.mxu0 0
    %8006 = vmatpush1.bf16.msra.mxu0 0
    %8007 = vmatprep.subr.bf16.mxu0 0
    %8008 = vmatpush1.bf16.msra.mxu0 0
    %8009 = vmatprep.subr.bf16.mxu0 0
    %8010 = vmatpush1.bf16.msra.mxu0 0
    %8011 = vmatprep.subr.bf16.mxu0 0
    %8012 = vmatpush1.bf16.msra.mxu0 0
    %8013 = vmatprep.mubr.bf16.mxu0 0
    %8014 = vmatmul.mubr.bf16.gmra.mrb[0].mxu0 %v7979
    %v8015 = vpop.f32.mrb[0].mxu0
    %v8016 = vadd.f32 0.0, %v8015
    %v8017 = vpop.f32.mrb[0].mxu0
    %v8018 = vpop.f32.mrb[0].mxu0
    %v8019 = vpop.f32.mrb[0].mxu0
    %8020 = vdwg.mxu0
    %v8021 = vadd.f32 %v7972, %v8016
    %v8022 = vpack.c.bf16 %v6438, %v6438
    %v8023 = vld [vmem:[#allocation2 + $0x400] sm:$0xff]
    %v8024 = vld [vmem:[#allocation2 + $0x408] sm:$0xff]
    %v8025 = vld [vmem:[#allocation2 + $0x410] sm:$0xff]
    %v8026 = vld [vmem:[#allocation2 + $0x418] sm:$0xff]
    %v8028 = vsel %vm6458, %v8022, 0
    %8030 = vmatprep.subr.bf16.mxu0 0
    %8031 = vmatpush1.bf16.msra.mxu0 %v8023
    %8032 = vmatprep.subr.bf16.mxu0 0
    %8033 = vmatpush1.bf16.msra.mxu0 %v8024
    %8034 = vmatprep.subr.bf16.mxu0 0
    %8035 = vmatpush1.bf16.msra.mxu0 %v8025
    %8036 = vmatprep.subr.bf16.mxu0 0
    %8037 = vmatpush1.bf16.msra.mxu0 %v8026
    %8038 = vmatprep.subr.bf16.mxu0 0
    %8039 = vmatpush1.bf16.msra.mxu0 0
    %8040 = vmatprep.subr.bf16.mxu0 0
    %8041 = vmatpush1.bf16.msra.mxu0 0
    %8042 = vmatprep.subr.bf16.mxu0 0
    %8043 = vmatpush1.bf16.msra.mxu0 0
    %8044 = vmatprep.subr.bf16.mxu0 0
    %8045 = vmatpush1.bf16.msra.mxu0 0
    %8046 = vmatprep.subr.bf16.mxu0 0
    %8047 = vmatpush1.bf16.msra.mxu0 0
    %8048 = vmatprep.subr.bf16.mxu0 0
    %8049 = vmatpush1.bf16.msra.mxu0 0
    %8050 = vmatprep.subr.bf16.mxu0 0
    %8051 = vmatpush1.bf16.msra.mxu0 0
    %8052 = vmatprep.subr.bf16.mxu0 0
    %8053 = vmatpush1.bf16.msra.mxu0 0
    %8054 = vmatprep.subr.bf16.mxu0 0
    %8055 = vmatpush1.bf16.msra.mxu0 0
    %8056 = vmatprep.subr.bf16.mxu0 0
    %8057 = vmatpush1.bf16.msra.mxu0 0
    %8058 = vmatprep.subr.bf16.mxu0 0
    %8059 = vmatpush1.bf16.msra.mxu0 0
    %8060 = vmatprep.subr.bf16.mxu0 0
    %8061 = vmatpush1.bf16.msra.mxu0 0
    %8062 = vmatprep.mubr.bf16.mxu0 0
    %8063 = vmatmul.mubr.bf16.gmra.mrb[0].mxu0 %v8028
    %v8064 = vpop.f32.mrb[0].mxu0
    %v8065 = vadd.f32 0.0, %v8064
    %v8066 = vpop.f32.mrb[0].mxu0
    %v8067 = vpop.f32.mrb[0].mxu0
    %v8068 = vpop.f32.mrb[0].mxu0
    %8069 = vdwg.mxu0
    %v8070 = vadd.f32 %v8021, %v8065
    %v8071 = vld [vmem:[#allocation2 + $0x420] sm:$0xff]
    %v8072 = vld [vmem:[#allocation2 + $0x428] sm:$0xff]
    %v8073 = vld [vmem:[#allocation2 + $0x430] sm:$0xff]
    %v8074 = vld [vmem:[#allocation2 + $0x438] sm:$0xff]
    %v8076 = vrot.slane %v8022, 1
    %v8078 = vsel %vm6458, %v8076, 0
    %8080 = vmatprep.subr.bf16.mxu0 0
    %8081 = vmatpush1.bf16.msra.mxu0 %v8071
    %8082 = vmatprep.subr.bf16.mxu0 0
    %8083 = vmatpush1.bf16.msra.mxu0 %v8072
    %8084 = vmatprep.subr.bf16.mxu0 0
    %8085 = vmatpush1.bf16.msra.mxu0 %v8073
    %8086 = vmatprep.subr.bf16.mxu0 0
    %8087 = vmatpush1.bf16.msra.mxu0 %v8074
    %8088 = vmatprep.subr.bf16.mxu0 0
    %8089 = vmatpush1.bf16.msra.mxu0 0
    %8090 = vmatprep.subr.bf16.mxu0 0
    %8091 = vmatpush1.bf16.msra.mxu0 0
    %8092 = vmatprep.subr.bf16.mxu0 0
    %8093 = vmatpush1.bf16.msra.mxu0 0
    %8094 = vmatprep.subr.bf16.mxu0 0
    %8095 = vmatpush1.bf16.msra.mxu0 0
    %8096 = vmatprep.subr.bf16.mxu0 0
    %8097 = vmatpush1.bf16.msra.mxu0 0
    %8098 = vmatprep.subr.bf16.mxu0 0
    %8099 = vmatpush1.bf16.msra.mxu0 0
    %8100 = vmatprep.subr.bf16.mxu0 0
    %8101 = vmatpush1.bf16.msra.mxu0 0
    %8102 = vmatprep.subr.bf16.mxu0 0
    %8103 = vmatpush1.bf16.msra.mxu0 0
    %8104 = vmatprep.subr.bf16.mxu0 0
    %8105 = vmatpush1.bf16.msra.mxu0 0
    %8106 = vmatprep.subr.bf16.mxu0 0
    %8107 = vmatpush1.bf16.msra.mxu0 0
    %8108 = vmatprep.subr.bf16.mxu0 0
    %8109 = vmatpush1.bf16.msra.mxu0 0
    %8110 = vmatprep.subr.bf16.mxu0 0
    %8111 = vmatpush1.bf16.msra.mxu0 0
    %8112 = vmatprep.mubr.bf16.mxu0 0
    %8113 = vmatmul.mubr.bf16.gmra.mrb[0].mxu0 %v8078
    %v8114 = vpop.f32.mrb[0].mxu0
    %v8115 = vadd.f32 0.0, %v8114
    %v8116 = vpop.f32.mrb[0].mxu0
    %v8117 = vpop.f32.mrb[0].mxu0
    %v8118 = vpop.f32.mrb[0].mxu0
    %8119 = vdwg.mxu0
    %v8120 = vadd.f32 %v8070, %v8115
    %v8121 = vld [vmem:[#allocation2 + $0x440] sm:$0xff]
    %v8122 = vld [vmem:[#allocation2 + $0x448] sm:$0xff]
    %v8123 = vld [vmem:[#allocation2 + $0x450] sm:$0xff]
    %v8124 = vld [vmem:[#allocation2 + $0x458] sm:$0xff]
    %v8125 = vrot.slane %v8022, 2
    %v8127 = vsel %vm6458, %v8125, 0
    %8129 = vmatprep.subr.bf16.mxu0 0
    %8130 = vmatpush1.bf16.msra.mxu0 %v8121
    %8131 = vmatprep.subr.bf16.mxu0 0
    %8132 = vmatpush1.bf16.msra.mxu0 %v8122
    %8133 = vmatprep.subr.bf16.mxu0 0
    %8134 = vmatpush1.bf16.msra.mxu0 %v8123
    %8135 = vmatprep.subr.bf16.mxu0 0
    %8136 = vmatpush1.bf16.msra.mxu0 %v8124
    %8137 = vmatprep.subr.bf16.mxu0 0
    %8138 = vmatpush1.bf16.msra.mxu0 0
    %8139 = vmatprep.subr.bf16.mxu0 0
    %8140 = vmatpush1.bf16.msra.mxu0 0
    %8141 = vmatprep.subr.bf16.mxu0 0
    %8142 = vmatpush1.bf16.msra.mxu0 0
    %8143 = vmatprep.subr.bf16.mxu0 0
    %8144 = vmatpush1.bf16.msra.mxu0 0
    %8145 = vmatprep.subr.bf16.mxu0 0
    %8146 = vmatpush1.bf16.msra.mxu0 0
    %8147 = vmatprep.subr.bf16.mxu0 0
    %8148 = vmatpush1.bf16.msra.mxu0 0
    %8149 = vmatprep.subr.bf16.mxu0 0
    %8150 = vmatpush1.bf16.msra.mxu0 0
    %8151 = vmatprep.subr.bf16.mxu0 0
    %8152 = vmatpush1.bf16.msra.mxu0 0
    %8153 = vmatprep.subr.bf16.mxu0 0
    %8154 = vmatpush1.bf16.msra.mxu0 0
    %8155 = vmatprep.subr.bf16.mxu0 0
    %8156 = vmatpush1.bf16.msra.mxu0 0
    %8157 = vmatprep.subr.bf16.mxu0 0
    %8158 = vmatpush1.bf16.msra.mxu0 0
    %8159 = vmatprep.subr.bf16.mxu0 0
    %8160 = vmatpush1.bf16.msra.mxu0 0
    %8161 = vmatprep.mubr.bf16.mxu0 0
    %8162 = vmatmul.mubr.bf16.gmra.mrb[0].mxu0 %v8127
    %v8163 = vpop.f32.mrb[0].mxu0
    %v8164 = vadd.f32 0.0, %v8163
    %v8165 = vpop.f32.mrb[0].mxu0
    %v8166 = vpop.f32.mrb[0].mxu0
    %v8167 = vpop.f32.mrb[0].mxu0
    %8168 = vdwg.mxu0
    %v8169 = vadd.f32 %v8120, %v8164
    %v8170 = vld [vmem:[#allocation2 + $0x460] sm:$0xff]
    %v8171 = vld [vmem:[#allocation2 + $0x468] sm:$0xff]
    %v8172 = vld [vmem:[#allocation2 + $0x470] sm:$0xff]
    %v8173 = vld [vmem:[#allocation2 + $0x478] sm:$0xff]
    %v8174 = vrot.slane %v8022, 3
    %v8176 = vsel %vm6458, %v8174, 0
    %8178 = vmatprep.subr.bf16.mxu0 0
    %8179 = vmatpush1.bf16.msra.mxu0 %v8170
    %8180 = vmatprep.subr.bf16.mxu0 0
    %8181 = vmatpush1.bf16.msra.mxu0 %v8171
    %8182 = vmatprep.subr.bf16.mxu0 0
    %8183 = vmatpush1.bf16.msra.mxu0 %v8172
    %8184 = vmatprep.subr.bf16.mxu0 0
    %8185 = vmatpush1.bf16.msra.mxu0 %v8173
    %8186 = vmatprep.subr.bf16.mxu0 0
    %8187 = vmatpush1.bf16.msra.mxu0 0
    %8188 = vmatprep.subr.bf16.mxu0 0
    %8189 = vmatpush1.bf16.msra.mxu0 0
    %8190 = vmatprep.subr.bf16.mxu0 0
    %8191 = vmatpush1.bf16.msra.mxu0 0
    %8192 = vmatprep.subr.bf16.mxu0 0
    %8193 = vmatpush1.bf16.msra.mxu0 0
    %8194 = vmatprep.subr.bf16.mxu0 0
    %8195 = vmatpush1.bf16.msra.mxu0 0
    %8196 = vmatprep.subr.bf16.mxu0 0
    %8197 = vmatpush1.bf16.msra.mxu0 0
    %8198 = vmatprep.subr.bf16.mxu0 0
    %8199 = vmatpush1.bf16.msra.mxu0 0
    %8200 = vmatprep.subr.bf16.mxu0 0
    %8201 = vmatpush1.bf16.msra.mxu0 0
    %8202 = vmatprep.subr.bf16.mxu0 0
    %8203 = vmatpush1.bf16.msra.mxu0 0
    %8204 = vmatprep.subr.bf16.mxu0 0
    %8205 = vmatpush1.bf16.msra.mxu0 0
    %8206 = vmatprep.subr.bf16.mxu0 0
    %8207 = vmatpush1.bf16.msra.mxu0 0
    %8208 = vmatprep.subr.bf16.mxu0 0
    %8209 = vmatpush1.bf16.msra.mxu0 0
    %8210 = vmatprep.mubr.bf16.mxu0 0
    %8211 = vmatmul.mubr.bf16.gmra.mrb[0].mxu0 %v8176
    %v8212 = vpop.f32.mrb[0].mxu0
    %v8213 = vadd.f32 0.0, %v8212
    %v8214 = vpop.f32.mrb[0].mxu0
    %v8215 = vpop.f32.mrb[0].mxu0
    %v8216 = vpop.f32.mrb[0].mxu0
    %8217 = vdwg.mxu0
    %v8218 = vadd.f32 %v8169, %v8213
    %v8219 = vpack.c.bf16 %v6439, %v6439
    %v8220 = vld [vmem:[#allocation2 + $0x480] sm:$0xff]
    %v8221 = vld [vmem:[#allocation2 + $0x488] sm:$0xff]
    %v8222 = vld [vmem:[#allocation2 + $0x490] sm:$0xff]
    %v8223 = vld [vmem:[#allocation2 + $0x498] sm:$0xff]
    %v8225 = vsel %vm6458, %v8219, 0
    %8227 = vmatprep.subr.bf16.mxu0 0
    %8228 = vmatpush1.bf16.msra.mxu0 %v8220
    %8229 = vmatprep.subr.bf16.mxu0 0
    %8230 = vmatpush1.bf16.msra.mxu0 %v8221
    %8231 = vmatprep.subr.bf16.mxu0 0
    %8232 = vmatpush1.bf16.msra.mxu0 %v8222
    %8233 = vmatprep.subr.bf16.mxu0 0
    %8234 = vmatpush1.bf16.msra.mxu0 %v8223
    %8235 = vmatprep.subr.bf16.mxu0 0
    %8236 = vmatpush1.bf16.msra.mxu0 0
    %8237 = vmatprep.subr.bf16.mxu0 0
    %8238 = vmatpush1.bf16.msra.mxu0 0
    %8239 = vmatprep.subr.bf16.mxu0 0
    %8240 = vmatpush1.bf16.msra.mxu0 0
    %8241 = vmatprep.subr.bf16.mxu0 0
    %8242 = vmatpush1.bf16.msra.mxu0 0
    %8243 = vmatprep.subr.bf16.mxu0 0
    %8244 = vmatpush1.bf16.msra.mxu0 0
    %8245 = vmatprep.subr.bf16.mxu0 0
    %8246 = vmatpush1.bf16.msra.mxu0 0
    %8247 = vmatprep.subr.bf16.mxu0 0
    %8248 = vmatpush1.bf16.msra.mxu0 0
    %8249 = vmatprep.subr.bf16.mxu0 0
    %8250 = vmatpush1.bf16.msra.mxu0 0
    %8251 = vmatprep.subr.bf16.mxu0 0
    %8252 = vmatpush1.bf16.msra.mxu0 0
    %8253 = vmatprep.subr.bf16.mxu0 0
    %8254 = vmatpush1.bf16.msra.mxu0 0
    %8255 = vmatprep.subr.bf16.mxu0 0
    %8256 = vmatpush1.bf16.msra.mxu0 0
    %8257 = vmatprep.subr.bf16.mxu0 0
    %8258 = vmatpush1.bf16.msra.mxu0 0
    %8259 = vmatprep.mubr.bf16.mxu0 0
    %8260 = vmatmul.mubr.bf16.gmra.mrb[0].mxu0 %v8225
    %v8261 = vpop.f32.mrb[0].mxu0
    %v8262 = vadd.f32 0.0, %v8261
    %v8263 = vpop.f32.mrb[0].mxu0
    %v8264 = vpop.f32.mrb[0].mxu0
    %v8265 = vpop.f32.mrb[0].mxu0
    %8266 = vdwg.mxu0
    %v8267 = vadd.f32 %v8218, %v8262
    %v8268 = vld [vmem:[#allocation2 + $0x4a0] sm:$0xff]
    %v8269 = vld [vmem:[#allocation2 + $0x4a8] sm:$0xff]
    %v8270 = vld [vmem:[#allocation2 + $0x4b0] sm:$0xff]
    %v8271 = vld [vmem:[#allocation2 + $0x4b8] sm:$0xff]
    %v8273 = vrot.slane %v8219, 1
    %v8275 = vsel %vm6458, %v8273, 0
    %8277 = vmatprep.subr.bf16.mxu0 0
    %8278 = vmatpush1.bf16.msra.mxu0 %v8268
    %8279 = vmatprep.subr.bf16.mxu0 0
    %8280 = vmatpush1.bf16.msra.mxu0 %v8269
    %8281 = vmatprep.subr.bf16.mxu0 0
    %8282 = vmatpush1.bf16.msra.mxu0 %v8270
    %8283 = vmatprep.subr.bf16.mxu0 0
    %8284 = vmatpush1.bf16.msra.mxu0 %v8271
    %8285 = vmatprep.subr.bf16.mxu0 0
    %8286 = vmatpush1.bf16.msra.mxu0 0
    %8287 = vmatprep.subr.bf16.mxu0 0
    %8288 = vmatpush1.bf16.msra.mxu0 0
    %8289 = vmatprep.subr.bf16.mxu0 0
    %8290 = vmatpush1.bf16.msra.mxu0 0
    %8291 = vmatprep.subr.bf16.mxu0 0
    %8292 = vmatpush1.bf16.msra.mxu0 0
    %8293 = vmatprep.subr.bf16.mxu0 0
    %8294 = vmatpush1.bf16.msra.mxu0 0
    %8295 = vmatprep.subr.bf16.mxu0 0
    %8296 = vmatpush1.bf16.msra.mxu0 0
    %8297 = vmatprep.subr.bf16.mxu0 0
    %8298 = vmatpush1.bf16.msra.mxu0 0
    %8299 = vmatprep.subr.bf16.mxu0 0
    %8300 = vmatpush1.bf16.msra.mxu0 0
    %8301 = vmatprep.subr.bf16.mxu0 0
    %8302 = vmatpush1.bf16.msra.mxu0 0
    %8303 = vmatprep.subr.bf16.mxu0 0
    %8304 = vmatpush1.bf16.msra.mxu0 0
    %8305 = vmatprep.subr.bf16.mxu0 0
    %8306 = vmatpush1.bf16.msra.mxu0 0
    %8307 = vmatprep.subr.bf16.mxu0 0
    %8308 = vmatpush1.bf16.msra.mxu0 0
    %8309 = vmatprep.mubr.bf16.mxu0 0
    %8310 = vmatmul.mubr.bf16.gmra.mrb[0].mxu0 %v8275
    %v8311 = vpop.f32.mrb[0].mxu0
    %v8312 = vadd.f32 0.0, %v8311
    %v8313 = vpop.f32.mrb[0].mxu0
    %v8314 = vpop.f32.mrb[0].mxu0
    %v8315 = vpop.f32.mrb[0].mxu0
    %8316 = vdwg.mxu0
    %v8317 = vadd.f32 %v8267, %v8312
    %v8318 = vld [vmem:[#allocation2 + $0x4c0] sm:$0xff]
    %v8319 = vld [vmem:[#allocation2 + $0x4c8] sm:$0xff]
    %v8320 = vld [vmem:[#allocation2 + $0x4d0] sm:$0xff]
    %v8321 = vld [vmem:[#allocation2 + $0x4d8] sm:$0xff]
    %v8322 = vrot.slane %v8219, 2
    %v8324 = vsel %vm6458, %v8322, 0
    %8326 = vmatprep.subr.bf16.mxu0 0
    %8327 = vmatpush1.bf16.msra.mxu0 %v8318
    %8328 = vmatprep.subr.bf16.mxu0 0
    %8329 = vmatpush1.bf16.msra.mxu0 %v8319
    %8330 = vmatprep.subr.bf16.mxu0 0
    %8331 = vmatpush1.bf16.msra.mxu0 %v8320
    %8332 = vmatprep.subr.bf16.mxu0 0
    %8333 = vmatpush1.bf16.msra.mxu0 %v8321
    %8334 = vmatprep.subr.bf16.mxu0 0
    %8335 = vmatpush1.bf16.msra.mxu0 0
    %8336 = vmatprep.subr.bf16.mxu0 0
    %8337 = vmatpush1.bf16.msra.mxu0 0
    %8338 = vmatprep.subr.bf16.mxu0 0
    %8339 = vmatpush1.bf16.msra.mxu0 0
    %8340 = vmatprep.subr.bf16.mxu0 0
    %8341 = vmatpush1.bf16.msra.mxu0 0
    %8342 = vmatprep.subr.bf16.mxu0 0
    %8343 = vmatpush1.bf16.msra.mxu0 0
    %8344 = vmatprep.subr.bf16.mxu0 0
    %8345 = vmatpush1.bf16.msra.mxu0 0
    %8346 = vmatprep.subr.bf16.mxu0 0
    %8347 = vmatpush1.bf16.msra.mxu0 0
    %8348 = vmatprep.subr.bf16.mxu0 0
    %8349 = vmatpush1.bf16.msra.mxu0 0
    %8350 = vmatprep.subr.bf16.mxu0 0
    %8351 = vmatpush1.bf16.msra.mxu0 0
    %8352 = vmatprep.subr.bf16.mxu0 0
    %8353 = vmatpush1.bf16.msra.mxu0 0
    %8354 = vmatprep.subr.bf16.mxu0 0
    %8355 = vmatpush1.bf16.msra.mxu0 0
    %8356 = vmatprep.subr.bf16.mxu0 0
    %8357 = vmatpush1.bf16.msra.mxu0 0
    %8358 = vmatprep.mubr.bf16.mxu0 0
    %8359 = vmatmul.mubr.bf16.gmra.mrb[0].mxu0 %v8324
    %v8360 = vpop.f32.mrb[0].mxu0
    %v8361 = vadd.f32 0.0, %v8360
    %v8362 = vpop.f32.mrb[0].mxu0
    %v8363 = vpop.f32.mrb[0].mxu0
    %v8364 = vpop.f32.mrb[0].mxu0
    %8365 = vdwg.mxu0
    %v8366 = vadd.f32 %v8317, %v8361
    %v8367 = vld [vmem:[#allocation2 + $0x4e0] sm:$0xff]
    %v8368 = vld [vmem:[#allocation2 + $0x4e8] sm:$0xff]
    %v8369 = vld [vmem:[#allocation2 + $0x4f0] sm:$0xff]
    %v8370 = vld [vmem:[#allocation2 + $0x4f8] sm:$0xff]
    %v8371 = vrot.slane %v8219, 3
    %v8373 = vsel %vm6458, %v8371, 0
    %8375 = vmatprep.subr.bf16.mxu0 0
    %8376 = vmatpush1.bf16.msra.mxu0 %v8367
    %8377 = vmatprep.subr.bf16.mxu0 0
    %8378 = vmatpush1.bf16.msra.mxu0 %v8368
    %8379 = vmatprep.subr.bf16.mxu0 0
    %8380 = vmatpush1.bf16.msra.mxu0 %v8369
    %8381 = vmatprep.subr.bf16.mxu0 0
    %8382 = vmatpush1.bf16.msra.mxu0 %v8370
    %8383 = vmatprep.subr.bf16.mxu0 0
    %8384 = vmatpush1.bf16.msra.mxu0 0
    %8385 = vmatprep.subr.bf16.mxu0 0
    %8386 = vmatpush1.bf16.msra.mxu0 0
    %8387 = vmatprep.subr.bf16.mxu0 0
    %8388 = vmatpush1.bf16.msra.mxu0 0
    %8389 = vmatprep.subr.bf16.mxu0 0
    %8390 = vmatpush1.bf16.msra.mxu0 0
    %8391 = vmatprep.subr.bf16.mxu0 0
    %8392 = vmatpush1.bf16.msra.mxu0 0
    %8393 = vmatprep.subr.bf16.mxu0 0
    %8394 = vmatpush1.bf16.msra.mxu0 0
    %8395 = vmatprep.subr.bf16.mxu0 0
    %8396 = vmatpush1.bf16.msra.mxu0 0
    %8397 = vmatprep.subr.bf16.mxu0 0
    %8398 = vmatpush1.bf16.msra.mxu0 0
    %8399 = vmatprep.subr.bf16.mxu0 0
    %8400 = vmatpush1.bf16.msra.mxu0 0
    %8401 = vmatprep.subr.bf16.mxu0 0
    %8402 = vmatpush1.bf16.msra.mxu0 0
    %8403 = vmatprep.subr.bf16.mxu0 0
    %8404 = vmatpush1.bf16.msra.mxu0 0
    %8405 = vmatprep.subr.bf16.mxu0 0
    %8406 = vmatpush1.bf16.msra.mxu0 0
    %8407 = vmatprep.mubr.bf16.mxu0 0
    %8408 = vmatmul.mubr.bf16.gmra.mrb[0].mxu0 %v8373
    %v8409 = vpop.f32.mrb[0].mxu0
    %v8410 = vadd.f32 0.0, %v8409
    %v8411 = vpop.f32.mrb[0].mxu0
    %v8412 = vpop.f32.mrb[0].mxu0
    %v8413 = vpop.f32.mrb[0].mxu0
    %8414 = vdwg.mxu0
    %v8415 = vadd.f32 %v8366, %v8410
    %v8416 = vpack.c.bf16 %v6440, %v6440
    %v8417 = vld [vmem:[#allocation2 + $0x500] sm:$0xff]
    %v8418 = vld [vmem:[#allocation2 + $0x508] sm:$0xff]
    %v8419 = vld [vmem:[#allocation2 + $0x510] sm:$0xff]
    %v8420 = vld [vmem:[#allocation2 + $0x518] sm:$0xff]
    %v8422 = vsel %vm6458, %v8416, 0
    %8424 = vmatprep.subr.bf16.mxu0 0
    %8425 = vmatpush1.bf16.msra.mxu0 %v8417
    %8426 = vmatprep.subr.bf16.mxu0 0
    %8427 = vmatpush1.bf16.msra.mxu0 %v8418
    %8428 = vmatprep.subr.bf16.mxu0 0
    %8429 = vmatpush1.bf16.msra.mxu0 %v8419
    %8430 = vmatprep.subr.bf16.mxu0 0
    %8431 = vmatpush1.bf16.msra.mxu0 %v8420
    %8432 = vmatprep.subr.bf16.mxu0 0
    %8433 = vmatpush1.bf16.msra.mxu0 0
    %8434 = vmatprep.subr.bf16.mxu0 0
    %8435 = vmatpush1.bf16.msra.mxu0 0
    %8436 = vmatprep.subr.bf16.mxu0 0
    %8437 = vmatpush1.bf16.msra.mxu0 0
    %8438 = vmatprep.subr.bf16.mxu0 0
    %8439 = vmatpush1.bf16.msra.mxu0 0
    %8440 = vmatprep.subr.bf16.mxu0 0
    %8441 = vmatpush1.bf16.msra.mxu0 0
    %8442 = vmatprep.subr.bf16.mxu0 0
    %8443 = vmatpush1.bf16.msra.mxu0 0
    %8444 = vmatprep.subr.bf16.mxu0 0
    %8445 = vmatpush1.bf16.msra.mxu0 0
    %8446 = vmatprep.subr.bf16.mxu0 0
    %8447 = vmatpush1.bf16.msra.mxu0 0
    %8448 = vmatprep.subr.bf16.mxu0 0
    %8449 = vmatpush1.bf16.msra.mxu0 0
    %8450 = vmatprep.subr.bf16.mxu0 0
    %8451 = vmatpush1.bf16.msra.mxu0 0
    %8452 = vmatprep.subr.bf16.mxu0 0
    %8453 = vmatpush1.bf16.msra.mxu0 0
    %8454 = vmatprep.subr.bf16.mxu0 0
    %8455 = vmatpush1.bf16.msra.mxu0 0
    %8456 = vmatprep.mubr.bf16.mxu0 0
    %8457 = vmatmul.mubr.bf16.gmra.mrb[0].mxu0 %v8422
    %v8458 = vpop.f32.mrb[0].mxu0
    %v8459 = vadd.f32 0.0, %v8458
    %v8460 = vpop.f32.mrb[0].mxu0
    %v8461 = vpop.f32.mrb[0].mxu0
    %v8462 = vpop.f32.mrb[0].mxu0
    %8463 = vdwg.mxu0
    %v8464 = vadd.f32 %v8415, %v8459
    %v8465 = vld [vmem:[#allocation2 + $0x520] sm:$0xff]
    %v8466 = vld [vmem:[#allocation2 + $0x528] sm:$0xff]
    %v8467 = vld [vmem:[#allocation2 + $0x530] sm:$0xff]
    %v8468 = vld [vmem:[#allocation2 + $0x538] sm:$0xff]
    %v8470 = vrot.slane %v8416, 1
    %v8472 = vsel %vm6458, %v8470, 0
    %8474 = vmatprep.subr.bf16.mxu0 0
    %8475 = vmatpush1.bf16.msra.mxu0 %v8465
    %8476 = vmatprep.subr.bf16.mxu0 0
    %8477 = vmatpush1.bf16.msra.mxu0 %v8466
    %8478 = vmatprep.subr.bf16.mxu0 0
    %8479 = vmatpush1.bf16.msra.mxu0 %v8467
    %8480 = vmatprep.subr.bf16.mxu0 0
    %8481 = vmatpush1.bf16.msra.mxu0 %v8468
    %8482 = vmatprep.subr.bf16.mxu0 0
    %8483 = vmatpush1.bf16.msra.mxu0 0
    %8484 = vmatprep.subr.bf16.mxu0 0
    %8485 = vmatpush1.bf16.msra.mxu0 0
    %8486 = vmatprep.subr.bf16.mxu0 0
    %8487 = vmatpush1.bf16.msra.mxu0 0
    %8488 = vmatprep.subr.bf16.mxu0 0
    %8489 = vmatpush1.bf16.msra.mxu0 0
    %8490 = vmatprep.subr.bf16.mxu0 0
    %8491 = vmatpush1.bf16.msra.mxu0 0
    %8492 = vmatprep.subr.bf16.mxu0 0
    %8493 = vmatpush1.bf16.msra.mxu0 0
    %8494 = vmatprep.subr.bf16.mxu0 0
    %8495 = vmatpush1.bf16.msra.mxu0 0
    %8496 = vmatprep.subr.bf16.mxu0 0
    %8497 = vmatpush1.bf16.msra.mxu0 0
    %8498 = vmatprep.subr.bf16.mxu0 0
    %8499 = vmatpush1.bf16.msra.mxu0 0
    %8500 = vmatprep.subr.bf16.mxu0 0
    %8501 = vmatpush1.bf16.msra.mxu0 0
    %8502 = vmatprep.subr.bf16.mxu0 0
    %8503 = vmatpush1.bf16.msra.mxu0 0
    %8504 = vmatprep.subr.bf16.mxu0 0
    %8505 = vmatpush1.bf16.msra.mxu0 0
    %8506 = vmatprep.mubr.bf16.mxu0 0
    %8507 = vmatmul.mubr.bf16.gmra.mrb[0].mxu0 %v8472
    %v8508 = vpop.f32.mrb[0].mxu0
    %v8509 = vadd.f32 0.0, %v8508
    %v8510 = vpop.f32.mrb[0].mxu0
    %v8511 = vpop.f32.mrb[0].mxu0
    %v8512 = vpop.f32.mrb[0].mxu0
    %8513 = vdwg.mxu0
    %v8514 = vadd.f32 %v8464, %v8509
    %v8515 = vld [vmem:[#allocation2 + $0x540] sm:$0xff]
    %v8516 = vld [vmem:[#allocation2 + $0x548] sm:$0xff]
    %v8517 = vld [vmem:[#allocation2 + $0x550] sm:$0xff]
    %v8518 = vld [vmem:[#allocation2 + $0x558] sm:$0xff]
    %v8519 = vrot.slane %v8416, 2
    %v8521 = vsel %vm6458, %v8519, 0
    %8523 = vmatprep.subr.bf16.mxu0 0
    %8524 = vmatpush1.bf16.msra.mxu0 %v8515
    %8525 = vmatprep.subr.bf16.mxu0 0
    %8526 = vmatpush1.bf16.msra.mxu0 %v8516
    %8527 = vmatprep.subr.bf16.mxu0 0
    %8528 = vmatpush1.bf16.msra.mxu0 %v8517
    %8529 = vmatprep.subr.bf16.mxu0 0
    %8530 = vmatpush1.bf16.msra.mxu0 %v8518
    %8531 = vmatprep.subr.bf16.mxu0 0
    %8532 = vmatpush1.bf16.msra.mxu0 0
    %8533 = vmatprep.subr.bf16.mxu0 0
    %8534 = vmatpush1.bf16.msra.mxu0 0
    %8535 = vmatprep.subr.bf16.mxu0 0
    %8536 = vmatpush1.bf16.msra.mxu0 0
    %8537 = vmatprep.subr.bf16.mxu0 0
    %8538 = vmatpush1.bf16.msra.mxu0 0
    %8539 = vmatprep.subr.bf16.mxu0 0
    %8540 = vmatpush1.bf16.msra.mxu0 0
    %8541 = vmatprep.subr.bf16.mxu0 0
    %8542 = vmatpush1.bf16.msra.mxu0 0
    %8543 = vmatprep.subr.bf16.mxu0 0
    %8544 = vmatpush1.bf16.msra.mxu0 0
    %8545 = vmatprep.subr.bf16.mxu0 0
    %8546 = vmatpush1.bf16.msra.mxu0 0
    %8547 = vmatprep.subr.bf16.mxu0 0
    %8548 = vmatpush1.bf16.msra.mxu0 0
    %8549 = vmatprep.subr.bf16.mxu0 0
    %8550 = vmatpush1.bf16.msra.mxu0 0
    %8551 = vmatprep.subr.bf16.mxu0 0
    %8552 = vmatpush1.bf16.msra.mxu0 0
    %8553 = vmatprep.subr.bf16.mxu0 0
    %8554 = vmatpush1.bf16.msra.mxu0 0
    %8555 = vmatprep.mubr.bf16.mxu0 0
    %8556 = vmatmul.mubr.bf16.gmra.mrb[0].mxu0 %v8521
    %v8557 = vpop.f32.mrb[0].mxu0
    %v8558 = vadd.f32 0.0, %v8557
    %v8559 = vpop.f32.mrb[0].mxu0
    %v8560 = vpop.f32.mrb[0].mxu0
    %v8561 = vpop.f32.mrb[0].mxu0
    %8562 = vdwg.mxu0
    %v8563 = vadd.f32 %v8514, %v8558
    %v8564 = vld [vmem:[#allocation2 + $0x560] sm:$0xff]
    %v8565 = vld [vmem:[#allocation2 + $0x568] sm:$0xff]
    %v8566 = vld [vmem:[#allocation2 + $0x570] sm:$0xff]
    %v8567 = vld [vmem:[#allocation2 + $0x578] sm:$0xff]
    %v8568 = vrot.slane %v8416, 3
    %v8570 = vsel %vm6458, %v8568, 0
    %8572 = vmatprep.subr.bf16.mxu0 0
    %8573 = vmatpush1.bf16.msra.mxu0 %v8564
    %8574 = vmatprep.subr.bf16.mxu0 0
    %8575 = vmatpush1.bf16.msra.mxu0 %v8565
    %8576 = vmatprep.subr.bf16.mxu0 0
    %8577 = vmatpush1.bf16.msra.mxu0 %v8566
    %8578 = vmatprep.subr.bf16.mxu0 0
    %8579 = vmatpush1.bf16.msra.mxu0 %v8567
    %8580 = vmatprep.subr.bf16.mxu0 0
    %8581 = vmatpush1.bf16.msra.mxu0 0
    %8582 = vmatprep.subr.bf16.mxu0 0
    %8583 = vmatpush1.bf16.msra.mxu0 0
    %8584 = vmatprep.subr.bf16.mxu0 0
    %8585 = vmatpush1.bf16.msra.mxu0 0
    %8586 = vmatprep.subr.bf16.mxu0 0
    %8587 = vmatpush1.bf16.msra.mxu0 0
    %8588 = vmatprep.subr.bf16.mxu0 0
    %8589 = vmatpush1.bf16.msra.mxu0 0
    %8590 = vmatprep.subr.bf16.mxu0 0
    %8591 = vmatpush1.bf16.msra.mxu0 0
    %8592 = vmatprep.subr.bf16.mxu0 0
    %8593 = vmatpush1.bf16.msra.mxu0 0
    %8594 = vmatprep.subr.bf16.mxu0 0
    %8595 = vmatpush1.bf16.msra.mxu0 0
    %8596 = vmatprep.subr.bf16.mxu0 0
    %8597 = vmatpush1.bf16.msra.mxu0 0
    %8598 = vmatprep.subr.bf16.mxu0 0
    %8599 = vmatpush1.bf16.msra.mxu0 0
    %8600 = vmatprep.subr.bf16.mxu0 0
    %8601 = vmatpush1.bf16.msra.mxu0 0
    %8602 = vmatprep.subr.bf16.mxu0 0
    %8603 = vmatpush1.bf16.msra.mxu0 0
    %8604 = vmatprep.mubr.bf16.mxu0 0
    %8605 = vmatmul.mubr.bf16.gmra.mrb[0].mxu0 %v8570
    %v8606 = vpop.f32.mrb[0].mxu0
    %v8607 = vadd.f32 0.0, %v8606
    %v8608 = vpop.f32.mrb[0].mxu0
    %v8609 = vpop.f32.mrb[0].mxu0
    %v8610 = vpop.f32.mrb[0].mxu0
    %8611 = vdwg.mxu0
    %v8612 = vadd.f32 %v8563, %v8607
    %v8613 = vpack.c.bf16 %v6441, %v6441
    %v8614 = vld [vmem:[#allocation2 + $0x580] sm:$0xff]
    %v8615 = vld [vmem:[#allocation2 + $0x588] sm:$0xff]
    %v8616 = vld [vmem:[#allocation2 + $0x590] sm:$0xff]
    %v8617 = vld [vmem:[#allocation2 + $0x598] sm:$0xff]
    %v8619 = vsel %vm6458, %v8613, 0
    %8621 = vmatprep.subr.bf16.mxu0 0
    %8622 = vmatpush1.bf16.msra.mxu0 %v8614
    %8623 = vmatprep.subr.bf16.mxu0 0
    %8624 = vmatpush1.bf16.msra.mxu0 %v8615
    %8625 = vmatprep.subr.bf16.mxu0 0
    %8626 = vmatpush1.bf16.msra.mxu0 %v8616
    %8627 = vmatprep.subr.bf16.mxu0 0
    %8628 = vmatpush1.bf16.msra.mxu0 %v8617
    %8629 = vmatprep.subr.bf16.mxu0 0
    %8630 = vmatpush1.bf16.msra.mxu0 0
    %8631 = vmatprep.subr.bf16.mxu0 0
    %8632 = vmatpush1.bf16.msra.mxu0 0
    %8633 = vmatprep.subr.bf16.mxu0 0
    %8634 = vmatpush1.bf16.msra.mxu0 0
    %8635 = vmatprep.subr.bf16.mxu0 0
    %8636 = vmatpush1.bf16.msra.mxu0 0
    %8637 = vmatprep.subr.bf16.mxu0 0
    %8638 = vmatpush1.bf16.msra.mxu0 0
    %8639 = vmatprep.subr.bf16.mxu0 0
    %8640 = vmatpush1.bf16.msra.mxu0 0
    %8641 = vmatprep.subr.bf16.mxu0 0
    %8642 = vmatpush1.bf16.msra.mxu0 0
    %8643 = vmatprep.subr.bf16.mxu0 0
    %8644 = vmatpush1.bf16.msra.mxu0 0
    %8645 = vmatprep.subr.bf16.mxu0 0
    %8646 = vmatpush1.bf16.msra.mxu0 0
    %8647 = vmatprep.subr.bf16.mxu0 0
    %8648 = vmatpush1.bf16.msra.mxu0 0
    %8649 = vmatprep.subr.bf16.mxu0 0
    %8650 = vmatpush1.bf16.msra.mxu0 0
    %8651 = vmatprep.subr.bf16.mxu0 0
    %8652 = vmatpush1.bf16.msra.mxu0 0
    %8653 = vmatprep.mubr.bf16.mxu0 0
    %8654 = vmatmul.mubr.bf16.gmra.mrb[0].mxu0 %v8619
    %v8655 = vpop.f32.mrb[0].mxu0
    %v8656 = vadd.f32 0.0, %v8655
    %v8657 = vpop.f32.mrb[0].mxu0
    %v8658 = vpop.f32.mrb[0].mxu0
    %v8659 = vpop.f32.mrb[0].mxu0
    %8660 = vdwg.mxu0
    %v8661 = vadd.f32 %v8612, %v8656
    %v8662 = vld [vmem:[#allocation2 + $0x5a0] sm:$0xff]
    %v8663 = vld [vmem:[#allocation2 + $0x5a8] sm:$0xff]
    %v8664 = vld [vmem:[#allocation2 + $0x5b0] sm:$0xff]
    %v8665 = vld [vmem:[#allocation2 + $0x5b8] sm:$0xff]
    %v8667 = vrot.slane %v8613, 1
    %v8669 = vsel %vm6458, %v8667, 0
    %8671 = vmatprep.subr.bf16.mxu0 0
    %8672 = vmatpush1.bf16.msra.mxu0 %v8662
    %8673 = vmatprep.subr.bf16.mxu0 0
    %8674 = vmatpush1.bf16.msra.mxu0 %v8663
    %8675 = vmatprep.subr.bf16.mxu0 0
    %8676 = vmatpush1.bf16.msra.mxu0 %v8664
    %8677 = vmatprep.subr.bf16.mxu0 0
    %8678 = vmatpush1.bf16.msra.mxu0 %v8665
    %8679 = vmatprep.subr.bf16.mxu0 0
    %8680 = vmatpush1.bf16.msra.mxu0 0
    %8681 = vmatprep.subr.bf16.mxu0 0
    %8682 = vmatpush1.bf16.msra.mxu0 0
    %8683 = vmatprep.subr.bf16.mxu0 0
    %8684 = vmatpush1.bf16.msra.mxu0 0
    %8685 = vmatprep.subr.bf16.mxu0 0
    %8686 = vmatpush1.bf16.msra.mxu0 0
    %8687 = vmatprep.subr.bf16.mxu0 0
    %8688 = vmatpush1.bf16.msra.mxu0 0
    %8689 = vmatprep.subr.bf16.mxu0 0
    %8690 = vmatpush1.bf16.msra.mxu0 0
    %8691 = vmatprep.subr.bf16.mxu0 0
    %8692 = vmatpush1.bf16.msra.mxu0 0
    %8693 = vmatprep.subr.bf16.mxu0 0
    %8694 = vmatpush1.bf16.msra.mxu0 0
    %8695 = vmatprep.subr.bf16.mxu0 0
    %8696 = vmatpush1.bf16.msra.mxu0 0
    %8697 = vmatprep.subr.bf16.mxu0 0
    %8698 = vmatpush1.bf16.msra.mxu0 0
    %8699 = vmatprep.subr.bf16.mxu0 0
    %8700 = vmatpush1.bf16.msra.mxu0 0
    %8701 = vmatprep.subr.bf16.mxu0 0
    %8702 = vmatpush1.bf16.msra.mxu0 0
    %8703 = vmatprep.mubr.bf16.mxu0 0
    %8704 = vmatmul.mubr.bf16.gmra.mrb[0].mxu0 %v8669
    %v8705 = vpop.f32.mrb[0].mxu0
    %v8706 = vadd.f32 0.0, %v8705
    %v8707 = vpop.f32.mrb[0].mxu0
    %v8708 = vpop.f32.mrb[0].mxu0
    %v8709 = vpop.f32.mrb[0].mxu0
    %8710 = vdwg.mxu0
    %v8711 = vadd.f32 %v8661, %v8706
    %v8712 = vld [vmem:[#allocation2 + $0x5c0] sm:$0xff]
    %v8713 = vld [vmem:[#allocation2 + $0x5c8] sm:$0xff]
    %v8714 = vld [vmem:[#allocation2 + $0x5d0] sm:$0xff]
    %v8715 = vld [vmem:[#allocation2 + $0x5d8] sm:$0xff]
    %v8716 = vrot.slane %v8613, 2
    %v8718 = vsel %vm6458, %v8716, 0
    %8720 = vmatprep.subr.bf16.mxu0 0
    %8721 = vmatpush1.bf16.msra.mxu0 %v8712
    %8722 = vmatprep.subr.bf16.mxu0 0
    %8723 = vmatpush1.bf16.msra.mxu0 %v8713
    %8724 = vmatprep.subr.bf16.mxu0 0
    %8725 = vmatpush1.bf16.msra.mxu0 %v8714
    %8726 = vmatprep.subr.bf16.mxu0 0
    %8727 = vmatpush1.bf16.msra.mxu0 %v8715
    %8728 = vmatprep.subr.bf16.mxu0 0
    %8729 = vmatpush1.bf16.msra.mxu0 0
    %8730 = vmatprep.subr.bf16.mxu0 0
    %8731 = vmatpush1.bf16.msra.mxu0 0
    %8732 = vmatprep.subr.bf16.mxu0 0
    %8733 = vmatpush1.bf16.msra.mxu0 0
    %8734 = vmatprep.subr.bf16.mxu0 0
    %8735 = vmatpush1.bf16.msra.mxu0 0
    %8736 = vmatprep.subr.bf16.mxu0 0
    %8737 = vmatpush1.bf16.msra.mxu0 0
    %8738 = vmatprep.subr.bf16.mxu0 0
    %8739 = vmatpush1.bf16.msra.mxu0 0
    %8740 = vmatprep.subr.bf16.mxu0 0
    %8741 = vmatpush1.bf16.msra.mxu0 0
    %8742 = vmatprep.subr.bf16.mxu0 0
    %8743 = vmatpush1.bf16.msra.mxu0 0
    %8744 = vmatprep.subr.bf16.mxu0 0
    %8745 = vmatpush1.bf16.msra.mxu0 0
    %8746 = vmatprep.subr.bf16.mxu0 0
    %8747 = vmatpush1.bf16.msra.mxu0 0
    %8748 = vmatprep.subr.bf16.mxu0 0
    %8749 = vmatpush1.bf16.msra.mxu0 0
    %8750 = vmatprep.subr.bf16.mxu0 0
    %8751 = vmatpush1.bf16.msra.mxu0 0
    %8752 = vmatprep.mubr.bf16.mxu0 0
    %8753 = vmatmul.mubr.bf16.gmra.mrb[0].mxu0 %v8718
    %v8754 = vpop.f32.mrb[0].mxu0
    %v8755 = vadd.f32 0.0, %v8754
    %v8756 = vpop.f32.mrb[0].mxu0
    %v8757 = vpop.f32.mrb[0].mxu0
    %v8758 = vpop.f32.mrb[0].mxu0
    %8759 = vdwg.mxu0
    %v8760 = vadd.f32 %v8711, %v8755
    %v8761 = vld [vmem:[#allocation2 + $0x5e0] sm:$0xff]
    %v8762 = vld [vmem:[#allocation2 + $0x5e8] sm:$0xff]
    %v8763 = vld [vmem:[#allocation2 + $0x5f0] sm:$0xff]
    %v8764 = vld [vmem:[#allocation2 + $0x5f8] sm:$0xff]
    %v8765 = vrot.slane %v8613, 3
    %v8767 = vsel %vm6458, %v8765, 0
    %8769 = vmatprep.subr.bf16.mxu0 0
    %8770 = vmatpush1.bf16.msra.mxu0 %v8761
    %8771 = vmatprep.subr.bf16.mxu0 0
    %8772 = vmatpush1.bf16.msra.mxu0 %v8762
    %8773 = vmatprep.subr.bf16.mxu0 0
    %8774 = vmatpush1.bf16.msra.mxu0 %v8763
    %8775 = vmatprep.subr.bf16.mxu0 0
    %8776 = vmatpush1.bf16.msra.mxu0 %v8764
    %8777 = vmatprep.subr.bf16.mxu0 0
    %8778 = vmatpush1.bf16.msra.mxu0 0
    %8779 = vmatprep.subr.bf16.mxu0 0
    %8780 = vmatpush1.bf16.msra.mxu0 0
    %8781 = vmatprep.subr.bf16.mxu0 0
    %8782 = vmatpush1.bf16.msra.mxu0 0
    %8783 = vmatprep.subr.bf16.mxu0 0
    %8784 = vmatpush1.bf16.msra.mxu0 0
    %8785 = vmatprep.subr.bf16.mxu0 0
    %8786 = vmatpush1.bf16.msra.mxu0 0
    %8787 = vmatprep.subr.bf16.mxu0 0
    %8788 = vmatpush1.bf16.msra.mxu0 0
    %8789 = vmatprep.subr.bf16.mxu0 0
    %8790 = vmatpush1.bf16.msra.mxu0 0
    %8791 = vmatprep.subr.bf16.mxu0 0
    %8792 = vmatpush1.bf16.msra.mxu0 0
    %8793 = vmatprep.subr.bf16.mxu0 0
    %8794 = vmatpush1.bf16.msra.mxu0 0
    %8795 = vmatprep.subr.bf16.mxu0 0
    %8796 = vmatpush1.bf16.msra.mxu0 0
    %8797 = vmatprep.subr.bf16.mxu0 0
    %8798 = vmatpush1.bf16.msra.mxu0 0
    %8799 = vmatprep.subr.bf16.mxu0 0
    %8800 = vmatpush1.bf16.msra.mxu0 0
    %8801 = vmatprep.mubr.bf16.mxu0 0
    %8802 = vmatmul.mubr.bf16.gmra.mrb[0].mxu0 %v8767
    %v8803 = vpop.f32.mrb[0].mxu0
    %v8804 = vadd.f32 0.0, %v8803
    %v8805 = vpop.f32.mrb[0].mxu0
    %v8806 = vpop.f32.mrb[0].mxu0
    %v8807 = vpop.f32.mrb[0].mxu0
    %8808 = vdwg.mxu0
    %v8809 = vadd.f32 %v8760, %v8804
    %v8810 = vpack.c.bf16 %v6442, %v6442
    %v8811 = vld [vmem:[#allocation2 + $0x600] sm:$0xff]
    %v8812 = vld [vmem:[#allocation2 + $0x608] sm:$0xff]
    %v8813 = vld [vmem:[#allocation2 + $0x610] sm:$0xff]
    %v8814 = vld [vmem:[#allocation2 + $0x618] sm:$0xff]
    %v8816 = vsel %vm6458, %v8810, 0
    %8818 = vmatprep.subr.bf16.mxu0 0
    %8819 = vmatpush1.bf16.msra.mxu0 %v8811
    %8820 = vmatprep.subr.bf16.mxu0 0
    %8821 = vmatpush1.bf16.msra.mxu0 %v8812
    %8822 = vmatprep.subr.bf16.mxu0 0
    %8823 = vmatpush1.bf16.msra.mxu0 %v8813
    %8824 = vmatprep.subr.bf16.mxu0 0
    %8825 = vmatpush1.bf16.msra.mxu0 %v8814
    %8826 = vmatprep.subr.bf16.mxu0 0
    %8827 = vmatpush1.bf16.msra.mxu0 0
    %8828 = vmatprep.subr.bf16.mxu0 0
    %8829 = vmatpush1.bf16.msra.mxu0 0
    %8830 = vmatprep.subr.bf16.mxu0 0
    %8831 = vmatpush1.bf16.msra.mxu0 0
    %8832 = vmatprep.subr.bf16.mxu0 0
    %8833 = vmatpush1.bf16.msra.mxu0 0
    %8834 = vmatprep.subr.bf16.mxu0 0
    %8835 = vmatpush1.bf16.msra.mxu0 0
    %8836 = vmatprep.subr.bf16.mxu0 0
    %8837 = vmatpush1.bf16.msra.mxu0 0
    %8838 = vmatprep.subr.bf16.mxu0 0
    %8839 = vmatpush1.bf16.msra.mxu0 0
    %8840 = vmatprep.subr.bf16.mxu0 0
    %8841 = vmatpush1.bf16.msra.mxu0 0
    %8842 = vmatprep.subr.bf16.mxu0 0
    %8843 = vmatpush1.bf16.msra.mxu0 0
    %8844 = vmatprep.subr.bf16.mxu0 0
    %8845 = vmatpush1.bf16.msra.mxu0 0
    %8846 = vmatprep.subr.bf16.mxu0 0
    %8847 = vmatpush1.bf16.msra.mxu0 0
    %8848 = vmatprep.subr.bf16.mxu0 0
    %8849 = vmatpush1.bf16.msra.mxu0 0
    %8850 = vmatprep.mubr.bf16.mxu0 0
    %8851 = vmatmul.mubr.bf16.gmra.mrb[0].mxu0 %v8816
    %v8852 = vpop.f32.mrb[0].mxu0
    %v8853 = vadd.f32 0.0, %v8852
    %v8854 = vpop.f32.mrb[0].mxu0
    %v8855 = vpop.f32.mrb[0].mxu0
    %v8856 = vpop.f32.mrb[0].mxu0
    %8857 = vdwg.mxu0
    %v8858 = vadd.f32 %v8809, %v8853
    %v8859 = vld [vmem:[%s4] sm:$0x1]
    %v8861 = vlaneseq
    %v8862 = vshrl.u32 %v8861, 7
    %v8863 = vsub.s32 0, %v8862
    %v8864 = vrot.slane %v8859, %v8863
    %v8866 = vadd.f32 %v8858, %v8864
    %v8867 = vmax.f32 %v8866, 0.0
    %v8868 = vpack.c.bf16 %v8867, %v8867
    %v8869 = vld [vmem:[%s5] sm:$0xf]
    %v8870 = vld [vmem:[%s5 + $0x4] sm:$0xf]
    %v8871 = vld [vmem:[%s5 + $0x8] sm:$0xf]
    %v8872 = vld [vmem:[%s5 + $0xc] sm:$0xf]
    %v8873 = vld [vmem:[%s5 + $0x10] sm:$0xf]
    %v8874 = vld [vmem:[%s5 + $0x14] sm:$0xf]
    %v8875 = vld [vmem:[%s5 + $0x18] sm:$0xf]
    %v8876 = vld [vmem:[%s5 + $0x1c] sm:$0xf]
    %v8877 = vld [vmem:[%s5 + $0x20] sm:$0xf]
    %v8878 = vld [vmem:[%s5 + $0x24] sm:$0xf]
    %v8879 = vld [vmem:[%s5 + $0x28] sm:$0xf]
    %v8880 = vld [vmem:[%s5 + $0x2c] sm:$0xf]
    %v8881 = vld [vmem:[%s5 + $0x30] sm:$0xf]
    %v8882 = vld [vmem:[%s5 + $0x34] sm:$0xf]
    %v8883 = vld [vmem:[%s5 + $0x38] sm:$0xf]
    %v8884 = vld [vmem:[%s5 + $0x3c] sm:$0xf]
    %v8885 = vld [vmem:[%s6] sm:$0x1]
    %v8887 = vlaneseq
    %v8888 = vshrl.u32 %v8887, 7
    %v8889 = vsub.s32 0, %v8888
    %v8890 = vrot.slane %v8885, %v8889
    %v8908 = vunpack.c.l.b16 %v8869
    %v8909 = vunpack.c.l.b16 %v8870
    %v8910 = vunpack.c.l.b16 %v8871
    %v8911 = vunpack.c.l.b16 %v8872
    %v8912 = vunpack.c.l.b16 %v8873
    %v8913 = vunpack.c.l.b16 %v8874
    %v8914 = vunpack.c.l.b16 %v8875
    %v8915 = vunpack.c.l.b16 %v8876
    %v8916 = vunpack.c.l.b16 %v8877
    %v8917 = vunpack.c.l.b16 %v8878
    %v8918 = vunpack.c.l.b16 %v8879
    %v8919 = vunpack.c.l.b16 %v8880
    %v8920 = vunpack.c.l.b16 %v8881
    %v8921 = vunpack.c.l.b16 %v8882
    %v8922 = vunpack.c.l.b16 %v8883
    %v8923 = vunpack.c.l.b16 %v8884
    %v8924 = vpack.c.b16 %v8909, %v8908
    %v8925 = vpack.c.b16 %v8911, %v8910
    %v8926 = vpack.c.b16 %v8913, %v8912
    %v8927 = vpack.c.b16 %v8915, %v8914
    %v8928 = vpack.c.b16 %v8917, %v8916
    %v8929 = vpack.c.b16 %v8919, %v8918
    %v8930 = vpack.c.b16 %v8921, %v8920
    %v8931 = vpack.c.b16 %v8923, %v8922
    %8940 = vmatprep.subr.bf16.mxu0 0
    %8941 = vmatpush1.bf16.msra.mxu0 %v8924
    %8942 = vmatprep.subr.bf16.mxu0 0
    %8943 = vmatpush1.bf16.msra.mxu0 %v8925
    %8944 = vmatprep.subr.bf16.mxu0 0
    %8945 = vmatpush1.bf16.msra.mxu0 %v8926
    %8946 = vmatprep.subr.bf16.mxu0 0
    %8947 = vmatpush1.bf16.msra.mxu0 %v8927
    %8948 = vmatprep.subr.bf16.mxu0 0
    %8949 = vmatpush1.bf16.msra.mxu0 %v8928
    %8950 = vmatprep.subr.bf16.mxu0 0
    %8951 = vmatpush1.bf16.msra.mxu0 %v8929
    %8952 = vmatprep.subr.bf16.mxu0 0
    %8953 = vmatpush1.bf16.msra.mxu0 %v8930
    %8954 = vmatprep.subr.bf16.mxu0 0
    %8955 = vmatpush1.bf16.msra.mxu0 %v8931
    %8956 = vmatprep.subr.bf16.mxu0 0
    %8957 = vmatpush1.bf16.msra.mxu0 0
    %8958 = vmatprep.subr.bf16.mxu0 0
    %8959 = vmatpush1.bf16.msra.mxu0 0
    %8960 = vmatprep.subr.bf16.mxu0 0
    %8961 = vmatpush1.bf16.msra.mxu0 0
    %8962 = vmatprep.subr.bf16.mxu0 0
    %8963 = vmatpush1.bf16.msra.mxu0 0
    %8964 = vmatprep.subr.bf16.mxu0 0
    %8965 = vmatpush1.bf16.msra.mxu0 0
    %8966 = vmatprep.subr.bf16.mxu0 0
    %8967 = vmatpush1.bf16.msra.mxu0 0
    %8968 = vmatprep.subr.bf16.mxu0 0
    %8969 = vmatpush1.bf16.msra.mxu0 0
    %8970 = vmatprep.subr.bf16.mxu0 0
    %8971 = vmatpush1.bf16.msra.mxu0 0
    %8972 = vmatprep.mubr.bf16.mxu0 0
    %8973 = vmatmul.mubr.bf16.gmra.mrb[0].mxu0 %v8868
    %v8974 = vpop.f32.mrb[0].mxu0
    %v8975 = vadd.f32 %v8890, %v8974
    %v8976 = vpop.f32.mrb[0].mxu0
    %v8977 = vpop.f32.mrb[0].mxu0
    %v8978 = vpop.f32.mrb[0].mxu0
    %8979 = vdwg.mxu0
    %8980 = vst [vmem:[#allocation4] sm:$0x3] %v8975
    // Predicated region
    $region60: #{forward.3} parent=1 // pred_check
      _
    $region61: #{forward.3} parent=1 // pred_check_branch
      %8982 = sbr.rel (0) target = $region63
    $region62: #{forward.3} parent=1 // pred_region
      %s8984 = ssub.s32 32, 32
      %8985 = vsyncadd [#allocation5], %s8984
      %s8987 = sshll.u32 [#allocation4], 4
      %s8988 = int_to_ptr.vmem [resolvable:$true] %s8987
      %8990 = dma.vmem_to_hbm [thread:$0]  %s8988, 32, %s7, [#allocation5]
    $region63: #{forward.3} parent=1 // pred_fallthru
      _
    // Predicated region
    $region64: #{forward.3} parent=1 // pred_check
      _
    $region65: #{forward.3} parent=1 // pred_check_branch
      %8992 = sbr.rel (0) target = $region67
    $region66: #{forward.3} parent=1 // pred_region
      %8993 = dma.done [#allocation5], 32
    $region67: #{forward.3} parent=1 // pred_fallthru
      _
    %8994 = vsyncpa [#allocation5], 1
  %8995 = vsyncmov [#allocation3]
  %s8996 = vpop.sfrf %8995
  %p8997 = scmp.eq.s32.totalorder %s8996, 0
  %p8998 = pneg %p8997
  %9000 = shalt.err (%p8998)

</llo_original>
